<compile_context>
chip_gen: v7x
topology: tpu7x:2x2x1
jax: 0.10.0
libtpu: 0.0.40
codegen_flags: <defaults>
</compile_context>

<pallas_src>
import functools

import jax
import jax.numpy as jnp
import numpy as np
from jax.experimental import pallas as pl
from jax.experimental.pallas import tpu as pltpu

LN_EPS = 1e-5          # nn.TransformerEncoderLayer default layer_norm_eps
_FFN_CHUNK = 1024      # lanes of the 4*D hidden dim processed per FFN chunk


# ----------------------------------------------------------------------------
# Pallas kernel: one post-norm TransformerEncoderLayer applied to a (TT, B, D)
# tile (TT "t" slots of the (T, B, D) tensor). Attention is over the B axis,
# independently per t; all projections run on the flattened (TT*B, D) slab.
# ----------------------------------------------------------------------------
def _encoder_layer_kernel(x_ref,
                          wqkv_ref, bqkv_ref, wo_ref, bo_ref,
                          ln1w_ref, ln1b_ref,
                          w1_ref, b1_ref, w2_ref, b2_ref,
                          ln2w_ref, ln2b_ref,
                          o_ref,
                          *, num_heads, ffn_chunk):
    TT, B, D = x_ref.shape
    H = num_heads
    hd = D // H
    scale = 1.0 / (hd ** 0.5)

    x = x_ref[...]                                    # (TT, B, D) bf16 activations
    xb = x.reshape(TT * B, D).astype(jnp.bfloat16)    # row = t*B + b
    x2 = xb.astype(jnp.float32)                       # f32 residual copy

    # ---- fused QKV projection: one fat (TT*B, D) x (D, 3D) bf16 matmul ----
    qkv = jnp.dot(xb, wqkv_ref[...], preferred_element_type=jnp.float32)
    qkv = qkv + bqkv_ref[0]

    # Fold the 1/sqrt(hd) scale into q (cheaper than scaling the score matrix).
    q = (qkv[:, 0 * D:1 * D] * scale).reshape(TT, B, D).astype(jnp.bfloat16)
    k = qkv[:, 1 * D:2 * D].reshape(TT, B, D).astype(jnp.bfloat16)
    v = qkv[:, 2 * D:3 * D].reshape(TT, B, D).astype(jnp.bfloat16)

    # ---- multi-head self-attention over the B axis, batched over TT slots.
    # Per-head contexts are concatenated along lanes so the out-projection is
    # a single (TT*B, D) x (D, D) matmul with full K=D MXU depth (instead of
    # H small K=hd dots accumulated on the VPU).
    ctx_heads = []
    for h_i in range(H):                               # static head loop
        sl = slice(h_i * hd, (h_i + 1) * hd)
        qh, kh, vh = q[:, :, sl], k[:, :, sl], v[:, :, sl]       # (TT, B, hd)
        s = jnp.einsum("tbe,tce->tbc", qh, kh,
                       preferred_element_type=jnp.float32)        # (TT, B, B)
        s = s - jnp.max(s, axis=-1, keepdims=True)
        p = jnp.exp(s)
        p = p * pl.reciprocal(jnp.sum(p, axis=-1, keepdims=True), approx=True)
        oh = jnp.einsum("tbc,tce->tbe", p.astype(jnp.bfloat16), vh,
                        preferred_element_type=jnp.float32)       # (TT, B, hd)
        ctx_heads.append(oh.astype(jnp.bfloat16))
    ctx = jnp.concatenate(ctx_heads, axis=-1).reshape(TT * B, D)   # (rows, D) bf16
    attn = jnp.dot(ctx, wo_ref[...], preferred_element_type=jnp.float32)
    attn = attn + bo_ref[0]

    # Dropout layers are treated as identity (eval-mode semantics).

    # ---- residual + LayerNorm 1 (post-norm), f32 statistics ----
    h1 = x2 + attn
    mu = jnp.mean(h1, axis=-1, keepdims=True)
    var = jnp.mean((h1 - mu) ** 2, axis=-1, keepdims=True)
    h1 = (h1 - mu) * jax.lax.rsqrt(var + LN_EPS) * ln1w_ref[0] + ln1b_ref[0]

    # ---- feed-forward Linear(D,4D) -> ReLU -> Linear(4D,D), chunked over the
    # 4D hidden dim so the live f32 intermediate is (rows, ffn_chunk) ----
    h1b = h1.astype(jnp.bfloat16)
    d_ff = w1_ref.shape[1]
    f = jnp.zeros((TT * B, D), jnp.float32)
    for c0 in range(0, d_ff, ffn_chunk):
        c1 = min(c0 + ffn_chunk, d_ff)
        fc = jnp.dot(h1b, w1_ref[:, c0:c1],
                     preferred_element_type=jnp.float32) + b1_ref[0, c0:c1]
        fc = jnp.maximum(fc, 0.0)
        f = f + jnp.dot(fc.astype(jnp.bfloat16), w2_ref[c0:c1, :],
                        preferred_element_type=jnp.float32)
    f = f + b2_ref[0]

    # ---- residual + LayerNorm 2 ----
    h2 = h1 + f
    mu2 = jnp.mean(h2, axis=-1, keepdims=True)
    var2 = jnp.mean((h2 - mu2) ** 2, axis=-1, keepdims=True)
    out = (h2 - mu2) * jax.lax.rsqrt(var2 + LN_EPS) * ln2w_ref[0] + ln2b_ref[0]

    o_ref[...] = out.reshape(TT, B, D).astype(o_ref.dtype)


# ----------------------------------------------------------------------------
# VMEM budgeting / tile planning
# ----------------------------------------------------------------------------
def _vmem_budget_bytes():
    """~85% of physical VMEM (so >64 MiB on v5e/v6e, headroom on v7x)."""
    cap = 64 << 20                                   # conservative (v7x-sized) fallback
    try:
        info = pltpu.get_tpu_info()
        cap = int(getattr(info, "vmem_capacity_bytes", cap) or cap)
    except Exception:
        pass
    return max(32 << 20, int(0.85 * cap))


def _plan_tt(T, B, D, d_ff, w_bytes, vmem_budget):
    """Pick how many t-slots per grid step so the working set fits the budget:
    double-buffered bf16 activation blocks + single-buffered weights +
    in-kernel f32/bf16 temporaries (qkv, FFN chunk, residual-path temps)."""
    ffn_chunk = min(d_ff, _FFN_CHUNK)
    io_per_row = 2 * (2 * D * 2)                      # in+out blocks, 2 buffers, bf16
    f32_tmp_per_row = (3 * D                          # qkv
                       + 4 * D                        # x2 / attn / h1 / h2
                       + ffn_chunk + D                # live FFN chunk + accumulator
                       + 2 * B) * 4                   # softmax scores (one head live)
    bf16_tmp_per_row = (3 * D + D) * 2                # q, k, v + ctx
    per_row = io_per_row + f32_tmp_per_row + bf16_tmp_per_row
    avail = vmem_budget - w_bytes - (6 << 20)         # weights + fixed slack
    rows = max(B, avail // per_row)
    rows = min(rows, 4096)                            # diminishing returns past this
    return int(max(1, min(T, rows // B)))


# ----------------------------------------------------------------------------
# One encoder layer = one pallas_call over the T axis
# ----------------------------------------------------------------------------
def _encoder_layer(h, lp, num_heads, *, tt=None):
    """Apply one encoder layer to h of shape (T, B, D)."""
    T, B, D = h.shape
    d_ff = lp["w1_t"].shape[1]

    weight_args = (lp["wqkv_t"], lp["bqkv"], lp["wo_t"], lp["bo"],
                   lp["ln1w"], lp["ln1b"],
                   lp["w1_t"], lp["b1"], lp["w2_t"], lp["b2"],
                   lp["ln2w"], lp["ln2b"])
    w_bytes = sum(int(np.prod(w.shape)) * w.dtype.itemsize for w in weight_args)

    vmem_budget = _vmem_budget_bytes()
    if tt is None:
        tt = _plan_tt(T, B, D, d_ff, w_bytes, vmem_budget)
    ffn_chunk = min(d_ff, _FFN_CHUNK)

    act_spec = pl.BlockSpec((tt, B, D), lambda i: (i, 0, 0))
    # Weights/biases: full-array blocks with a constant index_map -> single
    # buffer is enough (no re-fetch), halving resident weight VMEM.
    w_specs = [pl.BlockSpec(w.shape, lambda i: (0, 0),
                            pipeline_mode=pl.Buffered(1))
               for w in weight_args]

    return pl.pallas_call(
        functools.partial(_encoder_layer_kernel, num_heads=num_heads,
                          ffn_chunk=ffn_chunk),
        out_shape=jax.ShapeDtypeStruct((T, B, D), h.dtype),
        grid_spec=pltpu.PrefetchScalarGridSpec(
            num_scalar_prefetch=0,
            grid=(pl.cdiv(T, tt),),
            in_specs=[act_spec] + w_specs,
            out_specs=pl.BlockSpec((tt, B, D), lambda i: (i, 0, 0)),
        ),
        compiler_params=pltpu.CompilerParams(
            dimension_semantics=("parallel",),
            vmem_limit_bytes=vmem_budget),
    )(h, *weight_args)


# ----------------------------------------------------------------------------
# ViTPredictor forward (glue in plain JAX around the Pallas layer kernel)
# ----------------------------------------------------------------------------
def vit_predictor_forward(params, x, pos, num_heads, *, tt=None):
    B, S, D = x.shape
    P = pos.shape[1]
    pos_embed = jnp.broadcast_to(params["pos_embed"], (B, P, D))
    # Inter-layer activations kept in bf16 (halves HBM traffic / VMEM blocks).
    xc = jnp.concatenate([x.astype(jnp.bfloat16),
                          pos_embed.astype(jnp.bfloat16)], axis=1)   # (B, T, D)
    # Attention runs over the batch axis (batch_first=False semantics): the
    # encoder works in (T, B, D).
    # TODO(synk): fold this transpose pair + the concat into the first/last
    # layer kernels (in-VMEM tile transpose) to save two HBM passes.
    h = jnp.transpose(xc, (1, 0, 2))                                  # (T, B, D)
    for lp in params["layers"]:
        h = _encoder_layer(h, lp, num_heads, tt=tt)
    y = jnp.transpose(h, (1, 0, 2))                                   # (B, T, D)
    return y[:, -P:, :].astype(x.dtype)


# ----------------------------------------------------------------------------
# Deterministic parameter init (shapes from the module's __init__)
# ----------------------------------------------------------------------------
def init_params(key, embed_dim, num_heads, num_layers, w_dtype=jnp.bfloat16):
    D = embed_dim
    assert D % num_heads == 0
    params = {"pos_embed": jnp.zeros((1, 1, D), jnp.float32), "layers": []}
    for l in range(num_layers):
        keys = jax.random.split(jax.random.fold_in(key, l), 8)
        rnd = lambda k, shape, s: jax.random.normal(k, shape, jnp.float32) * s
        wqkv = rnd(keys[0], (3 * D, D), 0.05)          # in_proj_weight
        bqkv = rnd(keys[1], (3 * D,), 0.02)            # in_proj_bias
        wo = rnd(keys[2], (D, D), 0.05)                # out_proj.weight
        bo = rnd(keys[3], (D,), 0.02)
        w1 = rnd(keys[4], (4 * D, D), 0.05)            # linear1.weight
        b1 = rnd(keys[5], (4 * D,), 0.02)
        w2 = rnd(keys[6], (D, 4 * D), 0.05)            # linear2.weight
        b2 = rnd(keys[7], (D,), 0.02)
        params["layers"].append(dict(
            # pre-transposed so the kernel does x @ W (PyTorch Linear is x @ W.T)
            # matmul weights stored bf16; biases / LayerNorm params stay f32.
            wqkv_t=wqkv.T.astype(w_dtype), bqkv=bqkv.reshape(1, -1),
            wo_t=wo.T.astype(w_dtype), bo=bo.reshape(1, -1),
            ln1w=jnp.ones((1, D), jnp.float32), ln1b=jnp.zeros((1, D), jnp.float32),
            w1_t=w1.T.astype(w_dtype), b1=b1.reshape(1, -1),
            w2_t=w2.T.astype(w_dtype), b2=b2.reshape(1, -1),
            ln2w=jnp.ones((1, D), jnp.float32), ln2b=jnp.zeros((1, D), jnp.float32),
        ))
    return params


# ----------------------------------------------------------------------------
# Pure-JAX reference (mirrors the kernel's bf16 cast points) for verification
# ----------------------------------------------------------------------------
def _ln_ref(h, w, b):
    mu = jnp.mean(h, axis=-1, keepdims=True)
    var = jnp.mean((h - mu) ** 2, axis=-1, keepdims=True)
    return (h - mu) * jax.lax.rsqrt(var + LN_EPS) * w + b


def vit_predictor_ref(params, x, pos, num_heads):
    B, S, D = x.shape
    P = pos.shape[1]
    H = num_heads
    hd = D // H
    scale = 1.0 / (hd ** 0.5)
    bf = jnp.bfloat16
    pos_embed = jnp.broadcast_to(params["pos_embed"], (B, P, D))
    h = jnp.transpose(jnp.concatenate([x.astype(bf), pos_embed.astype(bf)], axis=1),
                      (1, 0, 2))                                   # (T, B, D) bf16
    T = h.shape[0]
    for lp in params["layers"]:
        xb = h.reshape(T * B, D)                                   # bf16
        x2 = xb.astype(jnp.float32)
        qkv = jnp.dot(xb, lp["wqkv_t"],
                      preferred_element_type=jnp.float32) + lp["bqkv"][0]
        q = (qkv[:, :D] * scale).reshape(T, B, H, hd).astype(bf)
        k = qkv[:, D:2 * D].reshape(T, B, H, hd).astype(bf)
        v = qkv[:, 2 * D:].reshape(T, B, H, hd).astype(bf)
        s = jnp.einsum("tbhe,tche->thbc", q, k, preferred_element_type=jnp.float32)
        p = jax.nn.softmax(s, axis=-1)
        a = jnp.einsum("thbc,tche->tbhe", p.astype(bf), v,
                       preferred_element_type=jnp.float32).reshape(T * B, D)
        a = jnp.dot(a.astype(bf), lp["wo_t"],
                    preferred_element_type=jnp.float32) + lp["bo"][0]
        h1 = _ln_ref(x2 + a, lp["ln1w"][0], lp["ln1b"][0])
        f = jnp.dot(h1.astype(bf), lp["w1_t"],
                    preferred_element_type=jnp.float32) + lp["b1"][0]
        f = jnp.maximum(f, 0.0)
        f = jnp.dot(f.astype(bf), lp["w2_t"],
                    preferred_element_type=jnp.float32) + lp["b2"][0]
        h = _ln_ref(h1 + f, lp["ln2w"][0], lp["ln2b"][0]).reshape(T, B, D).astype(bf)
    y = jnp.transpose(h, (1, 0, 2))
    return y[:, -P:, :].astype(x.dtype)


if __name__ == "__main__":
    embed_dim, num_heads, num_layers = 32, 4, 2
    B, S, P = 2, 8, 4

    key = jax.random.PRNGKey(0)
    kx, kp, kw = jax.random.split(key, 3)
    x = jax.random.normal(kx, (B, S, embed_dim), jnp.float32)
    pos = jax.random.normal(kp, (B, P, 2), jnp.float32)   # only pos.shape[1] is used
    params = init_params(kw, embed_dim, num_heads, num_layers)

    fwd = jax.jit(functools.partial(vit_predictor_forward, num_heads=num_heads))
    out = jax.block_until_ready(fwd(params, x, pos))

    ref = vit_predictor_ref(params, x, pos, num_heads)
    assert out.shape == (B, P, embed_dim), out.shape
    np.testing.assert_allclose(np.asarray(out), np.asarray(ref),
                               rtol=2e-2, atol=2e-2)
    print("KERNEL_OK")
</pallas_src>

<mosaic_0001>
module attributes {stable_mosaic.version = 11 : i64} {
  func.func @_encoder_layer_kernel(%arg0: i32, %arg1: memref<12x2x32xbf16, #tpu.memory_space<vmem>>, %arg2: memref<32x96xbf16, #tpu.memory_space<vmem>>, %arg3: memref<1x96xf32, #tpu.memory_space<vmem>>, %arg4: memref<32x32xbf16, #tpu.memory_space<vmem>>, %arg5: memref<1x32xf32, #tpu.memory_space<vmem>>, %arg6: memref<1x32xf32, #tpu.memory_space<vmem>>, %arg7: memref<1x32xf32, #tpu.memory_space<vmem>>, %arg8: memref<32x128xbf16, #tpu.memory_space<vmem>>, %arg9: memref<1x128xf32, #tpu.memory_space<vmem>>, %arg10: memref<128x32xbf16, #tpu.memory_space<vmem>>, %arg11: memref<1x32xf32, #tpu.memory_space<vmem>>, %arg12: memref<1x32xf32, #tpu.memory_space<vmem>>, %arg13: memref<1x32xf32, #tpu.memory_space<vmem>>, %arg14: memref<12x2x32xbf16, #tpu.memory_space<vmem>>) attributes {dimension_semantics = [#tpu.dimension_semantics<parallel>], iteration_bounds = array<i64: 1>, scalar_prefetch = 0 : i64, scratch_operands = 0 : i64, tpu.core_type = #tpu.core_type<tc>, window_params = [{transform_indices = @transform_0, window_bounds = array<i64: 12, 2, 32>}, {pipeline_mode = #tpu.pipeline_mode<synchronous>, transform_indices = @transform_1, window_bounds = array<i64: 32, 96>}, {pipeline_mode = #tpu.pipeline_mode<synchronous>, transform_indices = @transform_2, window_bounds = array<i64: 1, 96>}, {pipeline_mode = #tpu.pipeline_mode<synchronous>, transform_indices = @transform_3, window_bounds = array<i64: 32, 32>}, {pipeline_mode = #tpu.pipeline_mode<synchronous>, transform_indices = @transform_4, window_bounds = array<i64: 1, 32>}, {pipeline_mode = #tpu.pipeline_mode<synchronous>, transform_indices = @transform_5, window_bounds = array<i64: 1, 32>}, {pipeline_mode = #tpu.pipeline_mode<synchronous>, transform_indices = @transform_6, window_bounds = array<i64: 1, 32>}, {pipeline_mode = #tpu.pipeline_mode<synchronous>, transform_indices = @transform_7, window_bounds = array<i64: 32, 128>}, {pipeline_mode = #tpu.pipeline_mode<synchronous>, transform_indices = @transform_8, window_bounds = array<i64: 1, 128>}, {pipeline_mode = #tpu.pipeline_mode<synchronous>, transform_indices = @transform_9, window_bounds = array<i64: 128, 32>}, {pipeline_mode = #tpu.pipeline_mode<synchronous>, transform_indices = @transform_10, window_bounds = array<i64: 1, 32>}, {pipeline_mode = #tpu.pipeline_mode<synchronous>, transform_indices = @transform_11, window_bounds = array<i64: 1, 32>}, {pipeline_mode = #tpu.pipeline_mode<synchronous>, transform_indices = @transform_12, window_bounds = array<i64: 1, 32>}, {transform_indices = @transform_13, window_bounds = array<i64: 12, 2, 32>}]} {
    %c0 = arith.constant 0 : index
    %c0_0 = arith.constant 0 : index
    %c0_1 = arith.constant 0 : index
    %0 = vector.load %arg1[%c0, %c0_0, %c0_1] : memref<12x2x32xbf16, #tpu.memory_space<vmem>>, vector<12x2x32xbf16>
    %1 = vector.shape_cast %0 : vector<12x2x32xbf16> to vector<24x32xbf16>
    %2 = arith.extf %1 : vector<24x32xbf16> to vector<24x32xf32>
    %c0_2 = arith.constant 0 : index
    %c0_3 = arith.constant 0 : index
    %3 = vector.load %arg2[%c0_2, %c0_3] : memref<32x96xbf16, #tpu.memory_space<vmem>>, vector<32x96xbf16>
    %cst = arith.constant dense<0.000000e+00> : vector<24x96xf32>
    %4 = tpu.matmul %1, %3, %cst {dimension_numbers = #tpu.dot_dimension_numbers<[1], [0], [0], [1], [0, 0, 1, 1], [], []>} : vector<24x32xbf16>, vector<32x96xbf16>, vector<24x96xf32> -> vector<24x96xf32>
    %c0_4 = arith.constant 0 : index
    %c0_5 = arith.constant 0 : index
    %5 = vector.load %arg3[%c0_4, %c0_5] : memref<1x96xf32, #tpu.memory_space<vmem>>, vector<1x96xf32>
    %6 = vector.shape_cast %5 : vector<1x96xf32> to vector<96xf32>
    %7 = vector.shape_cast %6 : vector<96xf32> to vector<1x96xf32>
    %8 = vector.broadcast %7 : vector<1x96xf32> to vector<24x96xf32>
    %9 = arith.addf %4, %8 : vector<24x96xf32>
    %10 = vector.extract_strided_slice %9 {offsets = [0, 0], sizes = [24, 32], strides = [1, 1]} : vector<24x96xf32> to vector<24x32xf32>
    %cst_6 = arith.constant 0.353553385 : f32
    %11 = vector.broadcast %cst_6 : f32 to vector<24x32xf32>
    %12 = arith.mulf %10, %11 : vector<24x32xf32>
    %13 = vector.shape_cast %12 : vector<24x32xf32> to vector<12x2x32xf32>
    %14 = arith.truncf %13 : vector<12x2x32xf32> to vector<12x2x32xbf16>
    %15 = vector.extract_strided_slice %9 {offsets = [0, 32], sizes = [24, 32], strides = [1, 1]} : vector<24x96xf32> to vector<24x32xf32>
    %16 = vector.shape_cast %15 : vector<24x32xf32> to vector<12x2x32xf32>
    %17 = arith.truncf %16 : vector<12x2x32xf32> to vector<12x2x32xbf16>
    %18 = vector.extract_strided_slice %9 {offsets = [0, 64], sizes = [24, 32], strides = [1, 1]} : vector<24x96xf32> to vector<24x32xf32>
    %19 = vector.shape_cast %18 : vector<24x32xf32> to vector<12x2x32xf32>
    %20 = arith.truncf %19 : vector<12x2x32xf32> to vector<12x2x32xbf16>
    %21 = vector.extract_strided_slice %14 {offsets = [0, 0, 0], sizes = [12, 2, 8], strides = [1, 1, 1]} : vector<12x2x32xbf16> to vector<12x2x8xbf16>
    %22 = vector.extract_strided_slice %17 {offsets = [0, 0, 0], sizes = [12, 2, 8], strides = [1, 1, 1]} : vector<12x2x32xbf16> to vector<12x2x8xbf16>
    %23 = vector.extract_strided_slice %20 {offsets = [0, 0, 0], sizes = [12, 2, 8], strides = [1, 1, 1]} : vector<12x2x32xbf16> to vector<12x2x8xbf16>
    "tpu.trace_start"() <{level = 10 : i32, message = "tbe,tce->tbc"}> : () -> ()
    %cst_7 = arith.constant dense<0.000000e+00> : vector<12x2x2xf32>
    %24 = tpu.matmul %21, %22, %cst_7 {dimension_numbers = #tpu.dot_dimension_numbers<[2], [2], [1], [1], [0, 0, 0, 1, 1, 1], [0], [0]>} : vector<12x2x8xbf16>, vector<12x2x8xbf16>, vector<12x2x2xf32> -> vector<12x2x2xf32>
    "tpu.trace_stop"() : () -> ()
    %cst_8 = arith.constant dense<0xFF800000> : vector<12x2xf32>
    %25 = vector.multi_reduction <maximumf>, %24, %cst_8 [2] : vector<12x2x2xf32> to vector<12x2xf32>
    %26 = vector.shape_cast %25 : vector<12x2xf32> to vector<12x2x1xf32>
    %27 = vector.broadcast %26 : vector<12x2x1xf32> to vector<12x2x2xf32>
    %28 = arith.subf %24, %27 : vector<12x2x2xf32>
    %29 = math.exp %28 : vector<12x2x2xf32>
    %cst_9 = arith.constant dense<0.000000e+00> : vector<12x2xf32>
    %30 = vector.multi_reduction <add>, %29, %cst_9 [2] : vector<12x2x2xf32> to vector<12x2xf32>
    %31 = vector.shape_cast %30 : vector<12x2xf32> to vector<12x2x1xf32>
    %32 = tpu.reciprocal %31 {approx = true} : vector<12x2x1xf32> -> vector<12x2x1xf32>
    %33 = vector.broadcast %32 : vector<12x2x1xf32> to vector<12x2x2xf32>
    %34 = arith.mulf %29, %33 : vector<12x2x2xf32>
    %35 = arith.truncf %34 : vector<12x2x2xf32> to vector<12x2x2xbf16>
    "tpu.trace_start"() <{level = 10 : i32, message = "tbc,tce->tbe"}> : () -> ()
    %cst_10 = arith.constant dense<0.000000e+00> : vector<12x2x8xf32>
    %36 = tpu.matmul %35, %23, %cst_10 {dimension_numbers = #tpu.dot_dimension_numbers<[2], [1], [1], [2], [0, 0, 0, 1, 1, 2], [0], [0]>} : vector<12x2x2xbf16>, vector<12x2x8xbf16>, vector<12x2x8xf32> -> vector<12x2x8xf32>
    "tpu.trace_stop"() : () -> ()
    %37 = arith.truncf %36 : vector<12x2x8xf32> to vector<12x2x8xbf16>
    %38 = vector.extract_strided_slice %14 {offsets = [0, 0, 8], sizes = [12, 2, 8], strides = [1, 1, 1]} : vector<12x2x32xbf16> to vector<12x2x8xbf16>
    %39 = vector.extract_strided_slice %17 {offsets = [0, 0, 8], sizes = [12, 2, 8], strides = [1, 1, 1]} : vector<12x2x32xbf16> to vector<12x2x8xbf16>
    %40 = vector.extract_strided_slice %20 {offsets = [0, 0, 8], sizes = [12, 2, 8], strides = [1, 1, 1]} : vector<12x2x32xbf16> to vector<12x2x8xbf16>
    "tpu.trace_start"() <{level = 10 : i32, message = "tbe,tce->tbc"}> : () -> ()
    %cst_11 = arith.constant dense<0.000000e+00> : vector<12x2x2xf32>
    %41 = tpu.matmul %38, %39, %cst_11 {dimension_numbers = #tpu.dot_dimension_numbers<[2], [2], [1], [1], [0, 0, 0, 1, 1, 1], [0], [0]>} : vector<12x2x8xbf16>, vector<12x2x8xbf16>, vector<12x2x2xf32> -> vector<12x2x2xf32>
    "tpu.trace_stop"() : () -> ()
    %cst_12 = arith.constant dense<0xFF800000> : vector<12x2xf32>
    %42 = vector.multi_reduction <maximumf>, %41, %cst_12 [2] : vector<12x2x2xf32> to vector<12x2xf32>
    %43 = vector.shape_cast %42 : vector<12x2xf32> to vector<12x2x1xf32>
    %44 = vector.broadcast %43 : vector<12x2x1xf32> to vector<12x2x2xf32>
    %45 = arith.subf %41, %44 : vector<12x2x2xf32>
    %46 = math.exp %45 : vector<12x2x2xf32>
    %cst_13 = arith.constant dense<0.000000e+00> : vector<12x2xf32>
    %47 = vector.multi_reduction <add>, %46, %cst_13 [2] : vector<12x2x2xf32> to vector<12x2xf32>
    %48 = vector.shape_cast %47 : vector<12x2xf32> to vector<12x2x1xf32>
    %49 = tpu.reciprocal %48 {approx = true} : vector<12x2x1xf32> -> vector<12x2x1xf32>
    %50 = vector.broadcast %49 : vector<12x2x1xf32> to vector<12x2x2xf32>
    %51 = arith.mulf %46, %50 : vector<12x2x2xf32>
    %52 = arith.truncf %51 : vector<12x2x2xf32> to vector<12x2x2xbf16>
    "tpu.trace_start"() <{level = 10 : i32, message = "tbc,tce->tbe"}> : () -> ()
    %cst_14 = arith.constant dense<0.000000e+00> : vector<12x2x8xf32>
    %53 = tpu.matmul %52, %40, %cst_14 {dimension_numbers = #tpu.dot_dimension_numbers<[2], [1], [1], [2], [0, 0, 0, 1, 1, 2], [0], [0]>} : vector<12x2x2xbf16>, vector<12x2x8xbf16>, vector<12x2x8xf32> -> vector<12x2x8xf32>
    "tpu.trace_stop"() : () -> ()
    %54 = arith.truncf %53 : vector<12x2x8xf32> to vector<12x2x8xbf16>
    %55 = vector.extract_strided_slice %14 {offsets = [0, 0, 16], sizes = [12, 2, 8], strides = [1, 1, 1]} : vector<12x2x32xbf16> to vector<12x2x8xbf16>
    %56 = vector.extract_strided_slice %17 {offsets = [0, 0, 16], sizes = [12, 2, 8], strides = [1, 1, 1]} : vector<12x2x32xbf16> to vector<12x2x8xbf16>
    %57 = vector.extract_strided_slice %20 {offsets = [0, 0, 16], sizes = [12, 2, 8], strides = [1, 1, 1]} : vector<12x2x32xbf16> to vector<12x2x8xbf16>
    "tpu.trace_start"() <{level = 10 : i32, message = "tbe,tce->tbc"}> : () -> ()
    %cst_15 = arith.constant dense<0.000000e+00> : vector<12x2x2xf32>
    %58 = tpu.matmul %55, %56, %cst_15 {dimension_numbers = #tpu.dot_dimension_numbers<[2], [2], [1], [1], [0, 0, 0, 1, 1, 1], [0], [0]>} : vector<12x2x8xbf16>, vector<12x2x8xbf16>, vector<12x2x2xf32> -> vector<12x2x2xf32>
    "tpu.trace_stop"() : () -> ()
    %cst_16 = arith.constant dense<0xFF800000> : vector<12x2xf32>
    %59 = vector.multi_reduction <maximumf>, %58, %cst_16 [2] : vector<12x2x2xf32> to vector<12x2xf32>
    %60 = vector.shape_cast %59 : vector<12x2xf32> to vector<12x2x1xf32>
    %61 = vector.broadcast %60 : vector<12x2x1xf32> to vector<12x2x2xf32>
    %62 = arith.subf %58, %61 : vector<12x2x2xf32>
    %63 = math.exp %62 : vector<12x2x2xf32>
    %cst_17 = arith.constant dense<0.000000e+00> : vector<12x2xf32>
    %64 = vector.multi_reduction <add>, %63, %cst_17 [2] : vector<12x2x2xf32> to vector<12x2xf32>
    %65 = vector.shape_cast %64 : vector<12x2xf32> to vector<12x2x1xf32>
    %66 = tpu.reciprocal %65 {approx = true} : vector<12x2x1xf32> -> vector<12x2x1xf32>
    %67 = vector.broadcast %66 : vector<12x2x1xf32> to vector<12x2x2xf32>
    %68 = arith.mulf %63, %67 : vector<12x2x2xf32>
    %69 = arith.truncf %68 : vector<12x2x2xf32> to vector<12x2x2xbf16>
    "tpu.trace_start"() <{level = 10 : i32, message = "tbc,tce->tbe"}> : () -> ()
    %cst_18 = arith.constant dense<0.000000e+00> : vector<12x2x8xf32>
    %70 = tpu.matmul %69, %57, %cst_18 {dimension_numbers = #tpu.dot_dimension_numbers<[2], [1], [1], [2], [0, 0, 0, 1, 1, 2], [0], [0]>} : vector<12x2x2xbf16>, vector<12x2x8xbf16>, vector<12x2x8xf32> -> vector<12x2x8xf32>
    "tpu.trace_stop"() : () -> ()
    %71 = arith.truncf %70 : vector<12x2x8xf32> to vector<12x2x8xbf16>
    %72 = vector.extract_strided_slice %14 {offsets = [0, 0, 24], sizes = [12, 2, 8], strides = [1, 1, 1]} : vector<12x2x32xbf16> to vector<12x2x8xbf16>
    %73 = vector.extract_strided_slice %17 {offsets = [0, 0, 24], sizes = [12, 2, 8], strides = [1, 1, 1]} : vector<12x2x32xbf16> to vector<12x2x8xbf16>
    %74 = vector.extract_strided_slice %20 {offsets = [0, 0, 24], sizes = [12, 2, 8], strides = [1, 1, 1]} : vector<12x2x32xbf16> to vector<12x2x8xbf16>
    "tpu.trace_start"() <{level = 10 : i32, message = "tbe,tce->tbc"}> : () -> ()
    %cst_19 = arith.constant dense<0.000000e+00> : vector<12x2x2xf32>
    %75 = tpu.matmul %72, %73, %cst_19 {dimension_numbers = #tpu.dot_dimension_numbers<[2], [2], [1], [1], [0, 0, 0, 1, 1, 1], [0], [0]>} : vector<12x2x8xbf16>, vector<12x2x8xbf16>, vector<12x2x2xf32> -> vector<12x2x2xf32>
    "tpu.trace_stop"() : () -> ()
    %cst_20 = arith.constant dense<0xFF800000> : vector<12x2xf32>
    %76 = vector.multi_reduction <maximumf>, %75, %cst_20 [2] : vector<12x2x2xf32> to vector<12x2xf32>
    %77 = vector.shape_cast %76 : vector<12x2xf32> to vector<12x2x1xf32>
    %78 = vector.broadcast %77 : vector<12x2x1xf32> to vector<12x2x2xf32>
    %79 = arith.subf %75, %78 : vector<12x2x2xf32>
    %80 = math.exp %79 : vector<12x2x2xf32>
    %cst_21 = arith.constant dense<0.000000e+00> : vector<12x2xf32>
    %81 = vector.multi_reduction <add>, %80, %cst_21 [2] : vector<12x2x2xf32> to vector<12x2xf32>
    %82 = vector.shape_cast %81 : vector<12x2xf32> to vector<12x2x1xf32>
    %83 = tpu.reciprocal %82 {approx = true} : vector<12x2x1xf32> -> vector<12x2x1xf32>
    %84 = vector.broadcast %83 : vector<12x2x1xf32> to vector<12x2x2xf32>
    %85 = arith.mulf %80, %84 : vector<12x2x2xf32>
    %86 = arith.truncf %85 : vector<12x2x2xf32> to vector<12x2x2xbf16>
    "tpu.trace_start"() <{level = 10 : i32, message = "tbc,tce->tbe"}> : () -> ()
    %cst_22 = arith.constant dense<0.000000e+00> : vector<12x2x8xf32>
    %87 = tpu.matmul %86, %74, %cst_22 {dimension_numbers = #tpu.dot_dimension_numbers<[2], [1], [1], [2], [0, 0, 0, 1, 1, 2], [0], [0]>} : vector<12x2x2xbf16>, vector<12x2x8xbf16>, vector<12x2x8xf32> -> vector<12x2x8xf32>
    "tpu.trace_stop"() : () -> ()
    %88 = arith.truncf %87 : vector<12x2x8xf32> to vector<12x2x8xbf16>
    %89 = tpu.concatenate %37, %54, %71, %88 in 2 : vector<12x2x8xbf16>, vector<12x2x8xbf16>, vector<12x2x8xbf16>, vector<12x2x8xbf16> -> vector<12x2x32xbf16>
    %90 = vector.shape_cast %89 : vector<12x2x32xbf16> to vector<24x32xbf16>
    %c0_23 = arith.constant 0 : index
    %c0_24 = arith.constant 0 : index
    %91 = vector.load %arg4[%c0_23, %c0_24] : memref<32x32xbf16, #tpu.memory_space<vmem>>, vector<32x32xbf16>
    %cst_25 = arith.constant dense<0.000000e+00> : vector<24x32xf32>
    %92 = tpu.matmul %90, %91, %cst_25 {dimension_numbers = #tpu.dot_dimension_numbers<[1], [0], [0], [1], [0, 0, 1, 1], [], []>} : vector<24x32xbf16>, vector<32x32xbf16>, vector<24x32xf32> -> vector<24x32xf32>
    %c0_26 = arith.constant 0 : index
    %c0_27 = arith.constant 0 : index
    %93 = vector.load %arg5[%c0_26, %c0_27] : memref<1x32xf32, #tpu.memory_space<vmem>>, vector<1x32xf32>
    %94 = vector.shape_cast %93 : vector<1x32xf32> to vector<32xf32>
    %95 = vector.shape_cast %94 : vector<32xf32> to vector<1x32xf32>
    %96 = vector.broadcast %95 : vector<1x32xf32> to vector<24x32xf32>
    %97 = arith.addf %92, %96 : vector<24x32xf32>
    %98 = arith.addf %2, %97 : vector<24x32xf32>
    %cst_28 = arith.constant dense<0.000000e+00> : vector<24xf32>
    %99 = vector.multi_reduction <add>, %98, %cst_28 [1] : vector<24x32xf32> to vector<24xf32>
    %100 = vector.shape_cast %99 : vector<24xf32> to vector<24x1xf32>
    %cst_29 = arith.constant 3.200000e+01 : f32
    %101 = vector.broadcast %cst_29 : f32 to vector<24x1xf32>
    %102 = arith.divf %100, %101 : vector<24x1xf32>
    %103 = vector.broadcast %102 : vector<24x1xf32> to vector<24x32xf32>
    %104 = arith.subf %98, %103 : vector<24x32xf32>
    %105 = arith.mulf %104, %104 : vector<24x32xf32>
    %cst_30 = arith.constant dense<0.000000e+00> : vector<24xf32>
    %106 = vector.multi_reduction <add>, %105, %cst_30 [1] : vector<24x32xf32> to vector<24xf32>
    %107 = vector.shape_cast %106 : vector<24xf32> to vector<24x1xf32>
    %cst_31 = arith.constant 3.200000e+01 : f32
    %108 = vector.broadcast %cst_31 : f32 to vector<24x1xf32>
    %109 = arith.divf %107, %108 : vector<24x1xf32>
    %110 = vector.broadcast %102 : vector<24x1xf32> to vector<24x32xf32>
    %111 = arith.subf %98, %110 : vector<24x32xf32>
    %cst_32 = arith.constant 9.99999974E-6 : f32
    %112 = vector.broadcast %cst_32 : f32 to vector<24x1xf32>
    %113 = arith.addf %109, %112 : vector<24x1xf32>
    %114 = math.rsqrt %113 : vector<24x1xf32>
    %115 = vector.broadcast %114 : vector<24x1xf32> to vector<24x32xf32>
    %116 = arith.mulf %111, %115 : vector<24x32xf32>
    %c0_33 = arith.constant 0 : index
    %c0_34 = arith.constant 0 : index
    %117 = vector.load %arg6[%c0_33, %c0_34] : memref<1x32xf32, #tpu.memory_space<vmem>>, vector<1x32xf32>
    %118 = vector.shape_cast %117 : vector<1x32xf32> to vector<32xf32>
    %119 = vector.shape_cast %118 : vector<32xf32> to vector<1x32xf32>
    %120 = vector.broadcast %119 : vector<1x32xf32> to vector<24x32xf32>
    %121 = arith.mulf %116, %120 : vector<24x32xf32>
    %c0_35 = arith.constant 0 : index
    %c0_36 = arith.constant 0 : index
    %122 = vector.load %arg7[%c0_35, %c0_36] : memref<1x32xf32, #tpu.memory_space<vmem>>, vector<1x32xf32>
    %123 = vector.shape_cast %122 : vector<1x32xf32> to vector<32xf32>
    %124 = vector.shape_cast %123 : vector<32xf32> to vector<1x32xf32>
    %125 = vector.broadcast %124 : vector<1x32xf32> to vector<24x32xf32>
    %126 = arith.addf %121, %125 : vector<24x32xf32>
    %127 = arith.truncf %126 : vector<24x32xf32> to vector<24x32xbf16>
    %cst_37 = arith.constant 0.000000e+00 : f32
    %128 = vector.broadcast %cst_37 : f32 to vector<24x32xf32>
    %c0_38 = arith.constant 0 : index
    %c0_39 = arith.constant 0 : index
    %129 = vector.load %arg8[%c0_38, %c0_39] : memref<32x128xbf16, #tpu.memory_space<vmem>>, vector<32x128xbf16>
    %cst_40 = arith.constant dense<0.000000e+00> : vector<24x128xf32>
    %130 = tpu.matmul %127, %129, %cst_40 {dimension_numbers = #tpu.dot_dimension_numbers<[1], [0], [0], [1], [0, 0, 1, 1], [], []>} : vector<24x32xbf16>, vector<32x128xbf16>, vector<24x128xf32> -> vector<24x128xf32>
    %c0_41 = arith.constant 0 : index
    %c0_42 = arith.constant 0 : index
    %131 = vector.load %arg9[%c0_41, %c0_42] : memref<1x128xf32, #tpu.memory_space<vmem>>, vector<1x128xf32>
    %132 = vector.shape_cast %131 : vector<1x128xf32> to vector<128xf32>
    %133 = vector.shape_cast %132 : vector<128xf32> to vector<1x128xf32>
    %134 = vector.broadcast %133 : vector<1x128xf32> to vector<24x128xf32>
    %135 = arith.addf %130, %134 : vector<24x128xf32>
    %cst_43 = arith.constant 0.000000e+00 : f32
    %136 = vector.broadcast %cst_43 : f32 to vector<24x128xf32>
    %137 = arith.maximumf %135, %136 : vector<24x128xf32>
    %138 = arith.truncf %137 : vector<24x128xf32> to vector<24x128xbf16>
    %c0_44 = arith.constant 0 : index
    %c0_45 = arith.constant 0 : index
    %139 = vector.load %arg10[%c0_44, %c0_45] : memref<128x32xbf16, #tpu.memory_space<vmem>>, vector<128x32xbf16>
    %cst_46 = arith.constant dense<0.000000e+00> : vector<24x32xf32>
    %140 = tpu.matmul %138, %139, %cst_46 {dimension_numbers = #tpu.dot_dimension_numbers<[1], [0], [0], [1], [0, 0, 1, 1], [], []>} : vector<24x128xbf16>, vector<128x32xbf16>, vector<24x32xf32> -> vector<24x32xf32>
    %141 = arith.addf %128, %140 : vector<24x32xf32>
    %c0_47 = arith.constant 0 : index
    %c0_48 = arith.constant 0 : index
    %142 = vector.load %arg11[%c0_47, %c0_48] : memref<1x32xf32, #tpu.memory_space<vmem>>, vector<1x32xf32>
    %143 = vector.shape_cast %142 : vector<1x32xf32> to vector<32xf32>
    %144 = vector.shape_cast %143 : vector<32xf32> to vector<1x32xf32>
    %145 = vector.broadcast %144 : vector<1x32xf32> to vector<24x32xf32>
    %146 = arith.addf %141, %145 : vector<24x32xf32>
    %147 = arith.addf %126, %146 : vector<24x32xf32>
    %cst_49 = arith.constant dense<0.000000e+00> : vector<24xf32>
    %148 = vector.multi_reduction <add>, %147, %cst_49 [1] : vector<24x32xf32> to vector<24xf32>
    %149 = vector.shape_cast %148 : vector<24xf32> to vector<24x1xf32>
    %cst_50 = arith.constant 3.200000e+01 : f32
    %150 = vector.broadcast %cst_50 : f32 to vector<24x1xf32>
    %151 = arith.divf %149, %150 : vector<24x1xf32>
    %152 = vector.broadcast %151 : vector<24x1xf32> to vector<24x32xf32>
    %153 = arith.subf %147, %152 : vector<24x32xf32>
    %154 = arith.mulf %153, %153 : vector<24x32xf32>
    %cst_51 = arith.constant dense<0.000000e+00> : vector<24xf32>
    %155 = vector.multi_reduction <add>, %154, %cst_51 [1] : vector<24x32xf32> to vector<24xf32>
    %156 = vector.shape_cast %155 : vector<24xf32> to vector<24x1xf32>
    %cst_52 = arith.constant 3.200000e+01 : f32
    %157 = vector.broadcast %cst_52 : f32 to vector<24x1xf32>
    %158 = arith.divf %156, %157 : vector<24x1xf32>
    %159 = vector.broadcast %151 : vector<24x1xf32> to vector<24x32xf32>
    %160 = arith.subf %147, %159 : vector<24x32xf32>
    %cst_53 = arith.constant 9.99999974E-6 : f32
    %161 = vector.broadcast %cst_53 : f32 to vector<24x1xf32>
    %162 = arith.addf %158, %161 : vector<24x1xf32>
    %163 = math.rsqrt %162 : vector<24x1xf32>
    %164 = vector.broadcast %163 : vector<24x1xf32> to vector<24x32xf32>
    %165 = arith.mulf %160, %164 : vector<24x32xf32>
    %c0_54 = arith.constant 0 : index
    %c0_55 = arith.constant 0 : index
    %166 = vector.load %arg12[%c0_54, %c0_55] : memref<1x32xf32, #tpu.memory_space<vmem>>, vector<1x32xf32>
    %167 = vector.shape_cast %166 : vector<1x32xf32> to vector<32xf32>
    %168 = vector.shape_cast %167 : vector<32xf32> to vector<1x32xf32>
    %169 = vector.broadcast %168 : vector<1x32xf32> to vector<24x32xf32>
    %170 = arith.mulf %165, %169 : vector<24x32xf32>
    %c0_56 = arith.constant 0 : index
    %c0_57 = arith.constant 0 : index
    %171 = vector.load %arg13[%c0_56, %c0_57] : memref<1x32xf32, #tpu.memory_space<vmem>>, vector<1x32xf32>
    %172 = vector.shape_cast %171 : vector<1x32xf32> to vector<32xf32>
    %173 = vector.shape_cast %172 : vector<32xf32> to vector<1x32xf32>
    %174 = vector.broadcast %173 : vector<1x32xf32> to vector<24x32xf32>
    %175 = arith.addf %170, %174 : vector<24x32xf32>
    %176 = vector.shape_cast %175 : vector<24x32xf32> to vector<12x2x32xf32>
    %177 = arith.truncf %176 : vector<12x2x32xf32> to vector<12x2x32xbf16>
    %c0_58 = arith.constant 0 : index
    %c0_59 = arith.constant 0 : index
    %c0_60 = arith.constant 0 : index
    %178 = vector.load %arg14[%c0_58, %c0_59, %c0_60] : memref<12x2x32xbf16, #tpu.memory_space<vmem>>, vector<12x2x32xbf16>
    tpu.vector_store %arg14[%c0_58, %c0_59, %c0_60], %177 {strides = array<i32>} : memref<12x2x32xbf16, #tpu.memory_space<vmem>>, vector<12x2x32xbf16>,
    return
  }
  func.func @transform_0(%arg0: i32) -> (i32, i32, i32) {
    %c0_i32 = arith.constant 0 : i32
    %c0_i32_0 = arith.constant 0 : i32
    %c0_i32_1 = arith.constant 0 : i32
    return %arg0, %c0_i32, %c0_i32_0 : i32, i32, i32
  }
  func.func @transform_1(%arg0: i32) -> (i32, i32) {
    %c0_i32 = arith.constant 0 : i32
    %c0_i32_0 = arith.constant 0 : i32
    %c0_i32_1 = arith.constant 0 : i32
    return %c0_i32, %c0_i32_0 : i32, i32
  }
  func.func @transform_2(%arg0: i32) -> (i32, i32) {
    %c0_i32 = arith.constant 0 : i32
    %c0_i32_0 = arith.constant 0 : i32
    %c0_i32_1 = arith.constant 0 : i32
    return %c0_i32, %c0_i32_0 : i32, i32
  }
  func.func @transform_3(%arg0: i32) -> (i32, i32) {
    %c0_i32 = arith.constant 0 : i32
    %c0_i32_0 = arith.constant 0 : i32
    %c0_i32_1 = arith.constant 0 : i32
    return %c0_i32, %c0_i32_0 : i32, i32
  }
  func.func @transform_4(%arg0: i32) -> (i32, i32) {
    %c0_i32 = arith.constant 0 : i32
    %c0_i32_0 = arith.constant 0 : i32
    %c0_i32_1 = arith.constant 0 : i32
    return %c0_i32, %c0_i32_0 : i32, i32
  }
  func.func @transform_5(%arg0: i32) -> (i32, i32) {
    %c0_i32 = arith.constant 0 : i32
    %c0_i32_0 = arith.constant 0 : i32
    %c0_i32_1 = arith.constant 0 : i32
    return %c0_i32, %c0_i32_0 : i32, i32
  }
  func.func @transform_6(%arg0: i32) -> (i32, i32) {
    %c0_i32 = arith.constant 0 : i32
    %c0_i32_0 = arith.constant 0 : i32
    %c0_i32_1 = arith.constant 0 : i32
    return %c0_i32, %c0_i32_0 : i32, i32
  }
  func.func @transform_7(%arg0: i32) -> (i32, i32) {
    %c0_i32 = arith.constant 0 : i32
    %c0_i32_0 = arith.constant 0 : i32
    %c0_i32_1 = arith.constant 0 : i32
    return %c0_i32, %c0_i32_0 : i32, i32
  }
  func.func @transform_8(%arg0: i32) -> (i32, i32) {
    %c0_i32 = arith.constant 0 : i32
    %c0_i32_0 = arith.constant 0 : i32
    %c0_i32_1 = arith.constant 0 : i32
    return %c0_i32, %c0_i32_0 : i32, i32
  }
  func.func @transform_9(%arg0: i32) -> (i32, i32) {
    %c0_i32 = arith.constant 0 : i32
    %c0_i32_0 = arith.constant 0 : i32
    %c0_i32_1 = arith.constant 0 : i32
    return %c0_i32, %c0_i32_0 : i32, i32
  }
  func.func @transform_10(%arg0: i32) -> (i32, i32) {
    %c0_i32 = arith.constant 0 : i32
    %c0_i32_0 = arith.constant 0 : i32
    %c0_i32_1 = arith.constant 0 : i32
    return %c0_i32, %c0_i32_0 : i32, i32
  }
  func.func @transform_11(%arg0: i32) -> (i32, i32) {
    %c0_i32 = arith.constant 0 : i32
    %c0_i32_0 = arith.constant 0 : i32
    %c0_i32_1 = arith.constant 0 : i32
    return %c0_i32, %c0_i32_0 : i32, i32
  }
  func.func @transform_12(%arg0: i32) -> (i32, i32) {
    %c0_i32 = arith.constant 0 : i32
    %c0_i32_0 = arith.constant 0 : i32
    %c0_i32_1 = arith.constant 0 : i32
    return %c0_i32, %c0_i32_0 : i32, i32
  }
  func.func @transform_13(%arg0: i32) -> (i32, i32, i32) {
    %c0_i32 = arith.constant 0 : i32
    %c0_i32_0 = arith.constant 0 : i32
    %c0_i32_1 = arith.constant 0 : i32
    return %arg0, %c0_i32, %c0_i32_0 : i32, i32, i32
  }
}

</mosaic_0001>

<llo_original>
// kernel: vit_predictor_forward.2
$region0: #{vit_predictor_forward.2}
  #allocation0 [shape = 'u32[]', space=smem, size = 0x4, offset = 0x4, fixed_abs, tag = 'smem constant byte address 0x4 - core index']
  #allocation1 [shape = 'u32[144,128]{1,0:T(1,128)}', space=vmem, size = 0x12000, scoped, tag = 'internal scratch']
  %s0 = inlined_call_operand.vmem [shape: bf16[12,2,32], index: 0, kind: input, shape index: {}]
  %s1 = inlined_call_operand.vmem [shape: bf16[32,96], index: 1, kind: input, shape index: {}]
  %s2 = inlined_call_operand.vmem [shape: f32[1,96], index: 2, kind: input, shape index: {}]
  %s3 = inlined_call_operand.vmem [shape: bf16[32,32], index: 3, kind: input, shape index: {}]
  %s4 = inlined_call_operand.vmem [shape: f32[1,32], index: 4, kind: input, shape index: {}]
  %s5 = inlined_call_operand.vmem [shape: f32[1,32], index: 5, kind: input, shape index: {}]
  %s6 = inlined_call_operand.vmem [shape: f32[1,32], index: 6, kind: input, shape index: {}]
  %s7 = inlined_call_operand.vmem [shape: bf16[32,128], index: 7, kind: input, shape index: {}]
  %s8 = inlined_call_operand.vmem [shape: f32[1,128], index: 8, kind: input, shape index: {}]
  %s9 = inlined_call_operand.vmem [shape: bf16[128,32], index: 9, kind: input, shape index: {}]
  %s10 = inlined_call_operand.vmem [shape: f32[1,32], index: 10, kind: input, shape index: {}]
  %s11 = inlined_call_operand.vmem [shape: f32[1,32], index: 11, kind: input, shape index: {}]
  %s12 = inlined_call_operand.vmem [shape: f32[1,32], index: 12, kind: input, shape index: {}]
  %s13 = inlined_call_operand.vmem [shape: bf16[12,2,32], index: 13, kind: output, shape index: {}]
  %s14 = sld [smem:[#allocation0]]
  $region62: #{vit_predictor_forward.2} parent=0
    _
  %s16 = ssub.s32 1, %s14
  %s17 = scalar_select 0, %s16, %s14
  // Predicated region
  $region2: #{vit_predictor_forward.2} parent=0 // pred_check
    _
  $region3: #{vit_predictor_forward.2} parent=0 // pred_check_branch
    %19 = sbr.rel (0) target = $region5
  $region4: #{vit_predictor_forward.2} parent=0 // pred_region
    _
  $region5: #{vit_predictor_forward.2} parent=0 // pred_fallthru
    _
  // Predicated region
  $region6: #{vit_predictor_forward.2} parent=0 // pred_check
    _
  $region7: #{vit_predictor_forward.2} parent=0 // pred_check_branch
    %21 = sbr.rel (0) target = $region9
  $region8: #{vit_predictor_forward.2} parent=0 // pred_region
    _
  $region9: #{vit_predictor_forward.2} parent=0 // pred_fallthru
    _
  // Predicated region
  $region10: #{vit_predictor_forward.2} parent=0 // pred_check
    _
  $region11: #{vit_predictor_forward.2} parent=0 // pred_check_branch
    %23 = sbr.rel (0) target = $region13
  $region12: #{vit_predictor_forward.2} parent=0 // pred_region
    _
  $region13: #{vit_predictor_forward.2} parent=0 // pred_fallthru
    _
  // Predicated region
  $region14: #{vit_predictor_forward.2} parent=0 // pred_check
    _
  $region15: #{vit_predictor_forward.2} parent=0 // pred_check_branch
    %25 = sbr.rel (0) target = $region17
  $region16: #{vit_predictor_forward.2} parent=0 // pred_region
    _
  $region17: #{vit_predictor_forward.2} parent=0 // pred_fallthru
    _
  // Predicated region
  $region18: #{vit_predictor_forward.2} parent=0 // pred_check
    _
  $region19: #{vit_predictor_forward.2} parent=0 // pred_check_branch
    %27 = sbr.rel (0) target = $region21
  $region20: #{vit_predictor_forward.2} parent=0 // pred_region
    _
  $region21: #{vit_predictor_forward.2} parent=0 // pred_fallthru
    _
  // Predicated region
  $region22: #{vit_predictor_forward.2} parent=0 // pred_check
    _
  $region23: #{vit_predictor_forward.2} parent=0 // pred_check_branch
    %29 = sbr.rel (0) target = $region25
  $region24: #{vit_predictor_forward.2} parent=0 // pred_region
    _
  $region25: #{vit_predictor_forward.2} parent=0 // pred_fallthru
    _
  // Predicated region
  $region26: #{vit_predictor_forward.2} parent=0 // pred_check
    _
  $region27: #{vit_predictor_forward.2} parent=0 // pred_check_branch
    %31 = sbr.rel (0) target = $region29
  $region28: #{vit_predictor_forward.2} parent=0 // pred_region
    _
  $region29: #{vit_predictor_forward.2} parent=0 // pred_fallthru
    _
  // Predicated region
  $region30: #{vit_predictor_forward.2} parent=0 // pred_check
    _
  $region31: #{vit_predictor_forward.2} parent=0 // pred_check_branch
    %33 = sbr.rel (0) target = $region33
  $region32: #{vit_predictor_forward.2} parent=0 // pred_region
    _
  $region33: #{vit_predictor_forward.2} parent=0 // pred_fallthru
    _
  // Predicated region
  $region34: #{vit_predictor_forward.2} parent=0 // pred_check
    _
  $region35: #{vit_predictor_forward.2} parent=0 // pred_check_branch
    %35 = sbr.rel (0) target = $region37
  $region36: #{vit_predictor_forward.2} parent=0 // pred_region
    _
  $region37: #{vit_predictor_forward.2} parent=0 // pred_fallthru
    _
  // Predicated region
  $region38: #{vit_predictor_forward.2} parent=0 // pred_check
    _
  $region39: #{vit_predictor_forward.2} parent=0 // pred_check_branch
    %37 = sbr.rel (0) target = $region41
  $region40: #{vit_predictor_forward.2} parent=0 // pred_region
    _
  $region41: #{vit_predictor_forward.2} parent=0 // pred_fallthru
    _
  // Predicated region
  $region42: #{vit_predictor_forward.2} parent=0 // pred_check
    _
  $region43: #{vit_predictor_forward.2} parent=0 // pred_check_branch
    %39 = sbr.rel (0) target = $region45
  $region44: #{vit_predictor_forward.2} parent=0 // pred_region
    _
  $region45: #{vit_predictor_forward.2} parent=0 // pred_fallthru
    _
  // Predicated region
  $region46: #{vit_predictor_forward.2} parent=0 // pred_check
    _
  $region47: #{vit_predictor_forward.2} parent=0 // pred_check_branch
    %41 = sbr.rel (0) target = $region49
  $region48: #{vit_predictor_forward.2} parent=0 // pred_region
    _
  $region49: #{vit_predictor_forward.2} parent=0 // pred_fallthru
    _
  // Predicated region
  $region50: #{vit_predictor_forward.2} parent=0 // pred_check
    _
  $region51: #{vit_predictor_forward.2} parent=0 // pred_check_branch
    %43 = sbr.rel (0) target = $region53
  $region52: #{vit_predictor_forward.2} parent=0 // pred_region
    _
  $region53: #{vit_predictor_forward.2} parent=0 // pred_fallthru
    _
  %v45 = vld [vmem:[%s0] sm:$0x1]
  %v46 = vld [vmem:[%s0 + $0x1] sm:$0x1]
  %v47 = vld [vmem:[%s0 + $0x2] sm:$0x1]
  %v48 = vld [vmem:[%s0 + $0x3] sm:$0x1]
  %v49 = vld [vmem:[%s0 + $0x4] sm:$0x1]
  %v50 = vld [vmem:[%s0 + $0x5] sm:$0x1]
  %v51 = vld [vmem:[%s0 + $0x6] sm:$0x1]
  %v52 = vld [vmem:[%s0 + $0x7] sm:$0x1]
  %v53 = vld [vmem:[%s0 + $0x8] sm:$0x1]
  %v54 = vld [vmem:[%s0 + $0x9] sm:$0x1]
  %v55 = vld [vmem:[%s0 + $0xa] sm:$0x1]
  %v56 = vld [vmem:[%s0 + $0xb] sm:$0x1]
  %v57 = vunpack.c.l.bf16 %v45
  %v58 = vunpack.c.l.bf16 %v46
  %v59 = vunpack.c.l.bf16 %v47
  %v60 = vunpack.c.l.bf16 %v48
  %v61 = vunpack.c.l.bf16 %v49
  %v62 = vunpack.c.l.bf16 %v50
  %v63 = vunpack.c.l.bf16 %v51
  %v64 = vunpack.c.l.bf16 %v52
  %v65 = vunpack.c.l.bf16 %v53
  %v66 = vunpack.c.l.bf16 %v54
  %v67 = vunpack.c.l.bf16 %v55
  %v68 = vunpack.c.l.bf16 %v56
  %v69 = vld [vmem:[%s1] sm:$0xf]
  %v70 = vld [vmem:[%s1 + $0x4] sm:$0xf]
  %v71 = vld [vmem:[%s1 + $0x8] sm:$0xf]
  %v72 = vld [vmem:[%s1 + $0xc] sm:$0xf]
  %v73 = vld [vmem:[%s2] sm:$0x1]
  %v75 = vlaneseq
  %v76 = vshrl.u32 %v75, 7
  %v77 = vsub.s32 0, %v76
  %v78 = vrot.slane %v73, %v77
  %v92 = vcombine.low %v45, %v46
  %v93 = vcombine.low %v47, %v48
  %v94 = vcombine.low %v49, %v50
  %v95 = vcombine.low %v51, %v52
  %v97 = vunpack.c.l.s4 1966171168
  %v98 = vunpack.c.0.s8 %v97
  %v99 = vlaneseq
  %v100 = vshrl.u32 %v99, 7
  %v101 = vsub.s32 %v98, %v100
  %v102 = vrot.slane %v92, %v101
  %v104 = vunpack.c.l.s4 1966171168
  %v105 = vunpack.c.0.s8 %v104
  %v106 = vlaneseq
  %v107 = vshrl.u32 %v106, 7
  %v108 = vsub.s32 %v105, %v107
  %v109 = vrot.slane %v93, %v108
  %v111 = vunpack.c.l.s4 1966171168
  %v112 = vunpack.c.0.s8 %v111
  %v113 = vlaneseq
  %v114 = vshrl.u32 %v113, 7
  %v115 = vsub.s32 %v112, %v114
  %v116 = vrot.slane %v94, %v115
  %v118 = vunpack.c.l.s4 1966171168
  %v119 = vunpack.c.0.s8 %v118
  %v120 = vlaneseq
  %v121 = vshrl.u32 %v120, 7
  %v122 = vsub.s32 %v119, %v121
  %v123 = vrot.slane %v95, %v122
  %v124 = vcombine.low %v102, %v109
  %v125 = vcombine.low %v116, %v123
  %v127 = vunpack.c.l.s4 1966171168
  %v128 = vunpack.c.0.s8 %v127
  %v129 = vlaneseq
  %v130 = vshrl.u32 %v129, 7
  %v131 = vsub.s32 %v128, %v130
  %v132 = vrot.slane %v124, %v131
  %v134 = vunpack.c.l.s4 1966171168
  %v135 = vunpack.c.0.s8 %v134
  %v136 = vlaneseq
  %v137 = vshrl.u32 %v136, 7
  %v138 = vsub.s32 %v135, %v137
  %v139 = vrot.slane %v125, %v138
  %v140 = vcombine.low %v132, %v139
  %v141 = vcombine.low %v53, %v54
  %v142 = vcombine.low %v55, %v56
  %v144 = vunpack.c.l.s4 1966171168
  %v145 = vunpack.c.0.s8 %v144
  %v146 = vlaneseq
  %v147 = vshrl.u32 %v146, 7
  %v148 = vsub.s32 %v145, %v147
  %v149 = vrot.slane %v141, %v148
  %v151 = vunpack.c.l.s4 1966171168
  %v152 = vunpack.c.0.s8 %v151
  %v153 = vlaneseq
  %v154 = vshrl.u32 %v153, 7
  %v155 = vsub.s32 %v152, %v154
  %v156 = vrot.slane %v142, %v155
  %v157 = vcombine.low %v149, %v156
  %v159 = vunpack.c.l.s4 1966171168
  %v160 = vunpack.c.0.s8 %v159
  %v161 = vlaneseq
  %v162 = vshrl.u32 %v161, 7
  %v163 = vsub.s32 %v160, %v162
  %v164 = vrot.slane %v157, %v163
  %v169 = vunpack.c.l.b16 %v69
  %v170 = vunpack.c.l.b16 %v70
  %v171 = vunpack.c.l.b16 %v71
  %v172 = vunpack.c.l.b16 %v72
  %v173 = vpack.c.b16 %v170, %v169
  %v174 = vpack.c.b16 %v172, %v171
  %vm177 = vcmask 261120
  %v179 = vsel %vm177, %v140, 0
  %v182 = vsel %vm177, %v164, 0
  %184 = vmatprep.subr.bf16.mxu0 0
  %185 = vmatpush1.bf16.msra.mxu0 %v173
  %186 = vmatprep.subr.bf16.mxu0 0
  %187 = vmatpush1.bf16.msra.mxu0 %v174
  %188 = vmatprep.subr.bf16.mxu0 0
  %189 = vmatpush1.bf16.msra.mxu0 0
  %190 = vmatprep.subr.bf16.mxu0 0
  %191 = vmatpush1.bf16.msra.mxu0 0
  %192 = vmatprep.subr.bf16.mxu0 0
  %193 = vmatpush1.bf16.msra.mxu0 0
  %194 = vmatprep.subr.bf16.mxu0 0
  %195 = vmatpush1.bf16.msra.mxu0 0
  %196 = vmatprep.subr.bf16.mxu0 0
  %197 = vmatpush1.bf16.msra.mxu0 0
  %198 = vmatprep.subr.bf16.mxu0 0
  %199 = vmatpush1.bf16.msra.mxu0 0
  %200 = vmatprep.subr.bf16.mxu0 0
  %201 = vmatpush1.bf16.msra.mxu0 0
  %202 = vmatprep.subr.bf16.mxu0 0
  %203 = vmatpush1.bf16.msra.mxu0 0
  %204 = vmatprep.subr.bf16.mxu0 0
  %205 = vmatpush1.bf16.msra.mxu0 0
  %206 = vmatprep.subr.bf16.mxu0 0
  %207 = vmatpush1.bf16.msra.mxu0 0
  %208 = vmatprep.subr.bf16.mxu0 0
  %209 = vmatpush1.bf16.msra.mxu0 0
  %210 = vmatprep.subr.bf16.mxu0 0
  %211 = vmatpush1.bf16.msra.mxu0 0
  %212 = vmatprep.subr.bf16.mxu0 0
  %213 = vmatpush1.bf16.msra.mxu0 0
  %214 = vmatprep.subr.bf16.mxu0 0
  %215 = vmatpush1.bf16.msra.mxu0 0
  %216 = vmatprep.mubr.bf16.mxu0 0
  %217 = vmatmul.mubr.bf16.gmra.mrb[0].mxu0 %v179
  %v218 = vpop.f32.mrb[0].mxu0
  %v219 = vadd.f32 %v78, %v218
  %v220 = vpop.f32.mrb[0].mxu0
  %v221 = vpop.f32.mrb[0].mxu0
  %v222 = vadd.f32 %v78, %v221
  %v223 = vpop.f32.mrb[0].mxu0
  %224 = vmatprep.mubr.bf16.mxu0 0
  %225 = vmatmul.mubr.bf16.gmra.mrb[0].mxu0 %v182
  %v226 = vpop.f32.mrb[0].mxu0
  %v227 = vadd.f32 %v78, %v226
  %v228 = vpop.f32.mrb[0].mxu0
  %v229 = vpop.f32.mrb[0].mxu0
  %v230 = vpop.f32.mrb[0].mxu0
  %231 = vdwg.mxu0
  %v232 = vmul.f32 %v219, 0.35355338
  %v233 = vmul.f32 %v222, 0.35355338
  %v234 = vmul.f32 %v227, 0.35355338
  %v238 = vcombine.high %v232, %v232
  %v240 = vunpack.c.l.s4 1983009808
  %v241 = vunpack.c.0.s8 %v240
  %v242 = vlaneseq
  %v243 = vshrl.u32 %v242, 7
  %v244 = vsub.s32 %v241, %v243
  %v245 = vrot.slane %v232, %v244
  %v247 = vunpack.c.l.s4 1983009808
  %v248 = vunpack.c.0.s8 %v247
  %v249 = vlaneseq
  %v250 = vshrl.u32 %v249, 7
  %v251 = vsub.s32 %v248, %v250
  %v252 = vrot.slane %v238, %v251
  %v253 = vcombine.high %v245, %v245
  %v254 = vcombine.high %v252, %v252
  %v255 = vcombine.high %v233, %v233
  %v257 = vunpack.c.l.s4 1983009808
  %v258 = vunpack.c.0.s8 %v257
  %v259 = vlaneseq
  %v260 = vshrl.u32 %v259, 7
  %v261 = vsub.s32 %v258, %v260
  %v262 = vrot.slane %v233, %v261
  %v264 = vunpack.c.l.s4 1983009808
  %v265 = vunpack.c.0.s8 %v264
  %v266 = vlaneseq
  %v267 = vshrl.u32 %v266, 7
  %v268 = vsub.s32 %v265, %v267
  %v269 = vrot.slane %v255, %v268
  %v270 = vcombine.high %v262, %v262
  %v271 = vcombine.high %v269, %v269
  %v272 = vcombine.high %v234, %v234
  %v274 = vunpack.c.l.s4 1983009808
  %v275 = vunpack.c.0.s8 %v274
  %v276 = vlaneseq
  %v277 = vshrl.u32 %v276, 7
  %v278 = vsub.s32 %v275, %v277
  %v279 = vrot.slane %v234, %v278
  %v281 = vunpack.c.l.s4 1983009808
  %v282 = vunpack.c.0.s8 %v281
  %v283 = vlaneseq
  %v284 = vshrl.u32 %v283, 7
  %v285 = vsub.s32 %v282, %v284
  %v286 = vrot.slane %v272, %v285
  %v287 = vcombine.high %v279, %v279
  %v288 = vcombine.high %v286, %v286
  %v301 = vpack.c.bf16 %v245, %v245
  %v302 = vpack.c.bf16 %v253, %v253
  %v303 = vpack.c.bf16 %v252, %v252
  %v304 = vpack.c.bf16 %v254, %v254
  %v305 = vpack.c.bf16 %v262, %v262
  %v306 = vpack.c.bf16 %v270, %v270
  %v307 = vpack.c.bf16 %v269, %v269
  %v308 = vpack.c.bf16 %v271, %v271
  %v309 = vpack.c.bf16 %v279, %v279
  %v310 = vpack.c.bf16 %v287, %v287
  %v311 = vpack.c.bf16 %v286, %v286
  %v312 = vpack.c.bf16 %v288, %v288
  %v316 = vcombine.high %v219, %v219
  %v318 = vunpack.c.l.s4 1983009808
  %v319 = vunpack.c.0.s8 %v318
  %v320 = vlaneseq
  %v321 = vshrl.u32 %v320, 7
  %v322 = vsub.s32 %v319, %v321
  %v323 = vrot.slane %v219, %v322
  %v325 = vunpack.c.l.s4 1983009808
  %v326 = vunpack.c.0.s8 %v325
  %v327 = vlaneseq
  %v328 = vshrl.u32 %v327, 7
  %v329 = vsub.s32 %v326, %v328
  %v330 = vrot.slane %v316, %v329
  %v331 = vcombine.high %v323, %v323
  %v332 = vcombine.high %v330, %v330
  %v333 = vcombine.high %v222, %v222
  %v335 = vunpack.c.l.s4 1983009808
  %v336 = vunpack.c.0.s8 %v335
  %v337 = vlaneseq
  %v338 = vshrl.u32 %v337, 7
  %v339 = vsub.s32 %v336, %v338
  %v340 = vrot.slane %v222, %v339
  %v342 = vunpack.c.l.s4 1983009808
  %v343 = vunpack.c.0.s8 %v342
  %v344 = vlaneseq
  %v345 = vshrl.u32 %v344, 7
  %v346 = vsub.s32 %v343, %v345
  %v347 = vrot.slane %v333, %v346
  %v348 = vcombine.high %v340, %v340
  %v349 = vcombine.high %v347, %v347
  %v350 = vcombine.high %v227, %v227
  %v352 = vunpack.c.l.s4 1983009808
  %v353 = vunpack.c.0.s8 %v352
  %v354 = vlaneseq
  %v355 = vshrl.u32 %v354, 7
  %v356 = vsub.s32 %v353, %v355
  %v357 = vrot.slane %v227, %v356
  %v359 = vunpack.c.l.s4 1983009808
  %v360 = vunpack.c.0.s8 %v359
  %v361 = vlaneseq
  %v362 = vshrl.u32 %v361, 7
  %v363 = vsub.s32 %v360, %v362
  %v364 = vrot.slane %v350, %v363
  %v365 = vcombine.high %v357, %v357
  %v366 = vcombine.high %v364, %v364
  %v379 = vpack.c.bf16 %v323, %v323
  %v380 = vpack.c.bf16 %v331, %v331
  %v381 = vpack.c.bf16 %v330, %v330
  %v382 = vpack.c.bf16 %v332, %v332
  %v383 = vpack.c.bf16 %v340, %v340
  %v384 = vpack.c.bf16 %v348, %v348
  %v385 = vpack.c.bf16 %v347, %v347
  %v386 = vpack.c.bf16 %v349, %v349
  %v387 = vpack.c.bf16 %v357, %v357
  %v388 = vpack.c.bf16 %v365, %v365
  %v389 = vpack.c.bf16 %v364, %v364
  %v390 = vpack.c.bf16 %v366, %v366
  %392 = vrot.lane.b32.xlu0 %v379, 96
  %v393 = vpop.permute.xlu0 %392
  %vm394 = vcmask 64512
  %v396 = vsel %vm394, %v301, 0
  %v399 = vsel %vm394, %v393, 0
  %401 = vmatprep.subr.bf16.mxu0 0
  %402 = vmatpush1.bf16.xpose.msra.mxu0 %v399
  %403 = vmatprep.subr.bf16.mxu0 0
  %404 = vmatpush1.bf16.xpose.msra.mxu0 0
  %405 = vmatprep.subr.bf16.mxu0 0
  %406 = vmatpush1.bf16.xpose.msra.mxu0 0
  %407 = vmatprep.subr.bf16.mxu0 0
  %408 = vmatpush1.bf16.xpose.msra.mxu0 0
  %409 = vmatprep.subr.bf16.mxu0 0
  %410 = vmatpush1.bf16.xpose.msra.mxu0 0
  %411 = vmatprep.subr.bf16.mxu0 0
  %412 = vmatpush1.bf16.xpose.msra.mxu0 0
  %413 = vmatprep.subr.bf16.mxu0 0
  %414 = vmatpush1.bf16.xpose.msra.mxu0 0
  %415 = vmatprep.subr.bf16.mxu0 0
  %416 = vmatpush1.bf16.xpose.msra.mxu0 0
  %417 = vmatprep.subr.bf16.mxu0 0
  %418 = vmatpush1.bf16.xpose.msra.mxu0 0
  %419 = vmatprep.subr.bf16.mxu0 0
  %420 = vmatpush1.bf16.xpose.msra.mxu0 0
  %421 = vmatprep.subr.bf16.mxu0 0
  %422 = vmatpush1.bf16.xpose.msra.mxu0 0
  %423 = vmatprep.subr.bf16.mxu0 0
  %424 = vmatpush1.bf16.xpose.msra.mxu0 0
  %425 = vmatprep.subr.bf16.mxu0 0
  %426 = vmatpush1.bf16.xpose.msra.mxu0 0
  %427 = vmatprep.subr.bf16.mxu0 0
  %428 = vmatpush1.bf16.xpose.msra.mxu0 0
  %429 = vmatprep.subr.bf16.mxu0 0
  %430 = vmatpush1.bf16.xpose.msra.mxu0 0
  %431 = vmatprep.subr.bf16.mxu0 0
  %432 = vmatpush1.bf16.xpose.msra.mxu0 0
  %433 = vmatprep.mubr.bf16.mxu0 0
  %434 = vmatmul.mubr.bf16.gmra.mrb[0].mxu0 %v396
  %v435 = vpop.f32.mrb[0].mxu0
  %v436 = vadd.f32 0.0, %v435
  %v437 = vpop.f32.mrb[0].mxu0
  %v438 = vpop.f32.mrb[0].mxu0
  %v439 = vpop.f32.mrb[0].mxu0
  %440 = vdwg.mxu0
  %442 = vrot.lane.b32.xlu0 %v380, 96
  %v443 = vpop.permute.xlu0 %442
  %v445 = vsel %vm394, %v302, 0
  %v448 = vsel %vm394, %v443, 0
  %450 = vmatprep.subr.bf16.mxu0 0
  %451 = vmatpush1.bf16.xpose.msra.mxu0 %v448
  %452 = vmatprep.subr.bf16.mxu0 0
  %453 = vmatpush1.bf16.xpose.msra.mxu0 0
  %454 = vmatprep.subr.bf16.mxu0 0
  %455 = vmatpush1.bf16.xpose.msra.mxu0 0
  %456 = vmatprep.subr.bf16.mxu0 0
  %457 = vmatpush1.bf16.xpose.msra.mxu0 0
  %458 = vmatprep.subr.bf16.mxu0 0
  %459 = vmatpush1.bf16.xpose.msra.mxu0 0
  %460 = vmatprep.subr.bf16.mxu0 0
  %461 = vmatpush1.bf16.xpose.msra.mxu0 0
  %462 = vmatprep.subr.bf16.mxu0 0
  %463 = vmatpush1.bf16.xpose.msra.mxu0 0
  %464 = vmatprep.subr.bf16.mxu0 0
  %465 = vmatpush1.bf16.xpose.msra.mxu0 0
  %466 = vmatprep.subr.bf16.mxu0 0
  %467 = vmatpush1.bf16.xpose.msra.mxu0 0
  %468 = vmatprep.subr.bf16.mxu0 0
  %469 = vmatpush1.bf16.xpose.msra.mxu0 0
  %470 = vmatprep.subr.bf16.mxu0 0
  %471 = vmatpush1.bf16.xpose.msra.mxu0 0
  %472 = vmatprep.subr.bf16.mxu0 0
  %473 = vmatpush1.bf16.xpose.msra.mxu0 0
  %474 = vmatprep.subr.bf16.mxu0 0
  %475 = vmatpush1.bf16.xpose.msra.mxu0 0
  %476 = vmatprep.subr.bf16.mxu0 0
  %477 = vmatpush1.bf16.xpose.msra.mxu0 0
  %478 = vmatprep.subr.bf16.mxu0 0
  %479 = vmatpush1.bf16.xpose.msra.mxu0 0
  %480 = vmatprep.subr.bf16.mxu0 0
  %481 = vmatpush1.bf16.xpose.msra.mxu0 0
  %482 = vmatprep.mubr.bf16.mxu0 0
  %483 = vmatmul.mubr.bf16.gmra.mrb[0].mxu0 %v445
  %v484 = vpop.f32.mrb[0].mxu0
  %v485 = vadd.f32 0.0, %v484
  %v486 = vpop.f32.mrb[0].mxu0
  %v487 = vpop.f32.mrb[0].mxu0
  %v488 = vpop.f32.mrb[0].mxu0
  %489 = vdwg.mxu0
  %491 = vrot.lane.b32.xlu0 %v381, 96
  %v492 = vpop.permute.xlu0 %491
  %v494 = vsel %vm394, %v303, 0
  %v497 = vsel %vm394, %v492, 0
  %499 = vmatprep.subr.bf16.mxu0 0
  %500 = vmatpush1.bf16.xpose.msra.mxu0 %v497
  %501 = vmatprep.subr.bf16.mxu0 0
  %502 = vmatpush1.bf16.xpose.msra.mxu0 0
  %503 = vmatprep.subr.bf16.mxu0 0
  %504 = vmatpush1.bf16.xpose.msra.mxu0 0
  %505 = vmatprep.subr.bf16.mxu0 0
  %506 = vmatpush1.bf16.xpose.msra.mxu0 0
  %507 = vmatprep.subr.bf16.mxu0 0
  %508 = vmatpush1.bf16.xpose.msra.mxu0 0
  %509 = vmatprep.subr.bf16.mxu0 0
  %510 = vmatpush1.bf16.xpose.msra.mxu0 0
  %511 = vmatprep.subr.bf16.mxu0 0
  %512 = vmatpush1.bf16.xpose.msra.mxu0 0
  %513 = vmatprep.subr.bf16.mxu0 0
  %514 = vmatpush1.bf16.xpose.msra.mxu0 0
  %515 = vmatprep.subr.bf16.mxu0 0
  %516 = vmatpush1.bf16.xpose.msra.mxu0 0
  %517 = vmatprep.subr.bf16.mxu0 0
  %518 = vmatpush1.bf16.xpose.msra.mxu0 0
  %519 = vmatprep.subr.bf16.mxu0 0
  %520 = vmatpush1.bf16.xpose.msra.mxu0 0
  %521 = vmatprep.subr.bf16.mxu0 0
  %522 = vmatpush1.bf16.xpose.msra.mxu0 0
  %523 = vmatprep.subr.bf16.mxu0 0
  %524 = vmatpush1.bf16.xpose.msra.mxu0 0
  %525 = vmatprep.subr.bf16.mxu0 0
  %526 = vmatpush1.bf16.xpose.msra.mxu0 0
  %527 = vmatprep.subr.bf16.mxu0 0
  %528 = vmatpush1.bf16.xpose.msra.mxu0 0
  %529 = vmatprep.subr.bf16.mxu0 0
  %530 = vmatpush1.bf16.xpose.msra.mxu0 0
  %531 = vmatprep.mubr.bf16.mxu0 0
  %532 = vmatmul.mubr.bf16.gmra.mrb[0].mxu0 %v494
  %v533 = vpop.f32.mrb[0].mxu0
  %v534 = vadd.f32 0.0, %v533
  %v535 = vpop.f32.mrb[0].mxu0
  %v536 = vpop.f32.mrb[0].mxu0
  %v537 = vpop.f32.mrb[0].mxu0
  %538 = vdwg.mxu0
  %540 = vrot.lane.b32.xlu0 %v382, 96
  %v541 = vpop.permute.xlu0 %540
  %v543 = vsel %vm394, %v304, 0
  %v546 = vsel %vm394, %v541, 0
  %548 = vmatprep.subr.bf16.mxu0 0
  %549 = vmatpush1.bf16.xpose.msra.mxu0 %v546
  %550 = vmatprep.subr.bf16.mxu0 0
  %551 = vmatpush1.bf16.xpose.msra.mxu0 0
  %552 = vmatprep.subr.bf16.mxu0 0
  %553 = vmatpush1.bf16.xpose.msra.mxu0 0
  %554 = vmatprep.subr.bf16.mxu0 0
  %555 = vmatpush1.bf16.xpose.msra.mxu0 0
  %556 = vmatprep.subr.bf16.mxu0 0
  %557 = vmatpush1.bf16.xpose.msra.mxu0 0
  %558 = vmatprep.subr.bf16.mxu0 0
  %559 = vmatpush1.bf16.xpose.msra.mxu0 0
  %560 = vmatprep.subr.bf16.mxu0 0
  %561 = vmatpush1.bf16.xpose.msra.mxu0 0
  %562 = vmatprep.subr.bf16.mxu0 0
  %563 = vmatpush1.bf16.xpose.msra.mxu0 0
  %564 = vmatprep.subr.bf16.mxu0 0
  %565 = vmatpush1.bf16.xpose.msra.mxu0 0
  %566 = vmatprep.subr.bf16.mxu0 0
  %567 = vmatpush1.bf16.xpose.msra.mxu0 0
  %568 = vmatprep.subr.bf16.mxu0 0
  %569 = vmatpush1.bf16.xpose.msra.mxu0 0
  %570 = vmatprep.subr.bf16.mxu0 0
  %571 = vmatpush1.bf16.xpose.msra.mxu0 0
  %572 = vmatprep.subr.bf16.mxu0 0
  %573 = vmatpush1.bf16.xpose.msra.mxu0 0
  %574 = vmatprep.subr.bf16.mxu0 0
  %575 = vmatpush1.bf16.xpose.msra.mxu0 0
  %576 = vmatprep.subr.bf16.mxu0 0
  %577 = vmatpush1.bf16.xpose.msra.mxu0 0
  %578 = vmatprep.subr.bf16.mxu0 0
  %579 = vmatpush1.bf16.xpose.msra.mxu0 0
  %580 = vmatprep.mubr.bf16.mxu0 0
  %581 = vmatmul.mubr.bf16.gmra.mrb[0].mxu0 %v543
  %v582 = vpop.f32.mrb[0].mxu0
  %v583 = vadd.f32 0.0, %v582
  %v584 = vpop.f32.mrb[0].mxu0
  %v585 = vpop.f32.mrb[0].mxu0
  %v586 = vpop.f32.mrb[0].mxu0
  %587 = vdwg.mxu0
  %589 = vrot.lane.b32.xlu0 %v383, 96
  %v590 = vpop.permute.xlu0 %589
  %v592 = vsel %vm394, %v305, 0
  %v595 = vsel %vm394, %v590, 0
  %597 = vmatprep.subr.bf16.mxu0 0
  %598 = vmatpush1.bf16.xpose.msra.mxu0 %v595
  %599 = vmatprep.subr.bf16.mxu0 0
  %600 = vmatpush1.bf16.xpose.msra.mxu0 0
  %601 = vmatprep.subr.bf16.mxu0 0
  %602 = vmatpush1.bf16.xpose.msra.mxu0 0
  %603 = vmatprep.subr.bf16.mxu0 0
  %604 = vmatpush1.bf16.xpose.msra.mxu0 0
  %605 = vmatprep.subr.bf16.mxu0 0
  %606 = vmatpush1.bf16.xpose.msra.mxu0 0
  %607 = vmatprep.subr.bf16.mxu0 0
  %608 = vmatpush1.bf16.xpose.msra.mxu0 0
  %609 = vmatprep.subr.bf16.mxu0 0
  %610 = vmatpush1.bf16.xpose.msra.mxu0 0
  %611 = vmatprep.subr.bf16.mxu0 0
  %612 = vmatpush1.bf16.xpose.msra.mxu0 0
  %613 = vmatprep.subr.bf16.mxu0 0
  %614 = vmatpush1.bf16.xpose.msra.mxu0 0
  %615 = vmatprep.subr.bf16.mxu0 0
  %616 = vmatpush1.bf16.xpose.msra.mxu0 0
  %617 = vmatprep.subr.bf16.mxu0 0
  %618 = vmatpush1.bf16.xpose.msra.mxu0 0
  %619 = vmatprep.subr.bf16.mxu0 0
  %620 = vmatpush1.bf16.xpose.msra.mxu0 0
  %621 = vmatprep.subr.bf16.mxu0 0
  %622 = vmatpush1.bf16.xpose.msra.mxu0 0
  %623 = vmatprep.subr.bf16.mxu0 0
  %624 = vmatpush1.bf16.xpose.msra.mxu0 0
  %625 = vmatprep.subr.bf16.mxu0 0
  %626 = vmatpush1.bf16.xpose.msra.mxu0 0
  %627 = vmatprep.subr.bf16.mxu0 0
  %628 = vmatpush1.bf16.xpose.msra.mxu0 0
  %629 = vmatprep.mubr.bf16.mxu0 0
  %630 = vmatmul.mubr.bf16.gmra.mrb[0].mxu0 %v592
  %v631 = vpop.f32.mrb[0].mxu0
  %v632 = vadd.f32 0.0, %v631
  %v633 = vpop.f32.mrb[0].mxu0
  %v634 = vpop.f32.mrb[0].mxu0
  %v635 = vpop.f32.mrb[0].mxu0
  %636 = vdwg.mxu0
  %638 = vrot.lane.b32.xlu0 %v384, 96
  %v639 = vpop.permute.xlu0 %638
  %v641 = vsel %vm394, %v306, 0
  %v644 = vsel %vm394, %v639, 0
  %646 = vmatprep.subr.bf16.mxu0 0
  %647 = vmatpush1.bf16.xpose.msra.mxu0 %v644
  %648 = vmatprep.subr.bf16.mxu0 0
  %649 = vmatpush1.bf16.xpose.msra.mxu0 0
  %650 = vmatprep.subr.bf16.mxu0 0
  %651 = vmatpush1.bf16.xpose.msra.mxu0 0
  %652 = vmatprep.subr.bf16.mxu0 0
  %653 = vmatpush1.bf16.xpose.msra.mxu0 0
  %654 = vmatprep.subr.bf16.mxu0 0
  %655 = vmatpush1.bf16.xpose.msra.mxu0 0
  %656 = vmatprep.subr.bf16.mxu0 0
  %657 = vmatpush1.bf16.xpose.msra.mxu0 0
  %658 = vmatprep.subr.bf16.mxu0 0
  %659 = vmatpush1.bf16.xpose.msra.mxu0 0
  %660 = vmatprep.subr.bf16.mxu0 0
  %661 = vmatpush1.bf16.xpose.msra.mxu0 0
  %662 = vmatprep.subr.bf16.mxu0 0
  %663 = vmatpush1.bf16.xpose.msra.mxu0 0
  %664 = vmatprep.subr.bf16.mxu0 0
  %665 = vmatpush1.bf16.xpose.msra.mxu0 0
  %666 = vmatprep.subr.bf16.mxu0 0
  %667 = vmatpush1.bf16.xpose.msra.mxu0 0
  %668 = vmatprep.subr.bf16.mxu0 0
  %669 = vmatpush1.bf16.xpose.msra.mxu0 0
  %670 = vmatprep.subr.bf16.mxu0 0
  %671 = vmatpush1.bf16.xpose.msra.mxu0 0
  %672 = vmatprep.subr.bf16.mxu0 0
  %673 = vmatpush1.bf16.xpose.msra.mxu0 0
  %674 = vmatprep.subr.bf16.mxu0 0
  %675 = vmatpush1.bf16.xpose.msra.mxu0 0
  %676 = vmatprep.subr.bf16.mxu0 0
  %677 = vmatpush1.bf16.xpose.msra.mxu0 0
  %678 = vmatprep.mubr.bf16.mxu0 0
  %679 = vmatmul.mubr.bf16.gmra.mrb[0].mxu0 %v641
  %v680 = vpop.f32.mrb[0].mxu0
  %v681 = vadd.f32 0.0, %v680
  %v682 = vpop.f32.mrb[0].mxu0
  %v683 = vpop.f32.mrb[0].mxu0
  %v684 = vpop.f32.mrb[0].mxu0
  %685 = vdwg.mxu0
  %687 = vrot.lane.b32.xlu0 %v385, 96
  %v688 = vpop.permute.xlu0 %687
  %v690 = vsel %vm394, %v307, 0
  %v693 = vsel %vm394, %v688, 0
  %695 = vmatprep.subr.bf16.mxu0 0
  %696 = vmatpush1.bf16.xpose.msra.mxu0 %v693
  %697 = vmatprep.subr.bf16.mxu0 0
  %698 = vmatpush1.bf16.xpose.msra.mxu0 0
  %699 = vmatprep.subr.bf16.mxu0 0
  %700 = vmatpush1.bf16.xpose.msra.mxu0 0
  %701 = vmatprep.subr.bf16.mxu0 0
  %702 = vmatpush1.bf16.xpose.msra.mxu0 0
  %703 = vmatprep.subr.bf16.mxu0 0
  %704 = vmatpush1.bf16.xpose.msra.mxu0 0
  %705 = vmatprep.subr.bf16.mxu0 0
  %706 = vmatpush1.bf16.xpose.msra.mxu0 0
  %707 = vmatprep.subr.bf16.mxu0 0
  %708 = vmatpush1.bf16.xpose.msra.mxu0 0
  %709 = vmatprep.subr.bf16.mxu0 0
  %710 = vmatpush1.bf16.xpose.msra.mxu0 0
  %711 = vmatprep.subr.bf16.mxu0 0
  %712 = vmatpush1.bf16.xpose.msra.mxu0 0
  %713 = vmatprep.subr.bf16.mxu0 0
  %714 = vmatpush1.bf16.xpose.msra.mxu0 0
  %715 = vmatprep.subr.bf16.mxu0 0
  %716 = vmatpush1.bf16.xpose.msra.mxu0 0
  %717 = vmatprep.subr.bf16.mxu0 0
  %718 = vmatpush1.bf16.xpose.msra.mxu0 0
  %719 = vmatprep.subr.bf16.mxu0 0
  %720 = vmatpush1.bf16.xpose.msra.mxu0 0
  %721 = vmatprep.subr.bf16.mxu0 0
  %722 = vmatpush1.bf16.xpose.msra.mxu0 0
  %723 = vmatprep.subr.bf16.mxu0 0
  %724 = vmatpush1.bf16.xpose.msra.mxu0 0
  %725 = vmatprep.subr.bf16.mxu0 0
  %726 = vmatpush1.bf16.xpose.msra.mxu0 0
  %727 = vmatprep.mubr.bf16.mxu0 0
  %728 = vmatmul.mubr.bf16.gmra.mrb[0].mxu0 %v690
  %v729 = vpop.f32.mrb[0].mxu0
  %v730 = vadd.f32 0.0, %v729
  %v731 = vpop.f32.mrb[0].mxu0
  %v732 = vpop.f32.mrb[0].mxu0
  %v733 = vpop.f32.mrb[0].mxu0
  %734 = vdwg.mxu0
  %736 = vrot.lane.b32.xlu0 %v386, 96
  %v737 = vpop.permute.xlu0 %736
  %v739 = vsel %vm394, %v308, 0
  %v742 = vsel %vm394, %v737, 0
  %744 = vmatprep.subr.bf16.mxu0 0
  %745 = vmatpush1.bf16.xpose.msra.mxu0 %v742
  %746 = vmatprep.subr.bf16.mxu0 0
  %747 = vmatpush1.bf16.xpose.msra.mxu0 0
  %748 = vmatprep.subr.bf16.mxu0 0
  %749 = vmatpush1.bf16.xpose.msra.mxu0 0
  %750 = vmatprep.subr.bf16.mxu0 0
  %751 = vmatpush1.bf16.xpose.msra.mxu0 0
  %752 = vmatprep.subr.bf16.mxu0 0
  %753 = vmatpush1.bf16.xpose.msra.mxu0 0
  %754 = vmatprep.subr.bf16.mxu0 0
  %755 = vmatpush1.bf16.xpose.msra.mxu0 0
  %756 = vmatprep.subr.bf16.mxu0 0
  %757 = vmatpush1.bf16.xpose.msra.mxu0 0
  %758 = vmatprep.subr.bf16.mxu0 0
  %759 = vmatpush1.bf16.xpose.msra.mxu0 0
  %760 = vmatprep.subr.bf16.mxu0 0
  %761 = vmatpush1.bf16.xpose.msra.mxu0 0
  %762 = vmatprep.subr.bf16.mxu0 0
  %763 = vmatpush1.bf16.xpose.msra.mxu0 0
  %764 = vmatprep.subr.bf16.mxu0 0
  %765 = vmatpush1.bf16.xpose.msra.mxu0 0
  %766 = vmatprep.subr.bf16.mxu0 0
  %767 = vmatpush1.bf16.xpose.msra.mxu0 0
  %768 = vmatprep.subr.bf16.mxu0 0
  %769 = vmatpush1.bf16.xpose.msra.mxu0 0
  %770 = vmatprep.subr.bf16.mxu0 0
  %771 = vmatpush1.bf16.xpose.msra.mxu0 0
  %772 = vmatprep.subr.bf16.mxu0 0
  %773 = vmatpush1.bf16.xpose.msra.mxu0 0
  %774 = vmatprep.subr.bf16.mxu0 0
  %775 = vmatpush1.bf16.xpose.msra.mxu0 0
  %776 = vmatprep.mubr.bf16.mxu0 0
  %777 = vmatmul.mubr.bf16.gmra.mrb[0].mxu0 %v739
  %v778 = vpop.f32.mrb[0].mxu0
  %v779 = vadd.f32 0.0, %v778
  %v780 = vpop.f32.mrb[0].mxu0
  %v781 = vpop.f32.mrb[0].mxu0
  %v782 = vpop.f32.mrb[0].mxu0
  %783 = vdwg.mxu0
  %785 = vrot.lane.b32.xlu0 %v387, 96
  %v786 = vpop.permute.xlu0 %785
  %v788 = vsel %vm394, %v309, 0
  %v791 = vsel %vm394, %v786, 0
  %793 = vmatprep.subr.bf16.mxu0 0
  %794 = vmatpush1.bf16.xpose.msra.mxu0 %v791
  %795 = vmatprep.subr.bf16.mxu0 0
  %796 = vmatpush1.bf16.xpose.msra.mxu0 0
  %797 = vmatprep.subr.bf16.mxu0 0
  %798 = vmatpush1.bf16.xpose.msra.mxu0 0
  %799 = vmatprep.subr.bf16.mxu0 0
  %800 = vmatpush1.bf16.xpose.msra.mxu0 0
  %801 = vmatprep.subr.bf16.mxu0 0
  %802 = vmatpush1.bf16.xpose.msra.mxu0 0
  %803 = vmatprep.subr.bf16.mxu0 0
  %804 = vmatpush1.bf16.xpose.msra.mxu0 0
  %805 = vmatprep.subr.bf16.mxu0 0
  %806 = vmatpush1.bf16.xpose.msra.mxu0 0
  %807 = vmatprep.subr.bf16.mxu0 0
  %808 = vmatpush1.bf16.xpose.msra.mxu0 0
  %809 = vmatprep.subr.bf16.mxu0 0
  %810 = vmatpush1.bf16.xpose.msra.mxu0 0
  %811 = vmatprep.subr.bf16.mxu0 0
  %812 = vmatpush1.bf16.xpose.msra.mxu0 0
  %813 = vmatprep.subr.bf16.mxu0 0
  %814 = vmatpush1.bf16.xpose.msra.mxu0 0
  %815 = vmatprep.subr.bf16.mxu0 0
  %816 = vmatpush1.bf16.xpose.msra.mxu0 0
  %817 = vmatprep.subr.bf16.mxu0 0
  %818 = vmatpush1.bf16.xpose.msra.mxu0 0
  %819 = vmatprep.subr.bf16.mxu0 0
  %820 = vmatpush1.bf16.xpose.msra.mxu0 0
  %821 = vmatprep.subr.bf16.mxu0 0
  %822 = vmatpush1.bf16.xpose.msra.mxu0 0
  %823 = vmatprep.subr.bf16.mxu0 0
  %824 = vmatpush1.bf16.xpose.msra.mxu0 0
  %825 = vmatprep.mubr.bf16.mxu0 0
  %826 = vmatmul.mubr.bf16.gmra.mrb[0].mxu0 %v788
  %v827 = vpop.f32.mrb[0].mxu0
  %v828 = vadd.f32 0.0, %v827
  %v829 = vpop.f32.mrb[0].mxu0
  %v830 = vpop.f32.mrb[0].mxu0
  %v831 = vpop.f32.mrb[0].mxu0
  %832 = vdwg.mxu0
  %834 = vrot.lane.b32.xlu0 %v388, 96
  %v835 = vpop.permute.xlu0 %834
  %v837 = vsel %vm394, %v310, 0
  %v840 = vsel %vm394, %v835, 0
  %842 = vmatprep.subr.bf16.mxu0 0
  %843 = vmatpush1.bf16.xpose.msra.mxu0 %v840
  %844 = vmatprep.subr.bf16.mxu0 0
  %845 = vmatpush1.bf16.xpose.msra.mxu0 0
  %846 = vmatprep.subr.bf16.mxu0 0
  %847 = vmatpush1.bf16.xpose.msra.mxu0 0
  %848 = vmatprep.subr.bf16.mxu0 0
  %849 = vmatpush1.bf16.xpose.msra.mxu0 0
  %850 = vmatprep.subr.bf16.mxu0 0
  %851 = vmatpush1.bf16.xpose.msra.mxu0 0
  %852 = vmatprep.subr.bf16.mxu0 0
  %853 = vmatpush1.bf16.xpose.msra.mxu0 0
  %854 = vmatprep.subr.bf16.mxu0 0
  %855 = vmatpush1.bf16.xpose.msra.mxu0 0
  %856 = vmatprep.subr.bf16.mxu0 0
  %857 = vmatpush1.bf16.xpose.msra.mxu0 0
  %858 = vmatprep.subr.bf16.mxu0 0
  %859 = vmatpush1.bf16.xpose.msra.mxu0 0
  %860 = vmatprep.subr.bf16.mxu0 0
  %861 = vmatpush1.bf16.xpose.msra.mxu0 0
  %862 = vmatprep.subr.bf16.mxu0 0
  %863 = vmatpush1.bf16.xpose.msra.mxu0 0
  %864 = vmatprep.subr.bf16.mxu0 0
  %865 = vmatpush1.bf16.xpose.msra.mxu0 0
  %866 = vmatprep.subr.bf16.mxu0 0
  %867 = vmatpush1.bf16.xpose.msra.mxu0 0
  %868 = vmatprep.subr.bf16.mxu0 0
  %869 = vmatpush1.bf16.xpose.msra.mxu0 0
  %870 = vmatprep.subr.bf16.mxu0 0
  %871 = vmatpush1.bf16.xpose.msra.mxu0 0
  %872 = vmatprep.subr.bf16.mxu0 0
  %873 = vmatpush1.bf16.xpose.msra.mxu0 0
  %874 = vmatprep.mubr.bf16.mxu0 0
  %875 = vmatmul.mubr.bf16.gmra.mrb[0].mxu0 %v837
  %v876 = vpop.f32.mrb[0].mxu0
  %v877 = vadd.f32 0.0, %v876
  %v878 = vpop.f32.mrb[0].mxu0
  %v879 = vpop.f32.mrb[0].mxu0
  %v880 = vpop.f32.mrb[0].mxu0
  %881 = vdwg.mxu0
  %883 = vrot.lane.b32.xlu0 %v389, 96
  %v884 = vpop.permute.xlu0 %883
  %v886 = vsel %vm394, %v311, 0
  %v889 = vsel %vm394, %v884, 0
  %891 = vmatprep.subr.bf16.mxu0 0
  %892 = vmatpush1.bf16.xpose.msra.mxu0 %v889
  %893 = vmatprep.subr.bf16.mxu0 0
  %894 = vmatpush1.bf16.xpose.msra.mxu0 0
  %895 = vmatprep.subr.bf16.mxu0 0
  %896 = vmatpush1.bf16.xpose.msra.mxu0 0
  %897 = vmatprep.subr.bf16.mxu0 0
  %898 = vmatpush1.bf16.xpose.msra.mxu0 0
  %899 = vmatprep.subr.bf16.mxu0 0
  %900 = vmatpush1.bf16.xpose.msra.mxu0 0
  %901 = vmatprep.subr.bf16.mxu0 0
  %902 = vmatpush1.bf16.xpose.msra.mxu0 0
  %903 = vmatprep.subr.bf16.mxu0 0
  %904 = vmatpush1.bf16.xpose.msra.mxu0 0
  %905 = vmatprep.subr.bf16.mxu0 0
  %906 = vmatpush1.bf16.xpose.msra.mxu0 0
  %907 = vmatprep.subr.bf16.mxu0 0
  %908 = vmatpush1.bf16.xpose.msra.mxu0 0
  %909 = vmatprep.subr.bf16.mxu0 0
  %910 = vmatpush1.bf16.xpose.msra.mxu0 0
  %911 = vmatprep.subr.bf16.mxu0 0
  %912 = vmatpush1.bf16.xpose.msra.mxu0 0
  %913 = vmatprep.subr.bf16.mxu0 0
  %914 = vmatpush1.bf16.xpose.msra.mxu0 0
  %915 = vmatprep.subr.bf16.mxu0 0
  %916 = vmatpush1.bf16.xpose.msra.mxu0 0
  %917 = vmatprep.subr.bf16.mxu0 0
  %918 = vmatpush1.bf16.xpose.msra.mxu0 0
  %919 = vmatprep.subr.bf16.mxu0 0
  %920 = vmatpush1.bf16.xpose.msra.mxu0 0
  %921 = vmatprep.subr.bf16.mxu0 0
  %922 = vmatpush1.bf16.xpose.msra.mxu0 0
  %923 = vmatprep.mubr.bf16.mxu0 0
  %924 = vmatmul.mubr.bf16.gmra.mrb[0].mxu0 %v886
  %v925 = vpop.f32.mrb[0].mxu0
  %v926 = vadd.f32 0.0, %v925
  %v927 = vpop.f32.mrb[0].mxu0
  %v928 = vpop.f32.mrb[0].mxu0
  %v929 = vpop.f32.mrb[0].mxu0
  %930 = vdwg.mxu0
  %932 = vrot.lane.b32.xlu0 %v390, 96
  %v933 = vpop.permute.xlu0 %932
  %v935 = vsel %vm394, %v312, 0
  %v938 = vsel %vm394, %v933, 0
  %940 = vmatprep.subr.bf16.mxu0 0
  %941 = vmatpush1.bf16.xpose.msra.mxu0 %v938
  %942 = vmatprep.subr.bf16.mxu0 0
  %943 = vmatpush1.bf16.xpose.msra.mxu0 0
  %944 = vmatprep.subr.bf16.mxu0 0
  %945 = vmatpush1.bf16.xpose.msra.mxu0 0
  %946 = vmatprep.subr.bf16.mxu0 0
  %947 = vmatpush1.bf16.xpose.msra.mxu0 0
  %948 = vmatprep.subr.bf16.mxu0 0
  %949 = vmatpush1.bf16.xpose.msra.mxu0 0
  %950 = vmatprep.subr.bf16.mxu0 0
  %951 = vmatpush1.bf16.xpose.msra.mxu0 0
  %952 = vmatprep.subr.bf16.mxu0 0
  %953 = vmatpush1.bf16.xpose.msra.mxu0 0
  %954 = vmatprep.subr.bf16.mxu0 0
  %955 = vmatpush1.bf16.xpose.msra.mxu0 0
  %956 = vmatprep.subr.bf16.mxu0 0
  %957 = vmatpush1.bf16.xpose.msra.mxu0 0
  %958 = vmatprep.subr.bf16.mxu0 0
  %959 = vmatpush1.bf16.xpose.msra.mxu0 0
  %960 = vmatprep.subr.bf16.mxu0 0
  %961 = vmatpush1.bf16.xpose.msra.mxu0 0
  %962 = vmatprep.subr.bf16.mxu0 0
  %963 = vmatpush1.bf16.xpose.msra.mxu0 0
  %964 = vmatprep.subr.bf16.mxu0 0
  %965 = vmatpush1.bf16.xpose.msra.mxu0 0
  %966 = vmatprep.subr.bf16.mxu0 0
  %967 = vmatpush1.bf16.xpose.msra.mxu0 0
  %968 = vmatprep.subr.bf16.mxu0 0
  %969 = vmatpush1.bf16.xpose.msra.mxu0 0
  %970 = vmatprep.subr.bf16.mxu0 0
  %971 = vmatpush1.bf16.xpose.msra.mxu0 0
  %972 = vmatprep.mubr.bf16.mxu0 0
  %973 = vmatmul.mubr.bf16.gmra.mrb[0].mxu0 %v935
  %v974 = vpop.f32.mrb[0].mxu0
  %v975 = vadd.f32 0.0, %v974
  %v976 = vpop.f32.mrb[0].mxu0
  %v977 = vpop.f32.mrb[0].mxu0
  %v978 = vpop.f32.mrb[0].mxu0
  %979 = vdwg.mxu0
  %vm980 = vcmask 9216
  %v981 = vsel %vm980, %v436, -inf
  %982 = vmax.xlane.f32.xlu0 %v981
  %v983 = vpop.xlane.xlu0 %982
  %v984 = vsel %vm980, %v485, -inf
  %985 = vmax.xlane.f32.xlu0 %v984
  %v986 = vpop.xlane.xlu0 %985
  %v987 = vsel %vm980, %v534, -inf
  %988 = vmax.xlane.f32.xlu0 %v987
  %v989 = vpop.xlane.xlu0 %988
  %v990 = vsel %vm980, %v583, -inf
  %991 = vmax.xlane.f32.xlu0 %v990
  %v992 = vpop.xlane.xlu0 %991
  %v993 = vsel %vm980, %v632, -inf
  %994 = vmax.xlane.f32.xlu0 %v993
  %v995 = vpop.xlane.xlu0 %994
  %v996 = vsel %vm980, %v681, -inf
  %997 = vmax.xlane.f32.xlu0 %v996
  %v998 = vpop.xlane.xlu0 %997
  %v999 = vsel %vm980, %v730, -inf
  %1000 = vmax.xlane.f32.xlu0 %v999
  %v1001 = vpop.xlane.xlu0 %1000
  %v1002 = vsel %vm980, %v779, -inf
  %1003 = vmax.xlane.f32.xlu0 %v1002
  %v1004 = vpop.xlane.xlu0 %1003
  %v1005 = vsel %vm980, %v828, -inf
  %1006 = vmax.xlane.f32.xlu0 %v1005
  %v1007 = vpop.xlane.xlu0 %1006
  %v1008 = vsel %vm980, %v877, -inf
  %1009 = vmax.xlane.f32.xlu0 %v1008
  %v1010 = vpop.xlane.xlu0 %1009
  %v1011 = vsel %vm980, %v926, -inf
  %1012 = vmax.xlane.f32.xlu0 %v1011
  %v1013 = vpop.xlane.xlu0 %1012
  %v1014 = vsel %vm980, %v975, -inf
  %1015 = vmax.xlane.f32.xlu0 %v1014
  %v1016 = vpop.xlane.xlu0 %1015
  %v1017 = vsub.f32 %v436, %v983
  %v1018 = vsub.f32 %v485, %v986
  %v1019 = vsub.f32 %v534, %v989
  %v1020 = vsub.f32 %v583, %v992
  %v1021 = vsub.f32 %v632, %v995
  %v1022 = vsub.f32 %v681, %v998
  %v1023 = vsub.f32 %v730, %v1001
  %v1024 = vsub.f32 %v779, %v1004
  %v1025 = vsub.f32 %v828, %v1007
  %v1026 = vsub.f32 %v877, %v1010
  %v1027 = vsub.f32 %v926, %v1013
  %v1028 = vsub.f32 %v975, %v1016
  %v1029 = vmul.f32 %v1017, 1.442695
  %v1030 = vpow.pop %v1029
  %v1031 = vmul.f32 %v1018, 1.442695
  %v1032 = vpow.pop %v1031
  %v1033 = vmul.f32 %v1019, 1.442695
  %v1034 = vpow.pop %v1033
  %v1035 = vmul.f32 %v1020, 1.442695
  %v1036 = vpow.pop %v1035
  %v1037 = vmul.f32 %v1021, 1.442695
  %v1038 = vpow.pop %v1037
  %v1039 = vmul.f32 %v1022, 1.442695
  %v1040 = vpow.pop %v1039
  %v1041 = vmul.f32 %v1023, 1.442695
  %v1042 = vpow.pop %v1041
  %v1043 = vmul.f32 %v1024, 1.442695
  %v1044 = vpow.pop %v1043
  %v1045 = vmul.f32 %v1025, 1.442695
  %v1046 = vpow.pop %v1045
  %v1047 = vmul.f32 %v1026, 1.442695
  %v1048 = vpow.pop %v1047
  %v1049 = vmul.f32 %v1027, 1.442695
  %v1050 = vpow.pop %v1049
  %v1051 = vmul.f32 %v1028, 1.442695
  %v1052 = vpow.pop %v1051
  %v1053 = vsel %vm980, %v1030, 0.0
  %1054 = vadd.xlane.f32.xlu0 %v1053
  %v1055 = vpop.xlane.xlu0 %1054
  %v1056 = vsel %vm980, %v1032, 0.0
  %1057 = vadd.xlane.f32.xlu0 %v1056
  %v1058 = vpop.xlane.xlu0 %1057
  %v1059 = vsel %vm980, %v1034, 0.0
  %1060 = vadd.xlane.f32.xlu0 %v1059
  %v1061 = vpop.xlane.xlu0 %1060
  %v1062 = vsel %vm980, %v1036, 0.0
  %1063 = vadd.xlane.f32.xlu0 %v1062
  %v1064 = vpop.xlane.xlu0 %1063
  %v1065 = vsel %vm980, %v1038, 0.0
  %1066 = vadd.xlane.f32.xlu0 %v1065
  %v1067 = vpop.xlane.xlu0 %1066
  %v1068 = vsel %vm980, %v1040, 0.0
  %1069 = vadd.xlane.f32.xlu0 %v1068
  %v1070 = vpop.xlane.xlu0 %1069
  %v1071 = vsel %vm980, %v1042, 0.0
  %1072 = vadd.xlane.f32.xlu0 %v1071
  %v1073 = vpop.xlane.xlu0 %1072
  %v1074 = vsel %vm980, %v1044, 0.0
  %1075 = vadd.xlane.f32.xlu0 %v1074
  %v1076 = vpop.xlane.xlu0 %1075
  %v1077 = vsel %vm980, %v1046, 0.0
  %1078 = vadd.xlane.f32.xlu0 %v1077
  %v1079 = vpop.xlane.xlu0 %1078
  %v1080 = vsel %vm980, %v1048, 0.0
  %1081 = vadd.xlane.f32.xlu0 %v1080
  %v1082 = vpop.xlane.xlu0 %1081
  %v1083 = vsel %vm980, %v1050, 0.0
  %1084 = vadd.xlane.f32.xlu0 %v1083
  %v1085 = vpop.xlane.xlu0 %1084
  %v1086 = vsel %vm980, %v1052, 0.0
  %1087 = vadd.xlane.f32.xlu0 %v1086
  %v1088 = vpop.xlane.xlu0 %1087
  %v1089 = vrcp.pop %v1055
  %v1090 = vrcp.pop %v1058
  %v1091 = vrcp.pop %v1061
  %v1092 = vrcp.pop %v1064
  %v1093 = vrcp.pop %v1067
  %v1094 = vrcp.pop %v1070
  %v1095 = vrcp.pop %v1073
  %v1096 = vrcp.pop %v1076
  %v1097 = vrcp.pop %v1079
  %v1098 = vrcp.pop %v1082
  %v1099 = vrcp.pop %v1085
  %v1100 = vrcp.pop %v1088
  %v1101 = vmul.f32 %v1030, %v1089
  %v1102 = vmul.f32 %v1032, %v1090
  %v1103 = vmul.f32 %v1034, %v1091
  %v1104 = vmul.f32 %v1036, %v1092
  %v1105 = vmul.f32 %v1038, %v1093
  %v1106 = vmul.f32 %v1040, %v1094
  %v1107 = vmul.f32 %v1042, %v1095
  %v1108 = vmul.f32 %v1044, %v1096
  %v1109 = vmul.f32 %v1046, %v1097
  %v1110 = vmul.f32 %v1048, %v1098
  %v1111 = vmul.f32 %v1050, %v1099
  %v1112 = vmul.f32 %v1052, %v1100
  %v1113 = vpack.c.bf16 %v1101, %v1101
  %v1114 = vpack.c.bf16 %v1102, %v1102
  %v1115 = vpack.c.bf16 %v1103, %v1103
  %v1116 = vpack.c.bf16 %v1104, %v1104
  %v1117 = vpack.c.bf16 %v1105, %v1105
  %v1118 = vpack.c.bf16 %v1106, %v1106
  %v1119 = vpack.c.bf16 %v1107, %v1107
  %v1120 = vpack.c.bf16 %v1108, %v1108
  %v1121 = vpack.c.bf16 %v1109, %v1109
  %v1122 = vpack.c.bf16 %v1110, %v1110
  %v1123 = vpack.c.bf16 %v1111, %v1111
  %v1124 = vpack.c.bf16 %v1112, %v1112
  %1125 = vrot.lane.b32.xlu0 %v379, 64
  %v1126 = vpop.permute.xlu0 %1125
  %vm1127 = vcmask 15360
  %v1129 = vsel %vm1127, %v1113, 0
  %vm1131 = vcmask 1040384
  %v1133 = vsel %vm1131, %v1126, 0
  %1135 = vmatprep.subr.bf16.mxu0 0
  %1136 = vmatpush1.bf16.msra.mxu0 %v1133
  %1137 = vmatprep.subr.bf16.mxu0 0
  %1138 = vmatpush1.bf16.msra.mxu0 0
  %1139 = vmatprep.subr.bf16.mxu0 0
  %1140 = vmatpush1.bf16.msra.mxu0 0
  %1141 = vmatprep.subr.bf16.mxu0 0
  %1142 = vmatpush1.bf16.msra.mxu0 0
  %1143 = vmatprep.subr.bf16.mxu0 0
  %1144 = vmatpush1.bf16.msra.mxu0 0
  %1145 = vmatprep.subr.bf16.mxu0 0
  %1146 = vmatpush1.bf16.msra.mxu0 0
  %1147 = vmatprep.subr.bf16.mxu0 0
  %1148 = vmatpush1.bf16.msra.mxu0 0
  %1149 = vmatprep.subr.bf16.mxu0 0
  %1150 = vmatpush1.bf16.msra.mxu0 0
  %1151 = vmatprep.subr.bf16.mxu0 0
  %1152 = vmatpush1.bf16.msra.mxu0 0
  %1153 = vmatprep.subr.bf16.mxu0 0
  %1154 = vmatpush1.bf16.msra.mxu0 0
  %1155 = vmatprep.subr.bf16.mxu0 0
  %1156 = vmatpush1.bf16.msra.mxu0 0
  %1157 = vmatprep.subr.bf16.mxu0 0
  %1158 = vmatpush1.bf16.msra.mxu0 0
  %1159 = vmatprep.subr.bf16.mxu0 0
  %1160 = vmatpush1.bf16.msra.mxu0 0
  %1161 = vmatprep.subr.bf16.mxu0 0
  %1162 = vmatpush1.bf16.msra.mxu0 0
  %1163 = vmatprep.subr.bf16.mxu0 0
  %1164 = vmatpush1.bf16.msra.mxu0 0
  %1165 = vmatprep.subr.bf16.mxu0 0
  %1166 = vmatpush1.bf16.msra.mxu0 0
  %1167 = vmatprep.mubr.bf16.mxu0 0
  %1168 = vmatmul.mubr.bf16.gmra.mrb[0].mxu0 %v1129
  %v1169 = vpop.f32.mrb[0].mxu0
  %v1170 = vadd.f32 0.0, %v1169
  %v1171 = vpop.f32.mrb[0].mxu0
  %v1172 = vpop.f32.mrb[0].mxu0
  %v1173 = vpop.f32.mrb[0].mxu0
  %1174 = vdwg.mxu0
  %1175 = vrot.lane.b32.xlu0 %v380, 64
  %v1176 = vpop.permute.xlu0 %1175
  %v1178 = vsel %vm1127, %v1114, 0
  %v1181 = vsel %vm1131, %v1176, 0
  %1183 = vmatprep.subr.bf16.mxu0 0
  %1184 = vmatpush1.bf16.msra.mxu0 %v1181
  %1185 = vmatprep.subr.bf16.mxu0 0
  %1186 = vmatpush1.bf16.msra.mxu0 0
  %1187 = vmatprep.subr.bf16.mxu0 0
  %1188 = vmatpush1.bf16.msra.mxu0 0
  %1189 = vmatprep.subr.bf16.mxu0 0
  %1190 = vmatpush1.bf16.msra.mxu0 0
  %1191 = vmatprep.subr.bf16.mxu0 0
  %1192 = vmatpush1.bf16.msra.mxu0 0
  %1193 = vmatprep.subr.bf16.mxu0 0
  %1194 = vmatpush1.bf16.msra.mxu0 0
  %1195 = vmatprep.subr.bf16.mxu0 0
  %1196 = vmatpush1.bf16.msra.mxu0 0
  %1197 = vmatprep.subr.bf16.mxu0 0
  %1198 = vmatpush1.bf16.msra.mxu0 0
  %1199 = vmatprep.subr.bf16.mxu0 0
  %1200 = vmatpush1.bf16.msra.mxu0 0
  %1201 = vmatprep.subr.bf16.mxu0 0
  %1202 = vmatpush1.bf16.msra.mxu0 0
  %1203 = vmatprep.subr.bf16.mxu0 0
  %1204 = vmatpush1.bf16.msra.mxu0 0
  %1205 = vmatprep.subr.bf16.mxu0 0
  %1206 = vmatpush1.bf16.msra.mxu0 0
  %1207 = vmatprep.subr.bf16.mxu0 0
  %1208 = vmatpush1.bf16.msra.mxu0 0
  %1209 = vmatprep.subr.bf16.mxu0 0
  %1210 = vmatpush1.bf16.msra.mxu0 0
  %1211 = vmatprep.subr.bf16.mxu0 0
  %1212 = vmatpush1.bf16.msra.mxu0 0
  %1213 = vmatprep.subr.bf16.mxu0 0
  %1214 = vmatpush1.bf16.msra.mxu0 0
  %1215 = vmatprep.mubr.bf16.mxu0 0
  %1216 = vmatmul.mubr.bf16.gmra.mrb[0].mxu0 %v1178
  %v1217 = vpop.f32.mrb[0].mxu0
  %v1218 = vadd.f32 0.0, %v1217
  %v1219 = vpop.f32.mrb[0].mxu0
  %v1220 = vpop.f32.mrb[0].mxu0
  %v1221 = vpop.f32.mrb[0].mxu0
  %1222 = vdwg.mxu0
  %1223 = vrot.lane.b32.xlu0 %v381, 64
  %v1224 = vpop.permute.xlu0 %1223
  %v1226 = vsel %vm1127, %v1115, 0
  %v1229 = vsel %vm1131, %v1224, 0
  %1231 = vmatprep.subr.bf16.mxu0 0
  %1232 = vmatpush1.bf16.msra.mxu0 %v1229
  %1233 = vmatprep.subr.bf16.mxu0 0
  %1234 = vmatpush1.bf16.msra.mxu0 0
  %1235 = vmatprep.subr.bf16.mxu0 0
  %1236 = vmatpush1.bf16.msra.mxu0 0
  %1237 = vmatprep.subr.bf16.mxu0 0
  %1238 = vmatpush1.bf16.msra.mxu0 0
  %1239 = vmatprep.subr.bf16.mxu0 0
  %1240 = vmatpush1.bf16.msra.mxu0 0
  %1241 = vmatprep.subr.bf16.mxu0 0
  %1242 = vmatpush1.bf16.msra.mxu0 0
  %1243 = vmatprep.subr.bf16.mxu0 0
  %1244 = vmatpush1.bf16.msra.mxu0 0
  %1245 = vmatprep.subr.bf16.mxu0 0
  %1246 = vmatpush1.bf16.msra.mxu0 0
  %1247 = vmatprep.subr.bf16.mxu0 0
  %1248 = vmatpush1.bf16.msra.mxu0 0
  %1249 = vmatprep.subr.bf16.mxu0 0
  %1250 = vmatpush1.bf16.msra.mxu0 0
  %1251 = vmatprep.subr.bf16.mxu0 0
  %1252 = vmatpush1.bf16.msra.mxu0 0
  %1253 = vmatprep.subr.bf16.mxu0 0
  %1254 = vmatpush1.bf16.msra.mxu0 0
  %1255 = vmatprep.subr.bf16.mxu0 0
  %1256 = vmatpush1.bf16.msra.mxu0 0
  %1257 = vmatprep.subr.bf16.mxu0 0
  %1258 = vmatpush1.bf16.msra.mxu0 0
  %1259 = vmatprep.subr.bf16.mxu0 0
  %1260 = vmatpush1.bf16.msra.mxu0 0
  %1261 = vmatprep.subr.bf16.mxu0 0
  %1262 = vmatpush1.bf16.msra.mxu0 0
  %1263 = vmatprep.mubr.bf16.mxu0 0
  %1264 = vmatmul.mubr.bf16.gmra.mrb[0].mxu0 %v1226
  %v1265 = vpop.f32.mrb[0].mxu0
  %v1266 = vadd.f32 0.0, %v1265
  %v1267 = vpop.f32.mrb[0].mxu0
  %v1268 = vpop.f32.mrb[0].mxu0
  %v1269 = vpop.f32.mrb[0].mxu0
  %1270 = vdwg.mxu0
  %1271 = vrot.lane.b32.xlu0 %v382, 64
  %v1272 = vpop.permute.xlu0 %1271
  %v1274 = vsel %vm1127, %v1116, 0
  %v1277 = vsel %vm1131, %v1272, 0
  %1279 = vmatprep.subr.bf16.mxu0 0
  %1280 = vmatpush1.bf16.msra.mxu0 %v1277
  %1281 = vmatprep.subr.bf16.mxu0 0
  %1282 = vmatpush1.bf16.msra.mxu0 0
  %1283 = vmatprep.subr.bf16.mxu0 0
  %1284 = vmatpush1.bf16.msra.mxu0 0
  %1285 = vmatprep.subr.bf16.mxu0 0
  %1286 = vmatpush1.bf16.msra.mxu0 0
  %1287 = vmatprep.subr.bf16.mxu0 0
  %1288 = vmatpush1.bf16.msra.mxu0 0
  %1289 = vmatprep.subr.bf16.mxu0 0
  %1290 = vmatpush1.bf16.msra.mxu0 0
  %1291 = vmatprep.subr.bf16.mxu0 0
  %1292 = vmatpush1.bf16.msra.mxu0 0
  %1293 = vmatprep.subr.bf16.mxu0 0
  %1294 = vmatpush1.bf16.msra.mxu0 0
  %1295 = vmatprep.subr.bf16.mxu0 0
  %1296 = vmatpush1.bf16.msra.mxu0 0
  %1297 = vmatprep.subr.bf16.mxu0 0
  %1298 = vmatpush1.bf16.msra.mxu0 0
  %1299 = vmatprep.subr.bf16.mxu0 0
  %1300 = vmatpush1.bf16.msra.mxu0 0
  %1301 = vmatprep.subr.bf16.mxu0 0
  %1302 = vmatpush1.bf16.msra.mxu0 0
  %1303 = vmatprep.subr.bf16.mxu0 0
  %1304 = vmatpush1.bf16.msra.mxu0 0
  %1305 = vmatprep.subr.bf16.mxu0 0
  %1306 = vmatpush1.bf16.msra.mxu0 0
  %1307 = vmatprep.subr.bf16.mxu0 0
  %1308 = vmatpush1.bf16.msra.mxu0 0
  %1309 = vmatprep.subr.bf16.mxu0 0
  %1310 = vmatpush1.bf16.msra.mxu0 0
  %1311 = vmatprep.mubr.bf16.mxu0 0
  %1312 = vmatmul.mubr.bf16.gmra.mrb[0].mxu0 %v1274
  %v1313 = vpop.f32.mrb[0].mxu0
  %v1314 = vadd.f32 0.0, %v1313
  %v1315 = vpop.f32.mrb[0].mxu0
  %v1316 = vpop.f32.mrb[0].mxu0
  %v1317 = vpop.f32.mrb[0].mxu0
  %1318 = vdwg.mxu0
  %1319 = vrot.lane.b32.xlu0 %v383, 64
  %v1320 = vpop.permute.xlu0 %1319
  %v1322 = vsel %vm1127, %v1117, 0
  %v1325 = vsel %vm1131, %v1320, 0
  %1327 = vmatprep.subr.bf16.mxu0 0
  %1328 = vmatpush1.bf16.msra.mxu0 %v1325
  %1329 = vmatprep.subr.bf16.mxu0 0
  %1330 = vmatpush1.bf16.msra.mxu0 0
  %1331 = vmatprep.subr.bf16.mxu0 0
  %1332 = vmatpush1.bf16.msra.mxu0 0
  %1333 = vmatprep.subr.bf16.mxu0 0
  %1334 = vmatpush1.bf16.msra.mxu0 0
  %1335 = vmatprep.subr.bf16.mxu0 0
  %1336 = vmatpush1.bf16.msra.mxu0 0
  %1337 = vmatprep.subr.bf16.mxu0 0
  %1338 = vmatpush1.bf16.msra.mxu0 0
  %1339 = vmatprep.subr.bf16.mxu0 0
  %1340 = vmatpush1.bf16.msra.mxu0 0
  %1341 = vmatprep.subr.bf16.mxu0 0
  %1342 = vmatpush1.bf16.msra.mxu0 0
  %1343 = vmatprep.subr.bf16.mxu0 0
  %1344 = vmatpush1.bf16.msra.mxu0 0
  %1345 = vmatprep.subr.bf16.mxu0 0
  %1346 = vmatpush1.bf16.msra.mxu0 0
  %1347 = vmatprep.subr.bf16.mxu0 0
  %1348 = vmatpush1.bf16.msra.mxu0 0
  %1349 = vmatprep.subr.bf16.mxu0 0
  %1350 = vmatpush1.bf16.msra.mxu0 0
  %1351 = vmatprep.subr.bf16.mxu0 0
  %1352 = vmatpush1.bf16.msra.mxu0 0
  %1353 = vmatprep.subr.bf16.mxu0 0
  %1354 = vmatpush1.bf16.msra.mxu0 0
  %1355 = vmatprep.subr.bf16.mxu0 0
  %1356 = vmatpush1.bf16.msra.mxu0 0
  %1357 = vmatprep.subr.bf16.mxu0 0
  %1358 = vmatpush1.bf16.msra.mxu0 0
  %1359 = vmatprep.mubr.bf16.mxu0 0
  %1360 = vmatmul.mubr.bf16.gmra.mrb[0].mxu0 %v1322
  %v1361 = vpop.f32.mrb[0].mxu0
  %v1362 = vadd.f32 0.0, %v1361
  %v1363 = vpop.f32.mrb[0].mxu0
  %v1364 = vpop.f32.mrb[0].mxu0
  %v1365 = vpop.f32.mrb[0].mxu0
  %1366 = vdwg.mxu0
  %1367 = vrot.lane.b32.xlu0 %v384, 64
  %v1368 = vpop.permute.xlu0 %1367
  %v1370 = vsel %vm1127, %v1118, 0
  %v1373 = vsel %vm1131, %v1368, 0
  %1375 = vmatprep.subr.bf16.mxu0 0
  %1376 = vmatpush1.bf16.msra.mxu0 %v1373
  %1377 = vmatprep.subr.bf16.mxu0 0
  %1378 = vmatpush1.bf16.msra.mxu0 0
  %1379 = vmatprep.subr.bf16.mxu0 0
  %1380 = vmatpush1.bf16.msra.mxu0 0
  %1381 = vmatprep.subr.bf16.mxu0 0
  %1382 = vmatpush1.bf16.msra.mxu0 0
  %1383 = vmatprep.subr.bf16.mxu0 0
  %1384 = vmatpush1.bf16.msra.mxu0 0
  %1385 = vmatprep.subr.bf16.mxu0 0
  %1386 = vmatpush1.bf16.msra.mxu0 0
  %1387 = vmatprep.subr.bf16.mxu0 0
  %1388 = vmatpush1.bf16.msra.mxu0 0
  %1389 = vmatprep.subr.bf16.mxu0 0
  %1390 = vmatpush1.bf16.msra.mxu0 0
  %1391 = vmatprep.subr.bf16.mxu0 0
  %1392 = vmatpush1.bf16.msra.mxu0 0
  %1393 = vmatprep.subr.bf16.mxu0 0
  %1394 = vmatpush1.bf16.msra.mxu0 0
  %1395 = vmatprep.subr.bf16.mxu0 0
  %1396 = vmatpush1.bf16.msra.mxu0 0
  %1397 = vmatprep.subr.bf16.mxu0 0
  %1398 = vmatpush1.bf16.msra.mxu0 0
  %1399 = vmatprep.subr.bf16.mxu0 0
  %1400 = vmatpush1.bf16.msra.mxu0 0
  %1401 = vmatprep.subr.bf16.mxu0 0
  %1402 = vmatpush1.bf16.msra.mxu0 0
  %1403 = vmatprep.subr.bf16.mxu0 0
  %1404 = vmatpush1.bf16.msra.mxu0 0
  %1405 = vmatprep.subr.bf16.mxu0 0
  %1406 = vmatpush1.bf16.msra.mxu0 0
  %1407 = vmatprep.mubr.bf16.mxu0 0
  %1408 = vmatmul.mubr.bf16.gmra.mrb[0].mxu0 %v1370
  %v1409 = vpop.f32.mrb[0].mxu0
  %v1410 = vadd.f32 0.0, %v1409
  %v1411 = vpop.f32.mrb[0].mxu0
  %v1412 = vpop.f32.mrb[0].mxu0
  %v1413 = vpop.f32.mrb[0].mxu0
  %1414 = vdwg.mxu0
  %1415 = vrot.lane.b32.xlu0 %v385, 64
  %v1416 = vpop.permute.xlu0 %1415
  %v1418 = vsel %vm1127, %v1119, 0
  %v1421 = vsel %vm1131, %v1416, 0
  %1423 = vmatprep.subr.bf16.mxu0 0
  %1424 = vmatpush1.bf16.msra.mxu0 %v1421
  %1425 = vmatprep.subr.bf16.mxu0 0
  %1426 = vmatpush1.bf16.msra.mxu0 0
  %1427 = vmatprep.subr.bf16.mxu0 0
  %1428 = vmatpush1.bf16.msra.mxu0 0
  %1429 = vmatprep.subr.bf16.mxu0 0
  %1430 = vmatpush1.bf16.msra.mxu0 0
  %1431 = vmatprep.subr.bf16.mxu0 0
  %1432 = vmatpush1.bf16.msra.mxu0 0
  %1433 = vmatprep.subr.bf16.mxu0 0
  %1434 = vmatpush1.bf16.msra.mxu0 0
  %1435 = vmatprep.subr.bf16.mxu0 0
  %1436 = vmatpush1.bf16.msra.mxu0 0
  %1437 = vmatprep.subr.bf16.mxu0 0
  %1438 = vmatpush1.bf16.msra.mxu0 0
  %1439 = vmatprep.subr.bf16.mxu0 0
  %1440 = vmatpush1.bf16.msra.mxu0 0
  %1441 = vmatprep.subr.bf16.mxu0 0
  %1442 = vmatpush1.bf16.msra.mxu0 0
  %1443 = vmatprep.subr.bf16.mxu0 0
  %1444 = vmatpush1.bf16.msra.mxu0 0
  %1445 = vmatprep.subr.bf16.mxu0 0
  %1446 = vmatpush1.bf16.msra.mxu0 0
  %1447 = vmatprep.subr.bf16.mxu0 0
  %1448 = vmatpush1.bf16.msra.mxu0 0
  %1449 = vmatprep.subr.bf16.mxu0 0
  %1450 = vmatpush1.bf16.msra.mxu0 0
  %1451 = vmatprep.subr.bf16.mxu0 0
  %1452 = vmatpush1.bf16.msra.mxu0 0
  %1453 = vmatprep.subr.bf16.mxu0 0
  %1454 = vmatpush1.bf16.msra.mxu0 0
  %1455 = vmatprep.mubr.bf16.mxu0 0
  %1456 = vmatmul.mubr.bf16.gmra.mrb[0].mxu0 %v1418
  %v1457 = vpop.f32.mrb[0].mxu0
  %v1458 = vadd.f32 0.0, %v1457
  %v1459 = vpop.f32.mrb[0].mxu0
  %v1460 = vpop.f32.mrb[0].mxu0
  %v1461 = vpop.f32.mrb[0].mxu0
  %1462 = vdwg.mxu0
  %1463 = vrot.lane.b32.xlu0 %v386, 64
  %v1464 = vpop.permute.xlu0 %1463
  %v1466 = vsel %vm1127, %v1120, 0
  %v1469 = vsel %vm1131, %v1464, 0
  %1471 = vmatprep.subr.bf16.mxu0 0
  %1472 = vmatpush1.bf16.msra.mxu0 %v1469
  %1473 = vmatprep.subr.bf16.mxu0 0
  %1474 = vmatpush1.bf16.msra.mxu0 0
  %1475 = vmatprep.subr.bf16.mxu0 0
  %1476 = vmatpush1.bf16.msra.mxu0 0
  %1477 = vmatprep.subr.bf16.mxu0 0
  %1478 = vmatpush1.bf16.msra.mxu0 0
  %1479 = vmatprep.subr.bf16.mxu0 0
  %1480 = vmatpush1.bf16.msra.mxu0 0
  %1481 = vmatprep.subr.bf16.mxu0 0
  %1482 = vmatpush1.bf16.msra.mxu0 0
  %1483 = vmatprep.subr.bf16.mxu0 0
  %1484 = vmatpush1.bf16.msra.mxu0 0
  %1485 = vmatprep.subr.bf16.mxu0 0
  %1486 = vmatpush1.bf16.msra.mxu0 0
  %1487 = vmatprep.subr.bf16.mxu0 0
  %1488 = vmatpush1.bf16.msra.mxu0 0
  %1489 = vmatprep.subr.bf16.mxu0 0
  %1490 = vmatpush1.bf16.msra.mxu0 0
  %1491 = vmatprep.subr.bf16.mxu0 0
  %1492 = vmatpush1.bf16.msra.mxu0 0
  %1493 = vmatprep.subr.bf16.mxu0 0
  %1494 = vmatpush1.bf16.msra.mxu0 0
  %1495 = vmatprep.subr.bf16.mxu0 0
  %1496 = vmatpush1.bf16.msra.mxu0 0
  %1497 = vmatprep.subr.bf16.mxu0 0
  %1498 = vmatpush1.bf16.msra.mxu0 0
  %1499 = vmatprep.subr.bf16.mxu0 0
  %1500 = vmatpush1.bf16.msra.mxu0 0
  %1501 = vmatprep.subr.bf16.mxu0 0
  %1502 = vmatpush1.bf16.msra.mxu0 0
  %1503 = vmatprep.mubr.bf16.mxu0 0
  %1504 = vmatmul.mubr.bf16.gmra.mrb[0].mxu0 %v1466
  %v1505 = vpop.f32.mrb[0].mxu0
  %v1506 = vadd.f32 0.0, %v1505
  %v1507 = vpop.f32.mrb[0].mxu0
  %v1508 = vpop.f32.mrb[0].mxu0
  %v1509 = vpop.f32.mrb[0].mxu0
  %1510 = vdwg.mxu0
  %1511 = vrot.lane.b32.xlu0 %v387, 64
  %v1512 = vpop.permute.xlu0 %1511
  %v1514 = vsel %vm1127, %v1121, 0
  %v1517 = vsel %vm1131, %v1512, 0
  %1519 = vmatprep.subr.bf16.mxu0 0
  %1520 = vmatpush1.bf16.msra.mxu0 %v1517
  %1521 = vmatprep.subr.bf16.mxu0 0
  %1522 = vmatpush1.bf16.msra.mxu0 0
  %1523 = vmatprep.subr.bf16.mxu0 0
  %1524 = vmatpush1.bf16.msra.mxu0 0
  %1525 = vmatprep.subr.bf16.mxu0 0
  %1526 = vmatpush1.bf16.msra.mxu0 0
  %1527 = vmatprep.subr.bf16.mxu0 0
  %1528 = vmatpush1.bf16.msra.mxu0 0
  %1529 = vmatprep.subr.bf16.mxu0 0
  %1530 = vmatpush1.bf16.msra.mxu0 0
  %1531 = vmatprep.subr.bf16.mxu0 0
  %1532 = vmatpush1.bf16.msra.mxu0 0
  %1533 = vmatprep.subr.bf16.mxu0 0
  %1534 = vmatpush1.bf16.msra.mxu0 0
  %1535 = vmatprep.subr.bf16.mxu0 0
  %1536 = vmatpush1.bf16.msra.mxu0 0
  %1537 = vmatprep.subr.bf16.mxu0 0
  %1538 = vmatpush1.bf16.msra.mxu0 0
  %1539 = vmatprep.subr.bf16.mxu0 0
  %1540 = vmatpush1.bf16.msra.mxu0 0
  %1541 = vmatprep.subr.bf16.mxu0 0
  %1542 = vmatpush1.bf16.msra.mxu0 0
  %1543 = vmatprep.subr.bf16.mxu0 0
  %1544 = vmatpush1.bf16.msra.mxu0 0
  %1545 = vmatprep.subr.bf16.mxu0 0
  %1546 = vmatpush1.bf16.msra.mxu0 0
  %1547 = vmatprep.subr.bf16.mxu0 0
  %1548 = vmatpush1.bf16.msra.mxu0 0
  %1549 = vmatprep.subr.bf16.mxu0 0
  %1550 = vmatpush1.bf16.msra.mxu0 0
  %1551 = vmatprep.mubr.bf16.mxu0 0
  %1552 = vmatmul.mubr.bf16.gmra.mrb[0].mxu0 %v1514
  %v1553 = vpop.f32.mrb[0].mxu0
  %v1554 = vadd.f32 0.0, %v1553
  %v1555 = vpop.f32.mrb[0].mxu0
  %v1556 = vpop.f32.mrb[0].mxu0
  %v1557 = vpop.f32.mrb[0].mxu0
  %1558 = vdwg.mxu0
  %1559 = vrot.lane.b32.xlu0 %v388, 64
  %v1560 = vpop.permute.xlu0 %1559
  %v1562 = vsel %vm1127, %v1122, 0
  %v1565 = vsel %vm1131, %v1560, 0
  %1567 = vmatprep.subr.bf16.mxu0 0
  %1568 = vmatpush1.bf16.msra.mxu0 %v1565
  %1569 = vmatprep.subr.bf16.mxu0 0
  %1570 = vmatpush1.bf16.msra.mxu0 0
  %1571 = vmatprep.subr.bf16.mxu0 0
  %1572 = vmatpush1.bf16.msra.mxu0 0
  %1573 = vmatprep.subr.bf16.mxu0 0
  %1574 = vmatpush1.bf16.msra.mxu0 0
  %1575 = vmatprep.subr.bf16.mxu0 0
  %1576 = vmatpush1.bf16.msra.mxu0 0
  %1577 = vmatprep.subr.bf16.mxu0 0
  %1578 = vmatpush1.bf16.msra.mxu0 0
  %1579 = vmatprep.subr.bf16.mxu0 0
  %1580 = vmatpush1.bf16.msra.mxu0 0
  %1581 = vmatprep.subr.bf16.mxu0 0
  %1582 = vmatpush1.bf16.msra.mxu0 0
  %1583 = vmatprep.subr.bf16.mxu0 0
  %1584 = vmatpush1.bf16.msra.mxu0 0
  %1585 = vmatprep.subr.bf16.mxu0 0
  %1586 = vmatpush1.bf16.msra.mxu0 0
  %1587 = vmatprep.subr.bf16.mxu0 0
  %1588 = vmatpush1.bf16.msra.mxu0 0
  %1589 = vmatprep.subr.bf16.mxu0 0
  %1590 = vmatpush1.bf16.msra.mxu0 0
  %1591 = vmatprep.subr.bf16.mxu0 0
  %1592 = vmatpush1.bf16.msra.mxu0 0
  %1593 = vmatprep.subr.bf16.mxu0 0
  %1594 = vmatpush1.bf16.msra.mxu0 0
  %1595 = vmatprep.subr.bf16.mxu0 0
  %1596 = vmatpush1.bf16.msra.mxu0 0
  %1597 = vmatprep.subr.bf16.mxu0 0
  %1598 = vmatpush1.bf16.msra.mxu0 0
  %1599 = vmatprep.mubr.bf16.mxu0 0
  %1600 = vmatmul.mubr.bf16.gmra.mrb[0].mxu0 %v1562
  %v1601 = vpop.f32.mrb[0].mxu0
  %v1602 = vadd.f32 0.0, %v1601
  %v1603 = vpop.f32.mrb[0].mxu0
  %v1604 = vpop.f32.mrb[0].mxu0
  %v1605 = vpop.f32.mrb[0].mxu0
  %1606 = vdwg.mxu0
  %1607 = vrot.lane.b32.xlu0 %v389, 64
  %v1608 = vpop.permute.xlu0 %1607
  %v1610 = vsel %vm1127, %v1123, 0
  %v1613 = vsel %vm1131, %v1608, 0
  %1615 = vmatprep.subr.bf16.mxu0 0
  %1616 = vmatpush1.bf16.msra.mxu0 %v1613
  %1617 = vmatprep.subr.bf16.mxu0 0
  %1618 = vmatpush1.bf16.msra.mxu0 0
  %1619 = vmatprep.subr.bf16.mxu0 0
  %1620 = vmatpush1.bf16.msra.mxu0 0
  %1621 = vmatprep.subr.bf16.mxu0 0
  %1622 = vmatpush1.bf16.msra.mxu0 0
  %1623 = vmatprep.subr.bf16.mxu0 0
  %1624 = vmatpush1.bf16.msra.mxu0 0
  %1625 = vmatprep.subr.bf16.mxu0 0
  %1626 = vmatpush1.bf16.msra.mxu0 0
  %1627 = vmatprep.subr.bf16.mxu0 0
  %1628 = vmatpush1.bf16.msra.mxu0 0
  %1629 = vmatprep.subr.bf16.mxu0 0
  %1630 = vmatpush1.bf16.msra.mxu0 0
  %1631 = vmatprep.subr.bf16.mxu0 0
  %1632 = vmatpush1.bf16.msra.mxu0 0
  %1633 = vmatprep.subr.bf16.mxu0 0
  %1634 = vmatpush1.bf16.msra.mxu0 0
  %1635 = vmatprep.subr.bf16.mxu0 0
  %1636 = vmatpush1.bf16.msra.mxu0 0
  %1637 = vmatprep.subr.bf16.mxu0 0
  %1638 = vmatpush1.bf16.msra.mxu0 0
  %1639 = vmatprep.subr.bf16.mxu0 0
  %1640 = vmatpush1.bf16.msra.mxu0 0
  %1641 = vmatprep.subr.bf16.mxu0 0
  %1642 = vmatpush1.bf16.msra.mxu0 0
  %1643 = vmatprep.subr.bf16.mxu0 0
  %1644 = vmatpush1.bf16.msra.mxu0 0
  %1645 = vmatprep.subr.bf16.mxu0 0
  %1646 = vmatpush1.bf16.msra.mxu0 0
  %1647 = vmatprep.mubr.bf16.mxu0 0
  %1648 = vmatmul.mubr.bf16.gmra.mrb[0].mxu0 %v1610
  %v1649 = vpop.f32.mrb[0].mxu0
  %v1650 = vadd.f32 0.0, %v1649
  %v1651 = vpop.f32.mrb[0].mxu0
  %v1652 = vpop.f32.mrb[0].mxu0
  %v1653 = vpop.f32.mrb[0].mxu0
  %1654 = vdwg.mxu0
  %1655 = vrot.lane.b32.xlu0 %v390, 64
  %v1656 = vpop.permute.xlu0 %1655
  %v1658 = vsel %vm1127, %v1124, 0
  %v1661 = vsel %vm1131, %v1656, 0
  %1663 = vmatprep.subr.bf16.mxu0 0
  %1664 = vmatpush1.bf16.msra.mxu0 %v1661
  %1665 = vmatprep.subr.bf16.mxu0 0
  %1666 = vmatpush1.bf16.msra.mxu0 0
  %1667 = vmatprep.subr.bf16.mxu0 0
  %1668 = vmatpush1.bf16.msra.mxu0 0
  %1669 = vmatprep.subr.bf16.mxu0 0
  %1670 = vmatpush1.bf16.msra.mxu0 0
  %1671 = vmatprep.subr.bf16.mxu0 0
  %1672 = vmatpush1.bf16.msra.mxu0 0
  %1673 = vmatprep.subr.bf16.mxu0 0
  %1674 = vmatpush1.bf16.msra.mxu0 0
  %1675 = vmatprep.subr.bf16.mxu0 0
  %1676 = vmatpush1.bf16.msra.mxu0 0
  %1677 = vmatprep.subr.bf16.mxu0 0
  %1678 = vmatpush1.bf16.msra.mxu0 0
  %1679 = vmatprep.subr.bf16.mxu0 0
  %1680 = vmatpush1.bf16.msra.mxu0 0
  %1681 = vmatprep.subr.bf16.mxu0 0
  %1682 = vmatpush1.bf16.msra.mxu0 0
  %1683 = vmatprep.subr.bf16.mxu0 0
  %1684 = vmatpush1.bf16.msra.mxu0 0
  %1685 = vmatprep.subr.bf16.mxu0 0
  %1686 = vmatpush1.bf16.msra.mxu0 0
  %1687 = vmatprep.subr.bf16.mxu0 0
  %1688 = vmatpush1.bf16.msra.mxu0 0
  %1689 = vmatprep.subr.bf16.mxu0 0
  %1690 = vmatpush1.bf16.msra.mxu0 0
  %1691 = vmatprep.subr.bf16.mxu0 0
  %1692 = vmatpush1.bf16.msra.mxu0 0
  %1693 = vmatprep.subr.bf16.mxu0 0
  %1694 = vmatpush1.bf16.msra.mxu0 0
  %1695 = vmatprep.mubr.bf16.mxu0 0
  %1696 = vmatmul.mubr.bf16.gmra.mrb[0].mxu0 %v1658
  %v1697 = vpop.f32.mrb[0].mxu0
  %v1698 = vadd.f32 0.0, %v1697
  %v1699 = vpop.f32.mrb[0].mxu0
  %v1700 = vpop.f32.mrb[0].mxu0
  %v1701 = vpop.f32.mrb[0].mxu0
  %1702 = vdwg.mxu0
  %v1703 = vpack.c.bf16 %v1170, %v1170
  %v1704 = vpack.c.bf16 %v1218, %v1218
  %v1705 = vpack.c.bf16 %v1266, %v1266
  %v1706 = vpack.c.bf16 %v1314, %v1314
  %v1707 = vpack.c.bf16 %v1362, %v1362
  %v1708 = vpack.c.bf16 %v1410, %v1410
  %v1709 = vpack.c.bf16 %v1458, %v1458
  %v1710 = vpack.c.bf16 %v1506, %v1506
  %v1711 = vpack.c.bf16 %v1554, %v1554
  %v1712 = vpack.c.bf16 %v1602, %v1602
  %v1713 = vpack.c.bf16 %v1650, %v1650
  %v1714 = vpack.c.bf16 %v1698, %v1698
  %1716 = vrot.lane.b32.xlu0 %v301, 120
  %v1717 = vpop.permute.xlu0 %1716
  %1718 = vrot.lane.b32.xlu0 %v379, 88
  %v1719 = vpop.permute.xlu0 %1718
  %v1721 = vsel %vm394, %v1717, 0
  %v1724 = vsel %vm394, %v1719, 0
  %1726 = vmatprep.subr.bf16.mxu0 0
  %1727 = vmatpush1.bf16.xpose.msra.mxu0 %v1724
  %1728 = vmatprep.subr.bf16.mxu0 0
  %1729 = vmatpush1.bf16.xpose.msra.mxu0 0
  %1730 = vmatprep.subr.bf16.mxu0 0
  %1731 = vmatpush1.bf16.xpose.msra.mxu0 0
  %1732 = vmatprep.subr.bf16.mxu0 0
  %1733 = vmatpush1.bf16.xpose.msra.mxu0 0
  %1734 = vmatprep.subr.bf16.mxu0 0
  %1735 = vmatpush1.bf16.xpose.msra.mxu0 0
  %1736 = vmatprep.subr.bf16.mxu0 0
  %1737 = vmatpush1.bf16.xpose.msra.mxu0 0
  %1738 = vmatprep.subr.bf16.mxu0 0
  %1739 = vmatpush1.bf16.xpose.msra.mxu0 0
  %1740 = vmatprep.subr.bf16.mxu0 0
  %1741 = vmatpush1.bf16.xpose.msra.mxu0 0
  %1742 = vmatprep.subr.bf16.mxu0 0
  %1743 = vmatpush1.bf16.xpose.msra.mxu0 0
  %1744 = vmatprep.subr.bf16.mxu0 0
  %1745 = vmatpush1.bf16.xpose.msra.mxu0 0
  %1746 = vmatprep.subr.bf16.mxu0 0
  %1747 = vmatpush1.bf16.xpose.msra.mxu0 0
  %1748 = vmatprep.subr.bf16.mxu0 0
  %1749 = vmatpush1.bf16.xpose.msra.mxu0 0
  %1750 = vmatprep.subr.bf16.mxu0 0
  %1751 = vmatpush1.bf16.xpose.msra.mxu0 0
  %1752 = vmatprep.subr.bf16.mxu0 0
  %1753 = vmatpush1.bf16.xpose.msra.mxu0 0
  %1754 = vmatprep.subr.bf16.mxu0 0
  %1755 = vmatpush1.bf16.xpose.msra.mxu0 0
  %1756 = vmatprep.subr.bf16.mxu0 0
  %1757 = vmatpush1.bf16.xpose.msra.mxu0 0
  %1758 = vmatprep.mubr.bf16.mxu0 0
  %1759 = vmatmul.mubr.bf16.gmra.mrb[0].mxu0 %v1721
  %v1760 = vpop.f32.mrb[0].mxu0
  %v1761 = vadd.f32 0.0, %v1760
  %v1762 = vpop.f32.mrb[0].mxu0
  %v1763 = vpop.f32.mrb[0].mxu0
  %v1764 = vpop.f32.mrb[0].mxu0
  %1765 = vdwg.mxu0
  %1767 = vrot.lane.b32.xlu0 %v302, 120
  %v1768 = vpop.permute.xlu0 %1767
  %1769 = vrot.lane.b32.xlu0 %v380, 88
  %v1770 = vpop.permute.xlu0 %1769
  %v1772 = vsel %vm394, %v1768, 0
  %v1775 = vsel %vm394, %v1770, 0
  %1777 = vmatprep.subr.bf16.mxu0 0
  %1778 = vmatpush1.bf16.xpose.msra.mxu0 %v1775
  %1779 = vmatprep.subr.bf16.mxu0 0
  %1780 = vmatpush1.bf16.xpose.msra.mxu0 0
  %1781 = vmatprep.subr.bf16.mxu0 0
  %1782 = vmatpush1.bf16.xpose.msra.mxu0 0
  %1783 = vmatprep.subr.bf16.mxu0 0
  %1784 = vmatpush1.bf16.xpose.msra.mxu0 0
  %1785 = vmatprep.subr.bf16.mxu0 0
  %1786 = vmatpush1.bf16.xpose.msra.mxu0 0
  %1787 = vmatprep.subr.bf16.mxu0 0
  %1788 = vmatpush1.bf16.xpose.msra.mxu0 0
  %1789 = vmatprep.subr.bf16.mxu0 0
  %1790 = vmatpush1.bf16.xpose.msra.mxu0 0
  %1791 = vmatprep.subr.bf16.mxu0 0
  %1792 = vmatpush1.bf16.xpose.msra.mxu0 0
  %1793 = vmatprep.subr.bf16.mxu0 0
  %1794 = vmatpush1.bf16.xpose.msra.mxu0 0
  %1795 = vmatprep.subr.bf16.mxu0 0
  %1796 = vmatpush1.bf16.xpose.msra.mxu0 0
  %1797 = vmatprep.subr.bf16.mxu0 0
  %1798 = vmatpush1.bf16.xpose.msra.mxu0 0
  %1799 = vmatprep.subr.bf16.mxu0 0
  %1800 = vmatpush1.bf16.xpose.msra.mxu0 0
  %1801 = vmatprep.subr.bf16.mxu0 0
  %1802 = vmatpush1.bf16.xpose.msra.mxu0 0
  %1803 = vmatprep.subr.bf16.mxu0 0
  %1804 = vmatpush1.bf16.xpose.msra.mxu0 0
  %1805 = vmatprep.subr.bf16.mxu0 0
  %1806 = vmatpush1.bf16.xpose.msra.mxu0 0
  %1807 = vmatprep.subr.bf16.mxu0 0
  %1808 = vmatpush1.bf16.xpose.msra.mxu0 0
  %1809 = vmatprep.mubr.bf16.mxu0 0
  %1810 = vmatmul.mubr.bf16.gmra.mrb[0].mxu0 %v1772
  %v1811 = vpop.f32.mrb[0].mxu0
  %v1812 = vadd.f32 0.0, %v1811
  %v1813 = vpop.f32.mrb[0].mxu0
  %v1814 = vpop.f32.mrb[0].mxu0
  %v1815 = vpop.f32.mrb[0].mxu0
  %1816 = vdwg.mxu0
  %1818 = vrot.lane.b32.xlu0 %v303, 120
  %v1819 = vpop.permute.xlu0 %1818
  %1820 = vrot.lane.b32.xlu0 %v381, 88
  %v1821 = vpop.permute.xlu0 %1820
  %v1823 = vsel %vm394, %v1819, 0
  %v1826 = vsel %vm394, %v1821, 0
  %1828 = vmatprep.subr.bf16.mxu0 0
  %1829 = vmatpush1.bf16.xpose.msra.mxu0 %v1826
  %1830 = vmatprep.subr.bf16.mxu0 0
  %1831 = vmatpush1.bf16.xpose.msra.mxu0 0
  %1832 = vmatprep.subr.bf16.mxu0 0
  %1833 = vmatpush1.bf16.xpose.msra.mxu0 0
  %1834 = vmatprep.subr.bf16.mxu0 0
  %1835 = vmatpush1.bf16.xpose.msra.mxu0 0
  %1836 = vmatprep.subr.bf16.mxu0 0
  %1837 = vmatpush1.bf16.xpose.msra.mxu0 0
  %1838 = vmatprep.subr.bf16.mxu0 0
  %1839 = vmatpush1.bf16.xpose.msra.mxu0 0
  %1840 = vmatprep.subr.bf16.mxu0 0
  %1841 = vmatpush1.bf16.xpose.msra.mxu0 0
  %1842 = vmatprep.subr.bf16.mxu0 0
  %1843 = vmatpush1.bf16.xpose.msra.mxu0 0
  %1844 = vmatprep.subr.bf16.mxu0 0
  %1845 = vmatpush1.bf16.xpose.msra.mxu0 0
  %1846 = vmatprep.subr.bf16.mxu0 0
  %1847 = vmatpush1.bf16.xpose.msra.mxu0 0
  %1848 = vmatprep.subr.bf16.mxu0 0
  %1849 = vmatpush1.bf16.xpose.msra.mxu0 0
  %1850 = vmatprep.subr.bf16.mxu0 0
  %1851 = vmatpush1.bf16.xpose.msra.mxu0 0
  %1852 = vmatprep.subr.bf16.mxu0 0
  %1853 = vmatpush1.bf16.xpose.msra.mxu0 0
  %1854 = vmatprep.subr.bf16.mxu0 0
  %1855 = vmatpush1.bf16.xpose.msra.mxu0 0
  %1856 = vmatprep.subr.bf16.mxu0 0
  %1857 = vmatpush1.bf16.xpose.msra.mxu0 0
  %1858 = vmatprep.subr.bf16.mxu0 0
  %1859 = vmatpush1.bf16.xpose.msra.mxu0 0
  %1860 = vmatprep.mubr.bf16.mxu0 0
  %1861 = vmatmul.mubr.bf16.gmra.mrb[0].mxu0 %v1823
  %v1862 = vpop.f32.mrb[0].mxu0
  %v1863 = vadd.f32 0.0, %v1862
  %v1864 = vpop.f32.mrb[0].mxu0
  %v1865 = vpop.f32.mrb[0].mxu0
  %v1866 = vpop.f32.mrb[0].mxu0
  %1867 = vdwg.mxu0
  %1869 = vrot.lane.b32.xlu0 %v304, 120
  %v1870 = vpop.permute.xlu0 %1869
  %1871 = vrot.lane.b32.xlu0 %v382, 88
  %v1872 = vpop.permute.xlu0 %1871
  %v1874 = vsel %vm394, %v1870, 0
  %v1877 = vsel %vm394, %v1872, 0
  %1879 = vmatprep.subr.bf16.mxu0 0
  %1880 = vmatpush1.bf16.xpose.msra.mxu0 %v1877
  %1881 = vmatprep.subr.bf16.mxu0 0
  %1882 = vmatpush1.bf16.xpose.msra.mxu0 0
  %1883 = vmatprep.subr.bf16.mxu0 0
  %1884 = vmatpush1.bf16.xpose.msra.mxu0 0
  %1885 = vmatprep.subr.bf16.mxu0 0
  %1886 = vmatpush1.bf16.xpose.msra.mxu0 0
  %1887 = vmatprep.subr.bf16.mxu0 0
  %1888 = vmatpush1.bf16.xpose.msra.mxu0 0
  %1889 = vmatprep.subr.bf16.mxu0 0
  %1890 = vmatpush1.bf16.xpose.msra.mxu0 0
  %1891 = vmatprep.subr.bf16.mxu0 0
  %1892 = vmatpush1.bf16.xpose.msra.mxu0 0
  %1893 = vmatprep.subr.bf16.mxu0 0
  %1894 = vmatpush1.bf16.xpose.msra.mxu0 0
  %1895 = vmatprep.subr.bf16.mxu0 0
  %1896 = vmatpush1.bf16.xpose.msra.mxu0 0
  %1897 = vmatprep.subr.bf16.mxu0 0
  %1898 = vmatpush1.bf16.xpose.msra.mxu0 0
  %1899 = vmatprep.subr.bf16.mxu0 0
  %1900 = vmatpush1.bf16.xpose.msra.mxu0 0
  %1901 = vmatprep.subr.bf16.mxu0 0
  %1902 = vmatpush1.bf16.xpose.msra.mxu0 0
  %1903 = vmatprep.subr.bf16.mxu0 0
  %1904 = vmatpush1.bf16.xpose.msra.mxu0 0
  %1905 = vmatprep.subr.bf16.mxu0 0
  %1906 = vmatpush1.bf16.xpose.msra.mxu0 0
  %1907 = vmatprep.subr.bf16.mxu0 0
  %1908 = vmatpush1.bf16.xpose.msra.mxu0 0
  %1909 = vmatprep.subr.bf16.mxu0 0
  %1910 = vmatpush1.bf16.xpose.msra.mxu0 0
  %1911 = vmatprep.mubr.bf16.mxu0 0
  %1912 = vmatmul.mubr.bf16.gmra.mrb[0].mxu0 %v1874
  %v1913 = vpop.f32.mrb[0].mxu0
  %v1914 = vadd.f32 0.0, %v1913
  %v1915 = vpop.f32.mrb[0].mxu0
  %v1916 = vpop.f32.mrb[0].mxu0
  %v1917 = vpop.f32.mrb[0].mxu0
  %1918 = vdwg.mxu0
  %1920 = vrot.lane.b32.xlu0 %v305, 120
  %v1921 = vpop.permute.xlu0 %1920
  %1922 = vrot.lane.b32.xlu0 %v383, 88
  %v1923 = vpop.permute.xlu0 %1922
  %v1925 = vsel %vm394, %v1921, 0
  %v1928 = vsel %vm394, %v1923, 0
  %1930 = vmatprep.subr.bf16.mxu0 0
  %1931 = vmatpush1.bf16.xpose.msra.mxu0 %v1928
  %1932 = vmatprep.subr.bf16.mxu0 0
  %1933 = vmatpush1.bf16.xpose.msra.mxu0 0
  %1934 = vmatprep.subr.bf16.mxu0 0
  %1935 = vmatpush1.bf16.xpose.msra.mxu0 0
  %1936 = vmatprep.subr.bf16.mxu0 0
  %1937 = vmatpush1.bf16.xpose.msra.mxu0 0
  %1938 = vmatprep.subr.bf16.mxu0 0
  %1939 = vmatpush1.bf16.xpose.msra.mxu0 0
  %1940 = vmatprep.subr.bf16.mxu0 0
  %1941 = vmatpush1.bf16.xpose.msra.mxu0 0
  %1942 = vmatprep.subr.bf16.mxu0 0
  %1943 = vmatpush1.bf16.xpose.msra.mxu0 0
  %1944 = vmatprep.subr.bf16.mxu0 0
  %1945 = vmatpush1.bf16.xpose.msra.mxu0 0
  %1946 = vmatprep.subr.bf16.mxu0 0
  %1947 = vmatpush1.bf16.xpose.msra.mxu0 0
  %1948 = vmatprep.subr.bf16.mxu0 0
  %1949 = vmatpush1.bf16.xpose.msra.mxu0 0
  %1950 = vmatprep.subr.bf16.mxu0 0
  %1951 = vmatpush1.bf16.xpose.msra.mxu0 0
  %1952 = vmatprep.subr.bf16.mxu0 0
  %1953 = vmatpush1.bf16.xpose.msra.mxu0 0
  %1954 = vmatprep.subr.bf16.mxu0 0
  %1955 = vmatpush1.bf16.xpose.msra.mxu0 0
  %1956 = vmatprep.subr.bf16.mxu0 0
  %1957 = vmatpush1.bf16.xpose.msra.mxu0 0
  %1958 = vmatprep.subr.bf16.mxu0 0
  %1959 = vmatpush1.bf16.xpose.msra.mxu0 0
  %1960 = vmatprep.subr.bf16.mxu0 0
  %1961 = vmatpush1.bf16.xpose.msra.mxu0 0
  %1962 = vmatprep.mubr.bf16.mxu0 0
  %1963 = vmatmul.mubr.bf16.gmra.mrb[0].mxu0 %v1925
  %v1964 = vpop.f32.mrb[0].mxu0
  %v1965 = vadd.f32 0.0, %v1964
  %v1966 = vpop.f32.mrb[0].mxu0
  %v1967 = vpop.f32.mrb[0].mxu0
  %v1968 = vpop.f32.mrb[0].mxu0
  %1969 = vdwg.mxu0
  %1971 = vrot.lane.b32.xlu0 %v306, 120
  %v1972 = vpop.permute.xlu0 %1971
  %1973 = vrot.lane.b32.xlu0 %v384, 88
  %v1974 = vpop.permute.xlu0 %1973
  %v1976 = vsel %vm394, %v1972, 0
  %v1979 = vsel %vm394, %v1974, 0
  %1981 = vmatprep.subr.bf16.mxu0 0
  %1982 = vmatpush1.bf16.xpose.msra.mxu0 %v1979
  %1983 = vmatprep.subr.bf16.mxu0 0
  %1984 = vmatpush1.bf16.xpose.msra.mxu0 0
  %1985 = vmatprep.subr.bf16.mxu0 0
  %1986 = vmatpush1.bf16.xpose.msra.mxu0 0
  %1987 = vmatprep.subr.bf16.mxu0 0
  %1988 = vmatpush1.bf16.xpose.msra.mxu0 0
  %1989 = vmatprep.subr.bf16.mxu0 0
  %1990 = vmatpush1.bf16.xpose.msra.mxu0 0
  %1991 = vmatprep.subr.bf16.mxu0 0
  %1992 = vmatpush1.bf16.xpose.msra.mxu0 0
  %1993 = vmatprep.subr.bf16.mxu0 0
  %1994 = vmatpush1.bf16.xpose.msra.mxu0 0
  %1995 = vmatprep.subr.bf16.mxu0 0
  %1996 = vmatpush1.bf16.xpose.msra.mxu0 0
  %1997 = vmatprep.subr.bf16.mxu0 0
  %1998 = vmatpush1.bf16.xpose.msra.mxu0 0
  %1999 = vmatprep.subr.bf16.mxu0 0
  %2000 = vmatpush1.bf16.xpose.msra.mxu0 0
  %2001 = vmatprep.subr.bf16.mxu0 0
  %2002 = vmatpush1.bf16.xpose.msra.mxu0 0
  %2003 = vmatprep.subr.bf16.mxu0 0
  %2004 = vmatpush1.bf16.xpose.msra.mxu0 0
  %2005 = vmatprep.subr.bf16.mxu0 0
  %2006 = vmatpush1.bf16.xpose.msra.mxu0 0
  %2007 = vmatprep.subr.bf16.mxu0 0
  %2008 = vmatpush1.bf16.xpose.msra.mxu0 0
  %2009 = vmatprep.subr.bf16.mxu0 0
  %2010 = vmatpush1.bf16.xpose.msra.mxu0 0
  %2011 = vmatprep.subr.bf16.mxu0 0
  %2012 = vmatpush1.bf16.xpose.msra.mxu0 0
  %2013 = vmatprep.mubr.bf16.mxu0 0
  %2014 = vmatmul.mubr.bf16.gmra.mrb[0].mxu0 %v1976
  %v2015 = vpop.f32.mrb[0].mxu0
  %v2016 = vadd.f32 0.0, %v2015
  %v2017 = vpop.f32.mrb[0].mxu0
  %v2018 = vpop.f32.mrb[0].mxu0
  %v2019 = vpop.f32.mrb[0].mxu0
  %2020 = vdwg.mxu0
  %2022 = vrot.lane.b32.xlu0 %v307, 120
  %v2023 = vpop.permute.xlu0 %2022
  %2024 = vrot.lane.b32.xlu0 %v385, 88
  %v2025 = vpop.permute.xlu0 %2024
  %v2027 = vsel %vm394, %v2023, 0
  %v2030 = vsel %vm394, %v2025, 0
  %2032 = vmatprep.subr.bf16.mxu0 0
  %2033 = vmatpush1.bf16.xpose.msra.mxu0 %v2030
  %2034 = vmatprep.subr.bf16.mxu0 0
  %2035 = vmatpush1.bf16.xpose.msra.mxu0 0
  %2036 = vmatprep.subr.bf16.mxu0 0
  %2037 = vmatpush1.bf16.xpose.msra.mxu0 0
  %2038 = vmatprep.subr.bf16.mxu0 0
  %2039 = vmatpush1.bf16.xpose.msra.mxu0 0
  %2040 = vmatprep.subr.bf16.mxu0 0
  %2041 = vmatpush1.bf16.xpose.msra.mxu0 0
  %2042 = vmatprep.subr.bf16.mxu0 0
  %2043 = vmatpush1.bf16.xpose.msra.mxu0 0
  %2044 = vmatprep.subr.bf16.mxu0 0
  %2045 = vmatpush1.bf16.xpose.msra.mxu0 0
  %2046 = vmatprep.subr.bf16.mxu0 0
  %2047 = vmatpush1.bf16.xpose.msra.mxu0 0
  %2048 = vmatprep.subr.bf16.mxu0 0
  %2049 = vmatpush1.bf16.xpose.msra.mxu0 0
  %2050 = vmatprep.subr.bf16.mxu0 0
  %2051 = vmatpush1.bf16.xpose.msra.mxu0 0
  %2052 = vmatprep.subr.bf16.mxu0 0
  %2053 = vmatpush1.bf16.xpose.msra.mxu0 0
  %2054 = vmatprep.subr.bf16.mxu0 0
  %2055 = vmatpush1.bf16.xpose.msra.mxu0 0
  %2056 = vmatprep.subr.bf16.mxu0 0
  %2057 = vmatpush1.bf16.xpose.msra.mxu0 0
  %2058 = vmatprep.subr.bf16.mxu0 0
  %2059 = vmatpush1.bf16.xpose.msra.mxu0 0
  %2060 = vmatprep.subr.bf16.mxu0 0
  %2061 = vmatpush1.bf16.xpose.msra.mxu0 0
  %2062 = vmatprep.subr.bf16.mxu0 0
  %2063 = vmatpush1.bf16.xpose.msra.mxu0 0
  %2064 = vmatprep.mubr.bf16.mxu0 0
  %2065 = vmatmul.mubr.bf16.gmra.mrb[0].mxu0 %v2027
  %v2066 = vpop.f32.mrb[0].mxu0
  %v2067 = vadd.f32 0.0, %v2066
  %v2068 = vpop.f32.mrb[0].mxu0
  %v2069 = vpop.f32.mrb[0].mxu0
  %v2070 = vpop.f32.mrb[0].mxu0
  %2071 = vdwg.mxu0
  %2073 = vrot.lane.b32.xlu0 %v308, 120
  %v2074 = vpop.permute.xlu0 %2073
  %2075 = vrot.lane.b32.xlu0 %v386, 88
  %v2076 = vpop.permute.xlu0 %2075
  %v2078 = vsel %vm394, %v2074, 0
  %v2081 = vsel %vm394, %v2076, 0
  %2083 = vmatprep.subr.bf16.mxu0 0
  %2084 = vmatpush1.bf16.xpose.msra.mxu0 %v2081
  %2085 = vmatprep.subr.bf16.mxu0 0
  %2086 = vmatpush1.bf16.xpose.msra.mxu0 0
  %2087 = vmatprep.subr.bf16.mxu0 0
  %2088 = vmatpush1.bf16.xpose.msra.mxu0 0
  %2089 = vmatprep.subr.bf16.mxu0 0
  %2090 = vmatpush1.bf16.xpose.msra.mxu0 0
  %2091 = vmatprep.subr.bf16.mxu0 0
  %2092 = vmatpush1.bf16.xpose.msra.mxu0 0
  %2093 = vmatprep.subr.bf16.mxu0 0
  %2094 = vmatpush1.bf16.xpose.msra.mxu0 0
  %2095 = vmatprep.subr.bf16.mxu0 0
  %2096 = vmatpush1.bf16.xpose.msra.mxu0 0
  %2097 = vmatprep.subr.bf16.mxu0 0
  %2098 = vmatpush1.bf16.xpose.msra.mxu0 0
  %2099 = vmatprep.subr.bf16.mxu0 0
  %2100 = vmatpush1.bf16.xpose.msra.mxu0 0
  %2101 = vmatprep.subr.bf16.mxu0 0
  %2102 = vmatpush1.bf16.xpose.msra.mxu0 0
  %2103 = vmatprep.subr.bf16.mxu0 0
  %2104 = vmatpush1.bf16.xpose.msra.mxu0 0
  %2105 = vmatprep.subr.bf16.mxu0 0
  %2106 = vmatpush1.bf16.xpose.msra.mxu0 0
  %2107 = vmatprep.subr.bf16.mxu0 0
  %2108 = vmatpush1.bf16.xpose.msra.mxu0 0
  %2109 = vmatprep.subr.bf16.mxu0 0
  %2110 = vmatpush1.bf16.xpose.msra.mxu0 0
  %2111 = vmatprep.subr.bf16.mxu0 0
  %2112 = vmatpush1.bf16.xpose.msra.mxu0 0
  %2113 = vmatprep.subr.bf16.mxu0 0
  %2114 = vmatpush1.bf16.xpose.msra.mxu0 0
  %2115 = vmatprep.mubr.bf16.mxu0 0
  %2116 = vmatmul.mubr.bf16.gmra.mrb[0].mxu0 %v2078
  %v2117 = vpop.f32.mrb[0].mxu0
  %v2118 = vadd.f32 0.0, %v2117
  %v2119 = vpop.f32.mrb[0].mxu0
  %v2120 = vpop.f32.mrb[0].mxu0
  %v2121 = vpop.f32.mrb[0].mxu0
  %2122 = vdwg.mxu0
  %2124 = vrot.lane.b32.xlu0 %v309, 120
  %v2125 = vpop.permute.xlu0 %2124
  %2126 = vrot.lane.b32.xlu0 %v387, 88
  %v2127 = vpop.permute.xlu0 %2126
  %v2129 = vsel %vm394, %v2125, 0
  %v2132 = vsel %vm394, %v2127, 0
  %2134 = vmatprep.subr.bf16.mxu0 0
  %2135 = vmatpush1.bf16.xpose.msra.mxu0 %v2132
  %2136 = vmatprep.subr.bf16.mxu0 0
  %2137 = vmatpush1.bf16.xpose.msra.mxu0 0
  %2138 = vmatprep.subr.bf16.mxu0 0
  %2139 = vmatpush1.bf16.xpose.msra.mxu0 0
  %2140 = vmatprep.subr.bf16.mxu0 0
  %2141 = vmatpush1.bf16.xpose.msra.mxu0 0
  %2142 = vmatprep.subr.bf16.mxu0 0
  %2143 = vmatpush1.bf16.xpose.msra.mxu0 0
  %2144 = vmatprep.subr.bf16.mxu0 0
  %2145 = vmatpush1.bf16.xpose.msra.mxu0 0
  %2146 = vmatprep.subr.bf16.mxu0 0
  %2147 = vmatpush1.bf16.xpose.msra.mxu0 0
  %2148 = vmatprep.subr.bf16.mxu0 0
  %2149 = vmatpush1.bf16.xpose.msra.mxu0 0
  %2150 = vmatprep.subr.bf16.mxu0 0
  %2151 = vmatpush1.bf16.xpose.msra.mxu0 0
  %2152 = vmatprep.subr.bf16.mxu0 0
  %2153 = vmatpush1.bf16.xpose.msra.mxu0 0
  %2154 = vmatprep.subr.bf16.mxu0 0
  %2155 = vmatpush1.bf16.xpose.msra.mxu0 0
  %2156 = vmatprep.subr.bf16.mxu0 0
  %2157 = vmatpush1.bf16.xpose.msra.mxu0 0
  %2158 = vmatprep.subr.bf16.mxu0 0
  %2159 = vmatpush1.bf16.xpose.msra.mxu0 0
  %2160 = vmatprep.subr.bf16.mxu0 0
  %2161 = vmatpush1.bf16.xpose.msra.mxu0 0
  %2162 = vmatprep.subr.bf16.mxu0 0
  %2163 = vmatpush1.bf16.xpose.msra.mxu0 0
  %2164 = vmatprep.subr.bf16.mxu0 0
  %2165 = vmatpush1.bf16.xpose.msra.mxu0 0
  %2166 = vmatprep.mubr.bf16.mxu0 0
  %2167 = vmatmul.mubr.bf16.gmra.mrb[0].mxu0 %v2129
  %v2168 = vpop.f32.mrb[0].mxu0
  %v2169 = vadd.f32 0.0, %v2168
  %v2170 = vpop.f32.mrb[0].mxu0
  %v2171 = vpop.f32.mrb[0].mxu0
  %v2172 = vpop.f32.mrb[0].mxu0
  %2173 = vdwg.mxu0
  %2175 = vrot.lane.b32.xlu0 %v310, 120
  %v2176 = vpop.permute.xlu0 %2175
  %2177 = vrot.lane.b32.xlu0 %v388, 88
  %v2178 = vpop.permute.xlu0 %2177
  %v2180 = vsel %vm394, %v2176, 0
  %v2183 = vsel %vm394, %v2178, 0
  %2185 = vmatprep.subr.bf16.mxu0 0
  %2186 = vmatpush1.bf16.xpose.msra.mxu0 %v2183
  %2187 = vmatprep.subr.bf16.mxu0 0
  %2188 = vmatpush1.bf16.xpose.msra.mxu0 0
  %2189 = vmatprep.subr.bf16.mxu0 0
  %2190 = vmatpush1.bf16.xpose.msra.mxu0 0
  %2191 = vmatprep.subr.bf16.mxu0 0
  %2192 = vmatpush1.bf16.xpose.msra.mxu0 0
  %2193 = vmatprep.subr.bf16.mxu0 0
  %2194 = vmatpush1.bf16.xpose.msra.mxu0 0
  %2195 = vmatprep.subr.bf16.mxu0 0
  %2196 = vmatpush1.bf16.xpose.msra.mxu0 0
  %2197 = vmatprep.subr.bf16.mxu0 0
  %2198 = vmatpush1.bf16.xpose.msra.mxu0 0
  %2199 = vmatprep.subr.bf16.mxu0 0
  %2200 = vmatpush1.bf16.xpose.msra.mxu0 0
  %2201 = vmatprep.subr.bf16.mxu0 0
  %2202 = vmatpush1.bf16.xpose.msra.mxu0 0
  %2203 = vmatprep.subr.bf16.mxu0 0
  %2204 = vmatpush1.bf16.xpose.msra.mxu0 0
  %2205 = vmatprep.subr.bf16.mxu0 0
  %2206 = vmatpush1.bf16.xpose.msra.mxu0 0
  %2207 = vmatprep.subr.bf16.mxu0 0
  %2208 = vmatpush1.bf16.xpose.msra.mxu0 0
  %2209 = vmatprep.subr.bf16.mxu0 0
  %2210 = vmatpush1.bf16.xpose.msra.mxu0 0
  %2211 = vmatprep.subr.bf16.mxu0 0
  %2212 = vmatpush1.bf16.xpose.msra.mxu0 0
  %2213 = vmatprep.subr.bf16.mxu0 0
  %2214 = vmatpush1.bf16.xpose.msra.mxu0 0
  %2215 = vmatprep.subr.bf16.mxu0 0
  %2216 = vmatpush1.bf16.xpose.msra.mxu0 0
  %2217 = vmatprep.mubr.bf16.mxu0 0
  %2218 = vmatmul.mubr.bf16.gmra.mrb[0].mxu0 %v2180
  %v2219 = vpop.f32.mrb[0].mxu0
  %v2220 = vadd.f32 0.0, %v2219
  %v2221 = vpop.f32.mrb[0].mxu0
  %v2222 = vpop.f32.mrb[0].mxu0
  %v2223 = vpop.f32.mrb[0].mxu0
  %2224 = vdwg.mxu0
  %2226 = vrot.lane.b32.xlu0 %v311, 120
  %v2227 = vpop.permute.xlu0 %2226
  %2228 = vrot.lane.b32.xlu0 %v389, 88
  %v2229 = vpop.permute.xlu0 %2228
  %v2231 = vsel %vm394, %v2227, 0
  %v2234 = vsel %vm394, %v2229, 0
  %2236 = vmatprep.subr.bf16.mxu0 0
  %2237 = vmatpush1.bf16.xpose.msra.mxu0 %v2234
  %2238 = vmatprep.subr.bf16.mxu0 0
  %2239 = vmatpush1.bf16.xpose.msra.mxu0 0
  %2240 = vmatprep.subr.bf16.mxu0 0
  %2241 = vmatpush1.bf16.xpose.msra.mxu0 0
  %2242 = vmatprep.subr.bf16.mxu0 0
  %2243 = vmatpush1.bf16.xpose.msra.mxu0 0
  %2244 = vmatprep.subr.bf16.mxu0 0
  %2245 = vmatpush1.bf16.xpose.msra.mxu0 0
  %2246 = vmatprep.subr.bf16.mxu0 0
  %2247 = vmatpush1.bf16.xpose.msra.mxu0 0
  %2248 = vmatprep.subr.bf16.mxu0 0
  %2249 = vmatpush1.bf16.xpose.msra.mxu0 0
  %2250 = vmatprep.subr.bf16.mxu0 0
  %2251 = vmatpush1.bf16.xpose.msra.mxu0 0
  %2252 = vmatprep.subr.bf16.mxu0 0
  %2253 = vmatpush1.bf16.xpose.msra.mxu0 0
  %2254 = vmatprep.subr.bf16.mxu0 0
  %2255 = vmatpush1.bf16.xpose.msra.mxu0 0
  %2256 = vmatprep.subr.bf16.mxu0 0
  %2257 = vmatpush1.bf16.xpose.msra.mxu0 0
  %2258 = vmatprep.subr.bf16.mxu0 0
  %2259 = vmatpush1.bf16.xpose.msra.mxu0 0
  %2260 = vmatprep.subr.bf16.mxu0 0
  %2261 = vmatpush1.bf16.xpose.msra.mxu0 0
  %2262 = vmatprep.subr.bf16.mxu0 0
  %2263 = vmatpush1.bf16.xpose.msra.mxu0 0
  %2264 = vmatprep.subr.bf16.mxu0 0
  %2265 = vmatpush1.bf16.xpose.msra.mxu0 0
  %2266 = vmatprep.subr.bf16.mxu0 0
  %2267 = vmatpush1.bf16.xpose.msra.mxu0 0
  %2268 = vmatprep.mubr.bf16.mxu0 0
  %2269 = vmatmul.mubr.bf16.gmra.mrb[0].mxu0 %v2231
  %v2270 = vpop.f32.mrb[0].mxu0
  %v2271 = vadd.f32 0.0, %v2270
  %v2272 = vpop.f32.mrb[0].mxu0
  %v2273 = vpop.f32.mrb[0].mxu0
  %v2274 = vpop.f32.mrb[0].mxu0
  %2275 = vdwg.mxu0
  %2277 = vrot.lane.b32.xlu0 %v312, 120
  %v2278 = vpop.permute.xlu0 %2277
  %2279 = vrot.lane.b32.xlu0 %v390, 88
  %v2280 = vpop.permute.xlu0 %2279
  %v2282 = vsel %vm394, %v2278, 0
  %v2285 = vsel %vm394, %v2280, 0
  %2287 = vmatprep.subr.bf16.mxu0 0
  %2288 = vmatpush1.bf16.xpose.msra.mxu0 %v2285
  %2289 = vmatprep.subr.bf16.mxu0 0
  %2290 = vmatpush1.bf16.xpose.msra.mxu0 0
  %2291 = vmatprep.subr.bf16.mxu0 0
  %2292 = vmatpush1.bf16.xpose.msra.mxu0 0
  %2293 = vmatprep.subr.bf16.mxu0 0
  %2294 = vmatpush1.bf16.xpose.msra.mxu0 0
  %2295 = vmatprep.subr.bf16.mxu0 0
  %2296 = vmatpush1.bf16.xpose.msra.mxu0 0
  %2297 = vmatprep.subr.bf16.mxu0 0
  %2298 = vmatpush1.bf16.xpose.msra.mxu0 0
  %2299 = vmatprep.subr.bf16.mxu0 0
  %2300 = vmatpush1.bf16.xpose.msra.mxu0 0
  %2301 = vmatprep.subr.bf16.mxu0 0
  %2302 = vmatpush1.bf16.xpose.msra.mxu0 0
  %2303 = vmatprep.subr.bf16.mxu0 0
  %2304 = vmatpush1.bf16.xpose.msra.mxu0 0
  %2305 = vmatprep.subr.bf16.mxu0 0
  %2306 = vmatpush1.bf16.xpose.msra.mxu0 0
  %2307 = vmatprep.subr.bf16.mxu0 0
  %2308 = vmatpush1.bf16.xpose.msra.mxu0 0
  %2309 = vmatprep.subr.bf16.mxu0 0
  %2310 = vmatpush1.bf16.xpose.msra.mxu0 0
  %2311 = vmatprep.subr.bf16.mxu0 0
  %2312 = vmatpush1.bf16.xpose.msra.mxu0 0
  %2313 = vmatprep.subr.bf16.mxu0 0
  %2314 = vmatpush1.bf16.xpose.msra.mxu0 0
  %2315 = vmatprep.subr.bf16.mxu0 0
  %2316 = vmatpush1.bf16.xpose.msra.mxu0 0
  %2317 = vmatprep.subr.bf16.mxu0 0
  %2318 = vmatpush1.bf16.xpose.msra.mxu0 0
  %2319 = vmatprep.mubr.bf16.mxu0 0
  %2320 = vmatmul.mubr.bf16.gmra.mrb[0].mxu0 %v2282
  %v2321 = vpop.f32.mrb[0].mxu0
  %v2322 = vadd.f32 0.0, %v2321
  %v2323 = vpop.f32.mrb[0].mxu0
  %v2324 = vpop.f32.mrb[0].mxu0
  %v2325 = vpop.f32.mrb[0].mxu0
  %2326 = vdwg.mxu0
  %v2327 = vsel %vm980, %v1761, -inf
  %2328 = vmax.xlane.f32.xlu0 %v2327
  %v2329 = vpop.xlane.xlu0 %2328
  %v2330 = vsel %vm980, %v1812, -inf
  %2331 = vmax.xlane.f32.xlu0 %v2330
  %v2332 = vpop.xlane.xlu0 %2331
  %v2333 = vsel %vm980, %v1863, -inf
  %2334 = vmax.xlane.f32.xlu0 %v2333
  %v2335 = vpop.xlane.xlu0 %2334
  %v2336 = vsel %vm980, %v1914, -inf
  %2337 = vmax.xlane.f32.xlu0 %v2336
  %v2338 = vpop.xlane.xlu0 %2337
  %v2339 = vsel %vm980, %v1965, -inf
  %2340 = vmax.xlane.f32.xlu0 %v2339
  %v2341 = vpop.xlane.xlu0 %2340
  %v2342 = vsel %vm980, %v2016, -inf
  %2343 = vmax.xlane.f32.xlu0 %v2342
  %v2344 = vpop.xlane.xlu0 %2343
  %v2345 = vsel %vm980, %v2067, -inf
  %2346 = vmax.xlane.f32.xlu0 %v2345
  %v2347 = vpop.xlane.xlu0 %2346
  %v2348 = vsel %vm980, %v2118, -inf
  %2349 = vmax.xlane.f32.xlu0 %v2348
  %v2350 = vpop.xlane.xlu0 %2349
  %v2351 = vsel %vm980, %v2169, -inf
  %2352 = vmax.xlane.f32.xlu0 %v2351
  %v2353 = vpop.xlane.xlu0 %2352
  %v2354 = vsel %vm980, %v2220, -inf
  %2355 = vmax.xlane.f32.xlu0 %v2354
  %v2356 = vpop.xlane.xlu0 %2355
  %v2357 = vsel %vm980, %v2271, -inf
  %2358 = vmax.xlane.f32.xlu0 %v2357
  %v2359 = vpop.xlane.xlu0 %2358
  %v2360 = vsel %vm980, %v2322, -inf
  %2361 = vmax.xlane.f32.xlu0 %v2360
  %v2362 = vpop.xlane.xlu0 %2361
  %v2363 = vsub.f32 %v1761, %v2329
  %v2364 = vsub.f32 %v1812, %v2332
  %v2365 = vsub.f32 %v1863, %v2335
  %v2366 = vsub.f32 %v1914, %v2338
  %v2367 = vsub.f32 %v1965, %v2341
  %v2368 = vsub.f32 %v2016, %v2344
  %v2369 = vsub.f32 %v2067, %v2347
  %v2370 = vsub.f32 %v2118, %v2350
  %v2371 = vsub.f32 %v2169, %v2353
  %v2372 = vsub.f32 %v2220, %v2356
  %v2373 = vsub.f32 %v2271, %v2359
  %v2374 = vsub.f32 %v2322, %v2362
  %v2375 = vmul.f32 %v2363, 1.442695
  %v2376 = vpow.pop %v2375
  %v2377 = vmul.f32 %v2364, 1.442695
  %v2378 = vpow.pop %v2377
  %v2379 = vmul.f32 %v2365, 1.442695
  %v2380 = vpow.pop %v2379
  %v2381 = vmul.f32 %v2366, 1.442695
  %v2382 = vpow.pop %v2381
  %v2383 = vmul.f32 %v2367, 1.442695
  %v2384 = vpow.pop %v2383
  %v2385 = vmul.f32 %v2368, 1.442695
  %v2386 = vpow.pop %v2385
  %v2387 = vmul.f32 %v2369, 1.442695
  %v2388 = vpow.pop %v2387
  %v2389 = vmul.f32 %v2370, 1.442695
  %v2390 = vpow.pop %v2389
  %v2391 = vmul.f32 %v2371, 1.442695
  %v2392 = vpow.pop %v2391
  %v2393 = vmul.f32 %v2372, 1.442695
  %v2394 = vpow.pop %v2393
  %v2395 = vmul.f32 %v2373, 1.442695
  %v2396 = vpow.pop %v2395
  %v2397 = vmul.f32 %v2374, 1.442695
  %v2398 = vpow.pop %v2397
  %v2399 = vsel %vm980, %v2376, 0.0
  %2400 = vadd.xlane.f32.xlu0 %v2399
  %v2401 = vpop.xlane.xlu0 %2400
  %v2402 = vsel %vm980, %v2378, 0.0
  %2403 = vadd.xlane.f32.xlu0 %v2402
  %v2404 = vpop.xlane.xlu0 %2403
  %v2405 = vsel %vm980, %v2380, 0.0
  %2406 = vadd.xlane.f32.xlu0 %v2405
  %v2407 = vpop.xlane.xlu0 %2406
  %v2408 = vsel %vm980, %v2382, 0.0
  %2409 = vadd.xlane.f32.xlu0 %v2408
  %v2410 = vpop.xlane.xlu0 %2409
  %v2411 = vsel %vm980, %v2384, 0.0
  %2412 = vadd.xlane.f32.xlu0 %v2411
  %v2413 = vpop.xlane.xlu0 %2412
  %v2414 = vsel %vm980, %v2386, 0.0
  %2415 = vadd.xlane.f32.xlu0 %v2414
  %v2416 = vpop.xlane.xlu0 %2415
  %v2417 = vsel %vm980, %v2388, 0.0
  %2418 = vadd.xlane.f32.xlu0 %v2417
  %v2419 = vpop.xlane.xlu0 %2418
  %v2420 = vsel %vm980, %v2390, 0.0
  %2421 = vadd.xlane.f32.xlu0 %v2420
  %v2422 = vpop.xlane.xlu0 %2421
  %v2423 = vsel %vm980, %v2392, 0.0
  %2424 = vadd.xlane.f32.xlu0 %v2423
  %v2425 = vpop.xlane.xlu0 %2424
  %v2426 = vsel %vm980, %v2394, 0.0
  %2427 = vadd.xlane.f32.xlu0 %v2426
  %v2428 = vpop.xlane.xlu0 %2427
  %v2429 = vsel %vm980, %v2396, 0.0
  %2430 = vadd.xlane.f32.xlu0 %v2429
  %v2431 = vpop.xlane.xlu0 %2430
  %v2432 = vsel %vm980, %v2398, 0.0
  %2433 = vadd.xlane.f32.xlu0 %v2432
  %v2434 = vpop.xlane.xlu0 %2433
  %v2435 = vrcp.pop %v2401
  %v2436 = vrcp.pop %v2404
  %v2437 = vrcp.pop %v2407
  %v2438 = vrcp.pop %v2410
  %v2439 = vrcp.pop %v2413
  %v2440 = vrcp.pop %v2416
  %v2441 = vrcp.pop %v2419
  %v2442 = vrcp.pop %v2422
  %v2443 = vrcp.pop %v2425
  %v2444 = vrcp.pop %v2428
  %v2445 = vrcp.pop %v2431
  %v2446 = vrcp.pop %v2434
  %v2447 = vmul.f32 %v2376, %v2435
  %v2448 = vmul.f32 %v2378, %v2436
  %v2449 = vmul.f32 %v2380, %v2437
  %v2450 = vmul.f32 %v2382, %v2438
  %v2451 = vmul.f32 %v2384, %v2439
  %v2452 = vmul.f32 %v2386, %v2440
  %v2453 = vmul.f32 %v2388, %v2441
  %v2454 = vmul.f32 %v2390, %v2442
  %v2455 = vmul.f32 %v2392, %v2443
  %v2456 = vmul.f32 %v2394, %v2444
  %v2457 = vmul.f32 %v2396, %v2445
  %v2458 = vmul.f32 %v2398, %v2446
  %v2459 = vpack.c.bf16 %v2447, %v2447
  %v2460 = vpack.c.bf16 %v2448, %v2448
  %v2461 = vpack.c.bf16 %v2449, %v2449
  %v2462 = vpack.c.bf16 %v2450, %v2450
  %v2463 = vpack.c.bf16 %v2451, %v2451
  %v2464 = vpack.c.bf16 %v2452, %v2452
  %v2465 = vpack.c.bf16 %v2453, %v2453
  %v2466 = vpack.c.bf16 %v2454, %v2454
  %v2467 = vpack.c.bf16 %v2455, %v2455
  %v2468 = vpack.c.bf16 %v2456, %v2456
  %v2469 = vpack.c.bf16 %v2457, %v2457
  %v2470 = vpack.c.bf16 %v2458, %v2458
  %2471 = vrot.lane.b32.xlu0 %v379, 56
  %v2472 = vpop.permute.xlu0 %2471
  %v2474 = vsel %vm1127, %v2459, 0
  %v2477 = vsel %vm1131, %v2472, 0
  %2479 = vmatprep.subr.bf16.mxu0 0
  %2480 = vmatpush1.bf16.msra.mxu0 %v2477
  %2481 = vmatprep.subr.bf16.mxu0 0
  %2482 = vmatpush1.bf16.msra.mxu0 0
  %2483 = vmatprep.subr.bf16.mxu0 0
  %2484 = vmatpush1.bf16.msra.mxu0 0
  %2485 = vmatprep.subr.bf16.mxu0 0
  %2486 = vmatpush1.bf16.msra.mxu0 0
  %2487 = vmatprep.subr.bf16.mxu0 0
  %2488 = vmatpush1.bf16.msra.mxu0 0
  %2489 = vmatprep.subr.bf16.mxu0 0
  %2490 = vmatpush1.bf16.msra.mxu0 0
  %2491 = vmatprep.subr.bf16.mxu0 0
  %2492 = vmatpush1.bf16.msra.mxu0 0
  %2493 = vmatprep.subr.bf16.mxu0 0
  %2494 = vmatpush1.bf16.msra.mxu0 0
  %2495 = vmatprep.subr.bf16.mxu0 0
  %2496 = vmatpush1.bf16.msra.mxu0 0
  %2497 = vmatprep.subr.bf16.mxu0 0
  %2498 = vmatpush1.bf16.msra.mxu0 0
  %2499 = vmatprep.subr.bf16.mxu0 0
  %2500 = vmatpush1.bf16.msra.mxu0 0
  %2501 = vmatprep.subr.bf16.mxu0 0
  %2502 = vmatpush1.bf16.msra.mxu0 0
  %2503 = vmatprep.subr.bf16.mxu0 0
  %2504 = vmatpush1.bf16.msra.mxu0 0
  %2505 = vmatprep.subr.bf16.mxu0 0
  %2506 = vmatpush1.bf16.msra.mxu0 0
  %2507 = vmatprep.subr.bf16.mxu0 0
  %2508 = vmatpush1.bf16.msra.mxu0 0
  %2509 = vmatprep.subr.bf16.mxu0 0
  %2510 = vmatpush1.bf16.msra.mxu0 0
  %2511 = vmatprep.mubr.bf16.mxu0 0
  %2512 = vmatmul.mubr.bf16.gmra.mrb[0].mxu0 %v2474
  %v2513 = vpop.f32.mrb[0].mxu0
  %v2514 = vadd.f32 0.0, %v2513
  %v2515 = vpop.f32.mrb[0].mxu0
  %v2516 = vpop.f32.mrb[0].mxu0
  %v2517 = vpop.f32.mrb[0].mxu0
  %2518 = vdwg.mxu0
  %2519 = vrot.lane.b32.xlu0 %v380, 56
  %v2520 = vpop.permute.xlu0 %2519
  %v2522 = vsel %vm1127, %v2460, 0
  %v2525 = vsel %vm1131, %v2520, 0
  %2527 = vmatprep.subr.bf16.mxu0 0
  %2528 = vmatpush1.bf16.msra.mxu0 %v2525
  %2529 = vmatprep.subr.bf16.mxu0 0
  %2530 = vmatpush1.bf16.msra.mxu0 0
  %2531 = vmatprep.subr.bf16.mxu0 0
  %2532 = vmatpush1.bf16.msra.mxu0 0
  %2533 = vmatprep.subr.bf16.mxu0 0
  %2534 = vmatpush1.bf16.msra.mxu0 0
  %2535 = vmatprep.subr.bf16.mxu0 0
  %2536 = vmatpush1.bf16.msra.mxu0 0
  %2537 = vmatprep.subr.bf16.mxu0 0
  %2538 = vmatpush1.bf16.msra.mxu0 0
  %2539 = vmatprep.subr.bf16.mxu0 0
  %2540 = vmatpush1.bf16.msra.mxu0 0
  %2541 = vmatprep.subr.bf16.mxu0 0
  %2542 = vmatpush1.bf16.msra.mxu0 0
  %2543 = vmatprep.subr.bf16.mxu0 0
  %2544 = vmatpush1.bf16.msra.mxu0 0
  %2545 = vmatprep.subr.bf16.mxu0 0
  %2546 = vmatpush1.bf16.msra.mxu0 0
  %2547 = vmatprep.subr.bf16.mxu0 0
  %2548 = vmatpush1.bf16.msra.mxu0 0
  %2549 = vmatprep.subr.bf16.mxu0 0
  %2550 = vmatpush1.bf16.msra.mxu0 0
  %2551 = vmatprep.subr.bf16.mxu0 0
  %2552 = vmatpush1.bf16.msra.mxu0 0
  %2553 = vmatprep.subr.bf16.mxu0 0
  %2554 = vmatpush1.bf16.msra.mxu0 0
  %2555 = vmatprep.subr.bf16.mxu0 0
  %2556 = vmatpush1.bf16.msra.mxu0 0
  %2557 = vmatprep.subr.bf16.mxu0 0
  %2558 = vmatpush1.bf16.msra.mxu0 0
  %2559 = vmatprep.mubr.bf16.mxu0 0
  %2560 = vmatmul.mubr.bf16.gmra.mrb[0].mxu0 %v2522
  %v2561 = vpop.f32.mrb[0].mxu0
  %v2562 = vadd.f32 0.0, %v2561
  %v2563 = vpop.f32.mrb[0].mxu0
  %v2564 = vpop.f32.mrb[0].mxu0
  %v2565 = vpop.f32.mrb[0].mxu0
  %2566 = vdwg.mxu0
  %2567 = vrot.lane.b32.xlu0 %v381, 56
  %v2568 = vpop.permute.xlu0 %2567
  %v2570 = vsel %vm1127, %v2461, 0
  %v2573 = vsel %vm1131, %v2568, 0
  %2575 = vmatprep.subr.bf16.mxu0 0
  %2576 = vmatpush1.bf16.msra.mxu0 %v2573
  %2577 = vmatprep.subr.bf16.mxu0 0
  %2578 = vmatpush1.bf16.msra.mxu0 0
  %2579 = vmatprep.subr.bf16.mxu0 0
  %2580 = vmatpush1.bf16.msra.mxu0 0
  %2581 = vmatprep.subr.bf16.mxu0 0
  %2582 = vmatpush1.bf16.msra.mxu0 0
  %2583 = vmatprep.subr.bf16.mxu0 0
  %2584 = vmatpush1.bf16.msra.mxu0 0
  %2585 = vmatprep.subr.bf16.mxu0 0
  %2586 = vmatpush1.bf16.msra.mxu0 0
  %2587 = vmatprep.subr.bf16.mxu0 0
  %2588 = vmatpush1.bf16.msra.mxu0 0
  %2589 = vmatprep.subr.bf16.mxu0 0
  %2590 = vmatpush1.bf16.msra.mxu0 0
  %2591 = vmatprep.subr.bf16.mxu0 0
  %2592 = vmatpush1.bf16.msra.mxu0 0
  %2593 = vmatprep.subr.bf16.mxu0 0
  %2594 = vmatpush1.bf16.msra.mxu0 0
  %2595 = vmatprep.subr.bf16.mxu0 0
  %2596 = vmatpush1.bf16.msra.mxu0 0
  %2597 = vmatprep.subr.bf16.mxu0 0
  %2598 = vmatpush1.bf16.msra.mxu0 0
  %2599 = vmatprep.subr.bf16.mxu0 0
  %2600 = vmatpush1.bf16.msra.mxu0 0
  %2601 = vmatprep.subr.bf16.mxu0 0
  %2602 = vmatpush1.bf16.msra.mxu0 0
  %2603 = vmatprep.subr.bf16.mxu0 0
  %2604 = vmatpush1.bf16.msra.mxu0 0
  %2605 = vmatprep.subr.bf16.mxu0 0
  %2606 = vmatpush1.bf16.msra.mxu0 0
  %2607 = vmatprep.mubr.bf16.mxu0 0
  %2608 = vmatmul.mubr.bf16.gmra.mrb[0].mxu0 %v2570
  %v2609 = vpop.f32.mrb[0].mxu0
  %v2610 = vadd.f32 0.0, %v2609
  %v2611 = vpop.f32.mrb[0].mxu0
  %v2612 = vpop.f32.mrb[0].mxu0
  %v2613 = vpop.f32.mrb[0].mxu0
  %2614 = vdwg.mxu0
  %2615 = vrot.lane.b32.xlu0 %v382, 56
  %v2616 = vpop.permute.xlu0 %2615
  %v2618 = vsel %vm1127, %v2462, 0
  %v2621 = vsel %vm1131, %v2616, 0
  %2623 = vmatprep.subr.bf16.mxu0 0
  %2624 = vmatpush1.bf16.msra.mxu0 %v2621
  %2625 = vmatprep.subr.bf16.mxu0 0
  %2626 = vmatpush1.bf16.msra.mxu0 0
  %2627 = vmatprep.subr.bf16.mxu0 0
  %2628 = vmatpush1.bf16.msra.mxu0 0
  %2629 = vmatprep.subr.bf16.mxu0 0
  %2630 = vmatpush1.bf16.msra.mxu0 0
  %2631 = vmatprep.subr.bf16.mxu0 0
  %2632 = vmatpush1.bf16.msra.mxu0 0
  %2633 = vmatprep.subr.bf16.mxu0 0
  %2634 = vmatpush1.bf16.msra.mxu0 0
  %2635 = vmatprep.subr.bf16.mxu0 0
  %2636 = vmatpush1.bf16.msra.mxu0 0
  %2637 = vmatprep.subr.bf16.mxu0 0
  %2638 = vmatpush1.bf16.msra.mxu0 0
  %2639 = vmatprep.subr.bf16.mxu0 0
  %2640 = vmatpush1.bf16.msra.mxu0 0
  %2641 = vmatprep.subr.bf16.mxu0 0
  %2642 = vmatpush1.bf16.msra.mxu0 0
  %2643 = vmatprep.subr.bf16.mxu0 0
  %2644 = vmatpush1.bf16.msra.mxu0 0
  %2645 = vmatprep.subr.bf16.mxu0 0
  %2646 = vmatpush1.bf16.msra.mxu0 0
  %2647 = vmatprep.subr.bf16.mxu0 0
  %2648 = vmatpush1.bf16.msra.mxu0 0
  %2649 = vmatprep.subr.bf16.mxu0 0
  %2650 = vmatpush1.bf16.msra.mxu0 0
  %2651 = vmatprep.subr.bf16.mxu0 0
  %2652 = vmatpush1.bf16.msra.mxu0 0
  %2653 = vmatprep.subr.bf16.mxu0 0
  %2654 = vmatpush1.bf16.msra.mxu0 0
  %2655 = vmatprep.mubr.bf16.mxu0 0
  %2656 = vmatmul.mubr.bf16.gmra.mrb[0].mxu0 %v2618
  %v2657 = vpop.f32.mrb[0].mxu0
  %v2658 = vadd.f32 0.0, %v2657
  %v2659 = vpop.f32.mrb[0].mxu0
  %v2660 = vpop.f32.mrb[0].mxu0
  %v2661 = vpop.f32.mrb[0].mxu0
  %2662 = vdwg.mxu0
  %2663 = vrot.lane.b32.xlu0 %v383, 56
  %v2664 = vpop.permute.xlu0 %2663
  %v2666 = vsel %vm1127, %v2463, 0
  %v2669 = vsel %vm1131, %v2664, 0
  %2671 = vmatprep.subr.bf16.mxu0 0
  %2672 = vmatpush1.bf16.msra.mxu0 %v2669
  %2673 = vmatprep.subr.bf16.mxu0 0
  %2674 = vmatpush1.bf16.msra.mxu0 0
  %2675 = vmatprep.subr.bf16.mxu0 0
  %2676 = vmatpush1.bf16.msra.mxu0 0
  %2677 = vmatprep.subr.bf16.mxu0 0
  %2678 = vmatpush1.bf16.msra.mxu0 0
  %2679 = vmatprep.subr.bf16.mxu0 0
  %2680 = vmatpush1.bf16.msra.mxu0 0
  %2681 = vmatprep.subr.bf16.mxu0 0
  %2682 = vmatpush1.bf16.msra.mxu0 0
  %2683 = vmatprep.subr.bf16.mxu0 0
  %2684 = vmatpush1.bf16.msra.mxu0 0
  %2685 = vmatprep.subr.bf16.mxu0 0
  %2686 = vmatpush1.bf16.msra.mxu0 0
  %2687 = vmatprep.subr.bf16.mxu0 0
  %2688 = vmatpush1.bf16.msra.mxu0 0
  %2689 = vmatprep.subr.bf16.mxu0 0
  %2690 = vmatpush1.bf16.msra.mxu0 0
  %2691 = vmatprep.subr.bf16.mxu0 0
  %2692 = vmatpush1.bf16.msra.mxu0 0
  %2693 = vmatprep.subr.bf16.mxu0 0
  %2694 = vmatpush1.bf16.msra.mxu0 0
  %2695 = vmatprep.subr.bf16.mxu0 0
  %2696 = vmatpush1.bf16.msra.mxu0 0
  %2697 = vmatprep.subr.bf16.mxu0 0
  %2698 = vmatpush1.bf16.msra.mxu0 0
  %2699 = vmatprep.subr.bf16.mxu0 0
  %2700 = vmatpush1.bf16.msra.mxu0 0
  %2701 = vmatprep.subr.bf16.mxu0 0
  %2702 = vmatpush1.bf16.msra.mxu0 0
  %2703 = vmatprep.mubr.bf16.mxu0 0
  %2704 = vmatmul.mubr.bf16.gmra.mrb[0].mxu0 %v2666
  %v2705 = vpop.f32.mrb[0].mxu0
  %v2706 = vadd.f32 0.0, %v2705
  %v2707 = vpop.f32.mrb[0].mxu0
  %v2708 = vpop.f32.mrb[0].mxu0
  %v2709 = vpop.f32.mrb[0].mxu0
  %2710 = vdwg.mxu0
  %2711 = vrot.lane.b32.xlu0 %v384, 56
  %v2712 = vpop.permute.xlu0 %2711
  %v2714 = vsel %vm1127, %v2464, 0
  %v2717 = vsel %vm1131, %v2712, 0
  %2719 = vmatprep.subr.bf16.mxu0 0
  %2720 = vmatpush1.bf16.msra.mxu0 %v2717
  %2721 = vmatprep.subr.bf16.mxu0 0
  %2722 = vmatpush1.bf16.msra.mxu0 0
  %2723 = vmatprep.subr.bf16.mxu0 0
  %2724 = vmatpush1.bf16.msra.mxu0 0
  %2725 = vmatprep.subr.bf16.mxu0 0
  %2726 = vmatpush1.bf16.msra.mxu0 0
  %2727 = vmatprep.subr.bf16.mxu0 0
  %2728 = vmatpush1.bf16.msra.mxu0 0
  %2729 = vmatprep.subr.bf16.mxu0 0
  %2730 = vmatpush1.bf16.msra.mxu0 0
  %2731 = vmatprep.subr.bf16.mxu0 0
  %2732 = vmatpush1.bf16.msra.mxu0 0
  %2733 = vmatprep.subr.bf16.mxu0 0
  %2734 = vmatpush1.bf16.msra.mxu0 0
  %2735 = vmatprep.subr.bf16.mxu0 0
  %2736 = vmatpush1.bf16.msra.mxu0 0
  %2737 = vmatprep.subr.bf16.mxu0 0
  %2738 = vmatpush1.bf16.msra.mxu0 0
  %2739 = vmatprep.subr.bf16.mxu0 0
  %2740 = vmatpush1.bf16.msra.mxu0 0
  %2741 = vmatprep.subr.bf16.mxu0 0
  %2742 = vmatpush1.bf16.msra.mxu0 0
  %2743 = vmatprep.subr.bf16.mxu0 0
  %2744 = vmatpush1.bf16.msra.mxu0 0
  %2745 = vmatprep.subr.bf16.mxu0 0
  %2746 = vmatpush1.bf16.msra.mxu0 0
  %2747 = vmatprep.subr.bf16.mxu0 0
  %2748 = vmatpush1.bf16.msra.mxu0 0
  %2749 = vmatprep.subr.bf16.mxu0 0
  %2750 = vmatpush1.bf16.msra.mxu0 0
  %2751 = vmatprep.mubr.bf16.mxu0 0
  %2752 = vmatmul.mubr.bf16.gmra.mrb[0].mxu0 %v2714
  %v2753 = vpop.f32.mrb[0].mxu0
  %v2754 = vadd.f32 0.0, %v2753
  %v2755 = vpop.f32.mrb[0].mxu0
  %v2756 = vpop.f32.mrb[0].mxu0
  %v2757 = vpop.f32.mrb[0].mxu0
  %2758 = vdwg.mxu0
  %2759 = vrot.lane.b32.xlu0 %v385, 56
  %v2760 = vpop.permute.xlu0 %2759
  %v2762 = vsel %vm1127, %v2465, 0
  %v2765 = vsel %vm1131, %v2760, 0
  %2767 = vmatprep.subr.bf16.mxu0 0
  %2768 = vmatpush1.bf16.msra.mxu0 %v2765
  %2769 = vmatprep.subr.bf16.mxu0 0
  %2770 = vmatpush1.bf16.msra.mxu0 0
  %2771 = vmatprep.subr.bf16.mxu0 0
  %2772 = vmatpush1.bf16.msra.mxu0 0
  %2773 = vmatprep.subr.bf16.mxu0 0
  %2774 = vmatpush1.bf16.msra.mxu0 0
  %2775 = vmatprep.subr.bf16.mxu0 0
  %2776 = vmatpush1.bf16.msra.mxu0 0
  %2777 = vmatprep.subr.bf16.mxu0 0
  %2778 = vmatpush1.bf16.msra.mxu0 0
  %2779 = vmatprep.subr.bf16.mxu0 0
  %2780 = vmatpush1.bf16.msra.mxu0 0
  %2781 = vmatprep.subr.bf16.mxu0 0
  %2782 = vmatpush1.bf16.msra.mxu0 0
  %2783 = vmatprep.subr.bf16.mxu0 0
  %2784 = vmatpush1.bf16.msra.mxu0 0
  %2785 = vmatprep.subr.bf16.mxu0 0
  %2786 = vmatpush1.bf16.msra.mxu0 0
  %2787 = vmatprep.subr.bf16.mxu0 0
  %2788 = vmatpush1.bf16.msra.mxu0 0
  %2789 = vmatprep.subr.bf16.mxu0 0
  %2790 = vmatpush1.bf16.msra.mxu0 0
  %2791 = vmatprep.subr.bf16.mxu0 0
  %2792 = vmatpush1.bf16.msra.mxu0 0
  %2793 = vmatprep.subr.bf16.mxu0 0
  %2794 = vmatpush1.bf16.msra.mxu0 0
  %2795 = vmatprep.subr.bf16.mxu0 0
  %2796 = vmatpush1.bf16.msra.mxu0 0
  %2797 = vmatprep.subr.bf16.mxu0 0
  %2798 = vmatpush1.bf16.msra.mxu0 0
  %2799 = vmatprep.mubr.bf16.mxu0 0
  %2800 = vmatmul.mubr.bf16.gmra.mrb[0].mxu0 %v2762
  %v2801 = vpop.f32.mrb[0].mxu0
  %v2802 = vadd.f32 0.0, %v2801
  %v2803 = vpop.f32.mrb[0].mxu0
  %v2804 = vpop.f32.mrb[0].mxu0
  %v2805 = vpop.f32.mrb[0].mxu0
  %2806 = vdwg.mxu0
  %2807 = vrot.lane.b32.xlu0 %v386, 56
  %v2808 = vpop.permute.xlu0 %2807
  %v2810 = vsel %vm1127, %v2466, 0
  %v2813 = vsel %vm1131, %v2808, 0
  %2815 = vmatprep.subr.bf16.mxu0 0
  %2816 = vmatpush1.bf16.msra.mxu0 %v2813
  %2817 = vmatprep.subr.bf16.mxu0 0
  %2818 = vmatpush1.bf16.msra.mxu0 0
  %2819 = vmatprep.subr.bf16.mxu0 0
  %2820 = vmatpush1.bf16.msra.mxu0 0
  %2821 = vmatprep.subr.bf16.mxu0 0
  %2822 = vmatpush1.bf16.msra.mxu0 0
  %2823 = vmatprep.subr.bf16.mxu0 0
  %2824 = vmatpush1.bf16.msra.mxu0 0
  %2825 = vmatprep.subr.bf16.mxu0 0
  %2826 = vmatpush1.bf16.msra.mxu0 0
  %2827 = vmatprep.subr.bf16.mxu0 0
  %2828 = vmatpush1.bf16.msra.mxu0 0
  %2829 = vmatprep.subr.bf16.mxu0 0
  %2830 = vmatpush1.bf16.msra.mxu0 0
  %2831 = vmatprep.subr.bf16.mxu0 0
  %2832 = vmatpush1.bf16.msra.mxu0 0
  %2833 = vmatprep.subr.bf16.mxu0 0
  %2834 = vmatpush1.bf16.msra.mxu0 0
  %2835 = vmatprep.subr.bf16.mxu0 0
  %2836 = vmatpush1.bf16.msra.mxu0 0
  %2837 = vmatprep.subr.bf16.mxu0 0
  %2838 = vmatpush1.bf16.msra.mxu0 0
  %2839 = vmatprep.subr.bf16.mxu0 0
  %2840 = vmatpush1.bf16.msra.mxu0 0
  %2841 = vmatprep.subr.bf16.mxu0 0
  %2842 = vmatpush1.bf16.msra.mxu0 0
  %2843 = vmatprep.subr.bf16.mxu0 0
  %2844 = vmatpush1.bf16.msra.mxu0 0
  %2845 = vmatprep.subr.bf16.mxu0 0
  %2846 = vmatpush1.bf16.msra.mxu0 0
  %2847 = vmatprep.mubr.bf16.mxu0 0
  %2848 = vmatmul.mubr.bf16.gmra.mrb[0].mxu0 %v2810
  %v2849 = vpop.f32.mrb[0].mxu0
  %v2850 = vadd.f32 0.0, %v2849
  %v2851 = vpop.f32.mrb[0].mxu0
  %v2852 = vpop.f32.mrb[0].mxu0
  %v2853 = vpop.f32.mrb[0].mxu0
  %2854 = vdwg.mxu0
  %2855 = vrot.lane.b32.xlu0 %v387, 56
  %v2856 = vpop.permute.xlu0 %2855
  %v2858 = vsel %vm1127, %v2467, 0
  %v2861 = vsel %vm1131, %v2856, 0
  %2863 = vmatprep.subr.bf16.mxu0 0
  %2864 = vmatpush1.bf16.msra.mxu0 %v2861
  %2865 = vmatprep.subr.bf16.mxu0 0
  %2866 = vmatpush1.bf16.msra.mxu0 0
  %2867 = vmatprep.subr.bf16.mxu0 0
  %2868 = vmatpush1.bf16.msra.mxu0 0
  %2869 = vmatprep.subr.bf16.mxu0 0
  %2870 = vmatpush1.bf16.msra.mxu0 0
  %2871 = vmatprep.subr.bf16.mxu0 0
  %2872 = vmatpush1.bf16.msra.mxu0 0
  %2873 = vmatprep.subr.bf16.mxu0 0
  %2874 = vmatpush1.bf16.msra.mxu0 0
  %2875 = vmatprep.subr.bf16.mxu0 0
  %2876 = vmatpush1.bf16.msra.mxu0 0
  %2877 = vmatprep.subr.bf16.mxu0 0
  %2878 = vmatpush1.bf16.msra.mxu0 0
  %2879 = vmatprep.subr.bf16.mxu0 0
  %2880 = vmatpush1.bf16.msra.mxu0 0
  %2881 = vmatprep.subr.bf16.mxu0 0
  %2882 = vmatpush1.bf16.msra.mxu0 0
  %2883 = vmatprep.subr.bf16.mxu0 0
  %2884 = vmatpush1.bf16.msra.mxu0 0
  %2885 = vmatprep.subr.bf16.mxu0 0
  %2886 = vmatpush1.bf16.msra.mxu0 0
  %2887 = vmatprep.subr.bf16.mxu0 0
  %2888 = vmatpush1.bf16.msra.mxu0 0
  %2889 = vmatprep.subr.bf16.mxu0 0
  %2890 = vmatpush1.bf16.msra.mxu0 0
  %2891 = vmatprep.subr.bf16.mxu0 0
  %2892 = vmatpush1.bf16.msra.mxu0 0
  %2893 = vmatprep.subr.bf16.mxu0 0
  %2894 = vmatpush1.bf16.msra.mxu0 0
  %2895 = vmatprep.mubr.bf16.mxu0 0
  %2896 = vmatmul.mubr.bf16.gmra.mrb[0].mxu0 %v2858
  %v2897 = vpop.f32.mrb[0].mxu0
  %v2898 = vadd.f32 0.0, %v2897
  %v2899 = vpop.f32.mrb[0].mxu0
  %v2900 = vpop.f32.mrb[0].mxu0
  %v2901 = vpop.f32.mrb[0].mxu0
  %2902 = vdwg.mxu0
  %2903 = vrot.lane.b32.xlu0 %v388, 56
  %v2904 = vpop.permute.xlu0 %2903
  %v2906 = vsel %vm1127, %v2468, 0
  %v2909 = vsel %vm1131, %v2904, 0
  %2911 = vmatprep.subr.bf16.mxu0 0
  %2912 = vmatpush1.bf16.msra.mxu0 %v2909
  %2913 = vmatprep.subr.bf16.mxu0 0
  %2914 = vmatpush1.bf16.msra.mxu0 0
  %2915 = vmatprep.subr.bf16.mxu0 0
  %2916 = vmatpush1.bf16.msra.mxu0 0
  %2917 = vmatprep.subr.bf16.mxu0 0
  %2918 = vmatpush1.bf16.msra.mxu0 0
  %2919 = vmatprep.subr.bf16.mxu0 0
  %2920 = vmatpush1.bf16.msra.mxu0 0
  %2921 = vmatprep.subr.bf16.mxu0 0
  %2922 = vmatpush1.bf16.msra.mxu0 0
  %2923 = vmatprep.subr.bf16.mxu0 0
  %2924 = vmatpush1.bf16.msra.mxu0 0
  %2925 = vmatprep.subr.bf16.mxu0 0
  %2926 = vmatpush1.bf16.msra.mxu0 0
  %2927 = vmatprep.subr.bf16.mxu0 0
  %2928 = vmatpush1.bf16.msra.mxu0 0
  %2929 = vmatprep.subr.bf16.mxu0 0
  %2930 = vmatpush1.bf16.msra.mxu0 0
  %2931 = vmatprep.subr.bf16.mxu0 0
  %2932 = vmatpush1.bf16.msra.mxu0 0
  %2933 = vmatprep.subr.bf16.mxu0 0
  %2934 = vmatpush1.bf16.msra.mxu0 0
  %2935 = vmatprep.subr.bf16.mxu0 0
  %2936 = vmatpush1.bf16.msra.mxu0 0
  %2937 = vmatprep.subr.bf16.mxu0 0
  %2938 = vmatpush1.bf16.msra.mxu0 0
  %2939 = vmatprep.subr.bf16.mxu0 0
  %2940 = vmatpush1.bf16.msra.mxu0 0
  %2941 = vmatprep.subr.bf16.mxu0 0
  %2942 = vmatpush1.bf16.msra.mxu0 0
  %2943 = vmatprep.mubr.bf16.mxu0 0
  %2944 = vmatmul.mubr.bf16.gmra.mrb[0].mxu0 %v2906
  %v2945 = vpop.f32.mrb[0].mxu0
  %v2946 = vadd.f32 0.0, %v2945
  %v2947 = vpop.f32.mrb[0].mxu0
  %v2948 = vpop.f32.mrb[0].mxu0
  %v2949 = vpop.f32.mrb[0].mxu0
  %2950 = vdwg.mxu0
  %2951 = vrot.lane.b32.xlu0 %v389, 56
  %v2952 = vpop.permute.xlu0 %2951
  %v2954 = vsel %vm1127, %v2469, 0
  %v2957 = vsel %vm1131, %v2952, 0
  %2959 = vmatprep.subr.bf16.mxu0 0
  %2960 = vmatpush1.bf16.msra.mxu0 %v2957
  %2961 = vmatprep.subr.bf16.mxu0 0
  %2962 = vmatpush1.bf16.msra.mxu0 0
  %2963 = vmatprep.subr.bf16.mxu0 0
  %2964 = vmatpush1.bf16.msra.mxu0 0
  %2965 = vmatprep.subr.bf16.mxu0 0
  %2966 = vmatpush1.bf16.msra.mxu0 0
  %2967 = vmatprep.subr.bf16.mxu0 0
  %2968 = vmatpush1.bf16.msra.mxu0 0
  %2969 = vmatprep.subr.bf16.mxu0 0
  %2970 = vmatpush1.bf16.msra.mxu0 0
  %2971 = vmatprep.subr.bf16.mxu0 0
  %2972 = vmatpush1.bf16.msra.mxu0 0
  %2973 = vmatprep.subr.bf16.mxu0 0
  %2974 = vmatpush1.bf16.msra.mxu0 0
  %2975 = vmatprep.subr.bf16.mxu0 0
  %2976 = vmatpush1.bf16.msra.mxu0 0
  %2977 = vmatprep.subr.bf16.mxu0 0
  %2978 = vmatpush1.bf16.msra.mxu0 0
  %2979 = vmatprep.subr.bf16.mxu0 0
  %2980 = vmatpush1.bf16.msra.mxu0 0
  %2981 = vmatprep.subr.bf16.mxu0 0
  %2982 = vmatpush1.bf16.msra.mxu0 0
  %2983 = vmatprep.subr.bf16.mxu0 0
  %2984 = vmatpush1.bf16.msra.mxu0 0
  %2985 = vmatprep.subr.bf16.mxu0 0
  %2986 = vmatpush1.bf16.msra.mxu0 0
  %2987 = vmatprep.subr.bf16.mxu0 0
  %2988 = vmatpush1.bf16.msra.mxu0 0
  %2989 = vmatprep.subr.bf16.mxu0 0
  %2990 = vmatpush1.bf16.msra.mxu0 0
  %2991 = vmatprep.mubr.bf16.mxu0 0
  %2992 = vmatmul.mubr.bf16.gmra.mrb[0].mxu0 %v2954
  %v2993 = vpop.f32.mrb[0].mxu0
  %v2994 = vadd.f32 0.0, %v2993
  %v2995 = vpop.f32.mrb[0].mxu0
  %v2996 = vpop.f32.mrb[0].mxu0
  %v2997 = vpop.f32.mrb[0].mxu0
  %2998 = vdwg.mxu0
  %2999 = vrot.lane.b32.xlu0 %v390, 56
  %v3000 = vpop.permute.xlu0 %2999
  %v3002 = vsel %vm1127, %v2470, 0
  %v3005 = vsel %vm1131, %v3000, 0
  %3007 = vmatprep.subr.bf16.mxu0 0
  %3008 = vmatpush1.bf16.msra.mxu0 %v3005
  %3009 = vmatprep.subr.bf16.mxu0 0
  %3010 = vmatpush1.bf16.msra.mxu0 0
  %3011 = vmatprep.subr.bf16.mxu0 0
  %3012 = vmatpush1.bf16.msra.mxu0 0
  %3013 = vmatprep.subr.bf16.mxu0 0
  %3014 = vmatpush1.bf16.msra.mxu0 0
  %3015 = vmatprep.subr.bf16.mxu0 0
  %3016 = vmatpush1.bf16.msra.mxu0 0
  %3017 = vmatprep.subr.bf16.mxu0 0
  %3018 = vmatpush1.bf16.msra.mxu0 0
  %3019 = vmatprep.subr.bf16.mxu0 0
  %3020 = vmatpush1.bf16.msra.mxu0 0
  %3021 = vmatprep.subr.bf16.mxu0 0
  %3022 = vmatpush1.bf16.msra.mxu0 0
  %3023 = vmatprep.subr.bf16.mxu0 0
  %3024 = vmatpush1.bf16.msra.mxu0 0
  %3025 = vmatprep.subr.bf16.mxu0 0
  %3026 = vmatpush1.bf16.msra.mxu0 0
  %3027 = vmatprep.subr.bf16.mxu0 0
  %3028 = vmatpush1.bf16.msra.mxu0 0
  %3029 = vmatprep.subr.bf16.mxu0 0
  %3030 = vmatpush1.bf16.msra.mxu0 0
  %3031 = vmatprep.subr.bf16.mxu0 0
  %3032 = vmatpush1.bf16.msra.mxu0 0
  %3033 = vmatprep.subr.bf16.mxu0 0
  %3034 = vmatpush1.bf16.msra.mxu0 0
  %3035 = vmatprep.subr.bf16.mxu0 0
  %3036 = vmatpush1.bf16.msra.mxu0 0
  %3037 = vmatprep.subr.bf16.mxu0 0
  %3038 = vmatpush1.bf16.msra.mxu0 0
  %3039 = vmatprep.mubr.bf16.mxu0 0
  %3040 = vmatmul.mubr.bf16.gmra.mrb[0].mxu0 %v3002
  %v3041 = vpop.f32.mrb[0].mxu0
  %v3042 = vadd.f32 0.0, %v3041
  %v3043 = vpop.f32.mrb[0].mxu0
  %v3044 = vpop.f32.mrb[0].mxu0
  %v3045 = vpop.f32.mrb[0].mxu0
  %3046 = vdwg.mxu0
  %v3047 = vpack.c.bf16 %v2514, %v2514
  %v3048 = vpack.c.bf16 %v2562, %v2562
  %v3049 = vpack.c.bf16 %v2610, %v2610
  %v3050 = vpack.c.bf16 %v2658, %v2658
  %v3051 = vpack.c.bf16 %v2706, %v2706
  %v3052 = vpack.c.bf16 %v2754, %v2754
  %v3053 = vpack.c.bf16 %v2802, %v2802
  %v3054 = vpack.c.bf16 %v2850, %v2850
  %v3055 = vpack.c.bf16 %v2898, %v2898
  %v3056 = vpack.c.bf16 %v2946, %v2946
  %v3057 = vpack.c.bf16 %v2994, %v2994
  %v3058 = vpack.c.bf16 %v3042, %v3042
  %3059 = vrot.lane.b32.xlu0 %v301, 112
  %v3060 = vpop.permute.xlu0 %3059
  %3061 = vrot.lane.b32.xlu0 %v379, 80
  %v3062 = vpop.permute.xlu0 %3061
  %v3064 = vsel %vm394, %v3060, 0
  %v3067 = vsel %vm394, %v3062, 0
  %3069 = vmatprep.subr.bf16.mxu0 0
  %3070 = vmatpush1.bf16.xpose.msra.mxu0 %v3067
  %3071 = vmatprep.subr.bf16.mxu0 0
  %3072 = vmatpush1.bf16.xpose.msra.mxu0 0
  %3073 = vmatprep.subr.bf16.mxu0 0
  %3074 = vmatpush1.bf16.xpose.msra.mxu0 0
  %3075 = vmatprep.subr.bf16.mxu0 0
  %3076 = vmatpush1.bf16.xpose.msra.mxu0 0
  %3077 = vmatprep.subr.bf16.mxu0 0
  %3078 = vmatpush1.bf16.xpose.msra.mxu0 0
  %3079 = vmatprep.subr.bf16.mxu0 0
  %3080 = vmatpush1.bf16.xpose.msra.mxu0 0
  %3081 = vmatprep.subr.bf16.mxu0 0
  %3082 = vmatpush1.bf16.xpose.msra.mxu0 0
  %3083 = vmatprep.subr.bf16.mxu0 0
  %3084 = vmatpush1.bf16.xpose.msra.mxu0 0
  %3085 = vmatprep.subr.bf16.mxu0 0
  %3086 = vmatpush1.bf16.xpose.msra.mxu0 0
  %3087 = vmatprep.subr.bf16.mxu0 0
  %3088 = vmatpush1.bf16.xpose.msra.mxu0 0
  %3089 = vmatprep.subr.bf16.mxu0 0
  %3090 = vmatpush1.bf16.xpose.msra.mxu0 0
  %3091 = vmatprep.subr.bf16.mxu0 0
  %3092 = vmatpush1.bf16.xpose.msra.mxu0 0
  %3093 = vmatprep.subr.bf16.mxu0 0
  %3094 = vmatpush1.bf16.xpose.msra.mxu0 0
  %3095 = vmatprep.subr.bf16.mxu0 0
  %3096 = vmatpush1.bf16.xpose.msra.mxu0 0
  %3097 = vmatprep.subr.bf16.mxu0 0
  %3098 = vmatpush1.bf16.xpose.msra.mxu0 0
  %3099 = vmatprep.subr.bf16.mxu0 0
  %3100 = vmatpush1.bf16.xpose.msra.mxu0 0
  %3101 = vmatprep.mubr.bf16.mxu0 0
  %3102 = vmatmul.mubr.bf16.gmra.mrb[0].mxu0 %v3064
  %v3103 = vpop.f32.mrb[0].mxu0
  %v3104 = vadd.f32 0.0, %v3103
  %v3105 = vpop.f32.mrb[0].mxu0
  %v3106 = vpop.f32.mrb[0].mxu0
  %v3107 = vpop.f32.mrb[0].mxu0
  %3108 = vdwg.mxu0
  %3109 = vrot.lane.b32.xlu0 %v302, 112
  %v3110 = vpop.permute.xlu0 %3109
  %3111 = vrot.lane.b32.xlu0 %v380, 80
  %v3112 = vpop.permute.xlu0 %3111
  %v3114 = vsel %vm394, %v3110, 0
  %v3117 = vsel %vm394, %v3112, 0
  %3119 = vmatprep.subr.bf16.mxu0 0
  %3120 = vmatpush1.bf16.xpose.msra.mxu0 %v3117
  %3121 = vmatprep.subr.bf16.mxu0 0
  %3122 = vmatpush1.bf16.xpose.msra.mxu0 0
  %3123 = vmatprep.subr.bf16.mxu0 0
  %3124 = vmatpush1.bf16.xpose.msra.mxu0 0
  %3125 = vmatprep.subr.bf16.mxu0 0
  %3126 = vmatpush1.bf16.xpose.msra.mxu0 0
  %3127 = vmatprep.subr.bf16.mxu0 0
  %3128 = vmatpush1.bf16.xpose.msra.mxu0 0
  %3129 = vmatprep.subr.bf16.mxu0 0
  %3130 = vmatpush1.bf16.xpose.msra.mxu0 0
  %3131 = vmatprep.subr.bf16.mxu0 0
  %3132 = vmatpush1.bf16.xpose.msra.mxu0 0
  %3133 = vmatprep.subr.bf16.mxu0 0
  %3134 = vmatpush1.bf16.xpose.msra.mxu0 0
  %3135 = vmatprep.subr.bf16.mxu0 0
  %3136 = vmatpush1.bf16.xpose.msra.mxu0 0
  %3137 = vmatprep.subr.bf16.mxu0 0
  %3138 = vmatpush1.bf16.xpose.msra.mxu0 0
  %3139 = vmatprep.subr.bf16.mxu0 0
  %3140 = vmatpush1.bf16.xpose.msra.mxu0 0
  %3141 = vmatprep.subr.bf16.mxu0 0
  %3142 = vmatpush1.bf16.xpose.msra.mxu0 0
  %3143 = vmatprep.subr.bf16.mxu0 0
  %3144 = vmatpush1.bf16.xpose.msra.mxu0 0
  %3145 = vmatprep.subr.bf16.mxu0 0
  %3146 = vmatpush1.bf16.xpose.msra.mxu0 0
  %3147 = vmatprep.subr.bf16.mxu0 0
  %3148 = vmatpush1.bf16.xpose.msra.mxu0 0
  %3149 = vmatprep.subr.bf16.mxu0 0
  %3150 = vmatpush1.bf16.xpose.msra.mxu0 0
  %3151 = vmatprep.mubr.bf16.mxu0 0
  %3152 = vmatmul.mubr.bf16.gmra.mrb[0].mxu0 %v3114
  %v3153 = vpop.f32.mrb[0].mxu0
  %v3154 = vadd.f32 0.0, %v3153
  %v3155 = vpop.f32.mrb[0].mxu0
  %v3156 = vpop.f32.mrb[0].mxu0
  %v3157 = vpop.f32.mrb[0].mxu0
  %3158 = vdwg.mxu0
  %3159 = vrot.lane.b32.xlu0 %v303, 112
  %v3160 = vpop.permute.xlu0 %3159
  %3161 = vrot.lane.b32.xlu0 %v381, 80
  %v3162 = vpop.permute.xlu0 %3161
  %v3164 = vsel %vm394, %v3160, 0
  %v3167 = vsel %vm394, %v3162, 0
  %3169 = vmatprep.subr.bf16.mxu0 0
  %3170 = vmatpush1.bf16.xpose.msra.mxu0 %v3167
  %3171 = vmatprep.subr.bf16.mxu0 0
  %3172 = vmatpush1.bf16.xpose.msra.mxu0 0
  %3173 = vmatprep.subr.bf16.mxu0 0
  %3174 = vmatpush1.bf16.xpose.msra.mxu0 0
  %3175 = vmatprep.subr.bf16.mxu0 0
  %3176 = vmatpush1.bf16.xpose.msra.mxu0 0
  %3177 = vmatprep.subr.bf16.mxu0 0
  %3178 = vmatpush1.bf16.xpose.msra.mxu0 0
  %3179 = vmatprep.subr.bf16.mxu0 0
  %3180 = vmatpush1.bf16.xpose.msra.mxu0 0
  %3181 = vmatprep.subr.bf16.mxu0 0
  %3182 = vmatpush1.bf16.xpose.msra.mxu0 0
  %3183 = vmatprep.subr.bf16.mxu0 0
  %3184 = vmatpush1.bf16.xpose.msra.mxu0 0
  %3185 = vmatprep.subr.bf16.mxu0 0
  %3186 = vmatpush1.bf16.xpose.msra.mxu0 0
  %3187 = vmatprep.subr.bf16.mxu0 0
  %3188 = vmatpush1.bf16.xpose.msra.mxu0 0
  %3189 = vmatprep.subr.bf16.mxu0 0
  %3190 = vmatpush1.bf16.xpose.msra.mxu0 0
  %3191 = vmatprep.subr.bf16.mxu0 0
  %3192 = vmatpush1.bf16.xpose.msra.mxu0 0
  %3193 = vmatprep.subr.bf16.mxu0 0
  %3194 = vmatpush1.bf16.xpose.msra.mxu0 0
  %3195 = vmatprep.subr.bf16.mxu0 0
  %3196 = vmatpush1.bf16.xpose.msra.mxu0 0
  %3197 = vmatprep.subr.bf16.mxu0 0
  %3198 = vmatpush1.bf16.xpose.msra.mxu0 0
  %3199 = vmatprep.subr.bf16.mxu0 0
  %3200 = vmatpush1.bf16.xpose.msra.mxu0 0
  %3201 = vmatprep.mubr.bf16.mxu0 0
  %3202 = vmatmul.mubr.bf16.gmra.mrb[0].mxu0 %v3164
  %v3203 = vpop.f32.mrb[0].mxu0
  %v3204 = vadd.f32 0.0, %v3203
  %v3205 = vpop.f32.mrb[0].mxu0
  %v3206 = vpop.f32.mrb[0].mxu0
  %v3207 = vpop.f32.mrb[0].mxu0
  %3208 = vdwg.mxu0
  %3209 = vrot.lane.b32.xlu0 %v304, 112
  %v3210 = vpop.permute.xlu0 %3209
  %3211 = vrot.lane.b32.xlu0 %v382, 80
  %v3212 = vpop.permute.xlu0 %3211
  %v3214 = vsel %vm394, %v3210, 0
  %v3217 = vsel %vm394, %v3212, 0
  %3219 = vmatprep.subr.bf16.mxu0 0
  %3220 = vmatpush1.bf16.xpose.msra.mxu0 %v3217
  %3221 = vmatprep.subr.bf16.mxu0 0
  %3222 = vmatpush1.bf16.xpose.msra.mxu0 0
  %3223 = vmatprep.subr.bf16.mxu0 0
  %3224 = vmatpush1.bf16.xpose.msra.mxu0 0
  %3225 = vmatprep.subr.bf16.mxu0 0
  %3226 = vmatpush1.bf16.xpose.msra.mxu0 0
  %3227 = vmatprep.subr.bf16.mxu0 0
  %3228 = vmatpush1.bf16.xpose.msra.mxu0 0
  %3229 = vmatprep.subr.bf16.mxu0 0
  %3230 = vmatpush1.bf16.xpose.msra.mxu0 0
  %3231 = vmatprep.subr.bf16.mxu0 0
  %3232 = vmatpush1.bf16.xpose.msra.mxu0 0
  %3233 = vmatprep.subr.bf16.mxu0 0
  %3234 = vmatpush1.bf16.xpose.msra.mxu0 0
  %3235 = vmatprep.subr.bf16.mxu0 0
  %3236 = vmatpush1.bf16.xpose.msra.mxu0 0
  %3237 = vmatprep.subr.bf16.mxu0 0
  %3238 = vmatpush1.bf16.xpose.msra.mxu0 0
  %3239 = vmatprep.subr.bf16.mxu0 0
  %3240 = vmatpush1.bf16.xpose.msra.mxu0 0
  %3241 = vmatprep.subr.bf16.mxu0 0
  %3242 = vmatpush1.bf16.xpose.msra.mxu0 0
  %3243 = vmatprep.subr.bf16.mxu0 0
  %3244 = vmatpush1.bf16.xpose.msra.mxu0 0
  %3245 = vmatprep.subr.bf16.mxu0 0
  %3246 = vmatpush1.bf16.xpose.msra.mxu0 0
  %3247 = vmatprep.subr.bf16.mxu0 0
  %3248 = vmatpush1.bf16.xpose.msra.mxu0 0
  %3249 = vmatprep.subr.bf16.mxu0 0
  %3250 = vmatpush1.bf16.xpose.msra.mxu0 0
  %3251 = vmatprep.mubr.bf16.mxu0 0
  %3252 = vmatmul.mubr.bf16.gmra.mrb[0].mxu0 %v3214
  %v3253 = vpop.f32.mrb[0].mxu0
  %v3254 = vadd.f32 0.0, %v3253
  %v3255 = vpop.f32.mrb[0].mxu0
  %v3256 = vpop.f32.mrb[0].mxu0
  %v3257 = vpop.f32.mrb[0].mxu0
  %3258 = vdwg.mxu0
  %3259 = vrot.lane.b32.xlu0 %v305, 112
  %v3260 = vpop.permute.xlu0 %3259
  %3261 = vrot.lane.b32.xlu0 %v383, 80
  %v3262 = vpop.permute.xlu0 %3261
  %v3264 = vsel %vm394, %v3260, 0
  %v3267 = vsel %vm394, %v3262, 0
  %3269 = vmatprep.subr.bf16.mxu0 0
  %3270 = vmatpush1.bf16.xpose.msra.mxu0 %v3267
  %3271 = vmatprep.subr.bf16.mxu0 0
  %3272 = vmatpush1.bf16.xpose.msra.mxu0 0
  %3273 = vmatprep.subr.bf16.mxu0 0
  %3274 = vmatpush1.bf16.xpose.msra.mxu0 0
  %3275 = vmatprep.subr.bf16.mxu0 0
  %3276 = vmatpush1.bf16.xpose.msra.mxu0 0
  %3277 = vmatprep.subr.bf16.mxu0 0
  %3278 = vmatpush1.bf16.xpose.msra.mxu0 0
  %3279 = vmatprep.subr.bf16.mxu0 0
  %3280 = vmatpush1.bf16.xpose.msra.mxu0 0
  %3281 = vmatprep.subr.bf16.mxu0 0
  %3282 = vmatpush1.bf16.xpose.msra.mxu0 0
  %3283 = vmatprep.subr.bf16.mxu0 0
  %3284 = vmatpush1.bf16.xpose.msra.mxu0 0
  %3285 = vmatprep.subr.bf16.mxu0 0
  %3286 = vmatpush1.bf16.xpose.msra.mxu0 0
  %3287 = vmatprep.subr.bf16.mxu0 0
  %3288 = vmatpush1.bf16.xpose.msra.mxu0 0
  %3289 = vmatprep.subr.bf16.mxu0 0
  %3290 = vmatpush1.bf16.xpose.msra.mxu0 0
  %3291 = vmatprep.subr.bf16.mxu0 0
  %3292 = vmatpush1.bf16.xpose.msra.mxu0 0
  %3293 = vmatprep.subr.bf16.mxu0 0
  %3294 = vmatpush1.bf16.xpose.msra.mxu0 0
  %3295 = vmatprep.subr.bf16.mxu0 0
  %3296 = vmatpush1.bf16.xpose.msra.mxu0 0
  %3297 = vmatprep.subr.bf16.mxu0 0
  %3298 = vmatpush1.bf16.xpose.msra.mxu0 0
  %3299 = vmatprep.subr.bf16.mxu0 0
  %3300 = vmatpush1.bf16.xpose.msra.mxu0 0
  %3301 = vmatprep.mubr.bf16.mxu0 0
  %3302 = vmatmul.mubr.bf16.gmra.mrb[0].mxu0 %v3264
  %v3303 = vpop.f32.mrb[0].mxu0
  %v3304 = vadd.f32 0.0, %v3303
  %v3305 = vpop.f32.mrb[0].mxu0
  %v3306 = vpop.f32.mrb[0].mxu0
  %v3307 = vpop.f32.mrb[0].mxu0
  %3308 = vdwg.mxu0
  %3309 = vrot.lane.b32.xlu0 %v306, 112
  %v3310 = vpop.permute.xlu0 %3309
  %3311 = vrot.lane.b32.xlu0 %v384, 80
  %v3312 = vpop.permute.xlu0 %3311
  %v3314 = vsel %vm394, %v3310, 0
  %v3317 = vsel %vm394, %v3312, 0
  %3319 = vmatprep.subr.bf16.mxu0 0
  %3320 = vmatpush1.bf16.xpose.msra.mxu0 %v3317
  %3321 = vmatprep.subr.bf16.mxu0 0
  %3322 = vmatpush1.bf16.xpose.msra.mxu0 0
  %3323 = vmatprep.subr.bf16.mxu0 0
  %3324 = vmatpush1.bf16.xpose.msra.mxu0 0
  %3325 = vmatprep.subr.bf16.mxu0 0
  %3326 = vmatpush1.bf16.xpose.msra.mxu0 0
  %3327 = vmatprep.subr.bf16.mxu0 0
  %3328 = vmatpush1.bf16.xpose.msra.mxu0 0
  %3329 = vmatprep.subr.bf16.mxu0 0
  %3330 = vmatpush1.bf16.xpose.msra.mxu0 0
  %3331 = vmatprep.subr.bf16.mxu0 0
  %3332 = vmatpush1.bf16.xpose.msra.mxu0 0
  %3333 = vmatprep.subr.bf16.mxu0 0
  %3334 = vmatpush1.bf16.xpose.msra.mxu0 0
  %3335 = vmatprep.subr.bf16.mxu0 0
  %3336 = vmatpush1.bf16.xpose.msra.mxu0 0
  %3337 = vmatprep.subr.bf16.mxu0 0
  %3338 = vmatpush1.bf16.xpose.msra.mxu0 0
  %3339 = vmatprep.subr.bf16.mxu0 0
  %3340 = vmatpush1.bf16.xpose.msra.mxu0 0
  %3341 = vmatprep.subr.bf16.mxu0 0
  %3342 = vmatpush1.bf16.xpose.msra.mxu0 0
  %3343 = vmatprep.subr.bf16.mxu0 0
  %3344 = vmatpush1.bf16.xpose.msra.mxu0 0
  %3345 = vmatprep.subr.bf16.mxu0 0
  %3346 = vmatpush1.bf16.xpose.msra.mxu0 0
  %3347 = vmatprep.subr.bf16.mxu0 0
  %3348 = vmatpush1.bf16.xpose.msra.mxu0 0
  %3349 = vmatprep.subr.bf16.mxu0 0
  %3350 = vmatpush1.bf16.xpose.msra.mxu0 0
  %3351 = vmatprep.mubr.bf16.mxu0 0
  %3352 = vmatmul.mubr.bf16.gmra.mrb[0].mxu0 %v3314
  %v3353 = vpop.f32.mrb[0].mxu0
  %v3354 = vadd.f32 0.0, %v3353
  %v3355 = vpop.f32.mrb[0].mxu0
  %v3356 = vpop.f32.mrb[0].mxu0
  %v3357 = vpop.f32.mrb[0].mxu0
  %3358 = vdwg.mxu0
  %3359 = vrot.lane.b32.xlu0 %v307, 112
  %v3360 = vpop.permute.xlu0 %3359
  %3361 = vrot.lane.b32.xlu0 %v385, 80
  %v3362 = vpop.permute.xlu0 %3361
  %v3364 = vsel %vm394, %v3360, 0
  %v3367 = vsel %vm394, %v3362, 0
  %3369 = vmatprep.subr.bf16.mxu0 0
  %3370 = vmatpush1.bf16.xpose.msra.mxu0 %v3367
  %3371 = vmatprep.subr.bf16.mxu0 0
  %3372 = vmatpush1.bf16.xpose.msra.mxu0 0
  %3373 = vmatprep.subr.bf16.mxu0 0
  %3374 = vmatpush1.bf16.xpose.msra.mxu0 0
  %3375 = vmatprep.subr.bf16.mxu0 0
  %3376 = vmatpush1.bf16.xpose.msra.mxu0 0
  %3377 = vmatprep.subr.bf16.mxu0 0
  %3378 = vmatpush1.bf16.xpose.msra.mxu0 0
  %3379 = vmatprep.subr.bf16.mxu0 0
  %3380 = vmatpush1.bf16.xpose.msra.mxu0 0
  %3381 = vmatprep.subr.bf16.mxu0 0
  %3382 = vmatpush1.bf16.xpose.msra.mxu0 0
  %3383 = vmatprep.subr.bf16.mxu0 0
  %3384 = vmatpush1.bf16.xpose.msra.mxu0 0
  %3385 = vmatprep.subr.bf16.mxu0 0
  %3386 = vmatpush1.bf16.xpose.msra.mxu0 0
  %3387 = vmatprep.subr.bf16.mxu0 0
  %3388 = vmatpush1.bf16.xpose.msra.mxu0 0
  %3389 = vmatprep.subr.bf16.mxu0 0
  %3390 = vmatpush1.bf16.xpose.msra.mxu0 0
  %3391 = vmatprep.subr.bf16.mxu0 0
  %3392 = vmatpush1.bf16.xpose.msra.mxu0 0
  %3393 = vmatprep.subr.bf16.mxu0 0
  %3394 = vmatpush1.bf16.xpose.msra.mxu0 0
  %3395 = vmatprep.subr.bf16.mxu0 0
  %3396 = vmatpush1.bf16.xpose.msra.mxu0 0
  %3397 = vmatprep.subr.bf16.mxu0 0
  %3398 = vmatpush1.bf16.xpose.msra.mxu0 0
  %3399 = vmatprep.subr.bf16.mxu0 0
  %3400 = vmatpush1.bf16.xpose.msra.mxu0 0
  %3401 = vmatprep.mubr.bf16.mxu0 0
  %3402 = vmatmul.mubr.bf16.gmra.mrb[0].mxu0 %v3364
  %v3403 = vpop.f32.mrb[0].mxu0
  %v3404 = vadd.f32 0.0, %v3403
  %v3405 = vpop.f32.mrb[0].mxu0
  %v3406 = vpop.f32.mrb[0].mxu0
  %v3407 = vpop.f32.mrb[0].mxu0
  %3408 = vdwg.mxu0
  %3409 = vrot.lane.b32.xlu0 %v308, 112
  %v3410 = vpop.permute.xlu0 %3409
  %3411 = vrot.lane.b32.xlu0 %v386, 80
  %v3412 = vpop.permute.xlu0 %3411
  %v3414 = vsel %vm394, %v3410, 0
  %v3417 = vsel %vm394, %v3412, 0
  %3419 = vmatprep.subr.bf16.mxu0 0
  %3420 = vmatpush1.bf16.xpose.msra.mxu0 %v3417
  %3421 = vmatprep.subr.bf16.mxu0 0
  %3422 = vmatpush1.bf16.xpose.msra.mxu0 0
  %3423 = vmatprep.subr.bf16.mxu0 0
  %3424 = vmatpush1.bf16.xpose.msra.mxu0 0
  %3425 = vmatprep.subr.bf16.mxu0 0
  %3426 = vmatpush1.bf16.xpose.msra.mxu0 0
  %3427 = vmatprep.subr.bf16.mxu0 0
  %3428 = vmatpush1.bf16.xpose.msra.mxu0 0
  %3429 = vmatprep.subr.bf16.mxu0 0
  %3430 = vmatpush1.bf16.xpose.msra.mxu0 0
  %3431 = vmatprep.subr.bf16.mxu0 0
  %3432 = vmatpush1.bf16.xpose.msra.mxu0 0
  %3433 = vmatprep.subr.bf16.mxu0 0
  %3434 = vmatpush1.bf16.xpose.msra.mxu0 0
  %3435 = vmatprep.subr.bf16.mxu0 0
  %3436 = vmatpush1.bf16.xpose.msra.mxu0 0
  %3437 = vmatprep.subr.bf16.mxu0 0
  %3438 = vmatpush1.bf16.xpose.msra.mxu0 0
  %3439 = vmatprep.subr.bf16.mxu0 0
  %3440 = vmatpush1.bf16.xpose.msra.mxu0 0
  %3441 = vmatprep.subr.bf16.mxu0 0
  %3442 = vmatpush1.bf16.xpose.msra.mxu0 0
  %3443 = vmatprep.subr.bf16.mxu0 0
  %3444 = vmatpush1.bf16.xpose.msra.mxu0 0
  %3445 = vmatprep.subr.bf16.mxu0 0
  %3446 = vmatpush1.bf16.xpose.msra.mxu0 0
  %3447 = vmatprep.subr.bf16.mxu0 0
  %3448 = vmatpush1.bf16.xpose.msra.mxu0 0
  %3449 = vmatprep.subr.bf16.mxu0 0
  %3450 = vmatpush1.bf16.xpose.msra.mxu0 0
  %3451 = vmatprep.mubr.bf16.mxu0 0
  %3452 = vmatmul.mubr.bf16.gmra.mrb[0].mxu0 %v3414
  %v3453 = vpop.f32.mrb[0].mxu0
  %v3454 = vadd.f32 0.0, %v3453
  %v3455 = vpop.f32.mrb[0].mxu0
  %v3456 = vpop.f32.mrb[0].mxu0
  %v3457 = vpop.f32.mrb[0].mxu0
  %3458 = vdwg.mxu0
  %3459 = vrot.lane.b32.xlu0 %v309, 112
  %v3460 = vpop.permute.xlu0 %3459
  %3461 = vrot.lane.b32.xlu0 %v387, 80
  %v3462 = vpop.permute.xlu0 %3461
  %v3464 = vsel %vm394, %v3460, 0
  %v3467 = vsel %vm394, %v3462, 0
  %3469 = vmatprep.subr.bf16.mxu0 0
  %3470 = vmatpush1.bf16.xpose.msra.mxu0 %v3467
  %3471 = vmatprep.subr.bf16.mxu0 0
  %3472 = vmatpush1.bf16.xpose.msra.mxu0 0
  %3473 = vmatprep.subr.bf16.mxu0 0
  %3474 = vmatpush1.bf16.xpose.msra.mxu0 0
  %3475 = vmatprep.subr.bf16.mxu0 0
  %3476 = vmatpush1.bf16.xpose.msra.mxu0 0
  %3477 = vmatprep.subr.bf16.mxu0 0
  %3478 = vmatpush1.bf16.xpose.msra.mxu0 0
  %3479 = vmatprep.subr.bf16.mxu0 0
  %3480 = vmatpush1.bf16.xpose.msra.mxu0 0
  %3481 = vmatprep.subr.bf16.mxu0 0
  %3482 = vmatpush1.bf16.xpose.msra.mxu0 0
  %3483 = vmatprep.subr.bf16.mxu0 0
  %3484 = vmatpush1.bf16.xpose.msra.mxu0 0
  %3485 = vmatprep.subr.bf16.mxu0 0
  %3486 = vmatpush1.bf16.xpose.msra.mxu0 0
  %3487 = vmatprep.subr.bf16.mxu0 0
  %3488 = vmatpush1.bf16.xpose.msra.mxu0 0
  %3489 = vmatprep.subr.bf16.mxu0 0
  %3490 = vmatpush1.bf16.xpose.msra.mxu0 0
  %3491 = vmatprep.subr.bf16.mxu0 0
  %3492 = vmatpush1.bf16.xpose.msra.mxu0 0
  %3493 = vmatprep.subr.bf16.mxu0 0
  %3494 = vmatpush1.bf16.xpose.msra.mxu0 0
  %3495 = vmatprep.subr.bf16.mxu0 0
  %3496 = vmatpush1.bf16.xpose.msra.mxu0 0
  %3497 = vmatprep.subr.bf16.mxu0 0
  %3498 = vmatpush1.bf16.xpose.msra.mxu0 0
  %3499 = vmatprep.subr.bf16.mxu0 0
  %3500 = vmatpush1.bf16.xpose.msra.mxu0 0
  %3501 = vmatprep.mubr.bf16.mxu0 0
  %3502 = vmatmul.mubr.bf16.gmra.mrb[0].mxu0 %v3464
  %v3503 = vpop.f32.mrb[0].mxu0
  %v3504 = vadd.f32 0.0, %v3503
  %v3505 = vpop.f32.mrb[0].mxu0
  %v3506 = vpop.f32.mrb[0].mxu0
  %v3507 = vpop.f32.mrb[0].mxu0
  %3508 = vdwg.mxu0
  %3509 = vrot.lane.b32.xlu0 %v310, 112
  %v3510 = vpop.permute.xlu0 %3509
  %3511 = vrot.lane.b32.xlu0 %v388, 80
  %v3512 = vpop.permute.xlu0 %3511
  %v3514 = vsel %vm394, %v3510, 0
  %v3517 = vsel %vm394, %v3512, 0
  %3519 = vmatprep.subr.bf16.mxu0 0
  %3520 = vmatpush1.bf16.xpose.msra.mxu0 %v3517
  %3521 = vmatprep.subr.bf16.mxu0 0
  %3522 = vmatpush1.bf16.xpose.msra.mxu0 0
  %3523 = vmatprep.subr.bf16.mxu0 0
  %3524 = vmatpush1.bf16.xpose.msra.mxu0 0
  %3525 = vmatprep.subr.bf16.mxu0 0
  %3526 = vmatpush1.bf16.xpose.msra.mxu0 0
  %3527 = vmatprep.subr.bf16.mxu0 0
  %3528 = vmatpush1.bf16.xpose.msra.mxu0 0
  %3529 = vmatprep.subr.bf16.mxu0 0
  %3530 = vmatpush1.bf16.xpose.msra.mxu0 0
  %3531 = vmatprep.subr.bf16.mxu0 0
  %3532 = vmatpush1.bf16.xpose.msra.mxu0 0
  %3533 = vmatprep.subr.bf16.mxu0 0
  %3534 = vmatpush1.bf16.xpose.msra.mxu0 0
  %3535 = vmatprep.subr.bf16.mxu0 0
  %3536 = vmatpush1.bf16.xpose.msra.mxu0 0
  %3537 = vmatprep.subr.bf16.mxu0 0
  %3538 = vmatpush1.bf16.xpose.msra.mxu0 0
  %3539 = vmatprep.subr.bf16.mxu0 0
  %3540 = vmatpush1.bf16.xpose.msra.mxu0 0
  %3541 = vmatprep.subr.bf16.mxu0 0
  %3542 = vmatpush1.bf16.xpose.msra.mxu0 0
  %3543 = vmatprep.subr.bf16.mxu0 0
  %3544 = vmatpush1.bf16.xpose.msra.mxu0 0
  %3545 = vmatprep.subr.bf16.mxu0 0
  %3546 = vmatpush1.bf16.xpose.msra.mxu0 0
  %3547 = vmatprep.subr.bf16.mxu0 0
  %3548 = vmatpush1.bf16.xpose.msra.mxu0 0
  %3549 = vmatprep.subr.bf16.mxu0 0
  %3550 = vmatpush1.bf16.xpose.msra.mxu0 0
  %3551 = vmatprep.mubr.bf16.mxu0 0
  %3552 = vmatmul.mubr.bf16.gmra.mrb[0].mxu0 %v3514
  %v3553 = vpop.f32.mrb[0].mxu0
  %v3554 = vadd.f32 0.0, %v3553
  %v3555 = vpop.f32.mrb[0].mxu0
  %v3556 = vpop.f32.mrb[0].mxu0
  %v3557 = vpop.f32.mrb[0].mxu0
  %3558 = vdwg.mxu0
  %3559 = vrot.lane.b32.xlu0 %v311, 112
  %v3560 = vpop.permute.xlu0 %3559
  %3561 = vrot.lane.b32.xlu0 %v389, 80
  %v3562 = vpop.permute.xlu0 %3561
  %v3564 = vsel %vm394, %v3560, 0
  %v3567 = vsel %vm394, %v3562, 0
  %3569 = vmatprep.subr.bf16.mxu0 0
  %3570 = vmatpush1.bf16.xpose.msra.mxu0 %v3567
  %3571 = vmatprep.subr.bf16.mxu0 0
  %3572 = vmatpush1.bf16.xpose.msra.mxu0 0
  %3573 = vmatprep.subr.bf16.mxu0 0
  %3574 = vmatpush1.bf16.xpose.msra.mxu0 0
  %3575 = vmatprep.subr.bf16.mxu0 0
  %3576 = vmatpush1.bf16.xpose.msra.mxu0 0
  %3577 = vmatprep.subr.bf16.mxu0 0
  %3578 = vmatpush1.bf16.xpose.msra.mxu0 0
  %3579 = vmatprep.subr.bf16.mxu0 0
  %3580 = vmatpush1.bf16.xpose.msra.mxu0 0
  %3581 = vmatprep.subr.bf16.mxu0 0
  %3582 = vmatpush1.bf16.xpose.msra.mxu0 0
  %3583 = vmatprep.subr.bf16.mxu0 0
  %3584 = vmatpush1.bf16.xpose.msra.mxu0 0
  %3585 = vmatprep.subr.bf16.mxu0 0
  %3586 = vmatpush1.bf16.xpose.msra.mxu0 0
  %3587 = vmatprep.subr.bf16.mxu0 0
  %3588 = vmatpush1.bf16.xpose.msra.mxu0 0
  %3589 = vmatprep.subr.bf16.mxu0 0
  %3590 = vmatpush1.bf16.xpose.msra.mxu0 0
  %3591 = vmatprep.subr.bf16.mxu0 0
  %3592 = vmatpush1.bf16.xpose.msra.mxu0 0
  %3593 = vmatprep.subr.bf16.mxu0 0
  %3594 = vmatpush1.bf16.xpose.msra.mxu0 0
  %3595 = vmatprep.subr.bf16.mxu0 0
  %3596 = vmatpush1.bf16.xpose.msra.mxu0 0
  %3597 = vmatprep.subr.bf16.mxu0 0
  %3598 = vmatpush1.bf16.xpose.msra.mxu0 0
  %3599 = vmatprep.subr.bf16.mxu0 0
  %3600 = vmatpush1.bf16.xpose.msra.mxu0 0
  %3601 = vmatprep.mubr.bf16.mxu0 0
  %3602 = vmatmul.mubr.bf16.gmra.mrb[0].mxu0 %v3564
  %v3603 = vpop.f32.mrb[0].mxu0
  %v3604 = vadd.f32 0.0, %v3603
  %v3605 = vpop.f32.mrb[0].mxu0
  %v3606 = vpop.f32.mrb[0].mxu0
  %v3607 = vpop.f32.mrb[0].mxu0
  %3608 = vdwg.mxu0
  %3609 = vrot.lane.b32.xlu0 %v312, 112
  %v3610 = vpop.permute.xlu0 %3609
  %3611 = vrot.lane.b32.xlu0 %v390, 80
  %v3612 = vpop.permute.xlu0 %3611
  %v3614 = vsel %vm394, %v3610, 0
  %v3617 = vsel %vm394, %v3612, 0
  %3619 = vmatprep.subr.bf16.mxu0 0
  %3620 = vmatpush1.bf16.xpose.msra.mxu0 %v3617
  %3621 = vmatprep.subr.bf16.mxu0 0
  %3622 = vmatpush1.bf16.xpose.msra.mxu0 0
  %3623 = vmatprep.subr.bf16.mxu0 0
  %3624 = vmatpush1.bf16.xpose.msra.mxu0 0
  %3625 = vmatprep.subr.bf16.mxu0 0
  %3626 = vmatpush1.bf16.xpose.msra.mxu0 0
  %3627 = vmatprep.subr.bf16.mxu0 0
  %3628 = vmatpush1.bf16.xpose.msra.mxu0 0
  %3629 = vmatprep.subr.bf16.mxu0 0
  %3630 = vmatpush1.bf16.xpose.msra.mxu0 0
  %3631 = vmatprep.subr.bf16.mxu0 0
  %3632 = vmatpush1.bf16.xpose.msra.mxu0 0
  %3633 = vmatprep.subr.bf16.mxu0 0
  %3634 = vmatpush1.bf16.xpose.msra.mxu0 0
  %3635 = vmatprep.subr.bf16.mxu0 0
  %3636 = vmatpush1.bf16.xpose.msra.mxu0 0
  %3637 = vmatprep.subr.bf16.mxu0 0
  %3638 = vmatpush1.bf16.xpose.msra.mxu0 0
  %3639 = vmatprep.subr.bf16.mxu0 0
  %3640 = vmatpush1.bf16.xpose.msra.mxu0 0
  %3641 = vmatprep.subr.bf16.mxu0 0
  %3642 = vmatpush1.bf16.xpose.msra.mxu0 0
  %3643 = vmatprep.subr.bf16.mxu0 0
  %3644 = vmatpush1.bf16.xpose.msra.mxu0 0
  %3645 = vmatprep.subr.bf16.mxu0 0
  %3646 = vmatpush1.bf16.xpose.msra.mxu0 0
  %3647 = vmatprep.subr.bf16.mxu0 0
  %3648 = vmatpush1.bf16.xpose.msra.mxu0 0
  %3649 = vmatprep.subr.bf16.mxu0 0
  %3650 = vmatpush1.bf16.xpose.msra.mxu0 0
  %3651 = vmatprep.mubr.bf16.mxu0 0
  %3652 = vmatmul.mubr.bf16.gmra.mrb[0].mxu0 %v3614
  %v3653 = vpop.f32.mrb[0].mxu0
  %v3654 = vadd.f32 0.0, %v3653
  %v3655 = vpop.f32.mrb[0].mxu0
  %v3656 = vpop.f32.mrb[0].mxu0
  %v3657 = vpop.f32.mrb[0].mxu0
  %3658 = vdwg.mxu0
  %v3659 = vsel %vm980, %v3104, -inf
  %3660 = vmax.xlane.f32.xlu0 %v3659
  %v3661 = vpop.xlane.xlu0 %3660
  %v3662 = vsel %vm980, %v3154, -inf
  %3663 = vmax.xlane.f32.xlu0 %v3662
  %v3664 = vpop.xlane.xlu0 %3663
  %v3665 = vsel %vm980, %v3204, -inf
  %3666 = vmax.xlane.f32.xlu0 %v3665
  %v3667 = vpop.xlane.xlu0 %3666
  %v3668 = vsel %vm980, %v3254, -inf
  %3669 = vmax.xlane.f32.xlu0 %v3668
  %v3670 = vpop.xlane.xlu0 %3669
  %v3671 = vsel %vm980, %v3304, -inf
  %3672 = vmax.xlane.f32.xlu0 %v3671
  %v3673 = vpop.xlane.xlu0 %3672
  %v3674 = vsel %vm980, %v3354, -inf
  %3675 = vmax.xlane.f32.xlu0 %v3674
  %v3676 = vpop.xlane.xlu0 %3675
  %v3677 = vsel %vm980, %v3404, -inf
  %3678 = vmax.xlane.f32.xlu0 %v3677
  %v3679 = vpop.xlane.xlu0 %3678
  %v3680 = vsel %vm980, %v3454, -inf
  %3681 = vmax.xlane.f32.xlu0 %v3680
  %v3682 = vpop.xlane.xlu0 %3681
  %v3683 = vsel %vm980, %v3504, -inf
  %3684 = vmax.xlane.f32.xlu0 %v3683
  %v3685 = vpop.xlane.xlu0 %3684
  %v3686 = vsel %vm980, %v3554, -inf
  %3687 = vmax.xlane.f32.xlu0 %v3686
  %v3688 = vpop.xlane.xlu0 %3687
  %v3689 = vsel %vm980, %v3604, -inf
  %3690 = vmax.xlane.f32.xlu0 %v3689
  %v3691 = vpop.xlane.xlu0 %3690
  %v3692 = vsel %vm980, %v3654, -inf
  %3693 = vmax.xlane.f32.xlu0 %v3692
  %v3694 = vpop.xlane.xlu0 %3693
  %v3695 = vsub.f32 %v3104, %v3661
  %v3696 = vsub.f32 %v3154, %v3664
  %v3697 = vsub.f32 %v3204, %v3667
  %v3698 = vsub.f32 %v3254, %v3670
  %v3699 = vsub.f32 %v3304, %v3673
  %v3700 = vsub.f32 %v3354, %v3676
  %v3701 = vsub.f32 %v3404, %v3679
  %v3702 = vsub.f32 %v3454, %v3682
  %v3703 = vsub.f32 %v3504, %v3685
  %v3704 = vsub.f32 %v3554, %v3688
  %v3705 = vsub.f32 %v3604, %v3691
  %v3706 = vsub.f32 %v3654, %v3694
  %v3707 = vmul.f32 %v3695, 1.442695
  %v3708 = vpow.pop %v3707
  %v3709 = vmul.f32 %v3696, 1.442695
  %v3710 = vpow.pop %v3709
  %v3711 = vmul.f32 %v3697, 1.442695
  %v3712 = vpow.pop %v3711
  %v3713 = vmul.f32 %v3698, 1.442695
  %v3714 = vpow.pop %v3713
  %v3715 = vmul.f32 %v3699, 1.442695
  %v3716 = vpow.pop %v3715
  %v3717 = vmul.f32 %v3700, 1.442695
  %v3718 = vpow.pop %v3717
  %v3719 = vmul.f32 %v3701, 1.442695
  %v3720 = vpow.pop %v3719
  %v3721 = vmul.f32 %v3702, 1.442695
  %v3722 = vpow.pop %v3721
  %v3723 = vmul.f32 %v3703, 1.442695
  %v3724 = vpow.pop %v3723
  %v3725 = vmul.f32 %v3704, 1.442695
  %v3726 = vpow.pop %v3725
  %v3727 = vmul.f32 %v3705, 1.442695
  %v3728 = vpow.pop %v3727
  %v3729 = vmul.f32 %v3706, 1.442695
  %v3730 = vpow.pop %v3729
  %v3731 = vsel %vm980, %v3708, 0.0
  %3732 = vadd.xlane.f32.xlu0 %v3731
  %v3733 = vpop.xlane.xlu0 %3732
  %v3734 = vsel %vm980, %v3710, 0.0
  %3735 = vadd.xlane.f32.xlu0 %v3734
  %v3736 = vpop.xlane.xlu0 %3735
  %v3737 = vsel %vm980, %v3712, 0.0
  %3738 = vadd.xlane.f32.xlu0 %v3737
  %v3739 = vpop.xlane.xlu0 %3738
  %v3740 = vsel %vm980, %v3714, 0.0
  %3741 = vadd.xlane.f32.xlu0 %v3740
  %v3742 = vpop.xlane.xlu0 %3741
  %v3743 = vsel %vm980, %v3716, 0.0
  %3744 = vadd.xlane.f32.xlu0 %v3743
  %v3745 = vpop.xlane.xlu0 %3744
  %v3746 = vsel %vm980, %v3718, 0.0
  %3747 = vadd.xlane.f32.xlu0 %v3746
  %v3748 = vpop.xlane.xlu0 %3747
  %v3749 = vsel %vm980, %v3720, 0.0
  %3750 = vadd.xlane.f32.xlu0 %v3749
  %v3751 = vpop.xlane.xlu0 %3750
  %v3752 = vsel %vm980, %v3722, 0.0
  %3753 = vadd.xlane.f32.xlu0 %v3752
  %v3754 = vpop.xlane.xlu0 %3753
  %v3755 = vsel %vm980, %v3724, 0.0
  %3756 = vadd.xlane.f32.xlu0 %v3755
  %v3757 = vpop.xlane.xlu0 %3756
  %v3758 = vsel %vm980, %v3726, 0.0
  %3759 = vadd.xlane.f32.xlu0 %v3758
  %v3760 = vpop.xlane.xlu0 %3759
  %v3761 = vsel %vm980, %v3728, 0.0
  %3762 = vadd.xlane.f32.xlu0 %v3761
  %v3763 = vpop.xlane.xlu0 %3762
  %v3764 = vsel %vm980, %v3730, 0.0
  %3765 = vadd.xlane.f32.xlu0 %v3764
  %v3766 = vpop.xlane.xlu0 %3765
  %v3767 = vrcp.pop %v3733
  %v3768 = vrcp.pop %v3736
  %v3769 = vrcp.pop %v3739
  %v3770 = vrcp.pop %v3742
  %v3771 = vrcp.pop %v3745
  %v3772 = vrcp.pop %v3748
  %v3773 = vrcp.pop %v3751
  %v3774 = vrcp.pop %v3754
  %v3775 = vrcp.pop %v3757
  %v3776 = vrcp.pop %v3760
  %v3777 = vrcp.pop %v3763
  %v3778 = vrcp.pop %v3766
  %v3779 = vmul.f32 %v3708, %v3767
  %v3780 = vmul.f32 %v3710, %v3768
  %v3781 = vmul.f32 %v3712, %v3769
  %v3782 = vmul.f32 %v3714, %v3770
  %v3783 = vmul.f32 %v3716, %v3771
  %v3784 = vmul.f32 %v3718, %v3772
  %v3785 = vmul.f32 %v3720, %v3773
  %v3786 = vmul.f32 %v3722, %v3774
  %v3787 = vmul.f32 %v3724, %v3775
  %v3788 = vmul.f32 %v3726, %v3776
  %v3789 = vmul.f32 %v3728, %v3777
  %v3790 = vmul.f32 %v3730, %v3778
  %v3791 = vpack.c.bf16 %v3779, %v3779
  %v3792 = vpack.c.bf16 %v3780, %v3780
  %v3793 = vpack.c.bf16 %v3781, %v3781
  %v3794 = vpack.c.bf16 %v3782, %v3782
  %v3795 = vpack.c.bf16 %v3783, %v3783
  %v3796 = vpack.c.bf16 %v3784, %v3784
  %v3797 = vpack.c.bf16 %v3785, %v3785
  %v3798 = vpack.c.bf16 %v3786, %v3786
  %v3799 = vpack.c.bf16 %v3787, %v3787
  %v3800 = vpack.c.bf16 %v3788, %v3788
  %v3801 = vpack.c.bf16 %v3789, %v3789
  %v3802 = vpack.c.bf16 %v3790, %v3790
  %3803 = vrot.lane.b32.xlu0 %v379, 48
  %v3804 = vpop.permute.xlu0 %3803
  %v3806 = vsel %vm1127, %v3791, 0
  %v3809 = vsel %vm1131, %v3804, 0
  %3811 = vmatprep.subr.bf16.mxu0 0
  %3812 = vmatpush1.bf16.msra.mxu0 %v3809
  %3813 = vmatprep.subr.bf16.mxu0 0
  %3814 = vmatpush1.bf16.msra.mxu0 0
  %3815 = vmatprep.subr.bf16.mxu0 0
  %3816 = vmatpush1.bf16.msra.mxu0 0
  %3817 = vmatprep.subr.bf16.mxu0 0
  %3818 = vmatpush1.bf16.msra.mxu0 0
  %3819 = vmatprep.subr.bf16.mxu0 0
  %3820 = vmatpush1.bf16.msra.mxu0 0
  %3821 = vmatprep.subr.bf16.mxu0 0
  %3822 = vmatpush1.bf16.msra.mxu0 0
  %3823 = vmatprep.subr.bf16.mxu0 0
  %3824 = vmatpush1.bf16.msra.mxu0 0
  %3825 = vmatprep.subr.bf16.mxu0 0
  %3826 = vmatpush1.bf16.msra.mxu0 0
  %3827 = vmatprep.subr.bf16.mxu0 0
  %3828 = vmatpush1.bf16.msra.mxu0 0
  %3829 = vmatprep.subr.bf16.mxu0 0
  %3830 = vmatpush1.bf16.msra.mxu0 0
  %3831 = vmatprep.subr.bf16.mxu0 0
  %3832 = vmatpush1.bf16.msra.mxu0 0
  %3833 = vmatprep.subr.bf16.mxu0 0
  %3834 = vmatpush1.bf16.msra.mxu0 0
  %3835 = vmatprep.subr.bf16.mxu0 0
  %3836 = vmatpush1.bf16.msra.mxu0 0
  %3837 = vmatprep.subr.bf16.mxu0 0
  %3838 = vmatpush1.bf16.msra.mxu0 0
  %3839 = vmatprep.subr.bf16.mxu0 0
  %3840 = vmatpush1.bf16.msra.mxu0 0
  %3841 = vmatprep.subr.bf16.mxu0 0
  %3842 = vmatpush1.bf16.msra.mxu0 0
  %3843 = vmatprep.mubr.bf16.mxu0 0
  %3844 = vmatmul.mubr.bf16.gmra.mrb[0].mxu0 %v3806
  %v3845 = vpop.f32.mrb[0].mxu0
  %v3846 = vadd.f32 0.0, %v3845
  %v3847 = vpop.f32.mrb[0].mxu0
  %v3848 = vpop.f32.mrb[0].mxu0
  %v3849 = vpop.f32.mrb[0].mxu0
  %3850 = vdwg.mxu0
  %3851 = vrot.lane.b32.xlu0 %v380, 48
  %v3852 = vpop.permute.xlu0 %3851
  %v3854 = vsel %vm1127, %v3792, 0
  %v3857 = vsel %vm1131, %v3852, 0
  %3859 = vmatprep.subr.bf16.mxu0 0
  %3860 = vmatpush1.bf16.msra.mxu0 %v3857
  %3861 = vmatprep.subr.bf16.mxu0 0
  %3862 = vmatpush1.bf16.msra.mxu0 0
  %3863 = vmatprep.subr.bf16.mxu0 0
  %3864 = vmatpush1.bf16.msra.mxu0 0
  %3865 = vmatprep.subr.bf16.mxu0 0
  %3866 = vmatpush1.bf16.msra.mxu0 0
  %3867 = vmatprep.subr.bf16.mxu0 0
  %3868 = vmatpush1.bf16.msra.mxu0 0
  %3869 = vmatprep.subr.bf16.mxu0 0
  %3870 = vmatpush1.bf16.msra.mxu0 0
  %3871 = vmatprep.subr.bf16.mxu0 0
  %3872 = vmatpush1.bf16.msra.mxu0 0
  %3873 = vmatprep.subr.bf16.mxu0 0
  %3874 = vmatpush1.bf16.msra.mxu0 0
  %3875 = vmatprep.subr.bf16.mxu0 0
  %3876 = vmatpush1.bf16.msra.mxu0 0
  %3877 = vmatprep.subr.bf16.mxu0 0
  %3878 = vmatpush1.bf16.msra.mxu0 0
  %3879 = vmatprep.subr.bf16.mxu0 0
  %3880 = vmatpush1.bf16.msra.mxu0 0
  %3881 = vmatprep.subr.bf16.mxu0 0
  %3882 = vmatpush1.bf16.msra.mxu0 0
  %3883 = vmatprep.subr.bf16.mxu0 0
  %3884 = vmatpush1.bf16.msra.mxu0 0
  %3885 = vmatprep.subr.bf16.mxu0 0
  %3886 = vmatpush1.bf16.msra.mxu0 0
  %3887 = vmatprep.subr.bf16.mxu0 0
  %3888 = vmatpush1.bf16.msra.mxu0 0
  %3889 = vmatprep.subr.bf16.mxu0 0
  %3890 = vmatpush1.bf16.msra.mxu0 0
  %3891 = vmatprep.mubr.bf16.mxu0 0
  %3892 = vmatmul.mubr.bf16.gmra.mrb[0].mxu0 %v3854
  %v3893 = vpop.f32.mrb[0].mxu0
  %v3894 = vadd.f32 0.0, %v3893
  %v3895 = vpop.f32.mrb[0].mxu0
  %v3896 = vpop.f32.mrb[0].mxu0
  %v3897 = vpop.f32.mrb[0].mxu0
  %3898 = vdwg.mxu0
  %3899 = vrot.lane.b32.xlu0 %v381, 48
  %v3900 = vpop.permute.xlu0 %3899
  %v3902 = vsel %vm1127, %v3793, 0
  %v3905 = vsel %vm1131, %v3900, 0
  %3907 = vmatprep.subr.bf16.mxu0 0
  %3908 = vmatpush1.bf16.msra.mxu0 %v3905
  %3909 = vmatprep.subr.bf16.mxu0 0
  %3910 = vmatpush1.bf16.msra.mxu0 0
  %3911 = vmatprep.subr.bf16.mxu0 0
  %3912 = vmatpush1.bf16.msra.mxu0 0
  %3913 = vmatprep.subr.bf16.mxu0 0
  %3914 = vmatpush1.bf16.msra.mxu0 0
  %3915 = vmatprep.subr.bf16.mxu0 0
  %3916 = vmatpush1.bf16.msra.mxu0 0
  %3917 = vmatprep.subr.bf16.mxu0 0
  %3918 = vmatpush1.bf16.msra.mxu0 0
  %3919 = vmatprep.subr.bf16.mxu0 0
  %3920 = vmatpush1.bf16.msra.mxu0 0
  %3921 = vmatprep.subr.bf16.mxu0 0
  %3922 = vmatpush1.bf16.msra.mxu0 0
  %3923 = vmatprep.subr.bf16.mxu0 0
  %3924 = vmatpush1.bf16.msra.mxu0 0
  %3925 = vmatprep.subr.bf16.mxu0 0
  %3926 = vmatpush1.bf16.msra.mxu0 0
  %3927 = vmatprep.subr.bf16.mxu0 0
  %3928 = vmatpush1.bf16.msra.mxu0 0
  %3929 = vmatprep.subr.bf16.mxu0 0
  %3930 = vmatpush1.bf16.msra.mxu0 0
  %3931 = vmatprep.subr.bf16.mxu0 0
  %3932 = vmatpush1.bf16.msra.mxu0 0
  %3933 = vmatprep.subr.bf16.mxu0 0
  %3934 = vmatpush1.bf16.msra.mxu0 0
  %3935 = vmatprep.subr.bf16.mxu0 0
  %3936 = vmatpush1.bf16.msra.mxu0 0
  %3937 = vmatprep.subr.bf16.mxu0 0
  %3938 = vmatpush1.bf16.msra.mxu0 0
  %3939 = vmatprep.mubr.bf16.mxu0 0
  %3940 = vmatmul.mubr.bf16.gmra.mrb[0].mxu0 %v3902
  %v3941 = vpop.f32.mrb[0].mxu0
  %v3942 = vadd.f32 0.0, %v3941
  %v3943 = vpop.f32.mrb[0].mxu0
  %v3944 = vpop.f32.mrb[0].mxu0
  %v3945 = vpop.f32.mrb[0].mxu0
  %3946 = vdwg.mxu0
  %3947 = vrot.lane.b32.xlu0 %v382, 48
  %v3948 = vpop.permute.xlu0 %3947
  %v3950 = vsel %vm1127, %v3794, 0
  %v3953 = vsel %vm1131, %v3948, 0
  %3955 = vmatprep.subr.bf16.mxu0 0
  %3956 = vmatpush1.bf16.msra.mxu0 %v3953
  %3957 = vmatprep.subr.bf16.mxu0 0
  %3958 = vmatpush1.bf16.msra.mxu0 0
  %3959 = vmatprep.subr.bf16.mxu0 0
  %3960 = vmatpush1.bf16.msra.mxu0 0
  %3961 = vmatprep.subr.bf16.mxu0 0
  %3962 = vmatpush1.bf16.msra.mxu0 0
  %3963 = vmatprep.subr.bf16.mxu0 0
  %3964 = vmatpush1.bf16.msra.mxu0 0
  %3965 = vmatprep.subr.bf16.mxu0 0
  %3966 = vmatpush1.bf16.msra.mxu0 0
  %3967 = vmatprep.subr.bf16.mxu0 0
  %3968 = vmatpush1.bf16.msra.mxu0 0
  %3969 = vmatprep.subr.bf16.mxu0 0
  %3970 = vmatpush1.bf16.msra.mxu0 0
  %3971 = vmatprep.subr.bf16.mxu0 0
  %3972 = vmatpush1.bf16.msra.mxu0 0
  %3973 = vmatprep.subr.bf16.mxu0 0
  %3974 = vmatpush1.bf16.msra.mxu0 0
  %3975 = vmatprep.subr.bf16.mxu0 0
  %3976 = vmatpush1.bf16.msra.mxu0 0
  %3977 = vmatprep.subr.bf16.mxu0 0
  %3978 = vmatpush1.bf16.msra.mxu0 0
  %3979 = vmatprep.subr.bf16.mxu0 0
  %3980 = vmatpush1.bf16.msra.mxu0 0
  %3981 = vmatprep.subr.bf16.mxu0 0
  %3982 = vmatpush1.bf16.msra.mxu0 0
  %3983 = vmatprep.subr.bf16.mxu0 0
  %3984 = vmatpush1.bf16.msra.mxu0 0
  %3985 = vmatprep.subr.bf16.mxu0 0
  %3986 = vmatpush1.bf16.msra.mxu0 0
  %3987 = vmatprep.mubr.bf16.mxu0 0
  %3988 = vmatmul.mubr.bf16.gmra.mrb[0].mxu0 %v3950
  %v3989 = vpop.f32.mrb[0].mxu0
  %v3990 = vadd.f32 0.0, %v3989
  %v3991 = vpop.f32.mrb[0].mxu0
  %v3992 = vpop.f32.mrb[0].mxu0
  %v3993 = vpop.f32.mrb[0].mxu0
  %3994 = vdwg.mxu0
  %3995 = vrot.lane.b32.xlu0 %v383, 48
  %v3996 = vpop.permute.xlu0 %3995
  %v3998 = vsel %vm1127, %v3795, 0
  %v4001 = vsel %vm1131, %v3996, 0
  %4003 = vmatprep.subr.bf16.mxu0 0
  %4004 = vmatpush1.bf16.msra.mxu0 %v4001
  %4005 = vmatprep.subr.bf16.mxu0 0
  %4006 = vmatpush1.bf16.msra.mxu0 0
  %4007 = vmatprep.subr.bf16.mxu0 0
  %4008 = vmatpush1.bf16.msra.mxu0 0
  %4009 = vmatprep.subr.bf16.mxu0 0
  %4010 = vmatpush1.bf16.msra.mxu0 0
  %4011 = vmatprep.subr.bf16.mxu0 0
  %4012 = vmatpush1.bf16.msra.mxu0 0
  %4013 = vmatprep.subr.bf16.mxu0 0
  %4014 = vmatpush1.bf16.msra.mxu0 0
  %4015 = vmatprep.subr.bf16.mxu0 0
  %4016 = vmatpush1.bf16.msra.mxu0 0
  %4017 = vmatprep.subr.bf16.mxu0 0
  %4018 = vmatpush1.bf16.msra.mxu0 0
  %4019 = vmatprep.subr.bf16.mxu0 0
  %4020 = vmatpush1.bf16.msra.mxu0 0
  %4021 = vmatprep.subr.bf16.mxu0 0
  %4022 = vmatpush1.bf16.msra.mxu0 0
  %4023 = vmatprep.subr.bf16.mxu0 0
  %4024 = vmatpush1.bf16.msra.mxu0 0
  %4025 = vmatprep.subr.bf16.mxu0 0
  %4026 = vmatpush1.bf16.msra.mxu0 0
  %4027 = vmatprep.subr.bf16.mxu0 0
  %4028 = vmatpush1.bf16.msra.mxu0 0
  %4029 = vmatprep.subr.bf16.mxu0 0
  %4030 = vmatpush1.bf16.msra.mxu0 0
  %4031 = vmatprep.subr.bf16.mxu0 0
  %4032 = vmatpush1.bf16.msra.mxu0 0
  %4033 = vmatprep.subr.bf16.mxu0 0
  %4034 = vmatpush1.bf16.msra.mxu0 0
  %4035 = vmatprep.mubr.bf16.mxu0 0
  %4036 = vmatmul.mubr.bf16.gmra.mrb[0].mxu0 %v3998
  %v4037 = vpop.f32.mrb[0].mxu0
  %v4038 = vadd.f32 0.0, %v4037
  %v4039 = vpop.f32.mrb[0].mxu0
  %v4040 = vpop.f32.mrb[0].mxu0
  %v4041 = vpop.f32.mrb[0].mxu0
  %4042 = vdwg.mxu0
  %4043 = vrot.lane.b32.xlu0 %v384, 48
  %v4044 = vpop.permute.xlu0 %4043
  %v4046 = vsel %vm1127, %v3796, 0
  %v4049 = vsel %vm1131, %v4044, 0
  %4051 = vmatprep.subr.bf16.mxu0 0
  %4052 = vmatpush1.bf16.msra.mxu0 %v4049
  %4053 = vmatprep.subr.bf16.mxu0 0
  %4054 = vmatpush1.bf16.msra.mxu0 0
  %4055 = vmatprep.subr.bf16.mxu0 0
  %4056 = vmatpush1.bf16.msra.mxu0 0
  %4057 = vmatprep.subr.bf16.mxu0 0
  %4058 = vmatpush1.bf16.msra.mxu0 0
  %4059 = vmatprep.subr.bf16.mxu0 0
  %4060 = vmatpush1.bf16.msra.mxu0 0
  %4061 = vmatprep.subr.bf16.mxu0 0
  %4062 = vmatpush1.bf16.msra.mxu0 0
  %4063 = vmatprep.subr.bf16.mxu0 0
  %4064 = vmatpush1.bf16.msra.mxu0 0
  %4065 = vmatprep.subr.bf16.mxu0 0
  %4066 = vmatpush1.bf16.msra.mxu0 0
  %4067 = vmatprep.subr.bf16.mxu0 0
  %4068 = vmatpush1.bf16.msra.mxu0 0
  %4069 = vmatprep.subr.bf16.mxu0 0
  %4070 = vmatpush1.bf16.msra.mxu0 0
  %4071 = vmatprep.subr.bf16.mxu0 0
  %4072 = vmatpush1.bf16.msra.mxu0 0
  %4073 = vmatprep.subr.bf16.mxu0 0
  %4074 = vmatpush1.bf16.msra.mxu0 0
  %4075 = vmatprep.subr.bf16.mxu0 0
  %4076 = vmatpush1.bf16.msra.mxu0 0
  %4077 = vmatprep.subr.bf16.mxu0 0
  %4078 = vmatpush1.bf16.msra.mxu0 0
  %4079 = vmatprep.subr.bf16.mxu0 0
  %4080 = vmatpush1.bf16.msra.mxu0 0
  %4081 = vmatprep.subr.bf16.mxu0 0
  %4082 = vmatpush1.bf16.msra.mxu0 0
  %4083 = vmatprep.mubr.bf16.mxu0 0
  %4084 = vmatmul.mubr.bf16.gmra.mrb[0].mxu0 %v4046
  %v4085 = vpop.f32.mrb[0].mxu0
  %v4086 = vadd.f32 0.0, %v4085
  %v4087 = vpop.f32.mrb[0].mxu0
  %v4088 = vpop.f32.mrb[0].mxu0
  %v4089 = vpop.f32.mrb[0].mxu0
  %4090 = vdwg.mxu0
  %4091 = vrot.lane.b32.xlu0 %v385, 48
  %v4092 = vpop.permute.xlu0 %4091
  %v4094 = vsel %vm1127, %v3797, 0
  %v4097 = vsel %vm1131, %v4092, 0
  %4099 = vmatprep.subr.bf16.mxu0 0
  %4100 = vmatpush1.bf16.msra.mxu0 %v4097
  %4101 = vmatprep.subr.bf16.mxu0 0
  %4102 = vmatpush1.bf16.msra.mxu0 0
  %4103 = vmatprep.subr.bf16.mxu0 0
  %4104 = vmatpush1.bf16.msra.mxu0 0
  %4105 = vmatprep.subr.bf16.mxu0 0
  %4106 = vmatpush1.bf16.msra.mxu0 0
  %4107 = vmatprep.subr.bf16.mxu0 0
  %4108 = vmatpush1.bf16.msra.mxu0 0
  %4109 = vmatprep.subr.bf16.mxu0 0
  %4110 = vmatpush1.bf16.msra.mxu0 0
  %4111 = vmatprep.subr.bf16.mxu0 0
  %4112 = vmatpush1.bf16.msra.mxu0 0
  %4113 = vmatprep.subr.bf16.mxu0 0
  %4114 = vmatpush1.bf16.msra.mxu0 0
  %4115 = vmatprep.subr.bf16.mxu0 0
  %4116 = vmatpush1.bf16.msra.mxu0 0
  %4117 = vmatprep.subr.bf16.mxu0 0
  %4118 = vmatpush1.bf16.msra.mxu0 0
  %4119 = vmatprep.subr.bf16.mxu0 0
  %4120 = vmatpush1.bf16.msra.mxu0 0
  %4121 = vmatprep.subr.bf16.mxu0 0
  %4122 = vmatpush1.bf16.msra.mxu0 0
  %4123 = vmatprep.subr.bf16.mxu0 0
  %4124 = vmatpush1.bf16.msra.mxu0 0
  %4125 = vmatprep.subr.bf16.mxu0 0
  %4126 = vmatpush1.bf16.msra.mxu0 0
  %4127 = vmatprep.subr.bf16.mxu0 0
  %4128 = vmatpush1.bf16.msra.mxu0 0
  %4129 = vmatprep.subr.bf16.mxu0 0
  %4130 = vmatpush1.bf16.msra.mxu0 0
  %4131 = vmatprep.mubr.bf16.mxu0 0
  %4132 = vmatmul.mubr.bf16.gmra.mrb[0].mxu0 %v4094
  %v4133 = vpop.f32.mrb[0].mxu0
  %v4134 = vadd.f32 0.0, %v4133
  %v4135 = vpop.f32.mrb[0].mxu0
  %v4136 = vpop.f32.mrb[0].mxu0
  %v4137 = vpop.f32.mrb[0].mxu0
  %4138 = vdwg.mxu0
  %4139 = vrot.lane.b32.xlu0 %v386, 48
  %v4140 = vpop.permute.xlu0 %4139
  %v4142 = vsel %vm1127, %v3798, 0
  %v4145 = vsel %vm1131, %v4140, 0
  %4147 = vmatprep.subr.bf16.mxu0 0
  %4148 = vmatpush1.bf16.msra.mxu0 %v4145
  %4149 = vmatprep.subr.bf16.mxu0 0
  %4150 = vmatpush1.bf16.msra.mxu0 0
  %4151 = vmatprep.subr.bf16.mxu0 0
  %4152 = vmatpush1.bf16.msra.mxu0 0
  %4153 = vmatprep.subr.bf16.mxu0 0
  %4154 = vmatpush1.bf16.msra.mxu0 0
  %4155 = vmatprep.subr.bf16.mxu0 0
  %4156 = vmatpush1.bf16.msra.mxu0 0
  %4157 = vmatprep.subr.bf16.mxu0 0
  %4158 = vmatpush1.bf16.msra.mxu0 0
  %4159 = vmatprep.subr.bf16.mxu0 0
  %4160 = vmatpush1.bf16.msra.mxu0 0
  %4161 = vmatprep.subr.bf16.mxu0 0
  %4162 = vmatpush1.bf16.msra.mxu0 0
  %4163 = vmatprep.subr.bf16.mxu0 0
  %4164 = vmatpush1.bf16.msra.mxu0 0
  %4165 = vmatprep.subr.bf16.mxu0 0
  %4166 = vmatpush1.bf16.msra.mxu0 0
  %4167 = vmatprep.subr.bf16.mxu0 0
  %4168 = vmatpush1.bf16.msra.mxu0 0
  %4169 = vmatprep.subr.bf16.mxu0 0
  %4170 = vmatpush1.bf16.msra.mxu0 0
  %4171 = vmatprep.subr.bf16.mxu0 0
  %4172 = vmatpush1.bf16.msra.mxu0 0
  %4173 = vmatprep.subr.bf16.mxu0 0
  %4174 = vmatpush1.bf16.msra.mxu0 0
  %4175 = vmatprep.subr.bf16.mxu0 0
  %4176 = vmatpush1.bf16.msra.mxu0 0
  %4177 = vmatprep.subr.bf16.mxu0 0
  %4178 = vmatpush1.bf16.msra.mxu0 0
  %4179 = vmatprep.mubr.bf16.mxu0 0
  %4180 = vmatmul.mubr.bf16.gmra.mrb[0].mxu0 %v4142
  %v4181 = vpop.f32.mrb[0].mxu0
  %v4182 = vadd.f32 0.0, %v4181
  %v4183 = vpop.f32.mrb[0].mxu0
  %v4184 = vpop.f32.mrb[0].mxu0
  %v4185 = vpop.f32.mrb[0].mxu0
  %4186 = vdwg.mxu0
  %4187 = vrot.lane.b32.xlu0 %v387, 48
  %v4188 = vpop.permute.xlu0 %4187
  %v4190 = vsel %vm1127, %v3799, 0
  %v4193 = vsel %vm1131, %v4188, 0
  %4195 = vmatprep.subr.bf16.mxu0 0
  %4196 = vmatpush1.bf16.msra.mxu0 %v4193
  %4197 = vmatprep.subr.bf16.mxu0 0
  %4198 = vmatpush1.bf16.msra.mxu0 0
  %4199 = vmatprep.subr.bf16.mxu0 0
  %4200 = vmatpush1.bf16.msra.mxu0 0
  %4201 = vmatprep.subr.bf16.mxu0 0
  %4202 = vmatpush1.bf16.msra.mxu0 0
  %4203 = vmatprep.subr.bf16.mxu0 0
  %4204 = vmatpush1.bf16.msra.mxu0 0
  %4205 = vmatprep.subr.bf16.mxu0 0
  %4206 = vmatpush1.bf16.msra.mxu0 0
  %4207 = vmatprep.subr.bf16.mxu0 0
  %4208 = vmatpush1.bf16.msra.mxu0 0
  %4209 = vmatprep.subr.bf16.mxu0 0
  %4210 = vmatpush1.bf16.msra.mxu0 0
  %4211 = vmatprep.subr.bf16.mxu0 0
  %4212 = vmatpush1.bf16.msra.mxu0 0
  %4213 = vmatprep.subr.bf16.mxu0 0
  %4214 = vmatpush1.bf16.msra.mxu0 0
  %4215 = vmatprep.subr.bf16.mxu0 0
  %4216 = vmatpush1.bf16.msra.mxu0 0
  %4217 = vmatprep.subr.bf16.mxu0 0
  %4218 = vmatpush1.bf16.msra.mxu0 0
  %4219 = vmatprep.subr.bf16.mxu0 0
  %4220 = vmatpush1.bf16.msra.mxu0 0
  %4221 = vmatprep.subr.bf16.mxu0 0
  %4222 = vmatpush1.bf16.msra.mxu0 0
  %4223 = vmatprep.subr.bf16.mxu0 0
  %4224 = vmatpush1.bf16.msra.mxu0 0
  %4225 = vmatprep.subr.bf16.mxu0 0
  %4226 = vmatpush1.bf16.msra.mxu0 0
  %4227 = vmatprep.mubr.bf16.mxu0 0
  %4228 = vmatmul.mubr.bf16.gmra.mrb[0].mxu0 %v4190
  %v4229 = vpop.f32.mrb[0].mxu0
  %v4230 = vadd.f32 0.0, %v4229
  %v4231 = vpop.f32.mrb[0].mxu0
  %v4232 = vpop.f32.mrb[0].mxu0
  %v4233 = vpop.f32.mrb[0].mxu0
  %4234 = vdwg.mxu0
  %4235 = vrot.lane.b32.xlu0 %v388, 48
  %v4236 = vpop.permute.xlu0 %4235
  %v4238 = vsel %vm1127, %v3800, 0
  %v4241 = vsel %vm1131, %v4236, 0
  %4243 = vmatprep.subr.bf16.mxu0 0
  %4244 = vmatpush1.bf16.msra.mxu0 %v4241
  %4245 = vmatprep.subr.bf16.mxu0 0
  %4246 = vmatpush1.bf16.msra.mxu0 0
  %4247 = vmatprep.subr.bf16.mxu0 0
  %4248 = vmatpush1.bf16.msra.mxu0 0
  %4249 = vmatprep.subr.bf16.mxu0 0
  %4250 = vmatpush1.bf16.msra.mxu0 0
  %4251 = vmatprep.subr.bf16.mxu0 0
  %4252 = vmatpush1.bf16.msra.mxu0 0
  %4253 = vmatprep.subr.bf16.mxu0 0
  %4254 = vmatpush1.bf16.msra.mxu0 0
  %4255 = vmatprep.subr.bf16.mxu0 0
  %4256 = vmatpush1.bf16.msra.mxu0 0
  %4257 = vmatprep.subr.bf16.mxu0 0
  %4258 = vmatpush1.bf16.msra.mxu0 0
  %4259 = vmatprep.subr.bf16.mxu0 0
  %4260 = vmatpush1.bf16.msra.mxu0 0
  %4261 = vmatprep.subr.bf16.mxu0 0
  %4262 = vmatpush1.bf16.msra.mxu0 0
  %4263 = vmatprep.subr.bf16.mxu0 0
  %4264 = vmatpush1.bf16.msra.mxu0 0
  %4265 = vmatprep.subr.bf16.mxu0 0
  %4266 = vmatpush1.bf16.msra.mxu0 0
  %4267 = vmatprep.subr.bf16.mxu0 0
  %4268 = vmatpush1.bf16.msra.mxu0 0
  %4269 = vmatprep.subr.bf16.mxu0 0
  %4270 = vmatpush1.bf16.msra.mxu0 0
  %4271 = vmatprep.subr.bf16.mxu0 0
  %4272 = vmatpush1.bf16.msra.mxu0 0
  %4273 = vmatprep.subr.bf16.mxu0 0
  %4274 = vmatpush1.bf16.msra.mxu0 0
  %4275 = vmatprep.mubr.bf16.mxu0 0
  %4276 = vmatmul.mubr.bf16.gmra.mrb[0].mxu0 %v4238
  %v4277 = vpop.f32.mrb[0].mxu0
  %v4278 = vadd.f32 0.0, %v4277
  %v4279 = vpop.f32.mrb[0].mxu0
  %v4280 = vpop.f32.mrb[0].mxu0
  %v4281 = vpop.f32.mrb[0].mxu0
  %4282 = vdwg.mxu0
  %4283 = vrot.lane.b32.xlu0 %v389, 48
  %v4284 = vpop.permute.xlu0 %4283
  %v4286 = vsel %vm1127, %v3801, 0
  %v4289 = vsel %vm1131, %v4284, 0
  %4291 = vmatprep.subr.bf16.mxu0 0
  %4292 = vmatpush1.bf16.msra.mxu0 %v4289
  %4293 = vmatprep.subr.bf16.mxu0 0
  %4294 = vmatpush1.bf16.msra.mxu0 0
  %4295 = vmatprep.subr.bf16.mxu0 0
  %4296 = vmatpush1.bf16.msra.mxu0 0
  %4297 = vmatprep.subr.bf16.mxu0 0
  %4298 = vmatpush1.bf16.msra.mxu0 0
  %4299 = vmatprep.subr.bf16.mxu0 0
  %4300 = vmatpush1.bf16.msra.mxu0 0
  %4301 = vmatprep.subr.bf16.mxu0 0
  %4302 = vmatpush1.bf16.msra.mxu0 0
  %4303 = vmatprep.subr.bf16.mxu0 0
  %4304 = vmatpush1.bf16.msra.mxu0 0
  %4305 = vmatprep.subr.bf16.mxu0 0
  %4306 = vmatpush1.bf16.msra.mxu0 0
  %4307 = vmatprep.subr.bf16.mxu0 0
  %4308 = vmatpush1.bf16.msra.mxu0 0
  %4309 = vmatprep.subr.bf16.mxu0 0
  %4310 = vmatpush1.bf16.msra.mxu0 0
  %4311 = vmatprep.subr.bf16.mxu0 0
  %4312 = vmatpush1.bf16.msra.mxu0 0
  %4313 = vmatprep.subr.bf16.mxu0 0
  %4314 = vmatpush1.bf16.msra.mxu0 0
  %4315 = vmatprep.subr.bf16.mxu0 0
  %4316 = vmatpush1.bf16.msra.mxu0 0
  %4317 = vmatprep.subr.bf16.mxu0 0
  %4318 = vmatpush1.bf16.msra.mxu0 0
  %4319 = vmatprep.subr.bf16.mxu0 0
  %4320 = vmatpush1.bf16.msra.mxu0 0
  %4321 = vmatprep.subr.bf16.mxu0 0
  %4322 = vmatpush1.bf16.msra.mxu0 0
  %4323 = vmatprep.mubr.bf16.mxu0 0
  %4324 = vmatmul.mubr.bf16.gmra.mrb[0].mxu0 %v4286
  %v4325 = vpop.f32.mrb[0].mxu0
  %v4326 = vadd.f32 0.0, %v4325
  %v4327 = vpop.f32.mrb[0].mxu0
  %v4328 = vpop.f32.mrb[0].mxu0
  %v4329 = vpop.f32.mrb[0].mxu0
  %4330 = vdwg.mxu0
  %4331 = vrot.lane.b32.xlu0 %v390, 48
  %v4332 = vpop.permute.xlu0 %4331
  %v4334 = vsel %vm1127, %v3802, 0
  %v4337 = vsel %vm1131, %v4332, 0
  %4339 = vmatprep.subr.bf16.mxu0 0
  %4340 = vmatpush1.bf16.msra.mxu0 %v4337
  %4341 = vmatprep.subr.bf16.mxu0 0
  %4342 = vmatpush1.bf16.msra.mxu0 0
  %4343 = vmatprep.subr.bf16.mxu0 0
  %4344 = vmatpush1.bf16.msra.mxu0 0
  %4345 = vmatprep.subr.bf16.mxu0 0
  %4346 = vmatpush1.bf16.msra.mxu0 0
  %4347 = vmatprep.subr.bf16.mxu0 0
  %4348 = vmatpush1.bf16.msra.mxu0 0
  %4349 = vmatprep.subr.bf16.mxu0 0
  %4350 = vmatpush1.bf16.msra.mxu0 0
  %4351 = vmatprep.subr.bf16.mxu0 0
  %4352 = vmatpush1.bf16.msra.mxu0 0
  %4353 = vmatprep.subr.bf16.mxu0 0
  %4354 = vmatpush1.bf16.msra.mxu0 0
  %4355 = vmatprep.subr.bf16.mxu0 0
  %4356 = vmatpush1.bf16.msra.mxu0 0
  %4357 = vmatprep.subr.bf16.mxu0 0
  %4358 = vmatpush1.bf16.msra.mxu0 0
  %4359 = vmatprep.subr.bf16.mxu0 0
  %4360 = vmatpush1.bf16.msra.mxu0 0
  %4361 = vmatprep.subr.bf16.mxu0 0
  %4362 = vmatpush1.bf16.msra.mxu0 0
  %4363 = vmatprep.subr.bf16.mxu0 0
  %4364 = vmatpush1.bf16.msra.mxu0 0
  %4365 = vmatprep.subr.bf16.mxu0 0
  %4366 = vmatpush1.bf16.msra.mxu0 0
  %4367 = vmatprep.subr.bf16.mxu0 0
  %4368 = vmatpush1.bf16.msra.mxu0 0
  %4369 = vmatprep.subr.bf16.mxu0 0
  %4370 = vmatpush1.bf16.msra.mxu0 0
  %4371 = vmatprep.mubr.bf16.mxu0 0
  %4372 = vmatmul.mubr.bf16.gmra.mrb[0].mxu0 %v4334
  %v4373 = vpop.f32.mrb[0].mxu0
  %v4374 = vadd.f32 0.0, %v4373
  %v4375 = vpop.f32.mrb[0].mxu0
  %v4376 = vpop.f32.mrb[0].mxu0
  %v4377 = vpop.f32.mrb[0].mxu0
  %4378 = vdwg.mxu0
  %v4379 = vpack.c.bf16 %v3846, %v3846
  %v4380 = vpack.c.bf16 %v3894, %v3894
  %v4381 = vpack.c.bf16 %v3942, %v3942
  %v4382 = vpack.c.bf16 %v3990, %v3990
  %v4383 = vpack.c.bf16 %v4038, %v4038
  %v4384 = vpack.c.bf16 %v4086, %v4086
  %v4385 = vpack.c.bf16 %v4134, %v4134
  %v4386 = vpack.c.bf16 %v4182, %v4182
  %v4387 = vpack.c.bf16 %v4230, %v4230
  %v4388 = vpack.c.bf16 %v4278, %v4278
  %v4389 = vpack.c.bf16 %v4326, %v4326
  %v4390 = vpack.c.bf16 %v4374, %v4374
  %4391 = vrot.lane.b32.xlu0 %v301, 104
  %v4392 = vpop.permute.xlu0 %4391
  %4393 = vrot.lane.b32.xlu0 %v379, 72
  %v4394 = vpop.permute.xlu0 %4393
  %v4396 = vsel %vm394, %v4392, 0
  %v4399 = vsel %vm394, %v4394, 0
  %4401 = vmatprep.subr.bf16.mxu0 0
  %4402 = vmatpush1.bf16.xpose.msra.mxu0 %v4399
  %4403 = vmatprep.subr.bf16.mxu0 0
  %4404 = vmatpush1.bf16.xpose.msra.mxu0 0
  %4405 = vmatprep.subr.bf16.mxu0 0
  %4406 = vmatpush1.bf16.xpose.msra.mxu0 0
  %4407 = vmatprep.subr.bf16.mxu0 0
  %4408 = vmatpush1.bf16.xpose.msra.mxu0 0
  %4409 = vmatprep.subr.bf16.mxu0 0
  %4410 = vmatpush1.bf16.xpose.msra.mxu0 0
  %4411 = vmatprep.subr.bf16.mxu0 0
  %4412 = vmatpush1.bf16.xpose.msra.mxu0 0
  %4413 = vmatprep.subr.bf16.mxu0 0
  %4414 = vmatpush1.bf16.xpose.msra.mxu0 0
  %4415 = vmatprep.subr.bf16.mxu0 0
  %4416 = vmatpush1.bf16.xpose.msra.mxu0 0
  %4417 = vmatprep.subr.bf16.mxu0 0
  %4418 = vmatpush1.bf16.xpose.msra.mxu0 0
  %4419 = vmatprep.subr.bf16.mxu0 0
  %4420 = vmatpush1.bf16.xpose.msra.mxu0 0
  %4421 = vmatprep.subr.bf16.mxu0 0
  %4422 = vmatpush1.bf16.xpose.msra.mxu0 0
  %4423 = vmatprep.subr.bf16.mxu0 0
  %4424 = vmatpush1.bf16.xpose.msra.mxu0 0
  %4425 = vmatprep.subr.bf16.mxu0 0
  %4426 = vmatpush1.bf16.xpose.msra.mxu0 0
  %4427 = vmatprep.subr.bf16.mxu0 0
  %4428 = vmatpush1.bf16.xpose.msra.mxu0 0
  %4429 = vmatprep.subr.bf16.mxu0 0
  %4430 = vmatpush1.bf16.xpose.msra.mxu0 0
  %4431 = vmatprep.subr.bf16.mxu0 0
  %4432 = vmatpush1.bf16.xpose.msra.mxu0 0
  %4433 = vmatprep.mubr.bf16.mxu0 0
  %4434 = vmatmul.mubr.bf16.gmra.mrb[0].mxu0 %v4396
  %v4435 = vpop.f32.mrb[0].mxu0
  %v4436 = vadd.f32 0.0, %v4435
  %v4437 = vpop.f32.mrb[0].mxu0
  %v4438 = vpop.f32.mrb[0].mxu0
  %v4439 = vpop.f32.mrb[0].mxu0
  %4440 = vdwg.mxu0
  %4441 = vrot.lane.b32.xlu0 %v302, 104
  %v4442 = vpop.permute.xlu0 %4441
  %4443 = vrot.lane.b32.xlu0 %v380, 72
  %v4444 = vpop.permute.xlu0 %4443
  %v4446 = vsel %vm394, %v4442, 0
  %v4449 = vsel %vm394, %v4444, 0
  %4451 = vmatprep.subr.bf16.mxu0 0
  %4452 = vmatpush1.bf16.xpose.msra.mxu0 %v4449
  %4453 = vmatprep.subr.bf16.mxu0 0
  %4454 = vmatpush1.bf16.xpose.msra.mxu0 0
  %4455 = vmatprep.subr.bf16.mxu0 0
  %4456 = vmatpush1.bf16.xpose.msra.mxu0 0
  %4457 = vmatprep.subr.bf16.mxu0 0
  %4458 = vmatpush1.bf16.xpose.msra.mxu0 0
  %4459 = vmatprep.subr.bf16.mxu0 0
  %4460 = vmatpush1.bf16.xpose.msra.mxu0 0
  %4461 = vmatprep.subr.bf16.mxu0 0
  %4462 = vmatpush1.bf16.xpose.msra.mxu0 0
  %4463 = vmatprep.subr.bf16.mxu0 0
  %4464 = vmatpush1.bf16.xpose.msra.mxu0 0
  %4465 = vmatprep.subr.bf16.mxu0 0
  %4466 = vmatpush1.bf16.xpose.msra.mxu0 0
  %4467 = vmatprep.subr.bf16.mxu0 0
  %4468 = vmatpush1.bf16.xpose.msra.mxu0 0
  %4469 = vmatprep.subr.bf16.mxu0 0
  %4470 = vmatpush1.bf16.xpose.msra.mxu0 0
  %4471 = vmatprep.subr.bf16.mxu0 0
  %4472 = vmatpush1.bf16.xpose.msra.mxu0 0
  %4473 = vmatprep.subr.bf16.mxu0 0
  %4474 = vmatpush1.bf16.xpose.msra.mxu0 0
  %4475 = vmatprep.subr.bf16.mxu0 0
  %4476 = vmatpush1.bf16.xpose.msra.mxu0 0
  %4477 = vmatprep.subr.bf16.mxu0 0
  %4478 = vmatpush1.bf16.xpose.msra.mxu0 0
  %4479 = vmatprep.subr.bf16.mxu0 0
  %4480 = vmatpush1.bf16.xpose.msra.mxu0 0
  %4481 = vmatprep.subr.bf16.mxu0 0
  %4482 = vmatpush1.bf16.xpose.msra.mxu0 0
  %4483 = vmatprep.mubr.bf16.mxu0 0
  %4484 = vmatmul.mubr.bf16.gmra.mrb[0].mxu0 %v4446
  %v4485 = vpop.f32.mrb[0].mxu0
  %v4486 = vadd.f32 0.0, %v4485
  %v4487 = vpop.f32.mrb[0].mxu0
  %v4488 = vpop.f32.mrb[0].mxu0
  %v4489 = vpop.f32.mrb[0].mxu0
  %4490 = vdwg.mxu0
  %4491 = vrot.lane.b32.xlu0 %v303, 104
  %v4492 = vpop.permute.xlu0 %4491
  %4493 = vrot.lane.b32.xlu0 %v381, 72
  %v4494 = vpop.permute.xlu0 %4493
  %v4496 = vsel %vm394, %v4492, 0
  %v4499 = vsel %vm394, %v4494, 0
  %4501 = vmatprep.subr.bf16.mxu0 0
  %4502 = vmatpush1.bf16.xpose.msra.mxu0 %v4499
  %4503 = vmatprep.subr.bf16.mxu0 0
  %4504 = vmatpush1.bf16.xpose.msra.mxu0 0
  %4505 = vmatprep.subr.bf16.mxu0 0
  %4506 = vmatpush1.bf16.xpose.msra.mxu0 0
  %4507 = vmatprep.subr.bf16.mxu0 0
  %4508 = vmatpush1.bf16.xpose.msra.mxu0 0
  %4509 = vmatprep.subr.bf16.mxu0 0
  %4510 = vmatpush1.bf16.xpose.msra.mxu0 0
  %4511 = vmatprep.subr.bf16.mxu0 0
  %4512 = vmatpush1.bf16.xpose.msra.mxu0 0
  %4513 = vmatprep.subr.bf16.mxu0 0
  %4514 = vmatpush1.bf16.xpose.msra.mxu0 0
  %4515 = vmatprep.subr.bf16.mxu0 0
  %4516 = vmatpush1.bf16.xpose.msra.mxu0 0
  %4517 = vmatprep.subr.bf16.mxu0 0
  %4518 = vmatpush1.bf16.xpose.msra.mxu0 0
  %4519 = vmatprep.subr.bf16.mxu0 0
  %4520 = vmatpush1.bf16.xpose.msra.mxu0 0
  %4521 = vmatprep.subr.bf16.mxu0 0
  %4522 = vmatpush1.bf16.xpose.msra.mxu0 0
  %4523 = vmatprep.subr.bf16.mxu0 0
  %4524 = vmatpush1.bf16.xpose.msra.mxu0 0
  %4525 = vmatprep.subr.bf16.mxu0 0
  %4526 = vmatpush1.bf16.xpose.msra.mxu0 0
  %4527 = vmatprep.subr.bf16.mxu0 0
  %4528 = vmatpush1.bf16.xpose.msra.mxu0 0
  %4529 = vmatprep.subr.bf16.mxu0 0
  %4530 = vmatpush1.bf16.xpose.msra.mxu0 0
  %4531 = vmatprep.subr.bf16.mxu0 0
  %4532 = vmatpush1.bf16.xpose.msra.mxu0 0
  %4533 = vmatprep.mubr.bf16.mxu0 0
  %4534 = vmatmul.mubr.bf16.gmra.mrb[0].mxu0 %v4496
  %v4535 = vpop.f32.mrb[0].mxu0
  %v4536 = vadd.f32 0.0, %v4535
  %v4537 = vpop.f32.mrb[0].mxu0
  %v4538 = vpop.f32.mrb[0].mxu0
  %v4539 = vpop.f32.mrb[0].mxu0
  %4540 = vdwg.mxu0
  %4541 = vrot.lane.b32.xlu0 %v304, 104
  %v4542 = vpop.permute.xlu0 %4541
  %4543 = vrot.lane.b32.xlu0 %v382, 72
  %v4544 = vpop.permute.xlu0 %4543
  %v4546 = vsel %vm394, %v4542, 0
  %v4549 = vsel %vm394, %v4544, 0
  %4551 = vmatprep.subr.bf16.mxu0 0
  %4552 = vmatpush1.bf16.xpose.msra.mxu0 %v4549
  %4553 = vmatprep.subr.bf16.mxu0 0
  %4554 = vmatpush1.bf16.xpose.msra.mxu0 0
  %4555 = vmatprep.subr.bf16.mxu0 0
  %4556 = vmatpush1.bf16.xpose.msra.mxu0 0
  %4557 = vmatprep.subr.bf16.mxu0 0
  %4558 = vmatpush1.bf16.xpose.msra.mxu0 0
  %4559 = vmatprep.subr.bf16.mxu0 0
  %4560 = vmatpush1.bf16.xpose.msra.mxu0 0
  %4561 = vmatprep.subr.bf16.mxu0 0
  %4562 = vmatpush1.bf16.xpose.msra.mxu0 0
  %4563 = vmatprep.subr.bf16.mxu0 0
  %4564 = vmatpush1.bf16.xpose.msra.mxu0 0
  %4565 = vmatprep.subr.bf16.mxu0 0
  %4566 = vmatpush1.bf16.xpose.msra.mxu0 0
  %4567 = vmatprep.subr.bf16.mxu0 0
  %4568 = vmatpush1.bf16.xpose.msra.mxu0 0
  %4569 = vmatprep.subr.bf16.mxu0 0
  %4570 = vmatpush1.bf16.xpose.msra.mxu0 0
  %4571 = vmatprep.subr.bf16.mxu0 0
  %4572 = vmatpush1.bf16.xpose.msra.mxu0 0
  %4573 = vmatprep.subr.bf16.mxu0 0
  %4574 = vmatpush1.bf16.xpose.msra.mxu0 0
  %4575 = vmatprep.subr.bf16.mxu0 0
  %4576 = vmatpush1.bf16.xpose.msra.mxu0 0
  %4577 = vmatprep.subr.bf16.mxu0 0
  %4578 = vmatpush1.bf16.xpose.msra.mxu0 0
  %4579 = vmatprep.subr.bf16.mxu0 0
  %4580 = vmatpush1.bf16.xpose.msra.mxu0 0
  %4581 = vmatprep.subr.bf16.mxu0 0
  %4582 = vmatpush1.bf16.xpose.msra.mxu0 0
  %4583 = vmatprep.mubr.bf16.mxu0 0
  %4584 = vmatmul.mubr.bf16.gmra.mrb[0].mxu0 %v4546
  %v4585 = vpop.f32.mrb[0].mxu0
  %v4586 = vadd.f32 0.0, %v4585
  %v4587 = vpop.f32.mrb[0].mxu0
  %v4588 = vpop.f32.mrb[0].mxu0
  %v4589 = vpop.f32.mrb[0].mxu0
  %4590 = vdwg.mxu0
  %4591 = vrot.lane.b32.xlu0 %v305, 104
  %v4592 = vpop.permute.xlu0 %4591
  %4593 = vrot.lane.b32.xlu0 %v383, 72
  %v4594 = vpop.permute.xlu0 %4593
  %v4596 = vsel %vm394, %v4592, 0
  %v4599 = vsel %vm394, %v4594, 0
  %4601 = vmatprep.subr.bf16.mxu0 0
  %4602 = vmatpush1.bf16.xpose.msra.mxu0 %v4599
  %4603 = vmatprep.subr.bf16.mxu0 0
  %4604 = vmatpush1.bf16.xpose.msra.mxu0 0
  %4605 = vmatprep.subr.bf16.mxu0 0
  %4606 = vmatpush1.bf16.xpose.msra.mxu0 0
  %4607 = vmatprep.subr.bf16.mxu0 0
  %4608 = vmatpush1.bf16.xpose.msra.mxu0 0
  %4609 = vmatprep.subr.bf16.mxu0 0
  %4610 = vmatpush1.bf16.xpose.msra.mxu0 0
  %4611 = vmatprep.subr.bf16.mxu0 0
  %4612 = vmatpush1.bf16.xpose.msra.mxu0 0
  %4613 = vmatprep.subr.bf16.mxu0 0
  %4614 = vmatpush1.bf16.xpose.msra.mxu0 0
  %4615 = vmatprep.subr.bf16.mxu0 0
  %4616 = vmatpush1.bf16.xpose.msra.mxu0 0
  %4617 = vmatprep.subr.bf16.mxu0 0
  %4618 = vmatpush1.bf16.xpose.msra.mxu0 0
  %4619 = vmatprep.subr.bf16.mxu0 0
  %4620 = vmatpush1.bf16.xpose.msra.mxu0 0
  %4621 = vmatprep.subr.bf16.mxu0 0
  %4622 = vmatpush1.bf16.xpose.msra.mxu0 0
  %4623 = vmatprep.subr.bf16.mxu0 0
  %4624 = vmatpush1.bf16.xpose.msra.mxu0 0
  %4625 = vmatprep.subr.bf16.mxu0 0
  %4626 = vmatpush1.bf16.xpose.msra.mxu0 0
  %4627 = vmatprep.subr.bf16.mxu0 0
  %4628 = vmatpush1.bf16.xpose.msra.mxu0 0
  %4629 = vmatprep.subr.bf16.mxu0 0
  %4630 = vmatpush1.bf16.xpose.msra.mxu0 0
  %4631 = vmatprep.subr.bf16.mxu0 0
  %4632 = vmatpush1.bf16.xpose.msra.mxu0 0
  %4633 = vmatprep.mubr.bf16.mxu0 0
  %4634 = vmatmul.mubr.bf16.gmra.mrb[0].mxu0 %v4596
  %v4635 = vpop.f32.mrb[0].mxu0
  %v4636 = vadd.f32 0.0, %v4635
  %v4637 = vpop.f32.mrb[0].mxu0
  %v4638 = vpop.f32.mrb[0].mxu0
  %v4639 = vpop.f32.mrb[0].mxu0
  %4640 = vdwg.mxu0
  %4641 = vrot.lane.b32.xlu0 %v306, 104
  %v4642 = vpop.permute.xlu0 %4641
  %4643 = vrot.lane.b32.xlu0 %v384, 72
  %v4644 = vpop.permute.xlu0 %4643
  %v4646 = vsel %vm394, %v4642, 0
  %v4649 = vsel %vm394, %v4644, 0
  %4651 = vmatprep.subr.bf16.mxu0 0
  %4652 = vmatpush1.bf16.xpose.msra.mxu0 %v4649
  %4653 = vmatprep.subr.bf16.mxu0 0
  %4654 = vmatpush1.bf16.xpose.msra.mxu0 0
  %4655 = vmatprep.subr.bf16.mxu0 0
  %4656 = vmatpush1.bf16.xpose.msra.mxu0 0
  %4657 = vmatprep.subr.bf16.mxu0 0
  %4658 = vmatpush1.bf16.xpose.msra.mxu0 0
  %4659 = vmatprep.subr.bf16.mxu0 0
  %4660 = vmatpush1.bf16.xpose.msra.mxu0 0
  %4661 = vmatprep.subr.bf16.mxu0 0
  %4662 = vmatpush1.bf16.xpose.msra.mxu0 0
  %4663 = vmatprep.subr.bf16.mxu0 0
  %4664 = vmatpush1.bf16.xpose.msra.mxu0 0
  %4665 = vmatprep.subr.bf16.mxu0 0
  %4666 = vmatpush1.bf16.xpose.msra.mxu0 0
  %4667 = vmatprep.subr.bf16.mxu0 0
  %4668 = vmatpush1.bf16.xpose.msra.mxu0 0
  %4669 = vmatprep.subr.bf16.mxu0 0
  %4670 = vmatpush1.bf16.xpose.msra.mxu0 0
  %4671 = vmatprep.subr.bf16.mxu0 0
  %4672 = vmatpush1.bf16.xpose.msra.mxu0 0
  %4673 = vmatprep.subr.bf16.mxu0 0
  %4674 = vmatpush1.bf16.xpose.msra.mxu0 0
  %4675 = vmatprep.subr.bf16.mxu0 0
  %4676 = vmatpush1.bf16.xpose.msra.mxu0 0
  %4677 = vmatprep.subr.bf16.mxu0 0
  %4678 = vmatpush1.bf16.xpose.msra.mxu0 0
  %4679 = vmatprep.subr.bf16.mxu0 0
  %4680 = vmatpush1.bf16.xpose.msra.mxu0 0
  %4681 = vmatprep.subr.bf16.mxu0 0
  %4682 = vmatpush1.bf16.xpose.msra.mxu0 0
  %4683 = vmatprep.mubr.bf16.mxu0 0
  %4684 = vmatmul.mubr.bf16.gmra.mrb[0].mxu0 %v4646
  %v4685 = vpop.f32.mrb[0].mxu0
  %v4686 = vadd.f32 0.0, %v4685
  %v4687 = vpop.f32.mrb[0].mxu0
  %v4688 = vpop.f32.mrb[0].mxu0
  %v4689 = vpop.f32.mrb[0].mxu0
  %4690 = vdwg.mxu0
  %4691 = vrot.lane.b32.xlu0 %v307, 104
  %v4692 = vpop.permute.xlu0 %4691
  %4693 = vrot.lane.b32.xlu0 %v385, 72
  %v4694 = vpop.permute.xlu0 %4693
  %v4696 = vsel %vm394, %v4692, 0
  %v4699 = vsel %vm394, %v4694, 0
  %4701 = vmatprep.subr.bf16.mxu0 0
  %4702 = vmatpush1.bf16.xpose.msra.mxu0 %v4699
  %4703 = vmatprep.subr.bf16.mxu0 0
  %4704 = vmatpush1.bf16.xpose.msra.mxu0 0
  %4705 = vmatprep.subr.bf16.mxu0 0
  %4706 = vmatpush1.bf16.xpose.msra.mxu0 0
  %4707 = vmatprep.subr.bf16.mxu0 0
  %4708 = vmatpush1.bf16.xpose.msra.mxu0 0
  %4709 = vmatprep.subr.bf16.mxu0 0
  %4710 = vmatpush1.bf16.xpose.msra.mxu0 0
  %4711 = vmatprep.subr.bf16.mxu0 0
  %4712 = vmatpush1.bf16.xpose.msra.mxu0 0
  %4713 = vmatprep.subr.bf16.mxu0 0
  %4714 = vmatpush1.bf16.xpose.msra.mxu0 0
  %4715 = vmatprep.subr.bf16.mxu0 0
  %4716 = vmatpush1.bf16.xpose.msra.mxu0 0
  %4717 = vmatprep.subr.bf16.mxu0 0
  %4718 = vmatpush1.bf16.xpose.msra.mxu0 0
  %4719 = vmatprep.subr.bf16.mxu0 0
  %4720 = vmatpush1.bf16.xpose.msra.mxu0 0
  %4721 = vmatprep.subr.bf16.mxu0 0
  %4722 = vmatpush1.bf16.xpose.msra.mxu0 0
  %4723 = vmatprep.subr.bf16.mxu0 0
  %4724 = vmatpush1.bf16.xpose.msra.mxu0 0
  %4725 = vmatprep.subr.bf16.mxu0 0
  %4726 = vmatpush1.bf16.xpose.msra.mxu0 0
  %4727 = vmatprep.subr.bf16.mxu0 0
  %4728 = vmatpush1.bf16.xpose.msra.mxu0 0
  %4729 = vmatprep.subr.bf16.mxu0 0
  %4730 = vmatpush1.bf16.xpose.msra.mxu0 0
  %4731 = vmatprep.subr.bf16.mxu0 0
  %4732 = vmatpush1.bf16.xpose.msra.mxu0 0
  %4733 = vmatprep.mubr.bf16.mxu0 0
  %4734 = vmatmul.mubr.bf16.gmra.mrb[0].mxu0 %v4696
  %v4735 = vpop.f32.mrb[0].mxu0
  %v4736 = vadd.f32 0.0, %v4735
  %v4737 = vpop.f32.mrb[0].mxu0
  %v4738 = vpop.f32.mrb[0].mxu0
  %v4739 = vpop.f32.mrb[0].mxu0
  %4740 = vdwg.mxu0
  %4741 = vrot.lane.b32.xlu0 %v308, 104
  %v4742 = vpop.permute.xlu0 %4741
  %4743 = vrot.lane.b32.xlu0 %v386, 72
  %v4744 = vpop.permute.xlu0 %4743
  %v4746 = vsel %vm394, %v4742, 0
  %v4749 = vsel %vm394, %v4744, 0
  %4751 = vmatprep.subr.bf16.mxu0 0
  %4752 = vmatpush1.bf16.xpose.msra.mxu0 %v4749
  %4753 = vmatprep.subr.bf16.mxu0 0
  %4754 = vmatpush1.bf16.xpose.msra.mxu0 0
  %4755 = vmatprep.subr.bf16.mxu0 0
  %4756 = vmatpush1.bf16.xpose.msra.mxu0 0
  %4757 = vmatprep.subr.bf16.mxu0 0
  %4758 = vmatpush1.bf16.xpose.msra.mxu0 0
  %4759 = vmatprep.subr.bf16.mxu0 0
  %4760 = vmatpush1.bf16.xpose.msra.mxu0 0
  %4761 = vmatprep.subr.bf16.mxu0 0
  %4762 = vmatpush1.bf16.xpose.msra.mxu0 0
  %4763 = vmatprep.subr.bf16.mxu0 0
  %4764 = vmatpush1.bf16.xpose.msra.mxu0 0
  %4765 = vmatprep.subr.bf16.mxu0 0
  %4766 = vmatpush1.bf16.xpose.msra.mxu0 0
  %4767 = vmatprep.subr.bf16.mxu0 0
  %4768 = vmatpush1.bf16.xpose.msra.mxu0 0
  %4769 = vmatprep.subr.bf16.mxu0 0
  %4770 = vmatpush1.bf16.xpose.msra.mxu0 0
  %4771 = vmatprep.subr.bf16.mxu0 0
  %4772 = vmatpush1.bf16.xpose.msra.mxu0 0
  %4773 = vmatprep.subr.bf16.mxu0 0
  %4774 = vmatpush1.bf16.xpose.msra.mxu0 0
  %4775 = vmatprep.subr.bf16.mxu0 0
  %4776 = vmatpush1.bf16.xpose.msra.mxu0 0
  %4777 = vmatprep.subr.bf16.mxu0 0
  %4778 = vmatpush1.bf16.xpose.msra.mxu0 0
  %4779 = vmatprep.subr.bf16.mxu0 0
  %4780 = vmatpush1.bf16.xpose.msra.mxu0 0
  %4781 = vmatprep.subr.bf16.mxu0 0
  %4782 = vmatpush1.bf16.xpose.msra.mxu0 0
  %4783 = vmatprep.mubr.bf16.mxu0 0
  %4784 = vmatmul.mubr.bf16.gmra.mrb[0].mxu0 %v4746
  %v4785 = vpop.f32.mrb[0].mxu0
  %v4786 = vadd.f32 0.0, %v4785
  %v4787 = vpop.f32.mrb[0].mxu0
  %v4788 = vpop.f32.mrb[0].mxu0
  %v4789 = vpop.f32.mrb[0].mxu0
  %4790 = vdwg.mxu0
  %4791 = vrot.lane.b32.xlu0 %v309, 104
  %v4792 = vpop.permute.xlu0 %4791
  %4793 = vrot.lane.b32.xlu0 %v387, 72
  %v4794 = vpop.permute.xlu0 %4793
  %v4796 = vsel %vm394, %v4792, 0
  %v4799 = vsel %vm394, %v4794, 0
  %4801 = vmatprep.subr.bf16.mxu0 0
  %4802 = vmatpush1.bf16.xpose.msra.mxu0 %v4799
  %4803 = vmatprep.subr.bf16.mxu0 0
  %4804 = vmatpush1.bf16.xpose.msra.mxu0 0
  %4805 = vmatprep.subr.bf16.mxu0 0
  %4806 = vmatpush1.bf16.xpose.msra.mxu0 0
  %4807 = vmatprep.subr.bf16.mxu0 0
  %4808 = vmatpush1.bf16.xpose.msra.mxu0 0
  %4809 = vmatprep.subr.bf16.mxu0 0
  %4810 = vmatpush1.bf16.xpose.msra.mxu0 0
  %4811 = vmatprep.subr.bf16.mxu0 0
  %4812 = vmatpush1.bf16.xpose.msra.mxu0 0
  %4813 = vmatprep.subr.bf16.mxu0 0
  %4814 = vmatpush1.bf16.xpose.msra.mxu0 0
  %4815 = vmatprep.subr.bf16.mxu0 0
  %4816 = vmatpush1.bf16.xpose.msra.mxu0 0
  %4817 = vmatprep.subr.bf16.mxu0 0
  %4818 = vmatpush1.bf16.xpose.msra.mxu0 0
  %4819 = vmatprep.subr.bf16.mxu0 0
  %4820 = vmatpush1.bf16.xpose.msra.mxu0 0
  %4821 = vmatprep.subr.bf16.mxu0 0
  %4822 = vmatpush1.bf16.xpose.msra.mxu0 0
  %4823 = vmatprep.subr.bf16.mxu0 0
  %4824 = vmatpush1.bf16.xpose.msra.mxu0 0
  %4825 = vmatprep.subr.bf16.mxu0 0
  %4826 = vmatpush1.bf16.xpose.msra.mxu0 0
  %4827 = vmatprep.subr.bf16.mxu0 0
  %4828 = vmatpush1.bf16.xpose.msra.mxu0 0
  %4829 = vmatprep.subr.bf16.mxu0 0
  %4830 = vmatpush1.bf16.xpose.msra.mxu0 0
  %4831 = vmatprep.subr.bf16.mxu0 0
  %4832 = vmatpush1.bf16.xpose.msra.mxu0 0
  %4833 = vmatprep.mubr.bf16.mxu0 0
  %4834 = vmatmul.mubr.bf16.gmra.mrb[0].mxu0 %v4796
  %v4835 = vpop.f32.mrb[0].mxu0
  %v4836 = vadd.f32 0.0, %v4835
  %v4837 = vpop.f32.mrb[0].mxu0
  %v4838 = vpop.f32.mrb[0].mxu0
  %v4839 = vpop.f32.mrb[0].mxu0
  %4840 = vdwg.mxu0
  %4841 = vrot.lane.b32.xlu0 %v310, 104
  %v4842 = vpop.permute.xlu0 %4841
  %4843 = vrot.lane.b32.xlu0 %v388, 72
  %v4844 = vpop.permute.xlu0 %4843
  %v4846 = vsel %vm394, %v4842, 0
  %v4849 = vsel %vm394, %v4844, 0
  %4851 = vmatprep.subr.bf16.mxu0 0
  %4852 = vmatpush1.bf16.xpose.msra.mxu0 %v4849
  %4853 = vmatprep.subr.bf16.mxu0 0
  %4854 = vmatpush1.bf16.xpose.msra.mxu0 0
  %4855 = vmatprep.subr.bf16.mxu0 0
  %4856 = vmatpush1.bf16.xpose.msra.mxu0 0
  %4857 = vmatprep.subr.bf16.mxu0 0
  %4858 = vmatpush1.bf16.xpose.msra.mxu0 0
  %4859 = vmatprep.subr.bf16.mxu0 0
  %4860 = vmatpush1.bf16.xpose.msra.mxu0 0
  %4861 = vmatprep.subr.bf16.mxu0 0
  %4862 = vmatpush1.bf16.xpose.msra.mxu0 0
  %4863 = vmatprep.subr.bf16.mxu0 0
  %4864 = vmatpush1.bf16.xpose.msra.mxu0 0
  %4865 = vmatprep.subr.bf16.mxu0 0
  %4866 = vmatpush1.bf16.xpose.msra.mxu0 0
  %4867 = vmatprep.subr.bf16.mxu0 0
  %4868 = vmatpush1.bf16.xpose.msra.mxu0 0
  %4869 = vmatprep.subr.bf16.mxu0 0
  %4870 = vmatpush1.bf16.xpose.msra.mxu0 0
  %4871 = vmatprep.subr.bf16.mxu0 0
  %4872 = vmatpush1.bf16.xpose.msra.mxu0 0
  %4873 = vmatprep.subr.bf16.mxu0 0
  %4874 = vmatpush1.bf16.xpose.msra.mxu0 0
  %4875 = vmatprep.subr.bf16.mxu0 0
  %4876 = vmatpush1.bf16.xpose.msra.mxu0 0
  %4877 = vmatprep.subr.bf16.mxu0 0
  %4878 = vmatpush1.bf16.xpose.msra.mxu0 0
  %4879 = vmatprep.subr.bf16.mxu0 0
  %4880 = vmatpush1.bf16.xpose.msra.mxu0 0
  %4881 = vmatprep.subr.bf16.mxu0 0
  %4882 = vmatpush1.bf16.xpose.msra.mxu0 0
  %4883 = vmatprep.mubr.bf16.mxu0 0
  %4884 = vmatmul.mubr.bf16.gmra.mrb[0].mxu0 %v4846
  %v4885 = vpop.f32.mrb[0].mxu0
  %v4886 = vadd.f32 0.0, %v4885
  %v4887 = vpop.f32.mrb[0].mxu0
  %v4888 = vpop.f32.mrb[0].mxu0
  %v4889 = vpop.f32.mrb[0].mxu0
  %4890 = vdwg.mxu0
  %4891 = vrot.lane.b32.xlu0 %v311, 104
  %v4892 = vpop.permute.xlu0 %4891
  %4893 = vrot.lane.b32.xlu0 %v389, 72
  %v4894 = vpop.permute.xlu0 %4893
  %v4896 = vsel %vm394, %v4892, 0
  %v4899 = vsel %vm394, %v4894, 0
  %4901 = vmatprep.subr.bf16.mxu0 0
  %4902 = vmatpush1.bf16.xpose.msra.mxu0 %v4899
  %4903 = vmatprep.subr.bf16.mxu0 0
  %4904 = vmatpush1.bf16.xpose.msra.mxu0 0
  %4905 = vmatprep.subr.bf16.mxu0 0
  %4906 = vmatpush1.bf16.xpose.msra.mxu0 0
  %4907 = vmatprep.subr.bf16.mxu0 0
  %4908 = vmatpush1.bf16.xpose.msra.mxu0 0
  %4909 = vmatprep.subr.bf16.mxu0 0
  %4910 = vmatpush1.bf16.xpose.msra.mxu0 0
  %4911 = vmatprep.subr.bf16.mxu0 0
  %4912 = vmatpush1.bf16.xpose.msra.mxu0 0
  %4913 = vmatprep.subr.bf16.mxu0 0
  %4914 = vmatpush1.bf16.xpose.msra.mxu0 0
  %4915 = vmatprep.subr.bf16.mxu0 0
  %4916 = vmatpush1.bf16.xpose.msra.mxu0 0
  %4917 = vmatprep.subr.bf16.mxu0 0
  %4918 = vmatpush1.bf16.xpose.msra.mxu0 0
  %4919 = vmatprep.subr.bf16.mxu0 0
  %4920 = vmatpush1.bf16.xpose.msra.mxu0 0
  %4921 = vmatprep.subr.bf16.mxu0 0
  %4922 = vmatpush1.bf16.xpose.msra.mxu0 0
  %4923 = vmatprep.subr.bf16.mxu0 0
  %4924 = vmatpush1.bf16.xpose.msra.mxu0 0
  %4925 = vmatprep.subr.bf16.mxu0 0
  %4926 = vmatpush1.bf16.xpose.msra.mxu0 0
  %4927 = vmatprep.subr.bf16.mxu0 0
  %4928 = vmatpush1.bf16.xpose.msra.mxu0 0
  %4929 = vmatprep.subr.bf16.mxu0 0
  %4930 = vmatpush1.bf16.xpose.msra.mxu0 0
  %4931 = vmatprep.subr.bf16.mxu0 0
  %4932 = vmatpush1.bf16.xpose.msra.mxu0 0
  %4933 = vmatprep.mubr.bf16.mxu0 0
  %4934 = vmatmul.mubr.bf16.gmra.mrb[0].mxu0 %v4896
  %v4935 = vpop.f32.mrb[0].mxu0
  %v4936 = vadd.f32 0.0, %v4935
  %v4937 = vpop.f32.mrb[0].mxu0
  %v4938 = vpop.f32.mrb[0].mxu0
  %v4939 = vpop.f32.mrb[0].mxu0
  %4940 = vdwg.mxu0
  %4941 = vrot.lane.b32.xlu0 %v312, 104
  %v4942 = vpop.permute.xlu0 %4941
  %4943 = vrot.lane.b32.xlu0 %v390, 72
  %v4944 = vpop.permute.xlu0 %4943
  %v4946 = vsel %vm394, %v4942, 0
  %v4949 = vsel %vm394, %v4944, 0
  %4951 = vmatprep.subr.bf16.mxu0 0
  %4952 = vmatpush1.bf16.xpose.msra.mxu0 %v4949
  %4953 = vmatprep.subr.bf16.mxu0 0
  %4954 = vmatpush1.bf16.xpose.msra.mxu0 0
  %4955 = vmatprep.subr.bf16.mxu0 0
  %4956 = vmatpush1.bf16.xpose.msra.mxu0 0
  %4957 = vmatprep.subr.bf16.mxu0 0
  %4958 = vmatpush1.bf16.xpose.msra.mxu0 0
  %4959 = vmatprep.subr.bf16.mxu0 0
  %4960 = vmatpush1.bf16.xpose.msra.mxu0 0
  %4961 = vmatprep.subr.bf16.mxu0 0
  %4962 = vmatpush1.bf16.xpose.msra.mxu0 0
  %4963 = vmatprep.subr.bf16.mxu0 0
  %4964 = vmatpush1.bf16.xpose.msra.mxu0 0
  %4965 = vmatprep.subr.bf16.mxu0 0
  %4966 = vmatpush1.bf16.xpose.msra.mxu0 0
  %4967 = vmatprep.subr.bf16.mxu0 0
  %4968 = vmatpush1.bf16.xpose.msra.mxu0 0
  %4969 = vmatprep.subr.bf16.mxu0 0
  %4970 = vmatpush1.bf16.xpose.msra.mxu0 0
  %4971 = vmatprep.subr.bf16.mxu0 0
  %4972 = vmatpush1.bf16.xpose.msra.mxu0 0
  %4973 = vmatprep.subr.bf16.mxu0 0
  %4974 = vmatpush1.bf16.xpose.msra.mxu0 0
  %4975 = vmatprep.subr.bf16.mxu0 0
  %4976 = vmatpush1.bf16.xpose.msra.mxu0 0
  %4977 = vmatprep.subr.bf16.mxu0 0
  %4978 = vmatpush1.bf16.xpose.msra.mxu0 0
  %4979 = vmatprep.subr.bf16.mxu0 0
  %4980 = vmatpush1.bf16.xpose.msra.mxu0 0
  %4981 = vmatprep.subr.bf16.mxu0 0
  %4982 = vmatpush1.bf16.xpose.msra.mxu0 0
  %4983 = vmatprep.mubr.bf16.mxu0 0
  %4984 = vmatmul.mubr.bf16.gmra.mrb[0].mxu0 %v4946
  %v4985 = vpop.f32.mrb[0].mxu0
  %v4986 = vadd.f32 0.0, %v4985
  %v4987 = vpop.f32.mrb[0].mxu0
  %v4988 = vpop.f32.mrb[0].mxu0
  %v4989 = vpop.f32.mrb[0].mxu0
  %4990 = vdwg.mxu0
  %v4991 = vsel %vm980, %v4436, -inf
  %4992 = vmax.xlane.f32.xlu0 %v4991
  %v4993 = vpop.xlane.xlu0 %4992
  %v4994 = vsel %vm980, %v4486, -inf
  %4995 = vmax.xlane.f32.xlu0 %v4994
  %v4996 = vpop.xlane.xlu0 %4995
  %v4997 = vsel %vm980, %v4536, -inf
  %4998 = vmax.xlane.f32.xlu0 %v4997
  %v4999 = vpop.xlane.xlu0 %4998
  %v5000 = vsel %vm980, %v4586, -inf
  %5001 = vmax.xlane.f32.xlu0 %v5000
  %v5002 = vpop.xlane.xlu0 %5001
  %v5003 = vsel %vm980, %v4636, -inf
  %5004 = vmax.xlane.f32.xlu0 %v5003
  %v5005 = vpop.xlane.xlu0 %5004
  %v5006 = vsel %vm980, %v4686, -inf
  %5007 = vmax.xlane.f32.xlu0 %v5006
  %v5008 = vpop.xlane.xlu0 %5007
  %v5009 = vsel %vm980, %v4736, -inf
  %5010 = vmax.xlane.f32.xlu0 %v5009
  %v5011 = vpop.xlane.xlu0 %5010
  %v5012 = vsel %vm980, %v4786, -inf
  %5013 = vmax.xlane.f32.xlu0 %v5012
  %v5014 = vpop.xlane.xlu0 %5013
  %v5015 = vsel %vm980, %v4836, -inf
  %5016 = vmax.xlane.f32.xlu0 %v5015
  %v5017 = vpop.xlane.xlu0 %5016
  %v5018 = vsel %vm980, %v4886, -inf
  %5019 = vmax.xlane.f32.xlu0 %v5018
  %v5020 = vpop.xlane.xlu0 %5019
  %v5021 = vsel %vm980, %v4936, -inf
  %5022 = vmax.xlane.f32.xlu0 %v5021
  %v5023 = vpop.xlane.xlu0 %5022
  %v5024 = vsel %vm980, %v4986, -inf
  %5025 = vmax.xlane.f32.xlu0 %v5024
  %v5026 = vpop.xlane.xlu0 %5025
  %v5027 = vsub.f32 %v4436, %v4993
  %v5028 = vsub.f32 %v4486, %v4996
  %v5029 = vsub.f32 %v4536, %v4999
  %v5030 = vsub.f32 %v4586, %v5002
  %v5031 = vsub.f32 %v4636, %v5005
  %v5032 = vsub.f32 %v4686, %v5008
  %v5033 = vsub.f32 %v4736, %v5011
  %v5034 = vsub.f32 %v4786, %v5014
  %v5035 = vsub.f32 %v4836, %v5017
  %v5036 = vsub.f32 %v4886, %v5020
  %v5037 = vsub.f32 %v4936, %v5023
  %v5038 = vsub.f32 %v4986, %v5026
  %v5039 = vmul.f32 %v5027, 1.442695
  %v5040 = vpow.pop %v5039
  %v5041 = vmul.f32 %v5028, 1.442695
  %v5042 = vpow.pop %v5041
  %v5043 = vmul.f32 %v5029, 1.442695
  %v5044 = vpow.pop %v5043
  %v5045 = vmul.f32 %v5030, 1.442695
  %v5046 = vpow.pop %v5045
  %v5047 = vmul.f32 %v5031, 1.442695
  %v5048 = vpow.pop %v5047
  %v5049 = vmul.f32 %v5032, 1.442695
  %v5050 = vpow.pop %v5049
  %v5051 = vmul.f32 %v5033, 1.442695
  %v5052 = vpow.pop %v5051
  %v5053 = vmul.f32 %v5034, 1.442695
  %v5054 = vpow.pop %v5053
  %v5055 = vmul.f32 %v5035, 1.442695
  %v5056 = vpow.pop %v5055
  %v5057 = vmul.f32 %v5036, 1.442695
  %v5058 = vpow.pop %v5057
  %v5059 = vmul.f32 %v5037, 1.442695
  %v5060 = vpow.pop %v5059
  %v5061 = vmul.f32 %v5038, 1.442695
  %v5062 = vpow.pop %v5061
  %v5063 = vsel %vm980, %v5040, 0.0
  %5064 = vadd.xlane.f32.xlu0 %v5063
  %v5065 = vpop.xlane.xlu0 %5064
  %v5066 = vsel %vm980, %v5042, 0.0
  %5067 = vadd.xlane.f32.xlu0 %v5066
  %v5068 = vpop.xlane.xlu0 %5067
  %v5069 = vsel %vm980, %v5044, 0.0
  %5070 = vadd.xlane.f32.xlu0 %v5069
  %v5071 = vpop.xlane.xlu0 %5070
  %v5072 = vsel %vm980, %v5046, 0.0
  %5073 = vadd.xlane.f32.xlu0 %v5072
  %v5074 = vpop.xlane.xlu0 %5073
  %v5075 = vsel %vm980, %v5048, 0.0
  %5076 = vadd.xlane.f32.xlu0 %v5075
  %v5077 = vpop.xlane.xlu0 %5076
  %v5078 = vsel %vm980, %v5050, 0.0
  %5079 = vadd.xlane.f32.xlu0 %v5078
  %v5080 = vpop.xlane.xlu0 %5079
  %v5081 = vsel %vm980, %v5052, 0.0
  %5082 = vadd.xlane.f32.xlu0 %v5081
  %v5083 = vpop.xlane.xlu0 %5082
  %v5084 = vsel %vm980, %v5054, 0.0
  %5085 = vadd.xlane.f32.xlu0 %v5084
  %v5086 = vpop.xlane.xlu0 %5085
  %v5087 = vsel %vm980, %v5056, 0.0
  %5088 = vadd.xlane.f32.xlu0 %v5087
  %v5089 = vpop.xlane.xlu0 %5088
  %v5090 = vsel %vm980, %v5058, 0.0
  %5091 = vadd.xlane.f32.xlu0 %v5090
  %v5092 = vpop.xlane.xlu0 %5091
  %v5093 = vsel %vm980, %v5060, 0.0
  %5094 = vadd.xlane.f32.xlu0 %v5093
  %v5095 = vpop.xlane.xlu0 %5094
  %v5096 = vsel %vm980, %v5062, 0.0
  %5097 = vadd.xlane.f32.xlu0 %v5096
  %v5098 = vpop.xlane.xlu0 %5097
  %v5099 = vrcp.pop %v5065
  %v5100 = vrcp.pop %v5068
  %v5101 = vrcp.pop %v5071
  %v5102 = vrcp.pop %v5074
  %v5103 = vrcp.pop %v5077
  %v5104 = vrcp.pop %v5080
  %v5105 = vrcp.pop %v5083
  %v5106 = vrcp.pop %v5086
  %v5107 = vrcp.pop %v5089
  %v5108 = vrcp.pop %v5092
  %v5109 = vrcp.pop %v5095
  %v5110 = vrcp.pop %v5098
  %v5111 = vmul.f32 %v5040, %v5099
  %v5112 = vmul.f32 %v5042, %v5100
  %v5113 = vmul.f32 %v5044, %v5101
  %v5114 = vmul.f32 %v5046, %v5102
  %v5115 = vmul.f32 %v5048, %v5103
  %v5116 = vmul.f32 %v5050, %v5104
  %v5117 = vmul.f32 %v5052, %v5105
  %v5118 = vmul.f32 %v5054, %v5106
  %v5119 = vmul.f32 %v5056, %v5107
  %v5120 = vmul.f32 %v5058, %v5108
  %v5121 = vmul.f32 %v5060, %v5109
  %v5122 = vmul.f32 %v5062, %v5110
  %v5123 = vpack.c.bf16 %v5111, %v5111
  %v5124 = vpack.c.bf16 %v5112, %v5112
  %v5125 = vpack.c.bf16 %v5113, %v5113
  %v5126 = vpack.c.bf16 %v5114, %v5114
  %v5127 = vpack.c.bf16 %v5115, %v5115
  %v5128 = vpack.c.bf16 %v5116, %v5116
  %v5129 = vpack.c.bf16 %v5117, %v5117
  %v5130 = vpack.c.bf16 %v5118, %v5118
  %v5131 = vpack.c.bf16 %v5119, %v5119
  %v5132 = vpack.c.bf16 %v5120, %v5120
  %v5133 = vpack.c.bf16 %v5121, %v5121
  %v5134 = vpack.c.bf16 %v5122, %v5122
  %5135 = vrot.lane.b32.xlu0 %v379, 40
  %v5136 = vpop.permute.xlu0 %5135
  %v5138 = vsel %vm1127, %v5123, 0
  %v5141 = vsel %vm1131, %v5136, 0
  %5143 = vmatprep.subr.bf16.mxu0 0
  %5144 = vmatpush1.bf16.msra.mxu0 %v5141
  %5145 = vmatprep.subr.bf16.mxu0 0
  %5146 = vmatpush1.bf16.msra.mxu0 0
  %5147 = vmatprep.subr.bf16.mxu0 0
  %5148 = vmatpush1.bf16.msra.mxu0 0
  %5149 = vmatprep.subr.bf16.mxu0 0
  %5150 = vmatpush1.bf16.msra.mxu0 0
  %5151 = vmatprep.subr.bf16.mxu0 0
  %5152 = vmatpush1.bf16.msra.mxu0 0
  %5153 = vmatprep.subr.bf16.mxu0 0
  %5154 = vmatpush1.bf16.msra.mxu0 0
  %5155 = vmatprep.subr.bf16.mxu0 0
  %5156 = vmatpush1.bf16.msra.mxu0 0
  %5157 = vmatprep.subr.bf16.mxu0 0
  %5158 = vmatpush1.bf16.msra.mxu0 0
  %5159 = vmatprep.subr.bf16.mxu0 0
  %5160 = vmatpush1.bf16.msra.mxu0 0
  %5161 = vmatprep.subr.bf16.mxu0 0
  %5162 = vmatpush1.bf16.msra.mxu0 0
  %5163 = vmatprep.subr.bf16.mxu0 0
  %5164 = vmatpush1.bf16.msra.mxu0 0
  %5165 = vmatprep.subr.bf16.mxu0 0
  %5166 = vmatpush1.bf16.msra.mxu0 0
  %5167 = vmatprep.subr.bf16.mxu0 0
  %5168 = vmatpush1.bf16.msra.mxu0 0
  %5169 = vmatprep.subr.bf16.mxu0 0
  %5170 = vmatpush1.bf16.msra.mxu0 0
  %5171 = vmatprep.subr.bf16.mxu0 0
  %5172 = vmatpush1.bf16.msra.mxu0 0
  %5173 = vmatprep.subr.bf16.mxu0 0
  %5174 = vmatpush1.bf16.msra.mxu0 0
  %5175 = vmatprep.mubr.bf16.mxu0 0
  %5176 = vmatmul.mubr.bf16.gmra.mrb[0].mxu0 %v5138
  %v5177 = vpop.f32.mrb[0].mxu0
  %v5178 = vadd.f32 0.0, %v5177
  %v5179 = vpop.f32.mrb[0].mxu0
  %v5180 = vpop.f32.mrb[0].mxu0
  %v5181 = vpop.f32.mrb[0].mxu0
  %5182 = vdwg.mxu0
  %5183 = vrot.lane.b32.xlu0 %v380, 40
  %v5184 = vpop.permute.xlu0 %5183
  %v5186 = vsel %vm1127, %v5124, 0
  %v5189 = vsel %vm1131, %v5184, 0
  %5191 = vmatprep.subr.bf16.mxu0 0
  %5192 = vmatpush1.bf16.msra.mxu0 %v5189
  %5193 = vmatprep.subr.bf16.mxu0 0
  %5194 = vmatpush1.bf16.msra.mxu0 0
  %5195 = vmatprep.subr.bf16.mxu0 0
  %5196 = vmatpush1.bf16.msra.mxu0 0
  %5197 = vmatprep.subr.bf16.mxu0 0
  %5198 = vmatpush1.bf16.msra.mxu0 0
  %5199 = vmatprep.subr.bf16.mxu0 0
  %5200 = vmatpush1.bf16.msra.mxu0 0
  %5201 = vmatprep.subr.bf16.mxu0 0
  %5202 = vmatpush1.bf16.msra.mxu0 0
  %5203 = vmatprep.subr.bf16.mxu0 0
  %5204 = vmatpush1.bf16.msra.mxu0 0
  %5205 = vmatprep.subr.bf16.mxu0 0
  %5206 = vmatpush1.bf16.msra.mxu0 0
  %5207 = vmatprep.subr.bf16.mxu0 0
  %5208 = vmatpush1.bf16.msra.mxu0 0
  %5209 = vmatprep.subr.bf16.mxu0 0
  %5210 = vmatpush1.bf16.msra.mxu0 0
  %5211 = vmatprep.subr.bf16.mxu0 0
  %5212 = vmatpush1.bf16.msra.mxu0 0
  %5213 = vmatprep.subr.bf16.mxu0 0
  %5214 = vmatpush1.bf16.msra.mxu0 0
  %5215 = vmatprep.subr.bf16.mxu0 0
  %5216 = vmatpush1.bf16.msra.mxu0 0
  %5217 = vmatprep.subr.bf16.mxu0 0
  %5218 = vmatpush1.bf16.msra.mxu0 0
  %5219 = vmatprep.subr.bf16.mxu0 0
  %5220 = vmatpush1.bf16.msra.mxu0 0
  %5221 = vmatprep.subr.bf16.mxu0 0
  %5222 = vmatpush1.bf16.msra.mxu0 0
  %5223 = vmatprep.mubr.bf16.mxu0 0
  %5224 = vmatmul.mubr.bf16.gmra.mrb[0].mxu0 %v5186
  %v5225 = vpop.f32.mrb[0].mxu0
  %v5226 = vadd.f32 0.0, %v5225
  %v5227 = vpop.f32.mrb[0].mxu0
  %v5228 = vpop.f32.mrb[0].mxu0
  %v5229 = vpop.f32.mrb[0].mxu0
  %5230 = vdwg.mxu0
  %5231 = vrot.lane.b32.xlu0 %v381, 40
  %v5232 = vpop.permute.xlu0 %5231
  %v5234 = vsel %vm1127, %v5125, 0
  %v5237 = vsel %vm1131, %v5232, 0
  %5239 = vmatprep.subr.bf16.mxu0 0
  %5240 = vmatpush1.bf16.msra.mxu0 %v5237
  %5241 = vmatprep.subr.bf16.mxu0 0
  %5242 = vmatpush1.bf16.msra.mxu0 0
  %5243 = vmatprep.subr.bf16.mxu0 0
  %5244 = vmatpush1.bf16.msra.mxu0 0
  %5245 = vmatprep.subr.bf16.mxu0 0
  %5246 = vmatpush1.bf16.msra.mxu0 0
  %5247 = vmatprep.subr.bf16.mxu0 0
  %5248 = vmatpush1.bf16.msra.mxu0 0
  %5249 = vmatprep.subr.bf16.mxu0 0
  %5250 = vmatpush1.bf16.msra.mxu0 0
  %5251 = vmatprep.subr.bf16.mxu0 0
  %5252 = vmatpush1.bf16.msra.mxu0 0
  %5253 = vmatprep.subr.bf16.mxu0 0
  %5254 = vmatpush1.bf16.msra.mxu0 0
  %5255 = vmatprep.subr.bf16.mxu0 0
  %5256 = vmatpush1.bf16.msra.mxu0 0
  %5257 = vmatprep.subr.bf16.mxu0 0
  %5258 = vmatpush1.bf16.msra.mxu0 0
  %5259 = vmatprep.subr.bf16.mxu0 0
  %5260 = vmatpush1.bf16.msra.mxu0 0
  %5261 = vmatprep.subr.bf16.mxu0 0
  %5262 = vmatpush1.bf16.msra.mxu0 0
  %5263 = vmatprep.subr.bf16.mxu0 0
  %5264 = vmatpush1.bf16.msra.mxu0 0
  %5265 = vmatprep.subr.bf16.mxu0 0
  %5266 = vmatpush1.bf16.msra.mxu0 0
  %5267 = vmatprep.subr.bf16.mxu0 0
  %5268 = vmatpush1.bf16.msra.mxu0 0
  %5269 = vmatprep.subr.bf16.mxu0 0
  %5270 = vmatpush1.bf16.msra.mxu0 0
  %5271 = vmatprep.mubr.bf16.mxu0 0
  %5272 = vmatmul.mubr.bf16.gmra.mrb[0].mxu0 %v5234
  %v5273 = vpop.f32.mrb[0].mxu0
  %v5274 = vadd.f32 0.0, %v5273
  %v5275 = vpop.f32.mrb[0].mxu0
  %v5276 = vpop.f32.mrb[0].mxu0
  %v5277 = vpop.f32.mrb[0].mxu0
  %5278 = vdwg.mxu0
  %5279 = vrot.lane.b32.xlu0 %v382, 40
  %v5280 = vpop.permute.xlu0 %5279
  %v5282 = vsel %vm1127, %v5126, 0
  %v5285 = vsel %vm1131, %v5280, 0
  %5287 = vmatprep.subr.bf16.mxu0 0
  %5288 = vmatpush1.bf16.msra.mxu0 %v5285
  %5289 = vmatprep.subr.bf16.mxu0 0
  %5290 = vmatpush1.bf16.msra.mxu0 0
  %5291 = vmatprep.subr.bf16.mxu0 0
  %5292 = vmatpush1.bf16.msra.mxu0 0
  %5293 = vmatprep.subr.bf16.mxu0 0
  %5294 = vmatpush1.bf16.msra.mxu0 0
  %5295 = vmatprep.subr.bf16.mxu0 0
  %5296 = vmatpush1.bf16.msra.mxu0 0
  %5297 = vmatprep.subr.bf16.mxu0 0
  %5298 = vmatpush1.bf16.msra.mxu0 0
  %5299 = vmatprep.subr.bf16.mxu0 0
  %5300 = vmatpush1.bf16.msra.mxu0 0
  %5301 = vmatprep.subr.bf16.mxu0 0
  %5302 = vmatpush1.bf16.msra.mxu0 0
  %5303 = vmatprep.subr.bf16.mxu0 0
  %5304 = vmatpush1.bf16.msra.mxu0 0
  %5305 = vmatprep.subr.bf16.mxu0 0
  %5306 = vmatpush1.bf16.msra.mxu0 0
  %5307 = vmatprep.subr.bf16.mxu0 0
  %5308 = vmatpush1.bf16.msra.mxu0 0
  %5309 = vmatprep.subr.bf16.mxu0 0
  %5310 = vmatpush1.bf16.msra.mxu0 0
  %5311 = vmatprep.subr.bf16.mxu0 0
  %5312 = vmatpush1.bf16.msra.mxu0 0
  %5313 = vmatprep.subr.bf16.mxu0 0
  %5314 = vmatpush1.bf16.msra.mxu0 0
  %5315 = vmatprep.subr.bf16.mxu0 0
  %5316 = vmatpush1.bf16.msra.mxu0 0
  %5317 = vmatprep.subr.bf16.mxu0 0
  %5318 = vmatpush1.bf16.msra.mxu0 0
  %5319 = vmatprep.mubr.bf16.mxu0 0
  %5320 = vmatmul.mubr.bf16.gmra.mrb[0].mxu0 %v5282
  %v5321 = vpop.f32.mrb[0].mxu0
  %v5322 = vadd.f32 0.0, %v5321
  %v5323 = vpop.f32.mrb[0].mxu0
  %v5324 = vpop.f32.mrb[0].mxu0
  %v5325 = vpop.f32.mrb[0].mxu0
  %5326 = vdwg.mxu0
  %5327 = vrot.lane.b32.xlu0 %v383, 40
  %v5328 = vpop.permute.xlu0 %5327
  %v5330 = vsel %vm1127, %v5127, 0
  %v5333 = vsel %vm1131, %v5328, 0
  %5335 = vmatprep.subr.bf16.mxu0 0
  %5336 = vmatpush1.bf16.msra.mxu0 %v5333
  %5337 = vmatprep.subr.bf16.mxu0 0
  %5338 = vmatpush1.bf16.msra.mxu0 0
  %5339 = vmatprep.subr.bf16.mxu0 0
  %5340 = vmatpush1.bf16.msra.mxu0 0
  %5341 = vmatprep.subr.bf16.mxu0 0
  %5342 = vmatpush1.bf16.msra.mxu0 0
  %5343 = vmatprep.subr.bf16.mxu0 0
  %5344 = vmatpush1.bf16.msra.mxu0 0
  %5345 = vmatprep.subr.bf16.mxu0 0
  %5346 = vmatpush1.bf16.msra.mxu0 0
  %5347 = vmatprep.subr.bf16.mxu0 0
  %5348 = vmatpush1.bf16.msra.mxu0 0
  %5349 = vmatprep.subr.bf16.mxu0 0
  %5350 = vmatpush1.bf16.msra.mxu0 0
  %5351 = vmatprep.subr.bf16.mxu0 0
  %5352 = vmatpush1.bf16.msra.mxu0 0
  %5353 = vmatprep.subr.bf16.mxu0 0
  %5354 = vmatpush1.bf16.msra.mxu0 0
  %5355 = vmatprep.subr.bf16.mxu0 0
  %5356 = vmatpush1.bf16.msra.mxu0 0
  %5357 = vmatprep.subr.bf16.mxu0 0
  %5358 = vmatpush1.bf16.msra.mxu0 0
  %5359 = vmatprep.subr.bf16.mxu0 0
  %5360 = vmatpush1.bf16.msra.mxu0 0
  %5361 = vmatprep.subr.bf16.mxu0 0
  %5362 = vmatpush1.bf16.msra.mxu0 0
  %5363 = vmatprep.subr.bf16.mxu0 0
  %5364 = vmatpush1.bf16.msra.mxu0 0
  %5365 = vmatprep.subr.bf16.mxu0 0
  %5366 = vmatpush1.bf16.msra.mxu0 0
  %5367 = vmatprep.mubr.bf16.mxu0 0
  %5368 = vmatmul.mubr.bf16.gmra.mrb[0].mxu0 %v5330
  %v5369 = vpop.f32.mrb[0].mxu0
  %v5370 = vadd.f32 0.0, %v5369
  %v5371 = vpop.f32.mrb[0].mxu0
  %v5372 = vpop.f32.mrb[0].mxu0
  %v5373 = vpop.f32.mrb[0].mxu0
  %5374 = vdwg.mxu0
  %5375 = vrot.lane.b32.xlu0 %v384, 40
  %v5376 = vpop.permute.xlu0 %5375
  %v5378 = vsel %vm1127, %v5128, 0
  %v5381 = vsel %vm1131, %v5376, 0
  %5383 = vmatprep.subr.bf16.mxu0 0
  %5384 = vmatpush1.bf16.msra.mxu0 %v5381
  %5385 = vmatprep.subr.bf16.mxu0 0
  %5386 = vmatpush1.bf16.msra.mxu0 0
  %5387 = vmatprep.subr.bf16.mxu0 0
  %5388 = vmatpush1.bf16.msra.mxu0 0
  %5389 = vmatprep.subr.bf16.mxu0 0
  %5390 = vmatpush1.bf16.msra.mxu0 0
  %5391 = vmatprep.subr.bf16.mxu0 0
  %5392 = vmatpush1.bf16.msra.mxu0 0
  %5393 = vmatprep.subr.bf16.mxu0 0
  %5394 = vmatpush1.bf16.msra.mxu0 0
  %5395 = vmatprep.subr.bf16.mxu0 0
  %5396 = vmatpush1.bf16.msra.mxu0 0
  %5397 = vmatprep.subr.bf16.mxu0 0
  %5398 = vmatpush1.bf16.msra.mxu0 0
  %5399 = vmatprep.subr.bf16.mxu0 0
  %5400 = vmatpush1.bf16.msra.mxu0 0
  %5401 = vmatprep.subr.bf16.mxu0 0
  %5402 = vmatpush1.bf16.msra.mxu0 0
  %5403 = vmatprep.subr.bf16.mxu0 0
  %5404 = vmatpush1.bf16.msra.mxu0 0
  %5405 = vmatprep.subr.bf16.mxu0 0
  %5406 = vmatpush1.bf16.msra.mxu0 0
  %5407 = vmatprep.subr.bf16.mxu0 0
  %5408 = vmatpush1.bf16.msra.mxu0 0
  %5409 = vmatprep.subr.bf16.mxu0 0
  %5410 = vmatpush1.bf16.msra.mxu0 0
  %5411 = vmatprep.subr.bf16.mxu0 0
  %5412 = vmatpush1.bf16.msra.mxu0 0
  %5413 = vmatprep.subr.bf16.mxu0 0
  %5414 = vmatpush1.bf16.msra.mxu0 0
  %5415 = vmatprep.mubr.bf16.mxu0 0
  %5416 = vmatmul.mubr.bf16.gmra.mrb[0].mxu0 %v5378
  %v5417 = vpop.f32.mrb[0].mxu0
  %v5418 = vadd.f32 0.0, %v5417
  %v5419 = vpop.f32.mrb[0].mxu0
  %v5420 = vpop.f32.mrb[0].mxu0
  %v5421 = vpop.f32.mrb[0].mxu0
  %5422 = vdwg.mxu0
  %5423 = vrot.lane.b32.xlu0 %v385, 40
  %v5424 = vpop.permute.xlu0 %5423
  %v5426 = vsel %vm1127, %v5129, 0
  %v5429 = vsel %vm1131, %v5424, 0
  %5431 = vmatprep.subr.bf16.mxu0 0
  %5432 = vmatpush1.bf16.msra.mxu0 %v5429
  %5433 = vmatprep.subr.bf16.mxu0 0
  %5434 = vmatpush1.bf16.msra.mxu0 0
  %5435 = vmatprep.subr.bf16.mxu0 0
  %5436 = vmatpush1.bf16.msra.mxu0 0
  %5437 = vmatprep.subr.bf16.mxu0 0
  %5438 = vmatpush1.bf16.msra.mxu0 0
  %5439 = vmatprep.subr.bf16.mxu0 0
  %5440 = vmatpush1.bf16.msra.mxu0 0
  %5441 = vmatprep.subr.bf16.mxu0 0
  %5442 = vmatpush1.bf16.msra.mxu0 0
  %5443 = vmatprep.subr.bf16.mxu0 0
  %5444 = vmatpush1.bf16.msra.mxu0 0
  %5445 = vmatprep.subr.bf16.mxu0 0
  %5446 = vmatpush1.bf16.msra.mxu0 0
  %5447 = vmatprep.subr.bf16.mxu0 0
  %5448 = vmatpush1.bf16.msra.mxu0 0
  %5449 = vmatprep.subr.bf16.mxu0 0
  %5450 = vmatpush1.bf16.msra.mxu0 0
  %5451 = vmatprep.subr.bf16.mxu0 0
  %5452 = vmatpush1.bf16.msra.mxu0 0
  %5453 = vmatprep.subr.bf16.mxu0 0
  %5454 = vmatpush1.bf16.msra.mxu0 0
  %5455 = vmatprep.subr.bf16.mxu0 0
  %5456 = vmatpush1.bf16.msra.mxu0 0
  %5457 = vmatprep.subr.bf16.mxu0 0
  %5458 = vmatpush1.bf16.msra.mxu0 0
  %5459 = vmatprep.subr.bf16.mxu0 0
  %5460 = vmatpush1.bf16.msra.mxu0 0
  %5461 = vmatprep.subr.bf16.mxu0 0
  %5462 = vmatpush1.bf16.msra.mxu0 0
  %5463 = vmatprep.mubr.bf16.mxu0 0
  %5464 = vmatmul.mubr.bf16.gmra.mrb[0].mxu0 %v5426
  %v5465 = vpop.f32.mrb[0].mxu0
  %v5466 = vadd.f32 0.0, %v5465
  %v5467 = vpop.f32.mrb[0].mxu0
  %v5468 = vpop.f32.mrb[0].mxu0
  %v5469 = vpop.f32.mrb[0].mxu0
  %5470 = vdwg.mxu0
  %5471 = vrot.lane.b32.xlu0 %v386, 40
  %v5472 = vpop.permute.xlu0 %5471
  %v5474 = vsel %vm1127, %v5130, 0
  %v5477 = vsel %vm1131, %v5472, 0
  %5479 = vmatprep.subr.bf16.mxu0 0
  %5480 = vmatpush1.bf16.msra.mxu0 %v5477
  %5481 = vmatprep.subr.bf16.mxu0 0
  %5482 = vmatpush1.bf16.msra.mxu0 0
  %5483 = vmatprep.subr.bf16.mxu0 0
  %5484 = vmatpush1.bf16.msra.mxu0 0
  %5485 = vmatprep.subr.bf16.mxu0 0
  %5486 = vmatpush1.bf16.msra.mxu0 0
  %5487 = vmatprep.subr.bf16.mxu0 0
  %5488 = vmatpush1.bf16.msra.mxu0 0
  %5489 = vmatprep.subr.bf16.mxu0 0
  %5490 = vmatpush1.bf16.msra.mxu0 0
  %5491 = vmatprep.subr.bf16.mxu0 0
  %5492 = vmatpush1.bf16.msra.mxu0 0
  %5493 = vmatprep.subr.bf16.mxu0 0
  %5494 = vmatpush1.bf16.msra.mxu0 0
  %5495 = vmatprep.subr.bf16.mxu0 0
  %5496 = vmatpush1.bf16.msra.mxu0 0
  %5497 = vmatprep.subr.bf16.mxu0 0
  %5498 = vmatpush1.bf16.msra.mxu0 0
  %5499 = vmatprep.subr.bf16.mxu0 0
  %5500 = vmatpush1.bf16.msra.mxu0 0
  %5501 = vmatprep.subr.bf16.mxu0 0
  %5502 = vmatpush1.bf16.msra.mxu0 0
  %5503 = vmatprep.subr.bf16.mxu0 0
  %5504 = vmatpush1.bf16.msra.mxu0 0
  %5505 = vmatprep.subr.bf16.mxu0 0
  %5506 = vmatpush1.bf16.msra.mxu0 0
  %5507 = vmatprep.subr.bf16.mxu0 0
  %5508 = vmatpush1.bf16.msra.mxu0 0
  %5509 = vmatprep.subr.bf16.mxu0 0
  %5510 = vmatpush1.bf16.msra.mxu0 0
  %5511 = vmatprep.mubr.bf16.mxu0 0
  %5512 = vmatmul.mubr.bf16.gmra.mrb[0].mxu0 %v5474
  %v5513 = vpop.f32.mrb[0].mxu0
  %v5514 = vadd.f32 0.0, %v5513
  %v5515 = vpop.f32.mrb[0].mxu0
  %v5516 = vpop.f32.mrb[0].mxu0
  %v5517 = vpop.f32.mrb[0].mxu0
  %5518 = vdwg.mxu0
  %5519 = vrot.lane.b32.xlu0 %v387, 40
  %v5520 = vpop.permute.xlu0 %5519
  %v5522 = vsel %vm1127, %v5131, 0
  %v5525 = vsel %vm1131, %v5520, 0
  %5527 = vmatprep.subr.bf16.mxu0 0
  %5528 = vmatpush1.bf16.msra.mxu0 %v5525
  %5529 = vmatprep.subr.bf16.mxu0 0
  %5530 = vmatpush1.bf16.msra.mxu0 0
  %5531 = vmatprep.subr.bf16.mxu0 0
  %5532 = vmatpush1.bf16.msra.mxu0 0
  %5533 = vmatprep.subr.bf16.mxu0 0
  %5534 = vmatpush1.bf16.msra.mxu0 0
  %5535 = vmatprep.subr.bf16.mxu0 0
  %5536 = vmatpush1.bf16.msra.mxu0 0
  %5537 = vmatprep.subr.bf16.mxu0 0
  %5538 = vmatpush1.bf16.msra.mxu0 0
  %5539 = vmatprep.subr.bf16.mxu0 0
  %5540 = vmatpush1.bf16.msra.mxu0 0
  %5541 = vmatprep.subr.bf16.mxu0 0
  %5542 = vmatpush1.bf16.msra.mxu0 0
  %5543 = vmatprep.subr.bf16.mxu0 0
  %5544 = vmatpush1.bf16.msra.mxu0 0
  %5545 = vmatprep.subr.bf16.mxu0 0
  %5546 = vmatpush1.bf16.msra.mxu0 0
  %5547 = vmatprep.subr.bf16.mxu0 0
  %5548 = vmatpush1.bf16.msra.mxu0 0
  %5549 = vmatprep.subr.bf16.mxu0 0
  %5550 = vmatpush1.bf16.msra.mxu0 0
  %5551 = vmatprep.subr.bf16.mxu0 0
  %5552 = vmatpush1.bf16.msra.mxu0 0
  %5553 = vmatprep.subr.bf16.mxu0 0
  %5554 = vmatpush1.bf16.msra.mxu0 0
  %5555 = vmatprep.subr.bf16.mxu0 0
  %5556 = vmatpush1.bf16.msra.mxu0 0
  %5557 = vmatprep.subr.bf16.mxu0 0
  %5558 = vmatpush1.bf16.msra.mxu0 0
  %5559 = vmatprep.mubr.bf16.mxu0 0
  %5560 = vmatmul.mubr.bf16.gmra.mrb[0].mxu0 %v5522
  %v5561 = vpop.f32.mrb[0].mxu0
  %v5562 = vadd.f32 0.0, %v5561
  %v5563 = vpop.f32.mrb[0].mxu0
  %v5564 = vpop.f32.mrb[0].mxu0
  %v5565 = vpop.f32.mrb[0].mxu0
  %5566 = vdwg.mxu0
  %5567 = vrot.lane.b32.xlu0 %v388, 40
  %v5568 = vpop.permute.xlu0 %5567
  %v5570 = vsel %vm1127, %v5132, 0
  %v5573 = vsel %vm1131, %v5568, 0
  %5575 = vmatprep.subr.bf16.mxu0 0
  %5576 = vmatpush1.bf16.msra.mxu0 %v5573
  %5577 = vmatprep.subr.bf16.mxu0 0
  %5578 = vmatpush1.bf16.msra.mxu0 0
  %5579 = vmatprep.subr.bf16.mxu0 0
  %5580 = vmatpush1.bf16.msra.mxu0 0
  %5581 = vmatprep.subr.bf16.mxu0 0
  %5582 = vmatpush1.bf16.msra.mxu0 0
  %5583 = vmatprep.subr.bf16.mxu0 0
  %5584 = vmatpush1.bf16.msra.mxu0 0
  %5585 = vmatprep.subr.bf16.mxu0 0
  %5586 = vmatpush1.bf16.msra.mxu0 0
  %5587 = vmatprep.subr.bf16.mxu0 0
  %5588 = vmatpush1.bf16.msra.mxu0 0
  %5589 = vmatprep.subr.bf16.mxu0 0
  %5590 = vmatpush1.bf16.msra.mxu0 0
  %5591 = vmatprep.subr.bf16.mxu0 0
  %5592 = vmatpush1.bf16.msra.mxu0 0
  %5593 = vmatprep.subr.bf16.mxu0 0
  %5594 = vmatpush1.bf16.msra.mxu0 0
  %5595 = vmatprep.subr.bf16.mxu0 0
  %5596 = vmatpush1.bf16.msra.mxu0 0
  %5597 = vmatprep.subr.bf16.mxu0 0
  %5598 = vmatpush1.bf16.msra.mxu0 0
  %5599 = vmatprep.subr.bf16.mxu0 0
  %5600 = vmatpush1.bf16.msra.mxu0 0
  %5601 = vmatprep.subr.bf16.mxu0 0
  %5602 = vmatpush1.bf16.msra.mxu0 0
  %5603 = vmatprep.subr.bf16.mxu0 0
  %5604 = vmatpush1.bf16.msra.mxu0 0
  %5605 = vmatprep.subr.bf16.mxu0 0
  %5606 = vmatpush1.bf16.msra.mxu0 0
  %5607 = vmatprep.mubr.bf16.mxu0 0
  %5608 = vmatmul.mubr.bf16.gmra.mrb[0].mxu0 %v5570
  %v5609 = vpop.f32.mrb[0].mxu0
  %v5610 = vadd.f32 0.0, %v5609
  %v5611 = vpop.f32.mrb[0].mxu0
  %v5612 = vpop.f32.mrb[0].mxu0
  %v5613 = vpop.f32.mrb[0].mxu0
  %5614 = vdwg.mxu0
  %5615 = vrot.lane.b32.xlu0 %v389, 40
  %v5616 = vpop.permute.xlu0 %5615
  %v5618 = vsel %vm1127, %v5133, 0
  %v5621 = vsel %vm1131, %v5616, 0
  %5623 = vmatprep.subr.bf16.mxu0 0
  %5624 = vmatpush1.bf16.msra.mxu0 %v5621
  %5625 = vmatprep.subr.bf16.mxu0 0
  %5626 = vmatpush1.bf16.msra.mxu0 0
  %5627 = vmatprep.subr.bf16.mxu0 0
  %5628 = vmatpush1.bf16.msra.mxu0 0
  %5629 = vmatprep.subr.bf16.mxu0 0
  %5630 = vmatpush1.bf16.msra.mxu0 0
  %5631 = vmatprep.subr.bf16.mxu0 0
  %5632 = vmatpush1.bf16.msra.mxu0 0
  %5633 = vmatprep.subr.bf16.mxu0 0
  %5634 = vmatpush1.bf16.msra.mxu0 0
  %5635 = vmatprep.subr.bf16.mxu0 0
  %5636 = vmatpush1.bf16.msra.mxu0 0
  %5637 = vmatprep.subr.bf16.mxu0 0
  %5638 = vmatpush1.bf16.msra.mxu0 0
  %5639 = vmatprep.subr.bf16.mxu0 0
  %5640 = vmatpush1.bf16.msra.mxu0 0
  %5641 = vmatprep.subr.bf16.mxu0 0
  %5642 = vmatpush1.bf16.msra.mxu0 0
  %5643 = vmatprep.subr.bf16.mxu0 0
  %5644 = vmatpush1.bf16.msra.mxu0 0
  %5645 = vmatprep.subr.bf16.mxu0 0
  %5646 = vmatpush1.bf16.msra.mxu0 0
  %5647 = vmatprep.subr.bf16.mxu0 0
  %5648 = vmatpush1.bf16.msra.mxu0 0
  %5649 = vmatprep.subr.bf16.mxu0 0
  %5650 = vmatpush1.bf16.msra.mxu0 0
  %5651 = vmatprep.subr.bf16.mxu0 0
  %5652 = vmatpush1.bf16.msra.mxu0 0
  %5653 = vmatprep.subr.bf16.mxu0 0
  %5654 = vmatpush1.bf16.msra.mxu0 0
  %5655 = vmatprep.mubr.bf16.mxu0 0
  %5656 = vmatmul.mubr.bf16.gmra.mrb[0].mxu0 %v5618
  %v5657 = vpop.f32.mrb[0].mxu0
  %v5658 = vadd.f32 0.0, %v5657
  %v5659 = vpop.f32.mrb[0].mxu0
  %v5660 = vpop.f32.mrb[0].mxu0
  %v5661 = vpop.f32.mrb[0].mxu0
  %5662 = vdwg.mxu0
  %5663 = vrot.lane.b32.xlu0 %v390, 40
  %v5664 = vpop.permute.xlu0 %5663
  %v5666 = vsel %vm1127, %v5134, 0
  %v5669 = vsel %vm1131, %v5664, 0
  %5671 = vmatprep.subr.bf16.mxu0 0
  %5672 = vmatpush1.bf16.msra.mxu0 %v5669
  %5673 = vmatprep.subr.bf16.mxu0 0
  %5674 = vmatpush1.bf16.msra.mxu0 0
  %5675 = vmatprep.subr.bf16.mxu0 0
  %5676 = vmatpush1.bf16.msra.mxu0 0
  %5677 = vmatprep.subr.bf16.mxu0 0
  %5678 = vmatpush1.bf16.msra.mxu0 0
  %5679 = vmatprep.subr.bf16.mxu0 0
  %5680 = vmatpush1.bf16.msra.mxu0 0
  %5681 = vmatprep.subr.bf16.mxu0 0
  %5682 = vmatpush1.bf16.msra.mxu0 0
  %5683 = vmatprep.subr.bf16.mxu0 0
  %5684 = vmatpush1.bf16.msra.mxu0 0
  %5685 = vmatprep.subr.bf16.mxu0 0
  %5686 = vmatpush1.bf16.msra.mxu0 0
  %5687 = vmatprep.subr.bf16.mxu0 0
  %5688 = vmatpush1.bf16.msra.mxu0 0
  %5689 = vmatprep.subr.bf16.mxu0 0
  %5690 = vmatpush1.bf16.msra.mxu0 0
  %5691 = vmatprep.subr.bf16.mxu0 0
  %5692 = vmatpush1.bf16.msra.mxu0 0
  %5693 = vmatprep.subr.bf16.mxu0 0
  %5694 = vmatpush1.bf16.msra.mxu0 0
  %5695 = vmatprep.subr.bf16.mxu0 0
  %5696 = vmatpush1.bf16.msra.mxu0 0
  %5697 = vmatprep.subr.bf16.mxu0 0
  %5698 = vmatpush1.bf16.msra.mxu0 0
  %5699 = vmatprep.subr.bf16.mxu0 0
  %5700 = vmatpush1.bf16.msra.mxu0 0
  %5701 = vmatprep.subr.bf16.mxu0 0
  %5702 = vmatpush1.bf16.msra.mxu0 0
  %5703 = vmatprep.mubr.bf16.mxu0 0
  %5704 = vmatmul.mubr.bf16.gmra.mrb[0].mxu0 %v5666
  %v5705 = vpop.f32.mrb[0].mxu0
  %v5706 = vadd.f32 0.0, %v5705
  %v5707 = vpop.f32.mrb[0].mxu0
  %v5708 = vpop.f32.mrb[0].mxu0
  %v5709 = vpop.f32.mrb[0].mxu0
  %5710 = vdwg.mxu0
  %v5711 = vpack.c.bf16 %v5178, %v5178
  %v5712 = vpack.c.bf16 %v5226, %v5226
  %v5713 = vpack.c.bf16 %v5274, %v5274
  %v5714 = vpack.c.bf16 %v5322, %v5322
  %v5715 = vpack.c.bf16 %v5370, %v5370
  %v5716 = vpack.c.bf16 %v5418, %v5418
  %v5717 = vpack.c.bf16 %v5466, %v5466
  %v5718 = vpack.c.bf16 %v5514, %v5514
  %v5719 = vpack.c.bf16 %v5562, %v5562
  %v5720 = vpack.c.bf16 %v5610, %v5610
  %v5721 = vpack.c.bf16 %v5658, %v5658
  %v5722 = vpack.c.bf16 %v5706, %v5706
  %5735 = vrot.lane.b32.xlu0 %v3047, 8
  %v5736 = vpop.permute.xlu0 %5735
  %5737 = vrot.lane.b32.xlu0 %v3048, 8
  %v5738 = vpop.permute.xlu0 %5737
  %5739 = vrot.lane.b32.xlu0 %v3049, 8
  %v5740 = vpop.permute.xlu0 %5739
  %5741 = vrot.lane.b32.xlu0 %v3050, 8
  %v5742 = vpop.permute.xlu0 %5741
  %5743 = vrot.lane.b32.xlu0 %v3051, 8
  %v5744 = vpop.permute.xlu0 %5743
  %5745 = vrot.lane.b32.xlu0 %v3052, 8
  %v5746 = vpop.permute.xlu0 %5745
  %5747 = vrot.lane.b32.xlu0 %v3053, 8
  %v5748 = vpop.permute.xlu0 %5747
  %5749 = vrot.lane.b32.xlu0 %v3054, 8
  %v5750 = vpop.permute.xlu0 %5749
  %5751 = vrot.lane.b32.xlu0 %v3055, 8
  %v5752 = vpop.permute.xlu0 %5751
  %5753 = vrot.lane.b32.xlu0 %v3056, 8
  %v5754 = vpop.permute.xlu0 %5753
  %5755 = vrot.lane.b32.xlu0 %v3057, 8
  %v5756 = vpop.permute.xlu0 %5755
  %5757 = vrot.lane.b32.xlu0 %v3058, 8
  %v5758 = vpop.permute.xlu0 %5757
  %5771 = vrot.lane.b32.xlu0 %v4379, 16
  %v5772 = vpop.permute.xlu0 %5771
  %5773 = vrot.lane.b32.xlu0 %v4380, 16
  %v5774 = vpop.permute.xlu0 %5773
  %5775 = vrot.lane.b32.xlu0 %v4381, 16
  %v5776 = vpop.permute.xlu0 %5775
  %5777 = vrot.lane.b32.xlu0 %v4382, 16
  %v5778 = vpop.permute.xlu0 %5777
  %5779 = vrot.lane.b32.xlu0 %v4383, 16
  %v5780 = vpop.permute.xlu0 %5779
  %5781 = vrot.lane.b32.xlu0 %v4384, 16
  %v5782 = vpop.permute.xlu0 %5781
  %5783 = vrot.lane.b32.xlu0 %v4385, 16
  %v5784 = vpop.permute.xlu0 %5783
  %5785 = vrot.lane.b32.xlu0 %v4386, 16
  %v5786 = vpop.permute.xlu0 %5785
  %5787 = vrot.lane.b32.xlu0 %v4387, 16
  %v5788 = vpop.permute.xlu0 %5787
  %5789 = vrot.lane.b32.xlu0 %v4388, 16
  %v5790 = vpop.permute.xlu0 %5789
  %5791 = vrot.lane.b32.xlu0 %v4389, 16
  %v5792 = vpop.permute.xlu0 %5791
  %5793 = vrot.lane.b32.xlu0 %v4390, 16
  %v5794 = vpop.permute.xlu0 %5793
  %5807 = vrot.lane.b32.xlu0 %v5711, 24
  %v5808 = vpop.permute.xlu0 %5807
  %5809 = vrot.lane.b32.xlu0 %v5712, 24
  %v5810 = vpop.permute.xlu0 %5809
  %5811 = vrot.lane.b32.xlu0 %v5713, 24
  %v5812 = vpop.permute.xlu0 %5811
  %5813 = vrot.lane.b32.xlu0 %v5714, 24
  %v5814 = vpop.permute.xlu0 %5813
  %5815 = vrot.lane.b32.xlu0 %v5715, 24
  %v5816 = vpop.permute.xlu0 %5815
  %5817 = vrot.lane.b32.xlu0 %v5716, 24
  %v5818 = vpop.permute.xlu0 %5817
  %5819 = vrot.lane.b32.xlu0 %v5717, 24
  %v5820 = vpop.permute.xlu0 %5819
  %5821 = vrot.lane.b32.xlu0 %v5718, 24
  %v5822 = vpop.permute.xlu0 %5821
  %5823 = vrot.lane.b32.xlu0 %v5719, 24
  %v5824 = vpop.permute.xlu0 %5823
  %5825 = vrot.lane.b32.xlu0 %v5720, 24
  %v5826 = vpop.permute.xlu0 %5825
  %5827 = vrot.lane.b32.xlu0 %v5721, 24
  %v5828 = vpop.permute.xlu0 %5827
  %5829 = vrot.lane.b32.xlu0 %v5722, 24
  %v5830 = vpop.permute.xlu0 %5829
  %v5833 = vsel %vm394, %v1703, %v5736
  %v5836 = vsel %vm394, %v1704, %v5738
  %v5839 = vsel %vm394, %v1705, %v5740
  %v5842 = vsel %vm394, %v1706, %v5742
  %v5845 = vsel %vm394, %v1707, %v5744
  %v5848 = vsel %vm394, %v1708, %v5746
  %v5851 = vsel %vm394, %v1709, %v5748
  %v5854 = vsel %vm394, %v1710, %v5750
  %v5857 = vsel %vm394, %v1711, %v5752
  %v5860 = vsel %vm394, %v1712, %v5754
  %v5863 = vsel %vm394, %v1713, %v5756
  %v5866 = vsel %vm394, %v1714, %v5758
  %vm5867 = vcmask 130048
  %v5869 = vsel %vm5867, %v5833, %v5772
  %v5871 = vsel %vm5867, %v5836, %v5774
  %v5873 = vsel %vm5867, %v5839, %v5776
  %v5875 = vsel %vm5867, %v5842, %v5778
  %v5877 = vsel %vm5867, %v5845, %v5780
  %v5879 = vsel %vm5867, %v5848, %v5782
  %v5881 = vsel %vm5867, %v5851, %v5784
  %v5883 = vsel %vm5867, %v5854, %v5786
  %v5885 = vsel %vm5867, %v5857, %v5788
  %v5887 = vsel %vm5867, %v5860, %v5790
  %v5889 = vsel %vm5867, %v5863, %v5792
  %v5891 = vsel %vm5867, %v5866, %v5794
  %vm5892 = vcmask 195584
  %v5894 = vsel %vm5892, %v5869, %v5808
  %v5896 = vsel %vm5892, %v5871, %v5810
  %v5898 = vsel %vm5892, %v5873, %v5812
  %v5900 = vsel %vm5892, %v5875, %v5814
  %v5902 = vsel %vm5892, %v5877, %v5816
  %v5904 = vsel %vm5892, %v5879, %v5818
  %v5906 = vsel %vm5892, %v5881, %v5820
  %v5908 = vsel %vm5892, %v5883, %v5822
  %v5910 = vsel %vm5892, %v5885, %v5824
  %v5912 = vsel %vm5892, %v5887, %v5826
  %v5914 = vsel %vm5892, %v5889, %v5828
  %v5916 = vsel %vm5892, %v5891, %v5830
  %v5917 = vld [vmem:[%s3] sm:$0xf]
  %v5918 = vld [vmem:[%s3 + $0x4] sm:$0xf]
  %v5919 = vld [vmem:[%s3 + $0x8] sm:$0xf]
  %v5920 = vld [vmem:[%s3 + $0xc] sm:$0xf]
  %v5921 = vld [vmem:[%s4] sm:$0x1]
  %v5923 = vlaneseq
  %v5924 = vshrl.u32 %v5923, 7
  %v5925 = vsub.s32 0, %v5924
  %v5926 = vrot.slane %v5921, %v5925
  %v5940 = vcombine.low %v5894, %v5896
  %v5941 = vcombine.low %v5898, %v5900
  %v5942 = vcombine.low %v5902, %v5904
  %v5943 = vcombine.low %v5906, %v5908
  %v5945 = vunpack.c.l.s4 1966171168
  %v5946 = vunpack.c.0.s8 %v5945
  %v5947 = vlaneseq
  %v5948 = vshrl.u32 %v5947, 7
  %v5949 = vsub.s32 %v5946, %v5948
  %v5950 = vrot.slane %v5940, %v5949
  %v5952 = vunpack.c.l.s4 1966171168
  %v5953 = vunpack.c.0.s8 %v5952
  %v5954 = vlaneseq
  %v5955 = vshrl.u32 %v5954, 7
  %v5956 = vsub.s32 %v5953, %v5955
  %v5957 = vrot.slane %v5941, %v5956
  %v5959 = vunpack.c.l.s4 1966171168
  %v5960 = vunpack.c.0.s8 %v5959
  %v5961 = vlaneseq
  %v5962 = vshrl.u32 %v5961, 7
  %v5963 = vsub.s32 %v5960, %v5962
  %v5964 = vrot.slane %v5942, %v5963
  %v5966 = vunpack.c.l.s4 1966171168
  %v5967 = vunpack.c.0.s8 %v5966
  %v5968 = vlaneseq
  %v5969 = vshrl.u32 %v5968, 7
  %v5970 = vsub.s32 %v5967, %v5969
  %v5971 = vrot.slane %v5943, %v5970
  %v5972 = vcombine.low %v5950, %v5957
  %v5973 = vcombine.low %v5964, %v5971
  %v5975 = vunpack.c.l.s4 1966171168
  %v5976 = vunpack.c.0.s8 %v5975
  %v5977 = vlaneseq
  %v5978 = vshrl.u32 %v5977, 7
  %v5979 = vsub.s32 %v5976, %v5978
  %v5980 = vrot.slane %v5972, %v5979
  %v5982 = vunpack.c.l.s4 1966171168
  %v5983 = vunpack.c.0.s8 %v5982
  %v5984 = vlaneseq
  %v5985 = vshrl.u32 %v5984, 7
  %v5986 = vsub.s32 %v5983, %v5985
  %v5987 = vrot.slane %v5973, %v5986
  %v5988 = vcombine.low %v5980, %v5987
  %v5989 = vcombine.low %v5910, %v5912
  %v5990 = vcombine.low %v5914, %v5916
  %v5992 = vunpack.c.l.s4 1966171168
  %v5993 = vunpack.c.0.s8 %v5992
  %v5994 = vlaneseq
  %v5995 = vshrl.u32 %v5994, 7
  %v5996 = vsub.s32 %v5993, %v5995
  %v5997 = vrot.slane %v5989, %v5996
  %v5999 = vunpack.c.l.s4 1966171168
  %v6000 = vunpack.c.0.s8 %v5999
  %v6001 = vlaneseq
  %v6002 = vshrl.u32 %v6001, 7
  %v6003 = vsub.s32 %v6000, %v6002
  %v6004 = vrot.slane %v5990, %v6003
  %v6005 = vcombine.low %v5997, %v6004
  %v6007 = vunpack.c.l.s4 1966171168
  %v6008 = vunpack.c.0.s8 %v6007
  %v6009 = vlaneseq
  %v6010 = vshrl.u32 %v6009, 7
  %v6011 = vsub.s32 %v6008, %v6010
  %v6012 = vrot.slane %v6005, %v6011
  %v6017 = vunpack.c.l.b16 %v5917
  %v6018 = vunpack.c.l.b16 %v5918
  %v6019 = vunpack.c.l.b16 %v5919
  %v6020 = vunpack.c.l.b16 %v5920
  %v6021 = vpack.c.b16 %v6018, %v6017
  %v6022 = vpack.c.b16 %v6020, %v6019
  %v6026 = vsel %vm177, %v5988, 0
  %v6029 = vsel %vm177, %v6012, 0
  %6031 = vmatprep.subr.bf16.mxu0 0
  %6032 = vmatpush1.bf16.msra.mxu0 %v6021
  %6033 = vmatprep.subr.bf16.mxu0 0
  %6034 = vmatpush1.bf16.msra.mxu0 %v6022
  %6035 = vmatprep.subr.bf16.mxu0 0
  %6036 = vmatpush1.bf16.msra.mxu0 0
  %6037 = vmatprep.subr.bf16.mxu0 0
  %6038 = vmatpush1.bf16.msra.mxu0 0
  %6039 = vmatprep.subr.bf16.mxu0 0
  %6040 = vmatpush1.bf16.msra.mxu0 0
  %6041 = vmatprep.subr.bf16.mxu0 0
  %6042 = vmatpush1.bf16.msra.mxu0 0
  %6043 = vmatprep.subr.bf16.mxu0 0
  %6044 = vmatpush1.bf16.msra.mxu0 0
  %6045 = vmatprep.subr.bf16.mxu0 0
  %6046 = vmatpush1.bf16.msra.mxu0 0
  %6047 = vmatprep.subr.bf16.mxu0 0
  %6048 = vmatpush1.bf16.msra.mxu0 0
  %6049 = vmatprep.subr.bf16.mxu0 0
  %6050 = vmatpush1.bf16.msra.mxu0 0
  %6051 = vmatprep.subr.bf16.mxu0 0
  %6052 = vmatpush1.bf16.msra.mxu0 0
  %6053 = vmatprep.subr.bf16.mxu0 0
  %6054 = vmatpush1.bf16.msra.mxu0 0
  %6055 = vmatprep.subr.bf16.mxu0 0
  %6056 = vmatpush1.bf16.msra.mxu0 0
  %6057 = vmatprep.subr.bf16.mxu0 0
  %6058 = vmatpush1.bf16.msra.mxu0 0
  %6059 = vmatprep.subr.bf16.mxu0 0
  %6060 = vmatpush1.bf16.msra.mxu0 0
  %6061 = vmatprep.subr.bf16.mxu0 0
  %6062 = vmatpush1.bf16.msra.mxu0 0
  %6063 = vmatprep.mubr.bf16.mxu0 0
  %6064 = vmatmul.mubr.bf16.gmra.mrb[0].mxu0 %v6026
  %v6065 = vpop.f32.mrb[0].mxu0
  %v6066 = vadd.f32 %v5926, %v6065
  %v6067 = vpop.f32.mrb[0].mxu0
  %v6068 = vpop.f32.mrb[0].mxu0
  %v6069 = vadd.f32 %v5926, %v6068
  %v6070 = vpop.f32.mrb[0].mxu0
  %6071 = vmatprep.mubr.bf16.mxu0 0
  %6072 = vmatmul.mubr.bf16.gmra.mrb[0].mxu0 %v6029
  %v6073 = vpop.f32.mrb[0].mxu0
  %v6074 = vadd.f32 %v5926, %v6073
  %v6075 = vpop.f32.mrb[0].mxu0
  %v6076 = vpop.f32.mrb[0].mxu0
  %v6077 = vpop.f32.mrb[0].mxu0
  %6078 = vdwg.mxu0
  %v6082 = vcombine.high %v6066, %v6066
  %v6084 = vunpack.c.l.s4 1983009808
  %v6085 = vunpack.c.0.s8 %v6084
  %v6086 = vlaneseq
  %v6087 = vshrl.u32 %v6086, 7
  %v6088 = vsub.s32 %v6085, %v6087
  %v6089 = vrot.slane %v6066, %v6088
  %v6091 = vunpack.c.l.s4 1983009808
  %v6092 = vunpack.c.0.s8 %v6091
  %v6093 = vlaneseq
  %v6094 = vshrl.u32 %v6093, 7
  %v6095 = vsub.s32 %v6092, %v6094
  %v6096 = vrot.slane %v6082, %v6095
  %v6097 = vcombine.high %v6089, %v6089
  %v6098 = vcombine.high %v6096, %v6096
  %v6099 = vcombine.high %v6069, %v6069
  %v6101 = vunpack.c.l.s4 1983009808
  %v6102 = vunpack.c.0.s8 %v6101
  %v6103 = vlaneseq
  %v6104 = vshrl.u32 %v6103, 7
  %v6105 = vsub.s32 %v6102, %v6104
  %v6106 = vrot.slane %v6069, %v6105
  %v6108 = vunpack.c.l.s4 1983009808
  %v6109 = vunpack.c.0.s8 %v6108
  %v6110 = vlaneseq
  %v6111 = vshrl.u32 %v6110, 7
  %v6112 = vsub.s32 %v6109, %v6111
  %v6113 = vrot.slane %v6099, %v6112
  %v6114 = vcombine.high %v6106, %v6106
  %v6115 = vcombine.high %v6113, %v6113
  %v6116 = vcombine.high %v6074, %v6074
  %v6118 = vunpack.c.l.s4 1983009808
  %v6119 = vunpack.c.0.s8 %v6118
  %v6120 = vlaneseq
  %v6121 = vshrl.u32 %v6120, 7
  %v6122 = vsub.s32 %v6119, %v6121
  %v6123 = vrot.slane %v6074, %v6122
  %v6125 = vunpack.c.l.s4 1983009808
  %v6126 = vunpack.c.0.s8 %v6125
  %v6127 = vlaneseq
  %v6128 = vshrl.u32 %v6127, 7
  %v6129 = vsub.s32 %v6126, %v6128
  %v6130 = vrot.slane %v6116, %v6129
  %v6131 = vcombine.high %v6123, %v6123
  %v6132 = vcombine.high %v6130, %v6130
  %v6145 = vadd.f32 %v57, %v6089
  %v6146 = vadd.f32 %v58, %v6097
  %v6147 = vadd.f32 %v59, %v6096
  %v6148 = vadd.f32 %v60, %v6098
  %v6149 = vadd.f32 %v61, %v6106
  %v6150 = vadd.f32 %v62, %v6114
  %v6151 = vadd.f32 %v63, %v6113
  %v6152 = vadd.f32 %v64, %v6115
  %v6153 = vadd.f32 %v65, %v6123
  %v6154 = vadd.f32 %v66, %v6131
  %v6155 = vadd.f32 %v67, %v6130
  %v6156 = vadd.f32 %v68, %v6132
  %v6169 = vcombine.low %v6145, %v6146
  %v6170 = vcombine.low %v6147, %v6148
  %v6172 = vunpack.c.l.s4 1983009808
  %v6173 = vunpack.c.0.s8 %v6172
  %v6174 = vlaneseq
  %v6175 = vshrl.u32 %v6174, 7
  %v6176 = vsub.s32 %v6173, %v6175
  %v6177 = vrot.slane %v6169, %v6176
  %v6179 = vunpack.c.l.s4 1983009808
  %v6180 = vunpack.c.0.s8 %v6179
  %v6181 = vlaneseq
  %v6182 = vshrl.u32 %v6181, 7
  %v6183 = vsub.s32 %v6180, %v6182
  %v6184 = vrot.slane %v6170, %v6183
  %v6185 = vcombine.low %v6177, %v6184
  %v6186 = vcombine.low %v6149, %v6150
  %v6187 = vcombine.low %v6151, %v6152
  %v6189 = vunpack.c.l.s4 1983009808
  %v6190 = vunpack.c.0.s8 %v6189
  %v6191 = vlaneseq
  %v6192 = vshrl.u32 %v6191, 7
  %v6193 = vsub.s32 %v6190, %v6192
  %v6194 = vrot.slane %v6186, %v6193
  %v6196 = vunpack.c.l.s4 1983009808
  %v6197 = vunpack.c.0.s8 %v6196
  %v6198 = vlaneseq
  %v6199 = vshrl.u32 %v6198, 7
  %v6200 = vsub.s32 %v6197, %v6199
  %v6201 = vrot.slane %v6187, %v6200
  %v6202 = vcombine.low %v6194, %v6201
  %v6203 = vcombine.low %v6153, %v6154
  %v6204 = vcombine.low %v6155, %v6156
  %v6206 = vunpack.c.l.s4 1983009808
  %v6207 = vunpack.c.0.s8 %v6206
  %v6208 = vlaneseq
  %v6209 = vshrl.u32 %v6208, 7
  %v6210 = vsub.s32 %v6207, %v6209
  %v6211 = vrot.slane %v6203, %v6210
  %v6213 = vunpack.c.l.s4 1983009808
  %v6214 = vunpack.c.0.s8 %v6213
  %v6215 = vlaneseq
  %v6216 = vshrl.u32 %v6215, 7
  %v6217 = vsub.s32 %v6214, %v6216
  %v6218 = vrot.slane %v6204, %v6217
  %v6219 = vcombine.low %v6211, %v6218
  %v6223 = vsel %vm177, %v6185, 0.0
  %6224 = vadd.xlane.f32.xlu0 %v6223
  %v6225 = vpop.xlane.xlu0 %6224
  %v6226 = vsel %vm177, %v6202, 0.0
  %6227 = vadd.xlane.f32.xlu0 %v6226
  %v6228 = vpop.xlane.xlu0 %6227
  %v6229 = vsel %vm177, %v6219, 0.0
  %6230 = vadd.xlane.f32.xlu0 %v6229
  %v6231 = vpop.xlane.xlu0 %6230
  %v6232 = vrcp.pop 32.0
  %v6233 = vmul.f32 %v6225, %v6232
  %v6234 = vmul.f32 %v6228, %v6232
  %v6235 = vmul.f32 %v6231, %v6232
  %v6240 = vunpack.c.l.s4 269488144
  %v6241 = vunpack.c.0.s8 %v6240
  %v6242 = vlaneseq
  %v6243 = vshrl.u32 %v6242, 7
  %v6244 = vsub.s32 %v6241, %v6243
  %v6245 = vrot.slane %v6233, %v6244
  %v6247 = vunpack.c.l.s4 842150450
  %v6248 = vunpack.c.0.s8 %v6247
  %v6249 = vlaneseq
  %v6250 = vshrl.u32 %v6249, 7
  %v6251 = vsub.s32 %v6248, %v6250
  %v6252 = vrot.slane %v6233, %v6251
  %v6254 = vunpack.c.l.s4 1414812756
  %v6255 = vunpack.c.0.s8 %v6254
  %v6256 = vlaneseq
  %v6257 = vshrl.u32 %v6256, 7
  %v6258 = vsub.s32 %v6255, %v6257
  %v6259 = vrot.slane %v6233, %v6258
  %v6261 = vunpack.c.l.s4 1987475062
  %v6262 = vunpack.c.0.s8 %v6261
  %v6263 = vlaneseq
  %v6264 = vshrl.u32 %v6263, 7
  %v6265 = vsub.s32 %v6262, %v6264
  %v6266 = vrot.slane %v6233, %v6265
  %v6268 = vunpack.c.l.s4 269488144
  %v6269 = vunpack.c.0.s8 %v6268
  %v6270 = vlaneseq
  %v6271 = vshrl.u32 %v6270, 7
  %v6272 = vsub.s32 %v6269, %v6271
  %v6273 = vrot.slane %v6234, %v6272
  %v6275 = vunpack.c.l.s4 842150450
  %v6276 = vunpack.c.0.s8 %v6275
  %v6277 = vlaneseq
  %v6278 = vshrl.u32 %v6277, 7
  %v6279 = vsub.s32 %v6276, %v6278
  %v6280 = vrot.slane %v6234, %v6279
  %v6282 = vunpack.c.l.s4 1414812756
  %v6283 = vunpack.c.0.s8 %v6282
  %v6284 = vlaneseq
  %v6285 = vshrl.u32 %v6284, 7
  %v6286 = vsub.s32 %v6283, %v6285
  %v6287 = vrot.slane %v6234, %v6286
  %v6289 = vunpack.c.l.s4 1987475062
  %v6290 = vunpack.c.0.s8 %v6289
  %v6291 = vlaneseq
  %v6292 = vshrl.u32 %v6291, 7
  %v6293 = vsub.s32 %v6290, %v6292
  %v6294 = vrot.slane %v6234, %v6293
  %v6296 = vunpack.c.l.s4 269488144
  %v6297 = vunpack.c.0.s8 %v6296
  %v6298 = vlaneseq
  %v6299 = vshrl.u32 %v6298, 7
  %v6300 = vsub.s32 %v6297, %v6299
  %v6301 = vrot.slane %v6235, %v6300
  %v6303 = vunpack.c.l.s4 842150450
  %v6304 = vunpack.c.0.s8 %v6303
  %v6305 = vlaneseq
  %v6306 = vshrl.u32 %v6305, 7
  %v6307 = vsub.s32 %v6304, %v6306
  %v6308 = vrot.slane %v6235, %v6307
  %v6310 = vunpack.c.l.s4 1414812756
  %v6311 = vunpack.c.0.s8 %v6310
  %v6312 = vlaneseq
  %v6313 = vshrl.u32 %v6312, 7
  %v6314 = vsub.s32 %v6311, %v6313
  %v6315 = vrot.slane %v6235, %v6314
  %v6317 = vunpack.c.l.s4 1987475062
  %v6318 = vunpack.c.0.s8 %v6317
  %v6319 = vlaneseq
  %v6320 = vshrl.u32 %v6319, 7
  %v6321 = vsub.s32 %v6318, %v6320
  %v6322 = vrot.slane %v6235, %v6321
  %v6335 = vsub.f32 %v6145, %v6245
  %v6336 = vsub.f32 %v6146, %v6252
  %v6337 = vsub.f32 %v6147, %v6259
  %v6338 = vsub.f32 %v6148, %v6266
  %v6339 = vsub.f32 %v6149, %v6273
  %v6340 = vsub.f32 %v6150, %v6280
  %v6341 = vsub.f32 %v6151, %v6287
  %v6342 = vsub.f32 %v6152, %v6294
  %v6343 = vsub.f32 %v6153, %v6301
  %v6344 = vsub.f32 %v6154, %v6308
  %v6345 = vsub.f32 %v6155, %v6315
  %v6346 = vsub.f32 %v6156, %v6322
  %v6347 = vmul.f32 %v6335, %v6335
  %v6348 = vmul.f32 %v6336, %v6336
  %v6349 = vmul.f32 %v6337, %v6337
  %v6350 = vmul.f32 %v6338, %v6338
  %v6351 = vmul.f32 %v6339, %v6339
  %v6352 = vmul.f32 %v6340, %v6340
  %v6353 = vmul.f32 %v6341, %v6341
  %v6354 = vmul.f32 %v6342, %v6342
  %v6355 = vmul.f32 %v6343, %v6343
  %v6356 = vmul.f32 %v6344, %v6344
  %v6357 = vmul.f32 %v6345, %v6345
  %v6358 = vmul.f32 %v6346, %v6346
  %v6371 = vcombine.low %v6347, %v6348
  %v6372 = vcombine.low %v6349, %v6350
  %v6374 = vunpack.c.l.s4 1983009808
  %v6375 = vunpack.c.0.s8 %v6374
  %v6376 = vlaneseq
  %v6377 = vshrl.u32 %v6376, 7
  %v6378 = vsub.s32 %v6375, %v6377
  %v6379 = vrot.slane %v6371, %v6378
  %v6381 = vunpack.c.l.s4 1983009808
  %v6382 = vunpack.c.0.s8 %v6381
  %v6383 = vlaneseq
  %v6384 = vshrl.u32 %v6383, 7
  %v6385 = vsub.s32 %v6382, %v6384
  %v6386 = vrot.slane %v6372, %v6385
  %v6387 = vcombine.low %v6379, %v6386
  %v6388 = vcombine.low %v6351, %v6352
  %v6389 = vcombine.low %v6353, %v6354
  %v6391 = vunpack.c.l.s4 1983009808
  %v6392 = vunpack.c.0.s8 %v6391
  %v6393 = vlaneseq
  %v6394 = vshrl.u32 %v6393, 7
  %v6395 = vsub.s32 %v6392, %v6394
  %v6396 = vrot.slane %v6388, %v6395
  %v6398 = vunpack.c.l.s4 1983009808
  %v6399 = vunpack.c.0.s8 %v6398
  %v6400 = vlaneseq
  %v6401 = vshrl.u32 %v6400, 7
  %v6402 = vsub.s32 %v6399, %v6401
  %v6403 = vrot.slane %v6389, %v6402
  %v6404 = vcombine.low %v6396, %v6403
  %v6405 = vcombine.low %v6355, %v6356
  %v6406 = vcombine.low %v6357, %v6358
  %v6408 = vunpack.c.l.s4 1983009808
  %v6409 = vunpack.c.0.s8 %v6408
  %v6410 = vlaneseq
  %v6411 = vshrl.u32 %v6410, 7
  %v6412 = vsub.s32 %v6409, %v6411
  %v6413 = vrot.slane %v6405, %v6412
  %v6415 = vunpack.c.l.s4 1983009808
  %v6416 = vunpack.c.0.s8 %v6415
  %v6417 = vlaneseq
  %v6418 = vshrl.u32 %v6417, 7
  %v6419 = vsub.s32 %v6416, %v6418
  %v6420 = vrot.slane %v6406, %v6419
  %v6421 = vcombine.low %v6413, %v6420
  %v6425 = vsel %vm177, %v6387, 0.0
  %6426 = vadd.xlane.f32.xlu0 %v6425
  %v6427 = vpop.xlane.xlu0 %6426
  %v6428 = vsel %vm177, %v6404, 0.0
  %6429 = vadd.xlane.f32.xlu0 %v6428
  %v6430 = vpop.xlane.xlu0 %6429
  %v6431 = vsel %vm177, %v6421, 0.0
  %6432 = vadd.xlane.f32.xlu0 %v6431
  %v6433 = vpop.xlane.xlu0 %6432
  %v6434 = vmul.f32 %v6427, %v6232
  %v6435 = vmul.f32 %v6430, %v6232
  %v6436 = vmul.f32 %v6433, %v6232
  %v6437 = vadd.f32 %v6434, 1e-05
  %v6438 = vadd.f32 %v6435, 1e-05
  %v6439 = vadd.f32 %v6436, 1e-05
  %v6440 = vrsqrt.pop %v6437
  %v6441 = vrsqrt.pop %v6438
  %v6442 = vrsqrt.pop %v6439
  %v6447 = vunpack.c.l.s4 269488144
  %v6448 = vunpack.c.0.s8 %v6447
  %v6449 = vlaneseq
  %v6450 = vshrl.u32 %v6449, 7
  %v6451 = vsub.s32 %v6448, %v6450
  %v6452 = vrot.slane %v6440, %v6451
  %v6454 = vunpack.c.l.s4 842150450
  %v6455 = vunpack.c.0.s8 %v6454
  %v6456 = vlaneseq
  %v6457 = vshrl.u32 %v6456, 7
  %v6458 = vsub.s32 %v6455, %v6457
  %v6459 = vrot.slane %v6440, %v6458
  %v6461 = vunpack.c.l.s4 1414812756
  %v6462 = vunpack.c.0.s8 %v6461
  %v6463 = vlaneseq
  %v6464 = vshrl.u32 %v6463, 7
  %v6465 = vsub.s32 %v6462, %v6464
  %v6466 = vrot.slane %v6440, %v6465
  %v6468 = vunpack.c.l.s4 1987475062
  %v6469 = vunpack.c.0.s8 %v6468
  %v6470 = vlaneseq
  %v6471 = vshrl.u32 %v6470, 7
  %v6472 = vsub.s32 %v6469, %v6471
  %v6473 = vrot.slane %v6440, %v6472
  %v6475 = vunpack.c.l.s4 269488144
  %v6476 = vunpack.c.0.s8 %v6475
  %v6477 = vlaneseq
  %v6478 = vshrl.u32 %v6477, 7
  %v6479 = vsub.s32 %v6476, %v6478
  %v6480 = vrot.slane %v6441, %v6479
  %v6482 = vunpack.c.l.s4 842150450
  %v6483 = vunpack.c.0.s8 %v6482
  %v6484 = vlaneseq
  %v6485 = vshrl.u32 %v6484, 7
  %v6486 = vsub.s32 %v6483, %v6485
  %v6487 = vrot.slane %v6441, %v6486
  %v6489 = vunpack.c.l.s4 1414812756
  %v6490 = vunpack.c.0.s8 %v6489
  %v6491 = vlaneseq
  %v6492 = vshrl.u32 %v6491, 7
  %v6493 = vsub.s32 %v6490, %v6492
  %v6494 = vrot.slane %v6441, %v6493
  %v6496 = vunpack.c.l.s4 1987475062
  %v6497 = vunpack.c.0.s8 %v6496
  %v6498 = vlaneseq
  %v6499 = vshrl.u32 %v6498, 7
  %v6500 = vsub.s32 %v6497, %v6499
  %v6501 = vrot.slane %v6441, %v6500
  %v6503 = vunpack.c.l.s4 269488144
  %v6504 = vunpack.c.0.s8 %v6503
  %v6505 = vlaneseq
  %v6506 = vshrl.u32 %v6505, 7
  %v6507 = vsub.s32 %v6504, %v6506
  %v6508 = vrot.slane %v6442, %v6507
  %v6510 = vunpack.c.l.s4 842150450
  %v6511 = vunpack.c.0.s8 %v6510
  %v6512 = vlaneseq
  %v6513 = vshrl.u32 %v6512, 7
  %v6514 = vsub.s32 %v6511, %v6513
  %v6515 = vrot.slane %v6442, %v6514
  %v6517 = vunpack.c.l.s4 1414812756
  %v6518 = vunpack.c.0.s8 %v6517
  %v6519 = vlaneseq
  %v6520 = vshrl.u32 %v6519, 7
  %v6521 = vsub.s32 %v6518, %v6520
  %v6522 = vrot.slane %v6442, %v6521
  %v6524 = vunpack.c.l.s4 1987475062
  %v6525 = vunpack.c.0.s8 %v6524
  %v6526 = vlaneseq
  %v6527 = vshrl.u32 %v6526, 7
  %v6528 = vsub.s32 %v6525, %v6527
  %v6529 = vrot.slane %v6442, %v6528
  %v6542 = vmul.f32 %v6335, %v6452
  %v6543 = vmul.f32 %v6336, %v6459
  %v6544 = vmul.f32 %v6337, %v6466
  %v6545 = vmul.f32 %v6338, %v6473
  %v6546 = vmul.f32 %v6339, %v6480
  %v6547 = vmul.f32 %v6340, %v6487
  %v6548 = vmul.f32 %v6341, %v6494
  %v6549 = vmul.f32 %v6342, %v6501
  %v6550 = vmul.f32 %v6343, %v6508
  %v6551 = vmul.f32 %v6344, %v6515
  %v6552 = vmul.f32 %v6345, %v6522
  %v6553 = vmul.f32 %v6346, %v6529
  %v6554 = vld [vmem:[%s5] sm:$0x1]
  %v6556 = vlaneseq
  %v6557 = vshrl.u32 %v6556, 7
  %v6558 = vsub.s32 0, %v6557
  %v6559 = vrot.slane %v6554, %v6558
  %v6560 = vcombine.high %v6559, %v6559
  %v6562 = vunpack.c.l.s4 1983009808
  %v6563 = vunpack.c.0.s8 %v6562
  %v6564 = vlaneseq
  %v6565 = vshrl.u32 %v6564, 7
  %v6566 = vsub.s32 %v6563, %v6565
  %v6567 = vrot.slane %v6559, %v6566
  %v6569 = vunpack.c.l.s4 1983009808
  %v6570 = vunpack.c.0.s8 %v6569
  %v6571 = vlaneseq
  %v6572 = vshrl.u32 %v6571, 7
  %v6573 = vsub.s32 %v6570, %v6572
  %v6574 = vrot.slane %v6560, %v6573
  %v6575 = vcombine.high %v6567, %v6567
  %v6576 = vcombine.high %v6574, %v6574
  %v6581 = vmul.f32 %v6542, %v6567
  %v6582 = vmul.f32 %v6543, %v6575
  %v6583 = vmul.f32 %v6544, %v6574
  %v6584 = vmul.f32 %v6545, %v6576
  %v6585 = vmul.f32 %v6546, %v6567
  %v6586 = vmul.f32 %v6547, %v6575
  %v6587 = vmul.f32 %v6548, %v6574
  %v6588 = vmul.f32 %v6549, %v6576
  %v6589 = vmul.f32 %v6550, %v6567
  %v6590 = vmul.f32 %v6551, %v6575
  %v6591 = vmul.f32 %v6552, %v6574
  %v6592 = vmul.f32 %v6553, %v6576
  %v6593 = vld [vmem:[%s6] sm:$0x1]
  %v6595 = vlaneseq
  %v6596 = vshrl.u32 %v6595, 7
  %v6597 = vsub.s32 0, %v6596
  %v6598 = vrot.slane %v6593, %v6597
  %v6599 = vcombine.high %v6598, %v6598
  %v6601 = vunpack.c.l.s4 1983009808
  %v6602 = vunpack.c.0.s8 %v6601
  %v6603 = vlaneseq
  %v6604 = vshrl.u32 %v6603, 7
  %v6605 = vsub.s32 %v6602, %v6604
  %v6606 = vrot.slane %v6598, %v6605
  %v6608 = vunpack.c.l.s4 1983009808
  %v6609 = vunpack.c.0.s8 %v6608
  %v6610 = vlaneseq
  %v6611 = vshrl.u32 %v6610, 7
  %v6612 = vsub.s32 %v6609, %v6611
  %v6613 = vrot.slane %v6599, %v6612
  %v6614 = vcombine.high %v6606, %v6606
  %v6615 = vcombine.high %v6613, %v6613
  %v6620 = vadd.f32 %v6581, %v6606
  %v6621 = vadd.f32 %v6582, %v6614
  %v6622 = vadd.f32 %v6583, %v6613
  %v6623 = vadd.f32 %v6584, %v6615
  %v6624 = vadd.f32 %v6585, %v6606
  %v6625 = vadd.f32 %v6586, %v6614
  %v6626 = vadd.f32 %v6587, %v6613
  %v6627 = vadd.f32 %v6588, %v6615
  %v6628 = vadd.f32 %v6589, %v6606
  %v6629 = vadd.f32 %v6590, %v6614
  %v6630 = vadd.f32 %v6591, %v6613
  %v6631 = vadd.f32 %v6592, %v6615
  %v6644 = vcombine.low %v6620, %v6621
  %v6645 = vcombine.low %v6622, %v6623
  %v6647 = vunpack.c.l.s4 1983009808
  %v6648 = vunpack.c.0.s8 %v6647
  %v6649 = vlaneseq
  %v6650 = vshrl.u32 %v6649, 7
  %v6651 = vsub.s32 %v6648, %v6650
  %v6652 = vrot.slane %v6644, %v6651
  %v6654 = vunpack.c.l.s4 1983009808
  %v6655 = vunpack.c.0.s8 %v6654
  %v6656 = vlaneseq
  %v6657 = vshrl.u32 %v6656, 7
  %v6658 = vsub.s32 %v6655, %v6657
  %v6659 = vrot.slane %v6645, %v6658
  %v6660 = vcombine.low %v6652, %v6659
  %v6661 = vcombine.low %v6624, %v6625
  %v6662 = vcombine.low %v6626, %v6627
  %v6664 = vunpack.c.l.s4 1983009808
  %v6665 = vunpack.c.0.s8 %v6664
  %v6666 = vlaneseq
  %v6667 = vshrl.u32 %v6666, 7
  %v6668 = vsub.s32 %v6665, %v6667
  %v6669 = vrot.slane %v6661, %v6668
  %v6671 = vunpack.c.l.s4 1983009808
  %v6672 = vunpack.c.0.s8 %v6671
  %v6673 = vlaneseq
  %v6674 = vshrl.u32 %v6673, 7
  %v6675 = vsub.s32 %v6672, %v6674
  %v6676 = vrot.slane %v6662, %v6675
  %v6677 = vcombine.low %v6669, %v6676
  %v6678 = vcombine.low %v6628, %v6629
  %v6679 = vcombine.low %v6630, %v6631
  %v6681 = vunpack.c.l.s4 1983009808
  %v6682 = vunpack.c.0.s8 %v6681
  %v6683 = vlaneseq
  %v6684 = vshrl.u32 %v6683, 7
  %v6685 = vsub.s32 %v6682, %v6684
  %v6686 = vrot.slane %v6678, %v6685
  %v6688 = vunpack.c.l.s4 1983009808
  %v6689 = vunpack.c.0.s8 %v6688
  %v6690 = vlaneseq
  %v6691 = vshrl.u32 %v6690, 7
  %v6692 = vsub.s32 %v6689, %v6691
  %v6693 = vrot.slane %v6679, %v6692
  %v6694 = vcombine.low %v6686, %v6693
  %v6698 = vpack.c.bf16 %v6677, %v6660
  %v6699 = vpack.c.bf16 %v6694, %v6694
  %v6700 = vld [vmem:[%s7] sm:$0xf]
  %v6701 = vld [vmem:[%s7 + $0x4] sm:$0xf]
  %v6702 = vld [vmem:[%s7 + $0x8] sm:$0xf]
  %v6703 = vld [vmem:[%s7 + $0xc] sm:$0xf]
  %v6704 = vld [vmem:[%s8] sm:$0x1]
  %v6706 = vlaneseq
  %v6707 = vshrl.u32 %v6706, 7
  %v6708 = vsub.s32 0, %v6707
  %v6709 = vrot.slane %v6704, %v6708
  %v6715 = vunpack.c.l.b16 %v6700
  %v6716 = vunpack.c.l.b16 %v6701
  %v6717 = vunpack.c.l.b16 %v6702
  %v6718 = vunpack.c.l.b16 %v6703
  %v6719 = vpack.c.b16 %v6716, %v6715
  %v6720 = vpack.c.b16 %v6718, %v6717
  %v6724 = vsel %vm177, %v6698, 0
  %v6727 = vsel %vm177, %v6699, 0
  %6729 = vmatprep.subr.bf16.mxu0 0
  %6730 = vmatpush1.bf16.msra.mxu0 %v6719
  %6731 = vmatprep.subr.bf16.mxu0 0
  %6732 = vmatpush1.bf16.msra.mxu0 %v6720
  %6733 = vmatprep.subr.bf16.mxu0 0
  %6734 = vmatpush1.bf16.msra.mxu0 0
  %6735 = vmatprep.subr.bf16.mxu0 0
  %6736 = vmatpush1.bf16.msra.mxu0 0
  %6737 = vmatprep.subr.bf16.mxu0 0
  %6738 = vmatpush1.bf16.msra.mxu0 0
  %6739 = vmatprep.subr.bf16.mxu0 0
  %6740 = vmatpush1.bf16.msra.mxu0 0
  %6741 = vmatprep.subr.bf16.mxu0 0
  %6742 = vmatpush1.bf16.msra.mxu0 0
  %6743 = vmatprep.subr.bf16.mxu0 0
  %6744 = vmatpush1.bf16.msra.mxu0 0
  %6745 = vmatprep.subr.bf16.mxu0 0
  %6746 = vmatpush1.bf16.msra.mxu0 0
  %6747 = vmatprep.subr.bf16.mxu0 0
  %6748 = vmatpush1.bf16.msra.mxu0 0
  %6749 = vmatprep.subr.bf16.mxu0 0
  %6750 = vmatpush1.bf16.msra.mxu0 0
  %6751 = vmatprep.subr.bf16.mxu0 0
  %6752 = vmatpush1.bf16.msra.mxu0 0
  %6753 = vmatprep.subr.bf16.mxu0 0
  %6754 = vmatpush1.bf16.msra.mxu0 0
  %6755 = vmatprep.subr.bf16.mxu0 0
  %6756 = vmatpush1.bf16.msra.mxu0 0
  %6757 = vmatprep.subr.bf16.mxu0 0
  %6758 = vmatpush1.bf16.msra.mxu0 0
  %6759 = vmatprep.subr.bf16.mxu0 0
  %6760 = vmatpush1.bf16.msra.mxu0 0
  %6761 = vmatprep.mubr.bf16.mxu0 0
  %6762 = vmatmul.mubr.bf16.gmra.mrb[0].mxu0 %v6724
  %v6763 = vpop.f32.mrb[0].mxu0
  %v6764 = vadd.f32 %v6709, %v6763
  %v6765 = vpop.f32.mrb[0].mxu0
  %v6766 = vpop.f32.mrb[0].mxu0
  %v6767 = vadd.f32 %v6709, %v6766
  %v6768 = vpop.f32.mrb[0].mxu0
  %6769 = vmatprep.mubr.bf16.mxu0 0
  %6770 = vmatmul.mubr.bf16.gmra.mrb[0].mxu0 %v6727
  %v6771 = vpop.f32.mrb[0].mxu0
  %v6772 = vadd.f32 %v6709, %v6771
  %v6773 = vpop.f32.mrb[0].mxu0
  %v6774 = vpop.f32.mrb[0].mxu0
  %v6775 = vpop.f32.mrb[0].mxu0
  %6776 = vdwg.mxu0
  %v6777 = vmax.f32 %v6764, 0.0
  %v6778 = vmax.f32 %v6767, 0.0
  %v6779 = vmax.f32 %v6772, 0.0
  %v6780 = vpack.c.bf16 %v6778, %v6777
  %v6781 = vpack.c.bf16 %v6779, %v6779
  %v6782 = vld [vmem:[%s9] sm:$0xf]
  %v6783 = vld [vmem:[%s9 + $0x4] sm:$0xf]
  %v6784 = vld [vmem:[%s9 + $0x8] sm:$0xf]
  %v6785 = vld [vmem:[%s9 + $0xc] sm:$0xf]
  %v6786 = vld [vmem:[%s9 + $0x10] sm:$0xf]
  %v6787 = vld [vmem:[%s9 + $0x14] sm:$0xf]
  %v6788 = vld [vmem:[%s9 + $0x18] sm:$0xf]
  %v6789 = vld [vmem:[%s9 + $0x1c] sm:$0xf]
  %v6790 = vld [vmem:[%s9 + $0x20] sm:$0xf]
  %v6791 = vld [vmem:[%s9 + $0x24] sm:$0xf]
  %v6792 = vld [vmem:[%s9 + $0x28] sm:$0xf]
  %v6793 = vld [vmem:[%s9 + $0x2c] sm:$0xf]
  %v6794 = vld [vmem:[%s9 + $0x30] sm:$0xf]
  %v6795 = vld [vmem:[%s9 + $0x34] sm:$0xf]
  %v6796 = vld [vmem:[%s9 + $0x38] sm:$0xf]
  %v6797 = vld [vmem:[%s9 + $0x3c] sm:$0xf]
  %v6798 = vld [vmem:[%s10] sm:$0x1]
  %v6800 = vlaneseq
  %v6801 = vshrl.u32 %v6800, 7
  %v6802 = vsub.s32 0, %v6801
  %v6803 = vrot.slane %v6798, %v6802
  %v6821 = vunpack.c.l.b16 %v6782
  %v6822 = vunpack.c.l.b16 %v6783
  %v6823 = vunpack.c.l.b16 %v6784
  %v6824 = vunpack.c.l.b16 %v6785
  %v6825 = vunpack.c.l.b16 %v6786
  %v6826 = vunpack.c.l.b16 %v6787
  %v6827 = vunpack.c.l.b16 %v6788
  %v6828 = vunpack.c.l.b16 %v6789
  %v6829 = vunpack.c.l.b16 %v6790
  %v6830 = vunpack.c.l.b16 %v6791
  %v6831 = vunpack.c.l.b16 %v6792
  %v6832 = vunpack.c.l.b16 %v6793
  %v6833 = vunpack.c.l.b16 %v6794
  %v6834 = vunpack.c.l.b16 %v6795
  %v6835 = vunpack.c.l.b16 %v6796
  %v6836 = vunpack.c.l.b16 %v6797
  %v6837 = vpack.c.b16 %v6822, %v6821
  %v6838 = vpack.c.b16 %v6824, %v6823
  %v6839 = vpack.c.b16 %v6826, %v6825
  %v6840 = vpack.c.b16 %v6828, %v6827
  %v6841 = vpack.c.b16 %v6830, %v6829
  %v6842 = vpack.c.b16 %v6832, %v6831
  %v6843 = vpack.c.b16 %v6834, %v6833
  %v6844 = vpack.c.b16 %v6836, %v6835
  %6853 = vmatprep.subr.bf16.mxu0 0
  %6854 = vmatpush1.bf16.msra.mxu0 %v6837
  %6855 = vmatprep.subr.bf16.mxu0 0
  %6856 = vmatpush1.bf16.msra.mxu0 %v6838
  %6857 = vmatprep.subr.bf16.mxu0 0
  %6858 = vmatpush1.bf16.msra.mxu0 %v6839
  %6859 = vmatprep.subr.bf16.mxu0 0
  %6860 = vmatpush1.bf16.msra.mxu0 %v6840
  %6861 = vmatprep.subr.bf16.mxu0 0
  %6862 = vmatpush1.bf16.msra.mxu0 %v6841
  %6863 = vmatprep.subr.bf16.mxu0 0
  %6864 = vmatpush1.bf16.msra.mxu0 %v6842
  %6865 = vmatprep.subr.bf16.mxu0 0
  %6866 = vmatpush1.bf16.msra.mxu0 %v6843
  %6867 = vmatprep.subr.bf16.mxu0 0
  %6868 = vmatpush1.bf16.msra.mxu0 %v6844
  %6869 = vmatprep.subr.bf16.mxu0 0
  %6870 = vmatpush1.bf16.msra.mxu0 0
  %6871 = vmatprep.subr.bf16.mxu0 0
  %6872 = vmatpush1.bf16.msra.mxu0 0
  %6873 = vmatprep.subr.bf16.mxu0 0
  %6874 = vmatpush1.bf16.msra.mxu0 0
  %6875 = vmatprep.subr.bf16.mxu0 0
  %6876 = vmatpush1.bf16.msra.mxu0 0
  %6877 = vmatprep.subr.bf16.mxu0 0
  %6878 = vmatpush1.bf16.msra.mxu0 0
  %6879 = vmatprep.subr.bf16.mxu0 0
  %6880 = vmatpush1.bf16.msra.mxu0 0
  %6881 = vmatprep.subr.bf16.mxu0 0
  %6882 = vmatpush1.bf16.msra.mxu0 0
  %6883 = vmatprep.subr.bf16.mxu0 0
  %6884 = vmatpush1.bf16.msra.mxu0 0
  %6885 = vmatprep.mubr.bf16.mxu0 0
  %6886 = vmatmul.mubr.bf16.gmra.mrb[0].mxu0 %v6780
  %v6887 = vpop.f32.mrb[0].mxu0
  %v6888 = vadd.f32 %v6803, %v6887
  %v6889 = vpop.f32.mrb[0].mxu0
  %v6890 = vpop.f32.mrb[0].mxu0
  %v6891 = vadd.f32 %v6803, %v6890
  %v6892 = vpop.f32.mrb[0].mxu0
  %6893 = vmatprep.mubr.bf16.mxu0 0
  %6894 = vmatmul.mubr.bf16.gmra.mrb[0].mxu0 %v6781
  %v6895 = vpop.f32.mrb[0].mxu0
  %v6896 = vadd.f32 %v6803, %v6895
  %v6897 = vpop.f32.mrb[0].mxu0
  %v6898 = vpop.f32.mrb[0].mxu0
  %v6899 = vpop.f32.mrb[0].mxu0
  %6900 = vdwg.mxu0
  %v6904 = vcombine.high %v6888, %v6888
  %v6906 = vunpack.c.l.s4 1983009808
  %v6907 = vunpack.c.0.s8 %v6906
  %v6908 = vlaneseq
  %v6909 = vshrl.u32 %v6908, 7
  %v6910 = vsub.s32 %v6907, %v6909
  %v6911 = vrot.slane %v6888, %v6910
  %v6913 = vunpack.c.l.s4 1983009808
  %v6914 = vunpack.c.0.s8 %v6913
  %v6915 = vlaneseq
  %v6916 = vshrl.u32 %v6915, 7
  %v6917 = vsub.s32 %v6914, %v6916
  %v6918 = vrot.slane %v6904, %v6917
  %v6919 = vcombine.high %v6911, %v6911
  %v6920 = vcombine.high %v6918, %v6918
  %v6921 = vcombine.high %v6891, %v6891
  %v6923 = vunpack.c.l.s4 1983009808
  %v6924 = vunpack.c.0.s8 %v6923
  %v6925 = vlaneseq
  %v6926 = vshrl.u32 %v6925, 7
  %v6927 = vsub.s32 %v6924, %v6926
  %v6928 = vrot.slane %v6891, %v6927
  %v6930 = vunpack.c.l.s4 1983009808
  %v6931 = vunpack.c.0.s8 %v6930
  %v6932 = vlaneseq
  %v6933 = vshrl.u32 %v6932, 7
  %v6934 = vsub.s32 %v6931, %v6933
  %v6935 = vrot.slane %v6921, %v6934
  %v6936 = vcombine.high %v6928, %v6928
  %v6937 = vcombine.high %v6935, %v6935
  %v6938 = vcombine.high %v6896, %v6896
  %v6940 = vunpack.c.l.s4 1983009808
  %v6941 = vunpack.c.0.s8 %v6940
  %v6942 = vlaneseq
  %v6943 = vshrl.u32 %v6942, 7
  %v6944 = vsub.s32 %v6941, %v6943
  %v6945 = vrot.slane %v6896, %v6944
  %v6947 = vunpack.c.l.s4 1983009808
  %v6948 = vunpack.c.0.s8 %v6947
  %v6949 = vlaneseq
  %v6950 = vshrl.u32 %v6949, 7
  %v6951 = vsub.s32 %v6948, %v6950
  %v6952 = vrot.slane %v6938, %v6951
  %v6953 = vcombine.high %v6945, %v6945
  %v6954 = vcombine.high %v6952, %v6952
  %v6967 = vadd.f32 %v6620, %v6911
  %v6968 = vadd.f32 %v6621, %v6919
  %v6969 = vadd.f32 %v6622, %v6918
  %v6970 = vadd.f32 %v6623, %v6920
  %v6971 = vadd.f32 %v6624, %v6928
  %v6972 = vadd.f32 %v6625, %v6936
  %v6973 = vadd.f32 %v6626, %v6935
  %v6974 = vadd.f32 %v6627, %v6937
  %v6975 = vadd.f32 %v6628, %v6945
  %v6976 = vadd.f32 %v6629, %v6953
  %v6977 = vadd.f32 %v6630, %v6952
  %v6978 = vadd.f32 %v6631, %v6954
  %v6991 = vcombine.low %v6967, %v6968
  %v6992 = vcombine.low %v6969, %v6970
  %v6994 = vunpack.c.l.s4 1983009808
  %v6995 = vunpack.c.0.s8 %v6994
  %v6996 = vlaneseq
  %v6997 = vshrl.u32 %v6996, 7
  %v6998 = vsub.s32 %v6995, %v6997
  %v6999 = vrot.slane %v6991, %v6998
  %v7001 = vunpack.c.l.s4 1983009808
  %v7002 = vunpack.c.0.s8 %v7001
  %v7003 = vlaneseq
  %v7004 = vshrl.u32 %v7003, 7
  %v7005 = vsub.s32 %v7002, %v7004
  %v7006 = vrot.slane %v6992, %v7005
  %v7007 = vcombine.low %v6999, %v7006
  %v7008 = vcombine.low %v6971, %v6972
  %v7009 = vcombine.low %v6973, %v6974
  %v7011 = vunpack.c.l.s4 1983009808
  %v7012 = vunpack.c.0.s8 %v7011
  %v7013 = vlaneseq
  %v7014 = vshrl.u32 %v7013, 7
  %v7015 = vsub.s32 %v7012, %v7014
  %v7016 = vrot.slane %v7008, %v7015
  %v7018 = vunpack.c.l.s4 1983009808
  %v7019 = vunpack.c.0.s8 %v7018
  %v7020 = vlaneseq
  %v7021 = vshrl.u32 %v7020, 7
  %v7022 = vsub.s32 %v7019, %v7021
  %v7023 = vrot.slane %v7009, %v7022
  %v7024 = vcombine.low %v7016, %v7023
  %v7025 = vcombine.low %v6975, %v6976
  %v7026 = vcombine.low %v6977, %v6978
  %v7028 = vunpack.c.l.s4 1983009808
  %v7029 = vunpack.c.0.s8 %v7028
  %v7030 = vlaneseq
  %v7031 = vshrl.u32 %v7030, 7
  %v7032 = vsub.s32 %v7029, %v7031
  %v7033 = vrot.slane %v7025, %v7032
  %v7035 = vunpack.c.l.s4 1983009808
  %v7036 = vunpack.c.0.s8 %v7035
  %v7037 = vlaneseq
  %v7038 = vshrl.u32 %v7037, 7
  %v7039 = vsub.s32 %v7036, %v7038
  %v7040 = vrot.slane %v7026, %v7039
  %v7041 = vcombine.low %v7033, %v7040
  %v7045 = vsel %vm177, %v7007, 0.0
  %7046 = vadd.xlane.f32.xlu0 %v7045
  %v7047 = vpop.xlane.xlu0 %7046
  %v7048 = vsel %vm177, %v7024, 0.0
  %7049 = vadd.xlane.f32.xlu0 %v7048
  %v7050 = vpop.xlane.xlu0 %7049
  %v7051 = vsel %vm177, %v7041, 0.0
  %7052 = vadd.xlane.f32.xlu0 %v7051
  %v7053 = vpop.xlane.xlu0 %7052
  %v7054 = vmul.f32 %v7047, %v6232
  %v7055 = vmul.f32 %v7050, %v6232
  %v7056 = vmul.f32 %v7053, %v6232
  %v7061 = vunpack.c.l.s4 269488144
  %v7062 = vunpack.c.0.s8 %v7061
  %v7063 = vlaneseq
  %v7064 = vshrl.u32 %v7063, 7
  %v7065 = vsub.s32 %v7062, %v7064
  %v7066 = vrot.slane %v7054, %v7065
  %v7068 = vunpack.c.l.s4 842150450
  %v7069 = vunpack.c.0.s8 %v7068
  %v7070 = vlaneseq
  %v7071 = vshrl.u32 %v7070, 7
  %v7072 = vsub.s32 %v7069, %v7071
  %v7073 = vrot.slane %v7054, %v7072
  %v7075 = vunpack.c.l.s4 1414812756
  %v7076 = vunpack.c.0.s8 %v7075
  %v7077 = vlaneseq
  %v7078 = vshrl.u32 %v7077, 7
  %v7079 = vsub.s32 %v7076, %v7078
  %v7080 = vrot.slane %v7054, %v7079
  %v7082 = vunpack.c.l.s4 1987475062
  %v7083 = vunpack.c.0.s8 %v7082
  %v7084 = vlaneseq
  %v7085 = vshrl.u32 %v7084, 7
  %v7086 = vsub.s32 %v7083, %v7085
  %v7087 = vrot.slane %v7054, %v7086
  %v7089 = vunpack.c.l.s4 269488144
  %v7090 = vunpack.c.0.s8 %v7089
  %v7091 = vlaneseq
  %v7092 = vshrl.u32 %v7091, 7
  %v7093 = vsub.s32 %v7090, %v7092
  %v7094 = vrot.slane %v7055, %v7093
  %v7096 = vunpack.c.l.s4 842150450
  %v7097 = vunpack.c.0.s8 %v7096
  %v7098 = vlaneseq
  %v7099 = vshrl.u32 %v7098, 7
  %v7100 = vsub.s32 %v7097, %v7099
  %v7101 = vrot.slane %v7055, %v7100
  %v7103 = vunpack.c.l.s4 1414812756
  %v7104 = vunpack.c.0.s8 %v7103
  %v7105 = vlaneseq
  %v7106 = vshrl.u32 %v7105, 7
  %v7107 = vsub.s32 %v7104, %v7106
  %v7108 = vrot.slane %v7055, %v7107
  %v7110 = vunpack.c.l.s4 1987475062
  %v7111 = vunpack.c.0.s8 %v7110
  %v7112 = vlaneseq
  %v7113 = vshrl.u32 %v7112, 7
  %v7114 = vsub.s32 %v7111, %v7113
  %v7115 = vrot.slane %v7055, %v7114
  %v7117 = vunpack.c.l.s4 269488144
  %v7118 = vunpack.c.0.s8 %v7117
  %v7119 = vlaneseq
  %v7120 = vshrl.u32 %v7119, 7
  %v7121 = vsub.s32 %v7118, %v7120
  %v7122 = vrot.slane %v7056, %v7121
  %v7124 = vunpack.c.l.s4 842150450
  %v7125 = vunpack.c.0.s8 %v7124
  %v7126 = vlaneseq
  %v7127 = vshrl.u32 %v7126, 7
  %v7128 = vsub.s32 %v7125, %v7127
  %v7129 = vrot.slane %v7056, %v7128
  %v7131 = vunpack.c.l.s4 1414812756
  %v7132 = vunpack.c.0.s8 %v7131
  %v7133 = vlaneseq
  %v7134 = vshrl.u32 %v7133, 7
  %v7135 = vsub.s32 %v7132, %v7134
  %v7136 = vrot.slane %v7056, %v7135
  %v7138 = vunpack.c.l.s4 1987475062
  %v7139 = vunpack.c.0.s8 %v7138
  %v7140 = vlaneseq
  %v7141 = vshrl.u32 %v7140, 7
  %v7142 = vsub.s32 %v7139, %v7141
  %v7143 = vrot.slane %v7056, %v7142
  %v7156 = vsub.f32 %v6967, %v7066
  %v7157 = vsub.f32 %v6968, %v7073
  %v7158 = vsub.f32 %v6969, %v7080
  %v7159 = vsub.f32 %v6970, %v7087
  %v7160 = vsub.f32 %v6971, %v7094
  %v7161 = vsub.f32 %v6972, %v7101
  %v7162 = vsub.f32 %v6973, %v7108
  %v7163 = vsub.f32 %v6974, %v7115
  %v7164 = vsub.f32 %v6975, %v7122
  %v7165 = vsub.f32 %v6976, %v7129
  %v7166 = vsub.f32 %v6977, %v7136
  %v7167 = vsub.f32 %v6978, %v7143
  %v7168 = vmul.f32 %v7156, %v7156
  %v7169 = vmul.f32 %v7157, %v7157
  %v7170 = vmul.f32 %v7158, %v7158
  %v7171 = vmul.f32 %v7159, %v7159
  %v7172 = vmul.f32 %v7160, %v7160
  %v7173 = vmul.f32 %v7161, %v7161
  %v7174 = vmul.f32 %v7162, %v7162
  %v7175 = vmul.f32 %v7163, %v7163
  %v7176 = vmul.f32 %v7164, %v7164
  %v7177 = vmul.f32 %v7165, %v7165
  %v7178 = vmul.f32 %v7166, %v7166
  %v7179 = vmul.f32 %v7167, %v7167
  %v7192 = vcombine.low %v7168, %v7169
  %v7193 = vcombine.low %v7170, %v7171
  %v7195 = vunpack.c.l.s4 1983009808
  %v7196 = vunpack.c.0.s8 %v7195
  %v7197 = vlaneseq
  %v7198 = vshrl.u32 %v7197, 7
  %v7199 = vsub.s32 %v7196, %v7198
  %v7200 = vrot.slane %v7192, %v7199
  %v7202 = vunpack.c.l.s4 1983009808
  %v7203 = vunpack.c.0.s8 %v7202
  %v7204 = vlaneseq
  %v7205 = vshrl.u32 %v7204, 7
  %v7206 = vsub.s32 %v7203, %v7205
  %v7207 = vrot.slane %v7193, %v7206
  %v7208 = vcombine.low %v7200, %v7207
  %v7209 = vcombine.low %v7172, %v7173
  %v7210 = vcombine.low %v7174, %v7175
  %v7212 = vunpack.c.l.s4 1983009808
  %v7213 = vunpack.c.0.s8 %v7212
  %v7214 = vlaneseq
  %v7215 = vshrl.u32 %v7214, 7
  %v7216 = vsub.s32 %v7213, %v7215
  %v7217 = vrot.slane %v7209, %v7216
  %v7219 = vunpack.c.l.s4 1983009808
  %v7220 = vunpack.c.0.s8 %v7219
  %v7221 = vlaneseq
  %v7222 = vshrl.u32 %v7221, 7
  %v7223 = vsub.s32 %v7220, %v7222
  %v7224 = vrot.slane %v7210, %v7223
  %v7225 = vcombine.low %v7217, %v7224
  %v7226 = vcombine.low %v7176, %v7177
  %v7227 = vcombine.low %v7178, %v7179
  %v7229 = vunpack.c.l.s4 1983009808
  %v7230 = vunpack.c.0.s8 %v7229
  %v7231 = vlaneseq
  %v7232 = vshrl.u32 %v7231, 7
  %v7233 = vsub.s32 %v7230, %v7232
  %v7234 = vrot.slane %v7226, %v7233
  %v7236 = vunpack.c.l.s4 1983009808
  %v7237 = vunpack.c.0.s8 %v7236
  %v7238 = vlaneseq
  %v7239 = vshrl.u32 %v7238, 7
  %v7240 = vsub.s32 %v7237, %v7239
  %v7241 = vrot.slane %v7227, %v7240
  %v7242 = vcombine.low %v7234, %v7241
  %v7246 = vsel %vm177, %v7208, 0.0
  %7247 = vadd.xlane.f32.xlu0 %v7246
  %v7248 = vpop.xlane.xlu0 %7247
  %v7249 = vsel %vm177, %v7225, 0.0
  %7250 = vadd.xlane.f32.xlu0 %v7249
  %v7251 = vpop.xlane.xlu0 %7250
  %v7252 = vsel %vm177, %v7242, 0.0
  %7253 = vadd.xlane.f32.xlu0 %v7252
  %v7254 = vpop.xlane.xlu0 %7253
  %v7255 = vmul.f32 %v7248, %v6232
  %v7256 = vmul.f32 %v7251, %v6232
  %v7257 = vmul.f32 %v7254, %v6232
  %v7258 = vadd.f32 %v7255, 1e-05
  %v7259 = vadd.f32 %v7256, 1e-05
  %v7260 = vadd.f32 %v7257, 1e-05
  %v7261 = vrsqrt.pop %v7258
  %v7262 = vrsqrt.pop %v7259
  %v7263 = vrsqrt.pop %v7260
  %v7268 = vunpack.c.l.s4 269488144
  %v7269 = vunpack.c.0.s8 %v7268
  %v7270 = vlaneseq
  %v7271 = vshrl.u32 %v7270, 7
  %v7272 = vsub.s32 %v7269, %v7271
  %v7273 = vrot.slane %v7261, %v7272
  %v7275 = vunpack.c.l.s4 842150450
  %v7276 = vunpack.c.0.s8 %v7275
  %v7277 = vlaneseq
  %v7278 = vshrl.u32 %v7277, 7
  %v7279 = vsub.s32 %v7276, %v7278
  %v7280 = vrot.slane %v7261, %v7279
  %v7282 = vunpack.c.l.s4 1414812756
  %v7283 = vunpack.c.0.s8 %v7282
  %v7284 = vlaneseq
  %v7285 = vshrl.u32 %v7284, 7
  %v7286 = vsub.s32 %v7283, %v7285
  %v7287 = vrot.slane %v7261, %v7286
  %v7289 = vunpack.c.l.s4 1987475062
  %v7290 = vunpack.c.0.s8 %v7289
  %v7291 = vlaneseq
  %v7292 = vshrl.u32 %v7291, 7
  %v7293 = vsub.s32 %v7290, %v7292
  %v7294 = vrot.slane %v7261, %v7293
  %v7296 = vunpack.c.l.s4 269488144
  %v7297 = vunpack.c.0.s8 %v7296
  %v7298 = vlaneseq
  %v7299 = vshrl.u32 %v7298, 7
  %v7300 = vsub.s32 %v7297, %v7299
  %v7301 = vrot.slane %v7262, %v7300
  %v7303 = vunpack.c.l.s4 842150450
  %v7304 = vunpack.c.0.s8 %v7303
  %v7305 = vlaneseq
  %v7306 = vshrl.u32 %v7305, 7
  %v7307 = vsub.s32 %v7304, %v7306
  %v7308 = vrot.slane %v7262, %v7307
  %v7310 = vunpack.c.l.s4 1414812756
  %v7311 = vunpack.c.0.s8 %v7310
  %v7312 = vlaneseq
  %v7313 = vshrl.u32 %v7312, 7
  %v7314 = vsub.s32 %v7311, %v7313
  %v7315 = vrot.slane %v7262, %v7314
  %v7317 = vunpack.c.l.s4 1987475062
  %v7318 = vunpack.c.0.s8 %v7317
  %v7319 = vlaneseq
  %v7320 = vshrl.u32 %v7319, 7
  %v7321 = vsub.s32 %v7318, %v7320
  %v7322 = vrot.slane %v7262, %v7321
  %v7324 = vunpack.c.l.s4 269488144
  %v7325 = vunpack.c.0.s8 %v7324
  %v7326 = vlaneseq
  %v7327 = vshrl.u32 %v7326, 7
  %v7328 = vsub.s32 %v7325, %v7327
  %v7329 = vrot.slane %v7263, %v7328
  %v7331 = vunpack.c.l.s4 842150450
  %v7332 = vunpack.c.0.s8 %v7331
  %v7333 = vlaneseq
  %v7334 = vshrl.u32 %v7333, 7
  %v7335 = vsub.s32 %v7332, %v7334
  %v7336 = vrot.slane %v7263, %v7335
  %v7338 = vunpack.c.l.s4 1414812756
  %v7339 = vunpack.c.0.s8 %v7338
  %v7340 = vlaneseq
  %v7341 = vshrl.u32 %v7340, 7
  %v7342 = vsub.s32 %v7339, %v7341
  %v7343 = vrot.slane %v7263, %v7342
  %v7345 = vunpack.c.l.s4 1987475062
  %v7346 = vunpack.c.0.s8 %v7345
  %v7347 = vlaneseq
  %v7348 = vshrl.u32 %v7347, 7
  %v7349 = vsub.s32 %v7346, %v7348
  %v7350 = vrot.slane %v7263, %v7349
  %v7363 = vmul.f32 %v7156, %v7273
  %v7364 = vmul.f32 %v7157, %v7280
  %v7365 = vmul.f32 %v7158, %v7287
  %v7366 = vmul.f32 %v7159, %v7294
  %v7367 = vmul.f32 %v7160, %v7301
  %v7368 = vmul.f32 %v7161, %v7308
  %v7369 = vmul.f32 %v7162, %v7315
  %v7370 = vmul.f32 %v7163, %v7322
  %v7371 = vmul.f32 %v7164, %v7329
  %v7372 = vmul.f32 %v7165, %v7336
  %v7373 = vmul.f32 %v7166, %v7343
  %v7374 = vmul.f32 %v7167, %v7350
  %v7375 = vld [vmem:[%s11] sm:$0x1]
  %v7377 = vlaneseq
  %v7378 = vshrl.u32 %v7377, 7
  %v7379 = vsub.s32 0, %v7378
  %v7380 = vrot.slane %v7375, %v7379
  %v7381 = vcombine.high %v7380, %v7380
  %v7383 = vunpack.c.l.s4 1983009808
  %v7384 = vunpack.c.0.s8 %v7383
  %v7385 = vlaneseq
  %v7386 = vshrl.u32 %v7385, 7
  %v7387 = vsub.s32 %v7384, %v7386
  %v7388 = vrot.slane %v7380, %v7387
  %v7390 = vunpack.c.l.s4 1983009808
  %v7391 = vunpack.c.0.s8 %v7390
  %v7392 = vlaneseq
  %v7393 = vshrl.u32 %v7392, 7
  %v7394 = vsub.s32 %v7391, %v7393
  %v7395 = vrot.slane %v7381, %v7394
  %v7396 = vcombine.high %v7388, %v7388
  %v7397 = vcombine.high %v7395, %v7395
  %v7402 = vmul.f32 %v7363, %v7388
  %v7403 = vmul.f32 %v7364, %v7396
  %v7404 = vmul.f32 %v7365, %v7395
  %v7405 = vmul.f32 %v7366, %v7397
  %v7406 = vmul.f32 %v7367, %v7388
  %v7407 = vmul.f32 %v7368, %v7396
  %v7408 = vmul.f32 %v7369, %v7395
  %v7409 = vmul.f32 %v7370, %v7397
  %v7410 = vmul.f32 %v7371, %v7388
  %v7411 = vmul.f32 %v7372, %v7396
  %v7412 = vmul.f32 %v7373, %v7395
  %v7413 = vmul.f32 %v7374, %v7397
  %v7414 = vld [vmem:[%s12] sm:$0x1]
  %v7416 = vlaneseq
  %v7417 = vshrl.u32 %v7416, 7
  %v7418 = vsub.s32 0, %v7417
  %v7419 = vrot.slane %v7414, %v7418
  %v7420 = vcombine.high %v7419, %v7419
  %v7422 = vunpack.c.l.s4 1983009808
  %v7423 = vunpack.c.0.s8 %v7422
  %v7424 = vlaneseq
  %v7425 = vshrl.u32 %v7424, 7
  %v7426 = vsub.s32 %v7423, %v7425
  %v7427 = vrot.slane %v7419, %v7426
  %v7429 = vunpack.c.l.s4 1983009808
  %v7430 = vunpack.c.0.s8 %v7429
  %v7431 = vlaneseq
  %v7432 = vshrl.u32 %v7431, 7
  %v7433 = vsub.s32 %v7430, %v7432
  %v7434 = vrot.slane %v7420, %v7433
  %v7435 = vcombine.high %v7427, %v7427
  %v7436 = vcombine.high %v7434, %v7434
  %v7441 = vadd.f32 %v7402, %v7427
  %v7442 = vadd.f32 %v7403, %v7435
  %v7443 = vadd.f32 %v7404, %v7434
  %v7444 = vadd.f32 %v7405, %v7436
  %v7445 = vadd.f32 %v7406, %v7427
  %v7446 = vadd.f32 %v7407, %v7435
  %v7447 = vadd.f32 %v7408, %v7434
  %v7448 = vadd.f32 %v7409, %v7436
  %v7449 = vadd.f32 %v7410, %v7427
  %v7450 = vadd.f32 %v7411, %v7435
  %v7451 = vadd.f32 %v7412, %v7434
  %v7452 = vadd.f32 %v7413, %v7436
  %v7453 = vpack.c.bf16 %v7441, %v7441
  %v7454 = vpack.c.bf16 %v7442, %v7442
  %v7455 = vpack.c.bf16 %v7443, %v7443
  %v7456 = vpack.c.bf16 %v7444, %v7444
  %v7457 = vpack.c.bf16 %v7445, %v7445
  %v7458 = vpack.c.bf16 %v7446, %v7446
  %v7459 = vpack.c.bf16 %v7447, %v7447
  %v7460 = vpack.c.bf16 %v7448, %v7448
  %v7461 = vpack.c.bf16 %v7449, %v7449
  %v7462 = vpack.c.bf16 %v7450, %v7450
  %v7463 = vpack.c.bf16 %v7451, %v7451
  %v7464 = vpack.c.bf16 %v7452, %v7452
  %vm7465 = vcmask 253952
  %7466 = vst.msk [vmem:[%s13] sm:$0x1] %vm7465, %v7453
  %7467 = vst.msk [vmem:[%s13 + $0x1] sm:$0x1] %vm7465, %v7454
  %7468 = vst.msk [vmem:[%s13 + $0x2] sm:$0x1] %vm7465, %v7455
  %7469 = vst.msk [vmem:[%s13 + $0x3] sm:$0x1] %vm7465, %v7456
  %7470 = vst.msk [vmem:[%s13 + $0x4] sm:$0x1] %vm7465, %v7457
  %7471 = vst.msk [vmem:[%s13 + $0x5] sm:$0x1] %vm7465, %v7458
  %7472 = vst.msk [vmem:[%s13 + $0x6] sm:$0x1] %vm7465, %v7459
  %7473 = vst.msk [vmem:[%s13 + $0x7] sm:$0x1] %vm7465, %v7460
  %7474 = vst.msk [vmem:[%s13 + $0x8] sm:$0x1] %vm7465, %v7461
  %7475 = vst.msk [vmem:[%s13 + $0x9] sm:$0x1] %vm7465, %v7462
  %7476 = vst.msk [vmem:[%s13 + $0xa] sm:$0x1] %vm7465, %v7463
  %7477 = vst.msk [vmem:[%s13 + $0xb] sm:$0x1] %vm7465, %v7464
  // Predicated region
  $region54: #{vit_predictor_forward.2} parent=0 // pred_check
    _
  $region55: #{vit_predictor_forward.2} parent=0 // pred_check_branch
    %7479 = sbr.rel (0) target = $region57
  $region56: #{vit_predictor_forward.2} parent=0 // pred_region
    _
  $region57: #{vit_predictor_forward.2} parent=0 // pred_fallthru
    _
  // Predicated region
  $region58: #{vit_predictor_forward.2} parent=0 // pred_check
    _
  $region59: #{vit_predictor_forward.2} parent=0 // pred_check_branch
    %7481 = sbr.rel (0) target = $region61
  $region60: #{vit_predictor_forward.2} parent=0 // pred_region
    _
  $region61: #{vit_predictor_forward.2} parent=0 // pred_fallthru
    _

</llo_original>
